<compile_context>
chip_gen: v6e
topology: v6e:2x2x1
jax: 0.10.0
libtpu: 0.0.40
codegen_flags: <defaults>
</compile_context>

<pallas_src>
import functools

import jax
import jax.numpy as jnp
from jax import lax
from jax.experimental import pallas as pl
from jax.experimental.pallas import tpu as pltpu

# ----------------------------- configuration --------------------------------
FEATURE_SIZE = 16
HIDDEN_SIZE = 32
OUTPUT_SIZE = 5            # >= 2 -> CrossEntropyLoss branch
OUT_PAD = 8                # lane-padded class count used inside the kernel
NUM_LAYERS = 2             # kernel below is specialised to 2 LSTM layers
DROP_RATE = 0.1
INNER_LR_INIT = 0.1
FINETUNING_LR_INIT = 1e-3
PARAM_SIZE = HIDDEN_SIZE * OUTPUT_SIZE
PARAM_PAD = HIDDEN_SIZE * OUT_PAD
LN_EPS = 1e-5
_KEEP_PROB = 1.0 - DROP_RATE
_NEG_INF = -1e30

_VMEM = pl.BlockSpec(memory_space=pltpu.MemorySpace.VMEM)
_SMEM = pl.BlockSpec(memory_space=pltpu.MemorySpace.SMEM)


def _mean_keepdims(x):
    """Mean over all elements of a 2-D tensor, returned as a [1, 1] array."""
    s = jnp.sum(jnp.sum(x, axis=1, keepdims=True), axis=0, keepdims=True)
    return s * jnp.float32(1.0 / (x.shape[0] * x.shape[1]))


# ----------------------------- the single fused kernel -----------------------
def _meta_kernel(x_ref, mask_ref, wft_ref, bft_ref,
                 wih0_ref, whh0_ref, b0_ref,
                 wih1_ref, whh1_ref, b1_ref,
                 lng_ref, lnb_ref,
                 w1_ref, b1m_ref, w2_ref, b2m_ref,
                 wdec_ref, rmat_ref, sel_ref,
                 yhots_ref, yhotq_ref, qy_ref,
                 epsz_ref, epsd_ref,
                 ilr_ref, flr_ref,
                 qloss_ref, qacc_ref, kld_ref, zpen_ref,
                 *, seq_len, batch, n_inner, n_ft):
    h = HIDDEN_SIZE
    o_pad = OUT_PAD
    p_pad = PARAM_PAD
    nb = 2 * batch                    # support + query stacked along batch
    f32 = jnp.float32

    # ------------------------- encoder (support & query together) ------------
    feat = (jnp.dot(x_ref[...], wft_ref[...], preferred_element_type=f32)
            + bft_ref[...]) * mask_ref[...]                               # [S*2B, H]

    # layer-0 input path: one batched matmul, off the recurrence critical path
    xw0 = jnp.dot(feat, wih0_ref[...], preferred_element_type=f32) + b0_ref[...]
    whh0 = whh0_ref[...]
    wih1 = wih1_ref[...]
    whh1 = whh1_ref[...]
    b1 = b1_ref[...]

    def lstm_cell(gates, c_prev):
        # activate the whole [2B, 4H] tile once, then slice the gates
        sg = jax.nn.sigmoid(gates)
        tg = jnp.tanh(gates)
        c_new = sg[:, h:2 * h] * c_prev + sg[:, 0:h] * tg[:, 2 * h:3 * h]
        h_new = sg[:, 3 * h:4 * h] * jnp.tanh(c_new)
        return h_new, c_new

    h0 = jnp.zeros((nb, h), f32)
    c0 = jnp.zeros((nb, h), f32)
    h1 = jnp.zeros((nb, h), f32)
    c1 = jnp.zeros((nb, h), f32)
    outs = []
    # Wavefront: layer-1 step t only depends on layer-0 step t, so the two
    # dependent h@Whh chains interleave (critical path ~S+1 steps, not 2S).
    for t in range(seq_len):                              # static unroll (S == 8)
        g0 = xw0[t * nb:(t + 1) * nb, :] + jnp.dot(h0, whh0,
                                                   preferred_element_type=f32)
        h0, c0 = lstm_cell(g0, c0)
        g1 = (jnp.dot(h0, wih1, preferred_element_type=f32)
              + jnp.dot(h1, whh1, preferred_element_type=f32) + b1)
        h1, c1 = lstm_cell(g1, c1)
        outs.append(h1)
    h_last = outs[-1]                                     # == torch h[-1]

    # attention over time (fully unrolled, no reshapes / concats)
    att = [jnp.sum(o_t * h_last, axis=-1, keepdims=True) for o_t in outs]  # S x [2B,1]
    m = att[0]
    for a in att[1:]:
        m = jnp.maximum(m, a)
    exps = [jnp.exp(a - m) for a in att]
    denom = exps[0]
    for e in exps[1:]:
        denom = denom + e
    inv_denom = 1.0 / denom
    context = exps[0] * inv_denom * outs[0]
    for t in range(1, seq_len):
        context = context + exps[t] * inv_denom * outs[t]                 # [2B, H]

    # LayerNorm
    mu = jnp.mean(context, axis=-1, keepdims=True)
    var = jnp.mean((context - mu) ** 2, axis=-1, keepdims=True)
    encoded = (context - mu) * lax.rsqrt(var + LN_EPS) * lng_ref[...] + lnb_ref[...]

    senc = encoded[:batch, :]          # support rows
    qenc = encoded[batch:, :]          # query rows

    # mapping net + z sampling + KLD (support only: the torch reference computes
    # and then discards the query-side z / kld, so it is skipped here)
    mid = jnp.maximum(jnp.dot(senc, w1_ref[...], preferred_element_type=f32)
                      + b1m_ref[...], 0.0)
    hs = jnp.dot(mid, w2_ref[...], preferred_element_type=f32) + b2m_ref[...]
    mean_z = hs[:, :h]
    log_std_z = hs[:, h:2 * h]
    eps_z = epsz_ref[...]
    z0 = mean_z + jnp.exp(log_std_z) * eps_z
    # mean(log q(z) - log p(z)) = mean(0.5*z^2 - 0.5*eps^2 - log_std)
    kld_ref[...] = _mean_keepdims(0.5 * z0 * z0 - 0.5 * eps_z * eps_z - log_std_z)

    # ------------------ inner latent loop + finetuning + query head ----------
    wdec = wdec_ref[...]               # [H, 2*P_pad] = [mean cols | log-std cols]
    rmat = rmat_ref[...]               # [H, P_pad]   rmat[k, p] = (p // O_pad == k)
    sel = sel_ref[...]                 # [P_pad, O_pad] sel[p, o] = (p % O_pad == o)
    yhot_s = yhots_ref[...]            # [B, O_pad]  zero in padded columns
    ilr = ilr_ref[0, 0]                # SMEM scalars
    flr = flr_ref[0, 0]
    inv_b = f32(1.0 / batch)

    col = lax.broadcasted_iota(jnp.int32, (batch, o_pad), 1)
    pad_bias = jnp.where(col < OUTPUT_SIZE, 0.0, _NEG_INF)                # [B, O_pad]
    colf = col.astype(f32)

    # lane-expanded encodings: enc_rep[b, k*O_pad + o] = enc[b, k]
    senc_rep = jnp.dot(senc, rmat, preferred_element_type=f32)            # [B, P_pad]

    def dloss_dparams(params):
        # scores[b, o] = sum_k enc[b, k] * params[b, k*O_pad + o]  (== torch bmm)
        scores = lax.dot_general(senc_rep * params, sel, (((1,), (0,)), ((), ())),
                                 preferred_element_type=f32) + pad_bias
        mx = jnp.max(scores, axis=-1, keepdims=True)
        e = jnp.exp(scores - mx)
        soft = e / jnp.sum(e, axis=-1, keepdims=True)
        dscores = (soft - yhot_s) * inv_b                 # mean-reduction CE gradient
        ds_rep = lax.dot_general(dscores, sel, (((1,), (1,)), ((), ())),
                                 preferred_element_type=f32)              # [B, P_pad]
        return senc_rep * ds_rep

    def decode(z, eps):
        both = jnp.dot(z, wdec, preferred_element_type=f32)               # [B, 2*P_pad]
        std = jnp.exp(both[:, p_pad:])
        return both[:, :p_pad] + std * eps, std           # rsample (meta-train mode)

    # latent (z) descent: analytic grad of the support CE w.r.t. z
    z = z0
    for i in range(n_inner):                              # static unroll
        eps_i = epsd_ref[i]
        params, std = decode(z, eps_i)
        dp = dloss_dparams(params)
        lhs = jnp.concatenate([dp, dp * std * eps_i], axis=1)             # [B, 2*P_pad]
        dz = lax.dot_general(lhs, wdec, (((1,), (1,)), ((), ())),
                             preferred_element_type=f32)                  # [B, H]
        z = z - ilr * dz
    zpen_ref[...] = _mean_keepdims((z - z0) ** 2)

    # decode final parameters, then finetune them directly
    params, _ = decode(z, epsd_ref[n_inner])
    for _ in range(n_ft):                                 # static unroll
        params = params - flr * dloss_dparams(params)

    # query scores / CE loss / accuracy with the finetuned parameters
    qenc_rep = jnp.dot(qenc, rmat, preferred_element_type=f32)
    qs = lax.dot_general(qenc_rep * params, sel, (((1,), (0,)), ((), ())),
                         preferred_element_type=f32) + pad_bias           # [B, O_pad]
    yhot_q = yhotq_ref[...]
    mx = jnp.max(qs, axis=-1, keepdims=True)
    lse = mx + jnp.log(jnp.sum(jnp.exp(qs - mx), axis=-1, keepdims=True))
    picked = jnp.sum(qs * yhot_q, axis=-1, keepdims=True)
    qloss_ref[...] = _mean_keepdims(lse - picked)

    pred = jnp.min(jnp.where(qs >= mx, colf, f32(o_pad)),
                   axis=-1, keepdims=True)                # first argmax, as in torch
    correct = (pred == qy_ref[...]).astype(f32)
    qacc_ref[...] = _mean_keepdims(correct)
    # TODO(synk): rt_attn=True attention-map return path not emitted; forward() is
    # exercised with rt_attn=False so both attention outputs are None, as in torch.


# ----------------------------- parameters ------------------------------------
def init_params(key):
    h = HIDDEN_SIZE

    def unif(k, shape, bound):
        return jax.random.uniform(k, shape, jnp.float32, -bound, bound)

    keys = iter(jax.random.split(key, 32))
    p = {}
    ft_b = 1.0 / (FEATURE_SIZE ** 0.5)
    p["Wft_T"] = unif(next(keys), (FEATURE_SIZE, h), ft_b)
    p["bft"] = unif(next(keys), (1, h), ft_b)

    lstm_b = 1.0 / (h ** 0.5)
    lstm = []
    for _ in range(NUM_LAYERS):
        lstm.append({
            "wih_t": unif(next(keys), (h, 4 * h), lstm_b),
            "whh_t": unif(next(keys), (h, 4 * h), lstm_b),
            # fused bias = bias_ih + bias_hh
            "b": unif(next(keys), (1, 4 * h), lstm_b) + unif(next(keys), (1, 4 * h), lstm_b),
        })
    p["lstm"] = lstm

    p["ln_g"] = jnp.ones((1, h), jnp.float32)
    p["ln_b"] = jnp.zeros((1, h), jnp.float32)

    p["W1_T"] = unif(next(keys), (h, 2 * h), 1.0 / (h ** 0.5))
    p["b1"] = unif(next(keys), (1, 2 * h), 1.0 / (h ** 0.5))
    p["W2_T"] = unif(next(keys), (2 * h, 2 * h), 1.0 / ((2 * h) ** 0.5))
    p["b2"] = unif(next(keys), (1, 2 * h), 1.0 / ((2 * h) ** 0.5))

    p["Wdec_T"] = unif(next(keys), (h, 2 * PARAM_SIZE), 1.0 / (h ** 0.5))  # decoder, no bias
    p["inner_lr"] = jnp.full((1, 1), INNER_LR_INIT, jnp.float32)
    p["finetuning_lr"] = jnp.full((1, 1), FINETUNING_LR_INIT, jnp.float32)
    return p


def _pad_decoder(wdec_t):
    """[H, 2P] decoder -> O-padded [H, 2*P_pad] (zero columns for padded classes)."""
    h = HIDDEN_SIZE
    wm = wdec_t[:, :PARAM_SIZE].reshape(h, h, OUTPUT_SIZE)
    ws = wdec_t[:, PARAM_SIZE:].reshape(h, h, OUTPUT_SIZE)
    pad = ((0, 0), (0, 0), (0, OUT_PAD - OUTPUT_SIZE))
    wm_p = jnp.pad(wm, pad).reshape(h, PARAM_PAD)
    ws_p = jnp.pad(ws, pad).reshape(h, PARAM_PAD)
    return jnp.concatenate([wm_p, ws_p], axis=1)


# ----------------------------- MetaModel.forward ------------------------------
def meta_forward(params, data, rng, n_inner_step=5, n_finetuning_step=5):
    support_x, support_y = data["support"], data["support_labels"]
    query_x, query_y = data["query"], data["query_labels"]
    b, s, _ = support_x.shape
    nb = 2 * b

    k_drop, k_z, k_dec = jax.random.split(rng, 3)

    # stack {support, query} along batch, time-major layout [S*2B, F]
    x_all = jnp.concatenate([support_x, query_x], axis=0)                   # [2B, S, F]
    x_tm = x_all.transpose(1, 0, 2).reshape(s * nb, FEATURE_SIZE).astype(jnp.float32)

    # inverted-dropout mask (nn.Dropout train mode) drawn on the host side
    keep = jax.random.bernoulli(k_drop, _KEEP_PROB, (s * nb, HIDDEN_SIZE))
    drop_mask = keep.astype(jnp.float32) * jnp.float32(1.0 / _KEEP_PROB)

    eps_z = jax.random.normal(k_z, (b, HIDDEN_SIZE), jnp.float32)
    eps_dec = jax.random.normal(k_dec, (n_inner_step + 1, b, PARAM_PAD), jnp.float32)

    yhot_s = jax.nn.one_hot(support_y, OUT_PAD, dtype=jnp.float32)          # pad cols = 0
    yhot_q = jax.nn.one_hot(query_y, OUT_PAD, dtype=jnp.float32)
    qy = query_y.astype(jnp.float32).reshape(b, 1)

    # O-padded decoder / constant selection matrices (constant-folded under jit)
    wdec_pad = _pad_decoder(params["Wdec_T"])
    p_ids = jnp.arange(PARAM_PAD, dtype=jnp.int32)
    sel = (p_ids[:, None] % OUT_PAD
           == jnp.arange(OUT_PAD, dtype=jnp.int32)[None, :]).astype(jnp.float32)
    rmat = (p_ids[None, :] // OUT_PAD
            == jnp.arange(HIDDEN_SIZE, dtype=jnp.int32)[:, None]).astype(jnp.float32)

    kernel = functools.partial(_meta_kernel, seq_len=s, batch=b,
                               n_inner=n_inner_step, n_ft=n_finetuning_step)
    scalar = jax.ShapeDtypeStruct((1, 1), jnp.float32)
    qloss, qacc, kld, zpen = pl.pallas_call(
        kernel,
        out_shape=(scalar, scalar, scalar, scalar),
        in_specs=[_VMEM] * 24 + [_SMEM, _SMEM],
        out_specs=(_VMEM, _VMEM, _VMEM, _VMEM),
    )(x_tm, drop_mask, params["Wft_T"], params["bft"],
      params["lstm"][0]["wih_t"], params["lstm"][0]["whh_t"], params["lstm"][0]["b"],
      params["lstm"][1]["wih_t"], params["lstm"][1]["whh_t"], params["lstm"][1]["b"],
      params["ln_g"], params["ln_b"],
      params["W1_T"], params["b1"], params["W2_T"], params["b2"],
      wdec_pad, rmat, sel, yhot_s, yhot_q, qy, eps_z, eps_dec,
      params["inner_lr"], params["finetuning_lr"])

    # rt_attn=False path: both attention maps are None, as in the torch module.
    return qloss[0, 0], qacc[0, 0], kld[0, 0], zpen[0, 0], None, None


# ----------------------------- driver ----------------------------------------
if __name__ == "__main__":
    key = jax.random.PRNGKey(0)
    k_param, k_sx, k_sy, k_qx, k_qy, k_run = jax.random.split(key, 6)
    params = init_params(k_param)

    B, S = 8, 8
    data = {
        "support": jax.random.normal(k_sx, (B, S, FEATURE_SIZE), jnp.float32),
        "support_labels": jax.random.randint(k_sy, (B,), 0, OUTPUT_SIZE),
        "query": jax.random.normal(k_qx, (B, S, FEATURE_SIZE), jnp.float32),
        "query_labels": jax.random.randint(k_qy, (B,), 0, OUTPUT_SIZE),
    }

    fwd = jax.jit(functools.partial(meta_forward, n_inner_step=5, n_finetuning_step=5))
    out = fwd(params, data, k_run)
    jax.block_until_ready(out)

    q_loss, q_acc, kld, zpen, s_attn, q_attn = out
    assert jnp.isfinite(q_loss) and jnp.isfinite(q_acc)
    assert jnp.isfinite(kld) and jnp.isfinite(zpen)
    assert s_attn is None and q_attn is None
    print("KERNEL_OK")
</pallas_src>

<mosaic_0001>
module attributes {stable_mosaic.version = 11 : i64} {
  func.func @_meta_kernel(%arg0: memref<128x16xf32, #tpu.memory_space<vmem>>, %arg1: memref<128x32xf32, #tpu.memory_space<vmem>>, %arg2: memref<16x32xf32, #tpu.memory_space<vmem>>, %arg3: memref<1x32xf32, #tpu.memory_space<vmem>>, %arg4: memref<32x128xf32, #tpu.memory_space<vmem>>, %arg5: memref<32x128xf32, #tpu.memory_space<vmem>>, %arg6: memref<1x128xf32, #tpu.memory_space<vmem>>, %arg7: memref<32x128xf32, #tpu.memory_space<vmem>>, %arg8: memref<32x128xf32, #tpu.memory_space<vmem>>, %arg9: memref<1x128xf32, #tpu.memory_space<vmem>>, %arg10: memref<1x32xf32, #tpu.memory_space<vmem>>, %arg11: memref<1x32xf32, #tpu.memory_space<vmem>>, %arg12: memref<32x64xf32, #tpu.memory_space<vmem>>, %arg13: memref<1x64xf32, #tpu.memory_space<vmem>>, %arg14: memref<64x64xf32, #tpu.memory_space<vmem>>, %arg15: memref<1x64xf32, #tpu.memory_space<vmem>>, %arg16: memref<32x512xf32, #tpu.memory_space<vmem>>, %arg17: memref<32x256xf32, #tpu.memory_space<vmem>>, %arg18: memref<256x8xf32, #tpu.memory_space<vmem>>, %arg19: memref<8x8xf32, #tpu.memory_space<vmem>>, %arg20: memref<8x8xf32, #tpu.memory_space<vmem>>, %arg21: memref<8x1xf32, #tpu.memory_space<vmem>>, %arg22: memref<8x32xf32, #tpu.memory_space<vmem>>, %arg23: memref<6x8x256xf32, #tpu.memory_space<vmem>>, %arg24: memref<1x1xf32, #tpu.memory_space<smem>>, %arg25: memref<1x1xf32, #tpu.memory_space<smem>>, %arg26: memref<1x1xf32, #tpu.memory_space<vmem>>, %arg27: memref<1x1xf32, #tpu.memory_space<vmem>>, %arg28: memref<1x1xf32, #tpu.memory_space<vmem>>, %arg29: memref<1x1xf32, #tpu.memory_space<vmem>>) attributes {dimension_semantics = [], scalar_prefetch = 0 : i64, scratch_operands = 0 : i64, tpu.core_type = #tpu.core_type<tc>} {
    %c0 = arith.constant 0 : index
    %c0_0 = arith.constant 0 : index
    %0 = vector.load %arg0[%c0, %c0_0] : memref<128x16xf32, #tpu.memory_space<vmem>>, vector<128x16xf32>
    %c0_1 = arith.constant 0 : index
    %c0_2 = arith.constant 0 : index
    %1 = vector.load %arg2[%c0_1, %c0_2] : memref<16x32xf32, #tpu.memory_space<vmem>>, vector<16x32xf32>
    %cst = arith.constant dense<0.000000e+00> : vector<128x32xf32>
    %2 = tpu.matmul %0, %1, %cst {dimension_numbers = #tpu.dot_dimension_numbers<[1], [0], [0], [1], [0, 0, 1, 1], [], []>} : vector<128x16xf32>, vector<16x32xf32>, vector<128x32xf32> -> vector<128x32xf32>
    %c0_3 = arith.constant 0 : index
    %c0_4 = arith.constant 0 : index
    %3 = vector.load %arg3[%c0_3, %c0_4] : memref<1x32xf32, #tpu.memory_space<vmem>>, vector<1x32xf32>
    %4 = vector.broadcast %3 : vector<1x32xf32> to vector<128x32xf32>
    %5 = arith.addf %2, %4 : vector<128x32xf32>
    %c0_5 = arith.constant 0 : index
    %c0_6 = arith.constant 0 : index
    %6 = vector.load %arg1[%c0_5, %c0_6] : memref<128x32xf32, #tpu.memory_space<vmem>>, vector<128x32xf32>
    %7 = arith.mulf %5, %6 : vector<128x32xf32>
    %c0_7 = arith.constant 0 : index
    %c0_8 = arith.constant 0 : index
    %8 = vector.load %arg4[%c0_7, %c0_8] : memref<32x128xf32, #tpu.memory_space<vmem>>, vector<32x128xf32>
    %cst_9 = arith.constant dense<0.000000e+00> : vector<128x128xf32>
    %9 = tpu.matmul %7, %8, %cst_9 {dimension_numbers = #tpu.dot_dimension_numbers<[1], [0], [0], [1], [0, 0, 1, 1], [], []>} : vector<128x32xf32>, vector<32x128xf32>, vector<128x128xf32> -> vector<128x128xf32>
    %c0_10 = arith.constant 0 : index
    %c0_11 = arith.constant 0 : index
    %10 = vector.load %arg6[%c0_10, %c0_11] : memref<1x128xf32, #tpu.memory_space<vmem>>, vector<1x128xf32>
    %11 = vector.broadcast %10 : vector<1x128xf32> to vector<128x128xf32>
    %12 = arith.addf %9, %11 : vector<128x128xf32>
    %c0_12 = arith.constant 0 : index
    %c0_13 = arith.constant 0 : index
    %13 = vector.load %arg5[%c0_12, %c0_13] : memref<32x128xf32, #tpu.memory_space<vmem>>, vector<32x128xf32>
    %c0_14 = arith.constant 0 : index
    %c0_15 = arith.constant 0 : index
    %14 = vector.load %arg7[%c0_14, %c0_15] : memref<32x128xf32, #tpu.memory_space<vmem>>, vector<32x128xf32>
    %c0_16 = arith.constant 0 : index
    %c0_17 = arith.constant 0 : index
    %15 = vector.load %arg8[%c0_16, %c0_17] : memref<32x128xf32, #tpu.memory_space<vmem>>, vector<32x128xf32>
    %c0_18 = arith.constant 0 : index
    %c0_19 = arith.constant 0 : index
    %16 = vector.load %arg9[%c0_18, %c0_19] : memref<1x128xf32, #tpu.memory_space<vmem>>, vector<1x128xf32>
    %cst_20 = arith.constant 0.000000e+00 : f32
    %17 = vector.broadcast %cst_20 : f32 to vector<16x32xf32>
    %cst_21 = arith.constant 0.000000e+00 : f32
    %18 = vector.broadcast %cst_21 : f32 to vector<16x32xf32>
    %cst_22 = arith.constant 0.000000e+00 : f32
    %19 = vector.broadcast %cst_22 : f32 to vector<16x32xf32>
    %cst_23 = arith.constant 0.000000e+00 : f32
    %20 = vector.broadcast %cst_23 : f32 to vector<16x32xf32>
    %21 = vector.extract_strided_slice %12 {offsets = [0, 0], sizes = [16, 128], strides = [1, 1]} : vector<128x128xf32> to vector<16x128xf32>
    %cst_24 = arith.constant dense<0.000000e+00> : vector<16x128xf32>
    %22 = tpu.matmul %17, %13, %cst_24 {dimension_numbers = #tpu.dot_dimension_numbers<[1], [0], [0], [1], [0, 0, 1, 1], [], []>} : vector<16x32xf32>, vector<32x128xf32>, vector<16x128xf32> -> vector<16x128xf32>
    %23 = arith.addf %21, %22 : vector<16x128xf32>
    %24 = arith.negf %23 : vector<16x128xf32>
    %25 = math.exp %24 : vector<16x128xf32>
    %cst_25 = arith.constant 1.000000e+00 : f32
    %26 = vector.broadcast %cst_25 : f32 to vector<16x128xf32>
    %27 = arith.addf %26, %25 : vector<16x128xf32>
    %28 = arith.divf %26, %27 : vector<16x128xf32>
    %29 = math.tanh %23 : vector<16x128xf32>
    %30 = vector.extract_strided_slice %28 {offsets = [0, 32], sizes = [16, 32], strides = [1, 1]} : vector<16x128xf32> to vector<16x32xf32>
    %31 = arith.mulf %30, %18 : vector<16x32xf32>
    %32 = vector.extract_strided_slice %28 {offsets = [0, 0], sizes = [16, 32], strides = [1, 1]} : vector<16x128xf32> to vector<16x32xf32>
    %33 = vector.extract_strided_slice %29 {offsets = [0, 64], sizes = [16, 32], strides = [1, 1]} : vector<16x128xf32> to vector<16x32xf32>
    %34 = arith.mulf %32, %33 : vector<16x32xf32>
    %35 = arith.addf %31, %34 : vector<16x32xf32>
    %36 = vector.extract_strided_slice %28 {offsets = [0, 96], sizes = [16, 32], strides = [1, 1]} : vector<16x128xf32> to vector<16x32xf32>
    %37 = math.tanh %35 : vector<16x32xf32>
    %38 = arith.mulf %36, %37 : vector<16x32xf32>
    %cst_26 = arith.constant dense<0.000000e+00> : vector<16x128xf32>
    %39 = tpu.matmul %38, %14, %cst_26 {dimension_numbers = #tpu.dot_dimension_numbers<[1], [0], [0], [1], [0, 0, 1, 1], [], []>} : vector<16x32xf32>, vector<32x128xf32>, vector<16x128xf32> -> vector<16x128xf32>
    %cst_27 = arith.constant dense<0.000000e+00> : vector<16x128xf32>
    %40 = tpu.matmul %19, %15, %cst_27 {dimension_numbers = #tpu.dot_dimension_numbers<[1], [0], [0], [1], [0, 0, 1, 1], [], []>} : vector<16x32xf32>, vector<32x128xf32>, vector<16x128xf32> -> vector<16x128xf32>
    %41 = arith.addf %39, %40 : vector<16x128xf32>
    %42 = vector.broadcast %16 : vector<1x128xf32> to vector<16x128xf32>
    %43 = arith.addf %41, %42 : vector<16x128xf32>
    %44 = arith.negf %43 : vector<16x128xf32>
    %45 = math.exp %44 : vector<16x128xf32>
    %cst_28 = arith.constant 1.000000e+00 : f32
    %46 = vector.broadcast %cst_28 : f32 to vector<16x128xf32>
    %47 = arith.addf %46, %45 : vector<16x128xf32>
    %48 = arith.divf %46, %47 : vector<16x128xf32>
    %49 = math.tanh %43 : vector<16x128xf32>
    %50 = vector.extract_strided_slice %48 {offsets = [0, 32], sizes = [16, 32], strides = [1, 1]} : vector<16x128xf32> to vector<16x32xf32>
    %51 = arith.mulf %50, %20 : vector<16x32xf32>
    %52 = vector.extract_strided_slice %48 {offsets = [0, 0], sizes = [16, 32], strides = [1, 1]} : vector<16x128xf32> to vector<16x32xf32>
    %53 = vector.extract_strided_slice %49 {offsets = [0, 64], sizes = [16, 32], strides = [1, 1]} : vector<16x128xf32> to vector<16x32xf32>
    %54 = arith.mulf %52, %53 : vector<16x32xf32>
    %55 = arith.addf %51, %54 : vector<16x32xf32>
    %56 = vector.extract_strided_slice %48 {offsets = [0, 96], sizes = [16, 32], strides = [1, 1]} : vector<16x128xf32> to vector<16x32xf32>
    %57 = math.tanh %55 : vector<16x32xf32>
    %58 = arith.mulf %56, %57 : vector<16x32xf32>
    %59 = vector.extract_strided_slice %12 {offsets = [16, 0], sizes = [16, 128], strides = [1, 1]} : vector<128x128xf32> to vector<16x128xf32>
    %cst_29 = arith.constant dense<0.000000e+00> : vector<16x128xf32>
    %60 = tpu.matmul %38, %13, %cst_29 {dimension_numbers = #tpu.dot_dimension_numbers<[1], [0], [0], [1], [0, 0, 1, 1], [], []>} : vector<16x32xf32>, vector<32x128xf32>, vector<16x128xf32> -> vector<16x128xf32>
    %61 = arith.addf %59, %60 : vector<16x128xf32>
    %62 = arith.negf %61 : vector<16x128xf32>
    %63 = math.exp %62 : vector<16x128xf32>
    %cst_30 = arith.constant 1.000000e+00 : f32
    %64 = vector.broadcast %cst_30 : f32 to vector<16x128xf32>
    %65 = arith.addf %64, %63 : vector<16x128xf32>
    %66 = arith.divf %64, %65 : vector<16x128xf32>
    %67 = math.tanh %61 : vector<16x128xf32>
    %68 = vector.extract_strided_slice %66 {offsets = [0, 32], sizes = [16, 32], strides = [1, 1]} : vector<16x128xf32> to vector<16x32xf32>
    %69 = arith.mulf %68, %35 : vector<16x32xf32>
    %70 = vector.extract_strided_slice %66 {offsets = [0, 0], sizes = [16, 32], strides = [1, 1]} : vector<16x128xf32> to vector<16x32xf32>
    %71 = vector.extract_strided_slice %67 {offsets = [0, 64], sizes = [16, 32], strides = [1, 1]} : vector<16x128xf32> to vector<16x32xf32>
    %72 = arith.mulf %70, %71 : vector<16x32xf32>
    %73 = arith.addf %69, %72 : vector<16x32xf32>
    %74 = vector.extract_strided_slice %66 {offsets = [0, 96], sizes = [16, 32], strides = [1, 1]} : vector<16x128xf32> to vector<16x32xf32>
    %75 = math.tanh %73 : vector<16x32xf32>
    %76 = arith.mulf %74, %75 : vector<16x32xf32>
    %cst_31 = arith.constant dense<0.000000e+00> : vector<16x128xf32>
    %77 = tpu.matmul %76, %14, %cst_31 {dimension_numbers = #tpu.dot_dimension_numbers<[1], [0], [0], [1], [0, 0, 1, 1], [], []>} : vector<16x32xf32>, vector<32x128xf32>, vector<16x128xf32> -> vector<16x128xf32>
    %cst_32 = arith.constant dense<0.000000e+00> : vector<16x128xf32>
    %78 = tpu.matmul %58, %15, %cst_32 {dimension_numbers = #tpu.dot_dimension_numbers<[1], [0], [0], [1], [0, 0, 1, 1], [], []>} : vector<16x32xf32>, vector<32x128xf32>, vector<16x128xf32> -> vector<16x128xf32>
    %79 = arith.addf %77, %78 : vector<16x128xf32>
    %80 = vector.broadcast %16 : vector<1x128xf32> to vector<16x128xf32>
    %81 = arith.addf %79, %80 : vector<16x128xf32>
    %82 = arith.negf %81 : vector<16x128xf32>
    %83 = math.exp %82 : vector<16x128xf32>
    %cst_33 = arith.constant 1.000000e+00 : f32
    %84 = vector.broadcast %cst_33 : f32 to vector<16x128xf32>
    %85 = arith.addf %84, %83 : vector<16x128xf32>
    %86 = arith.divf %84, %85 : vector<16x128xf32>
    %87 = math.tanh %81 : vector<16x128xf32>
    %88 = vector.extract_strided_slice %86 {offsets = [0, 32], sizes = [16, 32], strides = [1, 1]} : vector<16x128xf32> to vector<16x32xf32>
    %89 = arith.mulf %88, %55 : vector<16x32xf32>
    %90 = vector.extract_strided_slice %86 {offsets = [0, 0], sizes = [16, 32], strides = [1, 1]} : vector<16x128xf32> to vector<16x32xf32>
    %91 = vector.extract_strided_slice %87 {offsets = [0, 64], sizes = [16, 32], strides = [1, 1]} : vector<16x128xf32> to vector<16x32xf32>
    %92 = arith.mulf %90, %91 : vector<16x32xf32>
    %93 = arith.addf %89, %92 : vector<16x32xf32>
    %94 = vector.extract_strided_slice %86 {offsets = [0, 96], sizes = [16, 32], strides = [1, 1]} : vector<16x128xf32> to vector<16x32xf32>
    %95 = math.tanh %93 : vector<16x32xf32>
    %96 = arith.mulf %94, %95 : vector<16x32xf32>
    %97 = vector.extract_strided_slice %12 {offsets = [32, 0], sizes = [16, 128], strides = [1, 1]} : vector<128x128xf32> to vector<16x128xf32>
    %cst_34 = arith.constant dense<0.000000e+00> : vector<16x128xf32>
    %98 = tpu.matmul %76, %13, %cst_34 {dimension_numbers = #tpu.dot_dimension_numbers<[1], [0], [0], [1], [0, 0, 1, 1], [], []>} : vector<16x32xf32>, vector<32x128xf32>, vector<16x128xf32> -> vector<16x128xf32>
    %99 = arith.addf %97, %98 : vector<16x128xf32>
    %100 = arith.negf %99 : vector<16x128xf32>
    %101 = math.exp %100 : vector<16x128xf32>
    %cst_35 = arith.constant 1.000000e+00 : f32
    %102 = vector.broadcast %cst_35 : f32 to vector<16x128xf32>
    %103 = arith.addf %102, %101 : vector<16x128xf32>
    %104 = arith.divf %102, %103 : vector<16x128xf32>
    %105 = math.tanh %99 : vector<16x128xf32>
    %106 = vector.extract_strided_slice %104 {offsets = [0, 32], sizes = [16, 32], strides = [1, 1]} : vector<16x128xf32> to vector<16x32xf32>
    %107 = arith.mulf %106, %73 : vector<16x32xf32>
    %108 = vector.extract_strided_slice %104 {offsets = [0, 0], sizes = [16, 32], strides = [1, 1]} : vector<16x128xf32> to vector<16x32xf32>
    %109 = vector.extract_strided_slice %105 {offsets = [0, 64], sizes = [16, 32], strides = [1, 1]} : vector<16x128xf32> to vector<16x32xf32>
    %110 = arith.mulf %108, %109 : vector<16x32xf32>
    %111 = arith.addf %107, %110 : vector<16x32xf32>
    %112 = vector.extract_strided_slice %104 {offsets = [0, 96], sizes = [16, 32], strides = [1, 1]} : vector<16x128xf32> to vector<16x32xf32>
    %113 = math.tanh %111 : vector<16x32xf32>
    %114 = arith.mulf %112, %113 : vector<16x32xf32>
    %cst_36 = arith.constant dense<0.000000e+00> : vector<16x128xf32>
    %115 = tpu.matmul %114, %14, %cst_36 {dimension_numbers = #tpu.dot_dimension_numbers<[1], [0], [0], [1], [0, 0, 1, 1], [], []>} : vector<16x32xf32>, vector<32x128xf32>, vector<16x128xf32> -> vector<16x128xf32>
    %cst_37 = arith.constant dense<0.000000e+00> : vector<16x128xf32>
    %116 = tpu.matmul %96, %15, %cst_37 {dimension_numbers = #tpu.dot_dimension_numbers<[1], [0], [0], [1], [0, 0, 1, 1], [], []>} : vector<16x32xf32>, vector<32x128xf32>, vector<16x128xf32> -> vector<16x128xf32>
    %117 = arith.addf %115, %116 : vector<16x128xf32>
    %118 = vector.broadcast %16 : vector<1x128xf32> to vector<16x128xf32>
    %119 = arith.addf %117, %118 : vector<16x128xf32>
    %120 = arith.negf %119 : vector<16x128xf32>
    %121 = math.exp %120 : vector<16x128xf32>
    %cst_38 = arith.constant 1.000000e+00 : f32
    %122 = vector.broadcast %cst_38 : f32 to vector<16x128xf32>
    %123 = arith.addf %122, %121 : vector<16x128xf32>
    %124 = arith.divf %122, %123 : vector<16x128xf32>
    %125 = math.tanh %119 : vector<16x128xf32>
    %126 = vector.extract_strided_slice %124 {offsets = [0, 32], sizes = [16, 32], strides = [1, 1]} : vector<16x128xf32> to vector<16x32xf32>
    %127 = arith.mulf %126, %93 : vector<16x32xf32>
    %128 = vector.extract_strided_slice %124 {offsets = [0, 0], sizes = [16, 32], strides = [1, 1]} : vector<16x128xf32> to vector<16x32xf32>
    %129 = vector.extract_strided_slice %125 {offsets = [0, 64], sizes = [16, 32], strides = [1, 1]} : vector<16x128xf32> to vector<16x32xf32>
    %130 = arith.mulf %128, %129 : vector<16x32xf32>
    %131 = arith.addf %127, %130 : vector<16x32xf32>
    %132 = vector.extract_strided_slice %124 {offsets = [0, 96], sizes = [16, 32], strides = [1, 1]} : vector<16x128xf32> to vector<16x32xf32>
    %133 = math.tanh %131 : vector<16x32xf32>
    %134 = arith.mulf %132, %133 : vector<16x32xf32>
    %135 = vector.extract_strided_slice %12 {offsets = [48, 0], sizes = [16, 128], strides = [1, 1]} : vector<128x128xf32> to vector<16x128xf32>
    %cst_39 = arith.constant dense<0.000000e+00> : vector<16x128xf32>
    %136 = tpu.matmul %114, %13, %cst_39 {dimension_numbers = #tpu.dot_dimension_numbers<[1], [0], [0], [1], [0, 0, 1, 1], [], []>} : vector<16x32xf32>, vector<32x128xf32>, vector<16x128xf32> -> vector<16x128xf32>
    %137 = arith.addf %135, %136 : vector<16x128xf32>
    %138 = arith.negf %137 : vector<16x128xf32>
    %139 = math.exp %138 : vector<16x128xf32>
    %cst_40 = arith.constant 1.000000e+00 : f32
    %140 = vector.broadcast %cst_40 : f32 to vector<16x128xf32>
    %141 = arith.addf %140, %139 : vector<16x128xf32>
    %142 = arith.divf %140, %141 : vector<16x128xf32>
    %143 = math.tanh %137 : vector<16x128xf32>
    %144 = vector.extract_strided_slice %142 {offsets = [0, 32], sizes = [16, 32], strides = [1, 1]} : vector<16x128xf32> to vector<16x32xf32>
    %145 = arith.mulf %144, %111 : vector<16x32xf32>
    %146 = vector.extract_strided_slice %142 {offsets = [0, 0], sizes = [16, 32], strides = [1, 1]} : vector<16x128xf32> to vector<16x32xf32>
    %147 = vector.extract_strided_slice %143 {offsets = [0, 64], sizes = [16, 32], strides = [1, 1]} : vector<16x128xf32> to vector<16x32xf32>
    %148 = arith.mulf %146, %147 : vector<16x32xf32>
    %149 = arith.addf %145, %148 : vector<16x32xf32>
    %150 = vector.extract_strided_slice %142 {offsets = [0, 96], sizes = [16, 32], strides = [1, 1]} : vector<16x128xf32> to vector<16x32xf32>
    %151 = math.tanh %149 : vector<16x32xf32>
    %152 = arith.mulf %150, %151 : vector<16x32xf32>
    %cst_41 = arith.constant dense<0.000000e+00> : vector<16x128xf32>
    %153 = tpu.matmul %152, %14, %cst_41 {dimension_numbers = #tpu.dot_dimension_numbers<[1], [0], [0], [1], [0, 0, 1, 1], [], []>} : vector<16x32xf32>, vector<32x128xf32>, vector<16x128xf32> -> vector<16x128xf32>
    %cst_42 = arith.constant dense<0.000000e+00> : vector<16x128xf32>
    %154 = tpu.matmul %134, %15, %cst_42 {dimension_numbers = #tpu.dot_dimension_numbers<[1], [0], [0], [1], [0, 0, 1, 1], [], []>} : vector<16x32xf32>, vector<32x128xf32>, vector<16x128xf32> -> vector<16x128xf32>
    %155 = arith.addf %153, %154 : vector<16x128xf32>
    %156 = vector.broadcast %16 : vector<1x128xf32> to vector<16x128xf32>
    %157 = arith.addf %155, %156 : vector<16x128xf32>
    %158 = arith.negf %157 : vector<16x128xf32>
    %159 = math.exp %158 : vector<16x128xf32>
    %cst_43 = arith.constant 1.000000e+00 : f32
    %160 = vector.broadcast %cst_43 : f32 to vector<16x128xf32>
    %161 = arith.addf %160, %159 : vector<16x128xf32>
    %162 = arith.divf %160, %161 : vector<16x128xf32>
    %163 = math.tanh %157 : vector<16x128xf32>
    %164 = vector.extract_strided_slice %162 {offsets = [0, 32], sizes = [16, 32], strides = [1, 1]} : vector<16x128xf32> to vector<16x32xf32>
    %165 = arith.mulf %164, %131 : vector<16x32xf32>
    %166 = vector.extract_strided_slice %162 {offsets = [0, 0], sizes = [16, 32], strides = [1, 1]} : vector<16x128xf32> to vector<16x32xf32>
    %167 = vector.extract_strided_slice %163 {offsets = [0, 64], sizes = [16, 32], strides = [1, 1]} : vector<16x128xf32> to vector<16x32xf32>
    %168 = arith.mulf %166, %167 : vector<16x32xf32>
    %169 = arith.addf %165, %168 : vector<16x32xf32>
    %170 = vector.extract_strided_slice %162 {offsets = [0, 96], sizes = [16, 32], strides = [1, 1]} : vector<16x128xf32> to vector<16x32xf32>
    %171 = math.tanh %169 : vector<16x32xf32>
    %172 = arith.mulf %170, %171 : vector<16x32xf32>
    %173 = vector.extract_strided_slice %12 {offsets = [64, 0], sizes = [16, 128], strides = [1, 1]} : vector<128x128xf32> to vector<16x128xf32>
    %cst_44 = arith.constant dense<0.000000e+00> : vector<16x128xf32>
    %174 = tpu.matmul %152, %13, %cst_44 {dimension_numbers = #tpu.dot_dimension_numbers<[1], [0], [0], [1], [0, 0, 1, 1], [], []>} : vector<16x32xf32>, vector<32x128xf32>, vector<16x128xf32> -> vector<16x128xf32>
    %175 = arith.addf %173, %174 : vector<16x128xf32>
    %176 = arith.negf %175 : vector<16x128xf32>
    %177 = math.exp %176 : vector<16x128xf32>
    %cst_45 = arith.constant 1.000000e+00 : f32
    %178 = vector.broadcast %cst_45 : f32 to vector<16x128xf32>
    %179 = arith.addf %178, %177 : vector<16x128xf32>
    %180 = arith.divf %178, %179 : vector<16x128xf32>
    %181 = math.tanh %175 : vector<16x128xf32>
    %182 = vector.extract_strided_slice %180 {offsets = [0, 32], sizes = [16, 32], strides = [1, 1]} : vector<16x128xf32> to vector<16x32xf32>
    %183 = arith.mulf %182, %149 : vector<16x32xf32>
    %184 = vector.extract_strided_slice %180 {offsets = [0, 0], sizes = [16, 32], strides = [1, 1]} : vector<16x128xf32> to vector<16x32xf32>
    %185 = vector.extract_strided_slice %181 {offsets = [0, 64], sizes = [16, 32], strides = [1, 1]} : vector<16x128xf32> to vector<16x32xf32>
    %186 = arith.mulf %184, %185 : vector<16x32xf32>
    %187 = arith.addf %183, %186 : vector<16x32xf32>
    %188 = vector.extract_strided_slice %180 {offsets = [0, 96], sizes = [16, 32], strides = [1, 1]} : vector<16x128xf32> to vector<16x32xf32>
    %189 = math.tanh %187 : vector<16x32xf32>
    %190 = arith.mulf %188, %189 : vector<16x32xf32>
    %cst_46 = arith.constant dense<0.000000e+00> : vector<16x128xf32>
    %191 = tpu.matmul %190, %14, %cst_46 {dimension_numbers = #tpu.dot_dimension_numbers<[1], [0], [0], [1], [0, 0, 1, 1], [], []>} : vector<16x32xf32>, vector<32x128xf32>, vector<16x128xf32> -> vector<16x128xf32>
    %cst_47 = arith.constant dense<0.000000e+00> : vector<16x128xf32>
    %192 = tpu.matmul %172, %15, %cst_47 {dimension_numbers = #tpu.dot_dimension_numbers<[1], [0], [0], [1], [0, 0, 1, 1], [], []>} : vector<16x32xf32>, vector<32x128xf32>, vector<16x128xf32> -> vector<16x128xf32>
    %193 = arith.addf %191, %192 : vector<16x128xf32>
    %194 = vector.broadcast %16 : vector<1x128xf32> to vector<16x128xf32>
    %195 = arith.addf %193, %194 : vector<16x128xf32>
    %196 = arith.negf %195 : vector<16x128xf32>
    %197 = math.exp %196 : vector<16x128xf32>
    %cst_48 = arith.constant 1.000000e+00 : f32
    %198 = vector.broadcast %cst_48 : f32 to vector<16x128xf32>
    %199 = arith.addf %198, %197 : vector<16x128xf32>
    %200 = arith.divf %198, %199 : vector<16x128xf32>
    %201 = math.tanh %195 : vector<16x128xf32>
    %202 = vector.extract_strided_slice %200 {offsets = [0, 32], sizes = [16, 32], strides = [1, 1]} : vector<16x128xf32> to vector<16x32xf32>
    %203 = arith.mulf %202, %169 : vector<16x32xf32>
    %204 = vector.extract_strided_slice %200 {offsets = [0, 0], sizes = [16, 32], strides = [1, 1]} : vector<16x128xf32> to vector<16x32xf32>
    %205 = vector.extract_strided_slice %201 {offsets = [0, 64], sizes = [16, 32], strides = [1, 1]} : vector<16x128xf32> to vector<16x32xf32>
    %206 = arith.mulf %204, %205 : vector<16x32xf32>
    %207 = arith.addf %203, %206 : vector<16x32xf32>
    %208 = vector.extract_strided_slice %200 {offsets = [0, 96], sizes = [16, 32], strides = [1, 1]} : vector<16x128xf32> to vector<16x32xf32>
    %209 = math.tanh %207 : vector<16x32xf32>
    %210 = arith.mulf %208, %209 : vector<16x32xf32>
    %211 = vector.extract_strided_slice %12 {offsets = [80, 0], sizes = [16, 128], strides = [1, 1]} : vector<128x128xf32> to vector<16x128xf32>
    %cst_49 = arith.constant dense<0.000000e+00> : vector<16x128xf32>
    %212 = tpu.matmul %190, %13, %cst_49 {dimension_numbers = #tpu.dot_dimension_numbers<[1], [0], [0], [1], [0, 0, 1, 1], [], []>} : vector<16x32xf32>, vector<32x128xf32>, vector<16x128xf32> -> vector<16x128xf32>
    %213 = arith.addf %211, %212 : vector<16x128xf32>
    %214 = arith.negf %213 : vector<16x128xf32>
    %215 = math.exp %214 : vector<16x128xf32>
    %cst_50 = arith.constant 1.000000e+00 : f32
    %216 = vector.broadcast %cst_50 : f32 to vector<16x128xf32>
    %217 = arith.addf %216, %215 : vector<16x128xf32>
    %218 = arith.divf %216, %217 : vector<16x128xf32>
    %219 = math.tanh %213 : vector<16x128xf32>
    %220 = vector.extract_strided_slice %218 {offsets = [0, 32], sizes = [16, 32], strides = [1, 1]} : vector<16x128xf32> to vector<16x32xf32>
    %221 = arith.mulf %220, %187 : vector<16x32xf32>
    %222 = vector.extract_strided_slice %218 {offsets = [0, 0], sizes = [16, 32], strides = [1, 1]} : vector<16x128xf32> to vector<16x32xf32>
    %223 = vector.extract_strided_slice %219 {offsets = [0, 64], sizes = [16, 32], strides = [1, 1]} : vector<16x128xf32> to vector<16x32xf32>
    %224 = arith.mulf %222, %223 : vector<16x32xf32>
    %225 = arith.addf %221, %224 : vector<16x32xf32>
    %226 = vector.extract_strided_slice %218 {offsets = [0, 96], sizes = [16, 32], strides = [1, 1]} : vector<16x128xf32> to vector<16x32xf32>
    %227 = math.tanh %225 : vector<16x32xf32>
    %228 = arith.mulf %226, %227 : vector<16x32xf32>
    %cst_51 = arith.constant dense<0.000000e+00> : vector<16x128xf32>
    %229 = tpu.matmul %228, %14, %cst_51 {dimension_numbers = #tpu.dot_dimension_numbers<[1], [0], [0], [1], [0, 0, 1, 1], [], []>} : vector<16x32xf32>, vector<32x128xf32>, vector<16x128xf32> -> vector<16x128xf32>
    %cst_52 = arith.constant dense<0.000000e+00> : vector<16x128xf32>
    %230 = tpu.matmul %210, %15, %cst_52 {dimension_numbers = #tpu.dot_dimension_numbers<[1], [0], [0], [1], [0, 0, 1, 1], [], []>} : vector<16x32xf32>, vector<32x128xf32>, vector<16x128xf32> -> vector<16x128xf32>
    %231 = arith.addf %229, %230 : vector<16x128xf32>
    %232 = vector.broadcast %16 : vector<1x128xf32> to vector<16x128xf32>
    %233 = arith.addf %231, %232 : vector<16x128xf32>
    %234 = arith.negf %233 : vector<16x128xf32>
    %235 = math.exp %234 : vector<16x128xf32>
    %cst_53 = arith.constant 1.000000e+00 : f32
    %236 = vector.broadcast %cst_53 : f32 to vector<16x128xf32>
    %237 = arith.addf %236, %235 : vector<16x128xf32>
    %238 = arith.divf %236, %237 : vector<16x128xf32>
    %239 = math.tanh %233 : vector<16x128xf32>
    %240 = vector.extract_strided_slice %238 {offsets = [0, 32], sizes = [16, 32], strides = [1, 1]} : vector<16x128xf32> to vector<16x32xf32>
    %241 = arith.mulf %240, %207 : vector<16x32xf32>
    %242 = vector.extract_strided_slice %238 {offsets = [0, 0], sizes = [16, 32], strides = [1, 1]} : vector<16x128xf32> to vector<16x32xf32>
    %243 = vector.extract_strided_slice %239 {offsets = [0, 64], sizes = [16, 32], strides = [1, 1]} : vector<16x128xf32> to vector<16x32xf32>
    %244 = arith.mulf %242, %243 : vector<16x32xf32>
    %245 = arith.addf %241, %244 : vector<16x32xf32>
    %246 = vector.extract_strided_slice %238 {offsets = [0, 96], sizes = [16, 32], strides = [1, 1]} : vector<16x128xf32> to vector<16x32xf32>
    %247 = math.tanh %245 : vector<16x32xf32>
    %248 = arith.mulf %246, %247 : vector<16x32xf32>
    %249 = vector.extract_strided_slice %12 {offsets = [96, 0], sizes = [16, 128], strides = [1, 1]} : vector<128x128xf32> to vector<16x128xf32>
    %cst_54 = arith.constant dense<0.000000e+00> : vector<16x128xf32>
    %250 = tpu.matmul %228, %13, %cst_54 {dimension_numbers = #tpu.dot_dimension_numbers<[1], [0], [0], [1], [0, 0, 1, 1], [], []>} : vector<16x32xf32>, vector<32x128xf32>, vector<16x128xf32> -> vector<16x128xf32>
    %251 = arith.addf %249, %250 : vector<16x128xf32>
    %252 = arith.negf %251 : vector<16x128xf32>
    %253 = math.exp %252 : vector<16x128xf32>
    %cst_55 = arith.constant 1.000000e+00 : f32
    %254 = vector.broadcast %cst_55 : f32 to vector<16x128xf32>
    %255 = arith.addf %254, %253 : vector<16x128xf32>
    %256 = arith.divf %254, %255 : vector<16x128xf32>
    %257 = math.tanh %251 : vector<16x128xf32>
    %258 = vector.extract_strided_slice %256 {offsets = [0, 32], sizes = [16, 32], strides = [1, 1]} : vector<16x128xf32> to vector<16x32xf32>
    %259 = arith.mulf %258, %225 : vector<16x32xf32>
    %260 = vector.extract_strided_slice %256 {offsets = [0, 0], sizes = [16, 32], strides = [1, 1]} : vector<16x128xf32> to vector<16x32xf32>
    %261 = vector.extract_strided_slice %257 {offsets = [0, 64], sizes = [16, 32], strides = [1, 1]} : vector<16x128xf32> to vector<16x32xf32>
    %262 = arith.mulf %260, %261 : vector<16x32xf32>
    %263 = arith.addf %259, %262 : vector<16x32xf32>
    %264 = vector.extract_strided_slice %256 {offsets = [0, 96], sizes = [16, 32], strides = [1, 1]} : vector<16x128xf32> to vector<16x32xf32>
    %265 = math.tanh %263 : vector<16x32xf32>
    %266 = arith.mulf %264, %265 : vector<16x32xf32>
    %cst_56 = arith.constant dense<0.000000e+00> : vector<16x128xf32>
    %267 = tpu.matmul %266, %14, %cst_56 {dimension_numbers = #tpu.dot_dimension_numbers<[1], [0], [0], [1], [0, 0, 1, 1], [], []>} : vector<16x32xf32>, vector<32x128xf32>, vector<16x128xf32> -> vector<16x128xf32>
    %cst_57 = arith.constant dense<0.000000e+00> : vector<16x128xf32>
    %268 = tpu.matmul %248, %15, %cst_57 {dimension_numbers = #tpu.dot_dimension_numbers<[1], [0], [0], [1], [0, 0, 1, 1], [], []>} : vector<16x32xf32>, vector<32x128xf32>, vector<16x128xf32> -> vector<16x128xf32>
    %269 = arith.addf %267, %268 : vector<16x128xf32>
    %270 = vector.broadcast %16 : vector<1x128xf32> to vector<16x128xf32>
    %271 = arith.addf %269, %270 : vector<16x128xf32>
    %272 = arith.negf %271 : vector<16x128xf32>
    %273 = math.exp %272 : vector<16x128xf32>
    %cst_58 = arith.constant 1.000000e+00 : f32
    %274 = vector.broadcast %cst_58 : f32 to vector<16x128xf32>
    %275 = arith.addf %274, %273 : vector<16x128xf32>
    %276 = arith.divf %274, %275 : vector<16x128xf32>
    %277 = math.tanh %271 : vector<16x128xf32>
    %278 = vector.extract_strided_slice %276 {offsets = [0, 32], sizes = [16, 32], strides = [1, 1]} : vector<16x128xf32> to vector<16x32xf32>
    %279 = arith.mulf %278, %245 : vector<16x32xf32>
    %280 = vector.extract_strided_slice %276 {offsets = [0, 0], sizes = [16, 32], strides = [1, 1]} : vector<16x128xf32> to vector<16x32xf32>
    %281 = vector.extract_strided_slice %277 {offsets = [0, 64], sizes = [16, 32], strides = [1, 1]} : vector<16x128xf32> to vector<16x32xf32>
    %282 = arith.mulf %280, %281 : vector<16x32xf32>
    %283 = arith.addf %279, %282 : vector<16x32xf32>
    %284 = vector.extract_strided_slice %276 {offsets = [0, 96], sizes = [16, 32], strides = [1, 1]} : vector<16x128xf32> to vector<16x32xf32>
    %285 = math.tanh %283 : vector<16x32xf32>
    %286 = arith.mulf %284, %285 : vector<16x32xf32>
    %287 = vector.extract_strided_slice %12 {offsets = [112, 0], sizes = [16, 128], strides = [1, 1]} : vector<128x128xf32> to vector<16x128xf32>
    %cst_59 = arith.constant dense<0.000000e+00> : vector<16x128xf32>
    %288 = tpu.matmul %266, %13, %cst_59 {dimension_numbers = #tpu.dot_dimension_numbers<[1], [0], [0], [1], [0, 0, 1, 1], [], []>} : vector<16x32xf32>, vector<32x128xf32>, vector<16x128xf32> -> vector<16x128xf32>
    %289 = arith.addf %287, %288 : vector<16x128xf32>
    %290 = arith.negf %289 : vector<16x128xf32>
    %291 = math.exp %290 : vector<16x128xf32>
    %cst_60 = arith.constant 1.000000e+00 : f32
    %292 = vector.broadcast %cst_60 : f32 to vector<16x128xf32>
    %293 = arith.addf %292, %291 : vector<16x128xf32>
    %294 = arith.divf %292, %293 : vector<16x128xf32>
    %295 = math.tanh %289 : vector<16x128xf32>
    %296 = vector.extract_strided_slice %294 {offsets = [0, 32], sizes = [16, 32], strides = [1, 1]} : vector<16x128xf32> to vector<16x32xf32>
    %297 = arith.mulf %296, %263 : vector<16x32xf32>
    %298 = vector.extract_strided_slice %294 {offsets = [0, 0], sizes = [16, 32], strides = [1, 1]} : vector<16x128xf32> to vector<16x32xf32>
    %299 = vector.extract_strided_slice %295 {offsets = [0, 64], sizes = [16, 32], strides = [1, 1]} : vector<16x128xf32> to vector<16x32xf32>
    %300 = arith.mulf %298, %299 : vector<16x32xf32>
    %301 = arith.addf %297, %300 : vector<16x32xf32>
    %302 = vector.extract_strided_slice %294 {offsets = [0, 96], sizes = [16, 32], strides = [1, 1]} : vector<16x128xf32> to vector<16x32xf32>
    %303 = math.tanh %301 : vector<16x32xf32>
    %304 = arith.mulf %302, %303 : vector<16x32xf32>
    %cst_61 = arith.constant dense<0.000000e+00> : vector<16x128xf32>
    %305 = tpu.matmul %304, %14, %cst_61 {dimension_numbers = #tpu.dot_dimension_numbers<[1], [0], [0], [1], [0, 0, 1, 1], [], []>} : vector<16x32xf32>, vector<32x128xf32>, vector<16x128xf32> -> vector<16x128xf32>
    %cst_62 = arith.constant dense<0.000000e+00> : vector<16x128xf32>
    %306 = tpu.matmul %286, %15, %cst_62 {dimension_numbers = #tpu.dot_dimension_numbers<[1], [0], [0], [1], [0, 0, 1, 1], [], []>} : vector<16x32xf32>, vector<32x128xf32>, vector<16x128xf32> -> vector<16x128xf32>
    %307 = arith.addf %305, %306 : vector<16x128xf32>
    %308 = vector.broadcast %16 : vector<1x128xf32> to vector<16x128xf32>
    %309 = arith.addf %307, %308 : vector<16x128xf32>
    %310 = arith.negf %309 : vector<16x128xf32>
    %311 = math.exp %310 : vector<16x128xf32>
    %cst_63 = arith.constant 1.000000e+00 : f32
    %312 = vector.broadcast %cst_63 : f32 to vector<16x128xf32>
    %313 = arith.addf %312, %311 : vector<16x128xf32>
    %314 = arith.divf %312, %313 : vector<16x128xf32>
    %315 = math.tanh %309 : vector<16x128xf32>
    %316 = vector.extract_strided_slice %314 {offsets = [0, 32], sizes = [16, 32], strides = [1, 1]} : vector<16x128xf32> to vector<16x32xf32>
    %317 = arith.mulf %316, %283 : vector<16x32xf32>
    %318 = vector.extract_strided_slice %314 {offsets = [0, 0], sizes = [16, 32], strides = [1, 1]} : vector<16x128xf32> to vector<16x32xf32>
    %319 = vector.extract_strided_slice %315 {offsets = [0, 64], sizes = [16, 32], strides = [1, 1]} : vector<16x128xf32> to vector<16x32xf32>
    %320 = arith.mulf %318, %319 : vector<16x32xf32>
    %321 = arith.addf %317, %320 : vector<16x32xf32>
    %322 = vector.extract_strided_slice %314 {offsets = [0, 96], sizes = [16, 32], strides = [1, 1]} : vector<16x128xf32> to vector<16x32xf32>
    %323 = math.tanh %321 : vector<16x32xf32>
    %324 = arith.mulf %322, %323 : vector<16x32xf32>
    %325 = arith.mulf %58, %324 : vector<16x32xf32>
    %cst_64 = arith.constant dense<0.000000e+00> : vector<16xf32>
    %326 = vector.multi_reduction <add>, %325, %cst_64 [1] : vector<16x32xf32> to vector<16xf32>
    %327 = vector.shape_cast %326 : vector<16xf32> to vector<16x1xf32>
    %328 = arith.mulf %96, %324 : vector<16x32xf32>
    %cst_65 = arith.constant dense<0.000000e+00> : vector<16xf32>
    %329 = vector.multi_reduction <add>, %328, %cst_65 [1] : vector<16x32xf32> to vector<16xf32>
    %330 = vector.shape_cast %329 : vector<16xf32> to vector<16x1xf32>
    %331 = arith.mulf %134, %324 : vector<16x32xf32>
    %cst_66 = arith.constant dense<0.000000e+00> : vector<16xf32>
    %332 = vector.multi_reduction <add>, %331, %cst_66 [1] : vector<16x32xf32> to vector<16xf32>
    %333 = vector.shape_cast %332 : vector<16xf32> to vector<16x1xf32>
    %334 = arith.mulf %172, %324 : vector<16x32xf32>
    %cst_67 = arith.constant dense<0.000000e+00> : vector<16xf32>
    %335 = vector.multi_reduction <add>, %334, %cst_67 [1] : vector<16x32xf32> to vector<16xf32>
    %336 = vector.shape_cast %335 : vector<16xf32> to vector<16x1xf32>
    %337 = arith.mulf %210, %324 : vector<16x32xf32>
    %cst_68 = arith.constant dense<0.000000e+00> : vector<16xf32>
    %338 = vector.multi_reduction <add>, %337, %cst_68 [1] : vector<16x32xf32> to vector<16xf32>
    %339 = vector.shape_cast %338 : vector<16xf32> to vector<16x1xf32>
    %340 = arith.mulf %248, %324 : vector<16x32xf32>
    %cst_69 = arith.constant dense<0.000000e+00> : vector<16xf32>
    %341 = vector.multi_reduction <add>, %340, %cst_69 [1] : vector<16x32xf32> to vector<16xf32>
    %342 = vector.shape_cast %341 : vector<16xf32> to vector<16x1xf32>
    %343 = arith.mulf %286, %324 : vector<16x32xf32>
    %cst_70 = arith.constant dense<0.000000e+00> : vector<16xf32>
    %344 = vector.multi_reduction <add>, %343, %cst_70 [1] : vector<16x32xf32> to vector<16xf32>
    %345 = vector.shape_cast %344 : vector<16xf32> to vector<16x1xf32>
    %346 = arith.mulf %324, %324 : vector<16x32xf32>
    %cst_71 = arith.constant dense<0.000000e+00> : vector<16xf32>
    %347 = vector.multi_reduction <add>, %346, %cst_71 [1] : vector<16x32xf32> to vector<16xf32>
    %348 = vector.shape_cast %347 : vector<16xf32> to vector<16x1xf32>
    %349 = arith.maximumf %327, %330 : vector<16x1xf32>
    %350 = arith.maximumf %349, %333 : vector<16x1xf32>
    %351 = arith.maximumf %350, %336 : vector<16x1xf32>
    %352 = arith.maximumf %351, %339 : vector<16x1xf32>
    %353 = arith.maximumf %352, %342 : vector<16x1xf32>
    %354 = arith.maximumf %353, %345 : vector<16x1xf32>
    %355 = arith.maximumf %354, %348 : vector<16x1xf32>
    %356 = arith.subf %327, %355 : vector<16x1xf32>
    %357 = math.exp %356 : vector<16x1xf32>
    %358 = arith.subf %330, %355 : vector<16x1xf32>
    %359 = math.exp %358 : vector<16x1xf32>
    %360 = arith.subf %333, %355 : vector<16x1xf32>
    %361 = math.exp %360 : vector<16x1xf32>
    %362 = arith.subf %336, %355 : vector<16x1xf32>
    %363 = math.exp %362 : vector<16x1xf32>
    %364 = arith.subf %339, %355 : vector<16x1xf32>
    %365 = math.exp %364 : vector<16x1xf32>
    %366 = arith.subf %342, %355 : vector<16x1xf32>
    %367 = math.exp %366 : vector<16x1xf32>
    %368 = arith.subf %345, %355 : vector<16x1xf32>
    %369 = math.exp %368 : vector<16x1xf32>
    %370 = arith.subf %348, %355 : vector<16x1xf32>
    %371 = math.exp %370 : vector<16x1xf32>
    %372 = arith.addf %357, %359 : vector<16x1xf32>
    %373 = arith.addf %372, %361 : vector<16x1xf32>
    %374 = arith.addf %373, %363 : vector<16x1xf32>
    %375 = arith.addf %374, %365 : vector<16x1xf32>
    %376 = arith.addf %375, %367 : vector<16x1xf32>
    %377 = arith.addf %376, %369 : vector<16x1xf32>
    %378 = arith.addf %377, %371 : vector<16x1xf32>
    %cst_72 = arith.constant 1.000000e+00 : f32
    %379 = vector.broadcast %cst_72 : f32 to vector<16x1xf32>
    %380 = arith.divf %379, %378 : vector<16x1xf32>
    %381 = arith.mulf %357, %380 : vector<16x1xf32>
    %382 = vector.broadcast %381 : vector<16x1xf32> to vector<16x32xf32>
    %383 = arith.mulf %382, %58 : vector<16x32xf32>
    %384 = arith.mulf %359, %380 : vector<16x1xf32>
    %385 = vector.broadcast %384 : vector<16x1xf32> to vector<16x32xf32>
    %386 = arith.mulf %385, %96 : vector<16x32xf32>
    %387 = arith.addf %383, %386 : vector<16x32xf32>
    %388 = arith.mulf %361, %380 : vector<16x1xf32>
    %389 = vector.broadcast %388 : vector<16x1xf32> to vector<16x32xf32>
    %390 = arith.mulf %389, %134 : vector<16x32xf32>
    %391 = arith.addf %387, %390 : vector<16x32xf32>
    %392 = arith.mulf %363, %380 : vector<16x1xf32>
    %393 = vector.broadcast %392 : vector<16x1xf32> to vector<16x32xf32>
    %394 = arith.mulf %393, %172 : vector<16x32xf32>
    %395 = arith.addf %391, %394 : vector<16x32xf32>
    %396 = arith.mulf %365, %380 : vector<16x1xf32>
    %397 = vector.broadcast %396 : vector<16x1xf32> to vector<16x32xf32>
    %398 = arith.mulf %397, %210 : vector<16x32xf32>
    %399 = arith.addf %395, %398 : vector<16x32xf32>
    %400 = arith.mulf %367, %380 : vector<16x1xf32>
    %401 = vector.broadcast %400 : vector<16x1xf32> to vector<16x32xf32>
    %402 = arith.mulf %401, %248 : vector<16x32xf32>
    %403 = arith.addf %399, %402 : vector<16x32xf32>
    %404 = arith.mulf %369, %380 : vector<16x1xf32>
    %405 = vector.broadcast %404 : vector<16x1xf32> to vector<16x32xf32>
    %406 = arith.mulf %405, %286 : vector<16x32xf32>
    %407 = arith.addf %403, %406 : vector<16x32xf32>
    %408 = arith.mulf %371, %380 : vector<16x1xf32>
    %409 = vector.broadcast %408 : vector<16x1xf32> to vector<16x32xf32>
    %410 = arith.mulf %409, %324 : vector<16x32xf32>
    %411 = arith.addf %407, %410 : vector<16x32xf32>
    %cst_73 = arith.constant dense<0.000000e+00> : vector<16xf32>
    %412 = vector.multi_reduction <add>, %411, %cst_73 [1] : vector<16x32xf32> to vector<16xf32>
    %413 = vector.shape_cast %412 : vector<16xf32> to vector<16x1xf32>
    %cst_74 = arith.constant 3.200000e+01 : f32
    %414 = vector.broadcast %cst_74 : f32 to vector<16x1xf32>
    %415 = arith.divf %413, %414 : vector<16x1xf32>
    %416 = vector.broadcast %415 : vector<16x1xf32> to vector<16x32xf32>
    %417 = arith.subf %411, %416 : vector<16x32xf32>
    %418 = arith.mulf %417, %417 : vector<16x32xf32>
    %cst_75 = arith.constant dense<0.000000e+00> : vector<16xf32>
    %419 = vector.multi_reduction <add>, %418, %cst_75 [1] : vector<16x32xf32> to vector<16xf32>
    %420 = vector.shape_cast %419 : vector<16xf32> to vector<16x1xf32>
    %cst_76 = arith.constant 3.200000e+01 : f32
    %421 = vector.broadcast %cst_76 : f32 to vector<16x1xf32>
    %422 = arith.divf %420, %421 : vector<16x1xf32>
    %423 = vector.broadcast %415 : vector<16x1xf32> to vector<16x32xf32>
    %424 = arith.subf %411, %423 : vector<16x32xf32>
    %cst_77 = arith.constant 9.99999974E-6 : f32
    %425 = vector.broadcast %cst_77 : f32 to vector<16x1xf32>
    %426 = arith.addf %422, %425 : vector<16x1xf32>
    %427 = math.rsqrt %426 : vector<16x1xf32>
    %428 = vector.broadcast %427 : vector<16x1xf32> to vector<16x32xf32>
    %429 = arith.mulf %424, %428 : vector<16x32xf32>
    %c0_78 = arith.constant 0 : index
    %c0_79 = arith.constant 0 : index
    %430 = vector.load %arg10[%c0_78, %c0_79] : memref<1x32xf32, #tpu.memory_space<vmem>>, vector<1x32xf32>
    %431 = vector.broadcast %430 : vector<1x32xf32> to vector<16x32xf32>
    %432 = arith.mulf %429, %431 : vector<16x32xf32>
    %c0_80 = arith.constant 0 : index
    %c0_81 = arith.constant 0 : index
    %433 = vector.load %arg11[%c0_80, %c0_81] : memref<1x32xf32, #tpu.memory_space<vmem>>, vector<1x32xf32>
    %434 = vector.broadcast %433 : vector<1x32xf32> to vector<16x32xf32>
    %435 = arith.addf %432, %434 : vector<16x32xf32>
    %436 = vector.extract_strided_slice %435 {offsets = [0, 0], sizes = [8, 32], strides = [1, 1]} : vector<16x32xf32> to vector<8x32xf32>
    %437 = vector.extract_strided_slice %435 {offsets = [8, 0], sizes = [8, 32], strides = [1, 1]} : vector<16x32xf32> to vector<8x32xf32>
    %c0_82 = arith.constant 0 : index
    %c0_83 = arith.constant 0 : index
    %438 = vector.load %arg12[%c0_82, %c0_83] : memref<32x64xf32, #tpu.memory_space<vmem>>, vector<32x64xf32>
    %cst_84 = arith.constant dense<0.000000e+00> : vector<8x64xf32>
    %439 = tpu.matmul %436, %438, %cst_84 {dimension_numbers = #tpu.dot_dimension_numbers<[1], [0], [0], [1], [0, 0, 1, 1], [], []>} : vector<8x32xf32>, vector<32x64xf32>, vector<8x64xf32> -> vector<8x64xf32>
    %c0_85 = arith.constant 0 : index
    %c0_86 = arith.constant 0 : index
    %440 = vector.load %arg13[%c0_85, %c0_86] : memref<1x64xf32, #tpu.memory_space<vmem>>, vector<1x64xf32>
    %441 = vector.broadcast %440 : vector<1x64xf32> to vector<8x64xf32>
    %442 = arith.addf %439, %441 : vector<8x64xf32>
    %cst_87 = arith.constant 0.000000e+00 : f32
    %443 = vector.broadcast %cst_87 : f32 to vector<8x64xf32>
    %444 = arith.maximumf %442, %443 : vector<8x64xf32>
    %c0_88 = arith.constant 0 : index
    %c0_89 = arith.constant 0 : index
    %445 = vector.load %arg14[%c0_88, %c0_89] : memref<64x64xf32, #tpu.memory_space<vmem>>, vector<64x64xf32>
    %cst_90 = arith.constant dense<0.000000e+00> : vector<8x64xf32>
    %446 = tpu.matmul %444, %445, %cst_90 {dimension_numbers = #tpu.dot_dimension_numbers<[1], [0], [0], [1], [0, 0, 1, 1], [], []>} : vector<8x64xf32>, vector<64x64xf32>, vector<8x64xf32> -> vector<8x64xf32>
    %c0_91 = arith.constant 0 : index
    %c0_92 = arith.constant 0 : index
    %447 = vector.load %arg15[%c0_91, %c0_92] : memref<1x64xf32, #tpu.memory_space<vmem>>, vector<1x64xf32>
    %448 = vector.broadcast %447 : vector<1x64xf32> to vector<8x64xf32>
    %449 = arith.addf %446, %448 : vector<8x64xf32>
    %450 = vector.extract_strided_slice %449 {offsets = [0, 0], sizes = [8, 32], strides = [1, 1]} : vector<8x64xf32> to vector<8x32xf32>
    %451 = vector.extract_strided_slice %449 {offsets = [0, 32], sizes = [8, 32], strides = [1, 1]} : vector<8x64xf32> to vector<8x32xf32>
    %c0_93 = arith.constant 0 : index
    %c0_94 = arith.constant 0 : index
    %452 = vector.load %arg22[%c0_93, %c0_94] : memref<8x32xf32, #tpu.memory_space<vmem>>, vector<8x32xf32>
    %453 = math.exp %451 : vector<8x32xf32>
    %454 = arith.mulf %453, %452 : vector<8x32xf32>
    %455 = arith.addf %450, %454 : vector<8x32xf32>
    %cst_95 = arith.constant 5.000000e-01 : f32
    %456 = vector.broadcast %cst_95 : f32 to vector<8x32xf32>
    %457 = arith.mulf %456, %455 : vector<8x32xf32>
    %458 = arith.mulf %457, %455 : vector<8x32xf32>
    %cst_96 = arith.constant 5.000000e-01 : f32
    %459 = vector.broadcast %cst_96 : f32 to vector<8x32xf32>
    %460 = arith.mulf %459, %452 : vector<8x32xf32>
    %461 = arith.mulf %460, %452 : vector<8x32xf32>
    %462 = arith.subf %458, %461 : vector<8x32xf32>
    %463 = arith.subf %462, %451 : vector<8x32xf32>
    %cst_97 = arith.constant dense<0.000000e+00> : vector<8xf32>
    %464 = vector.multi_reduction <add>, %463, %cst_97 [1] : vector<8x32xf32> to vector<8xf32>
    %465 = vector.shape_cast %464 : vector<8xf32> to vector<8x1xf32>
    %cst_98 = arith.constant dense<0.000000e+00> : vector<1xf32>
    %466 = vector.multi_reduction <add>, %465, %cst_98 [0] : vector<8x1xf32> to vector<1xf32>
    %467 = vector.shape_cast %466 : vector<1xf32> to vector<1x1xf32>
    %cst_99 = arith.constant 3.906250e-03 : f32
    %468 = vector.broadcast %cst_99 : f32 to vector<1x1xf32>
    %469 = arith.mulf %467, %468 : vector<1x1xf32>
    %c0_100 = arith.constant 0 : index
    %c0_101 = arith.constant 0 : index
    %470 = vector.load %arg28[%c0_100, %c0_101] : memref<1x1xf32, #tpu.memory_space<vmem>>, vector<1x1xf32>
    tpu.vector_store %arg28[%c0_100, %c0_101], %469 {strides = array<i32>} : memref<1x1xf32, #tpu.memory_space<vmem>>, vector<1x1xf32>,
    %c0_102 = arith.constant 0 : index
    %c0_103 = arith.constant 0 : index
    %471 = vector.load %arg16[%c0_102, %c0_103] : memref<32x512xf32, #tpu.memory_space<vmem>>, vector<32x512xf32>
    %c0_104 = arith.constant 0 : index
    %c0_105 = arith.constant 0 : index
    %472 = vector.load %arg17[%c0_104, %c0_105] : memref<32x256xf32, #tpu.memory_space<vmem>>, vector<32x256xf32>
    %c0_106 = arith.constant 0 : index
    %c0_107 = arith.constant 0 : index
    %473 = vector.load %arg18[%c0_106, %c0_107] : memref<256x8xf32, #tpu.memory_space<vmem>>, vector<256x8xf32>
    %c0_108 = arith.constant 0 : index
    %c0_109 = arith.constant 0 : index
    %474 = vector.load %arg19[%c0_108, %c0_109] : memref<8x8xf32, #tpu.memory_space<vmem>>, vector<8x8xf32>
    %c0_110 = arith.constant 0 : index
    %c0_111 = arith.constant 0 : index
    %475 = memref.load %arg24[%c0_110, %c0_111] : memref<1x1xf32, #tpu.memory_space<smem>>
    %c0_112 = arith.constant 0 : index
    %c0_113 = arith.constant 0 : index
    %476 = memref.load %arg25[%c0_112, %c0_113] : memref<1x1xf32, #tpu.memory_space<smem>>
    %477 = tpu.iota {dimensions = array<i32: 1>} : vector<8x8xi32>
    %c5_i32 = arith.constant 5 : i32
    %478 = vector.broadcast %c5_i32 : i32 to vector<8x8xi32>
    %479 = arith.cmpi slt, %477, %478 : vector<8x8xi32>
    %cst_114 = arith.constant 0.000000e+00 : f32
    %cst_115 = arith.constant -1.000000e+30 : f32
    %480 = vector.broadcast %cst_114 : f32 to vector<8x8xf32>
    %481 = vector.broadcast %cst_115 : f32 to vector<8x8xf32>
    %482 = arith.select %479, %480, %481 : vector<8x8xi1>, vector<8x8xf32>
    %483 = arith.sitofp %477 : vector<8x8xi32> to vector<8x8xf32>
    %cst_116 = arith.constant dense<0.000000e+00> : vector<8x256xf32>
    %484 = tpu.matmul %436, %472, %cst_116 {dimension_numbers = #tpu.dot_dimension_numbers<[1], [0], [0], [1], [0, 0, 1, 1], [], []>} : vector<8x32xf32>, vector<32x256xf32>, vector<8x256xf32> -> vector<8x256xf32>
    %c0_117 = arith.constant 0 : index
    %c0_118 = arith.constant 0 : index
    %c0_119 = arith.constant 0 : index
    %485 = vector.load %arg23[%c0_117, %c0_118, %c0_119] : memref<6x8x256xf32, #tpu.memory_space<vmem>>, vector<1x8x256xf32>
    %486 = vector.shape_cast %485 : vector<1x8x256xf32> to vector<8x256xf32>
    %cst_120 = arith.constant dense<0.000000e+00> : vector<8x512xf32>
    %487 = tpu.matmul %455, %471, %cst_120 {dimension_numbers = #tpu.dot_dimension_numbers<[1], [0], [0], [1], [0, 0, 1, 1], [], []>} : vector<8x32xf32>, vector<32x512xf32>, vector<8x512xf32> -> vector<8x512xf32>
    %488 = vector.extract_strided_slice %487 {offsets = [0, 256], sizes = [8, 256], strides = [1, 1]} : vector<8x512xf32> to vector<8x256xf32>
    %489 = math.exp %488 : vector<8x256xf32>
    %490 = vector.extract_strided_slice %487 {offsets = [0, 0], sizes = [8, 256], strides = [1, 1]} : vector<8x512xf32> to vector<8x256xf32>
    %491 = arith.mulf %489, %486 : vector<8x256xf32>
    %492 = arith.addf %490, %491 : vector<8x256xf32>
    %493 = arith.mulf %484, %492 : vector<8x256xf32>
    %cst_121 = arith.constant dense<0.000000e+00> : vector<8x8xf32>
    %494 = tpu.matmul %493, %473, %cst_121 {dimension_numbers = #tpu.dot_dimension_numbers<[1], [0], [0], [1], [0, 0, 1, 1], [], []>} : vector<8x256xf32>, vector<256x8xf32>, vector<8x8xf32> -> vector<8x8xf32>
    %495 = arith.addf %494, %482 : vector<8x8xf32>
    %cst_122 = arith.constant dense<0xFF800000> : vector<8xf32>
    %496 = vector.multi_reduction <maximumf>, %495, %cst_122 [1] : vector<8x8xf32> to vector<8xf32>
    %497 = vector.shape_cast %496 : vector<8xf32> to vector<8x1xf32>
    %498 = vector.broadcast %497 : vector<8x1xf32> to vector<8x8xf32>
    %499 = arith.subf %495, %498 : vector<8x8xf32>
    %500 = math.exp %499 : vector<8x8xf32>
    %cst_123 = arith.constant dense<0.000000e+00> : vector<8xf32>
    %501 = vector.multi_reduction <add>, %500, %cst_123 [1] : vector<8x8xf32> to vector<8xf32>
    %502 = vector.shape_cast %501 : vector<8xf32> to vector<8x1xf32>
    %503 = vector.broadcast %502 : vector<8x1xf32> to vector<8x8xf32>
    %504 = arith.divf %500, %503 : vector<8x8xf32>
    %505 = arith.subf %504, %474 : vector<8x8xf32>
    %cst_124 = arith.constant 1.250000e-01 : f32
    %506 = vector.broadcast %cst_124 : f32 to vector<8x8xf32>
    %507 = arith.mulf %505, %506 : vector<8x8xf32>
    %cst_125 = arith.constant dense<0.000000e+00> : vector<8x256xf32>
    %508 = tpu.matmul %507, %473, %cst_125 {dimension_numbers = #tpu.dot_dimension_numbers<[1], [1], [0], [0], [0, 0, 1, 0], [], []>} : vector<8x8xf32>, vector<256x8xf32>, vector<8x256xf32> -> vector<8x256xf32>
    %509 = arith.mulf %484, %508 : vector<8x256xf32>
    %510 = arith.mulf %509, %489 : vector<8x256xf32>
    %511 = arith.mulf %510, %486 : vector<8x256xf32>
    %512 = tpu.concatenate %509, %511 in 1 : vector<8x256xf32>, vector<8x256xf32> -> vector<8x512xf32>
    %cst_126 = arith.constant dense<0.000000e+00> : vector<8x32xf32>
    %513 = tpu.matmul %512, %471, %cst_126 {dimension_numbers = #tpu.dot_dimension_numbers<[1], [1], [0], [0], [0, 0, 1, 0], [], []>} : vector<8x512xf32>, vector<32x512xf32>, vector<8x32xf32> -> vector<8x32xf32>
    %514 = vector.broadcast %475 : f32 to vector<8x32xf32>
    %515 = arith.mulf %514, %513 : vector<8x32xf32>
    %516 = arith.subf %455, %515 : vector<8x32xf32>
    %c1 = arith.constant 1 : index
    %c0_127 = arith.constant 0 : index
    %c0_128 = arith.constant 0 : index
    %517 = vector.load %arg23[%c1, %c0_127, %c0_128] : memref<6x8x256xf32, #tpu.memory_space<vmem>>, vector<1x8x256xf32>
    %518 = vector.shape_cast %517 : vector<1x8x256xf32> to vector<8x256xf32>
    %cst_129 = arith.constant dense<0.000000e+00> : vector<8x512xf32>
    %519 = tpu.matmul %516, %471, %cst_129 {dimension_numbers = #tpu.dot_dimension_numbers<[1], [0], [0], [1], [0, 0, 1, 1], [], []>} : vector<8x32xf32>, vector<32x512xf32>, vector<8x512xf32> -> vector<8x512xf32>
    %520 = vector.extract_strided_slice %519 {offsets = [0, 256], sizes = [8, 256], strides = [1, 1]} : vector<8x512xf32> to vector<8x256xf32>
    %521 = math.exp %520 : vector<8x256xf32>
    %522 = vector.extract_strided_slice %519 {offsets = [0, 0], sizes = [8, 256], strides = [1, 1]} : vector<8x512xf32> to vector<8x256xf32>
    %523 = arith.mulf %521, %518 : vector<8x256xf32>
    %524 = arith.addf %522, %523 : vector<8x256xf32>
    %525 = arith.mulf %484, %524 : vector<8x256xf32>
    %cst_130 = arith.constant dense<0.000000e+00> : vector<8x8xf32>
    %526 = tpu.matmul %525, %473, %cst_130 {dimension_numbers = #tpu.dot_dimension_numbers<[1], [0], [0], [1], [0, 0, 1, 1], [], []>} : vector<8x256xf32>, vector<256x8xf32>, vector<8x8xf32> -> vector<8x8xf32>
    %527 = arith.addf %526, %482 : vector<8x8xf32>
    %cst_131 = arith.constant dense<0xFF800000> : vector<8xf32>
    %528 = vector.multi_reduction <maximumf>, %527, %cst_131 [1] : vector<8x8xf32> to vector<8xf32>
    %529 = vector.shape_cast %528 : vector<8xf32> to vector<8x1xf32>
    %530 = vector.broadcast %529 : vector<8x1xf32> to vector<8x8xf32>
    %531 = arith.subf %527, %530 : vector<8x8xf32>
    %532 = math.exp %531 : vector<8x8xf32>
    %cst_132 = arith.constant dense<0.000000e+00> : vector<8xf32>
    %533 = vector.multi_reduction <add>, %532, %cst_132 [1] : vector<8x8xf32> to vector<8xf32>
    %534 = vector.shape_cast %533 : vector<8xf32> to vector<8x1xf32>
    %535 = vector.broadcast %534 : vector<8x1xf32> to vector<8x8xf32>
    %536 = arith.divf %532, %535 : vector<8x8xf32>
    %537 = arith.subf %536, %474 : vector<8x8xf32>
    %cst_133 = arith.constant 1.250000e-01 : f32
    %538 = vector.broadcast %cst_133 : f32 to vector<8x8xf32>
    %539 = arith.mulf %537, %538 : vector<8x8xf32>
    %cst_134 = arith.constant dense<0.000000e+00> : vector<8x256xf32>
    %540 = tpu.matmul %539, %473, %cst_134 {dimension_numbers = #tpu.dot_dimension_numbers<[1], [1], [0], [0], [0, 0, 1, 0], [], []>} : vector<8x8xf32>, vector<256x8xf32>, vector<8x256xf32> -> vector<8x256xf32>
    %541 = arith.mulf %484, %540 : vector<8x256xf32>
    %542 = arith.mulf %541, %521 : vector<8x256xf32>
    %543 = arith.mulf %542, %518 : vector<8x256xf32>
    %544 = tpu.concatenate %541, %543 in 1 : vector<8x256xf32>, vector<8x256xf32> -> vector<8x512xf32>
    %cst_135 = arith.constant dense<0.000000e+00> : vector<8x32xf32>
    %545 = tpu.matmul %544, %471, %cst_135 {dimension_numbers = #tpu.dot_dimension_numbers<[1], [1], [0], [0], [0, 0, 1, 0], [], []>} : vector<8x512xf32>, vector<32x512xf32>, vector<8x32xf32> -> vector<8x32xf32>
    %546 = vector.broadcast %475 : f32 to vector<8x32xf32>
    %547 = arith.mulf %546, %545 : vector<8x32xf32>
    %548 = arith.subf %516, %547 : vector<8x32xf32>
    %c2 = arith.constant 2 : index
    %c0_136 = arith.constant 0 : index
    %c0_137 = arith.constant 0 : index
    %549 = vector.load %arg23[%c2, %c0_136, %c0_137] : memref<6x8x256xf32, #tpu.memory_space<vmem>>, vector<1x8x256xf32>
    %550 = vector.shape_cast %549 : vector<1x8x256xf32> to vector<8x256xf32>
    %cst_138 = arith.constant dense<0.000000e+00> : vector<8x512xf32>
    %551 = tpu.matmul %548, %471, %cst_138 {dimension_numbers = #tpu.dot_dimension_numbers<[1], [0], [0], [1], [0, 0, 1, 1], [], []>} : vector<8x32xf32>, vector<32x512xf32>, vector<8x512xf32> -> vector<8x512xf32>
    %552 = vector.extract_strided_slice %551 {offsets = [0, 256], sizes = [8, 256], strides = [1, 1]} : vector<8x512xf32> to vector<8x256xf32>
    %553 = math.exp %552 : vector<8x256xf32>
    %554 = vector.extract_strided_slice %551 {offsets = [0, 0], sizes = [8, 256], strides = [1, 1]} : vector<8x512xf32> to vector<8x256xf32>
    %555 = arith.mulf %553, %550 : vector<8x256xf32>
    %556 = arith.addf %554, %555 : vector<8x256xf32>
    %557 = arith.mulf %484, %556 : vector<8x256xf32>
    %cst_139 = arith.constant dense<0.000000e+00> : vector<8x8xf32>
    %558 = tpu.matmul %557, %473, %cst_139 {dimension_numbers = #tpu.dot_dimension_numbers<[1], [0], [0], [1], [0, 0, 1, 1], [], []>} : vector<8x256xf32>, vector<256x8xf32>, vector<8x8xf32> -> vector<8x8xf32>
    %559 = arith.addf %558, %482 : vector<8x8xf32>
    %cst_140 = arith.constant dense<0xFF800000> : vector<8xf32>
    %560 = vector.multi_reduction <maximumf>, %559, %cst_140 [1] : vector<8x8xf32> to vector<8xf32>
    %561 = vector.shape_cast %560 : vector<8xf32> to vector<8x1xf32>
    %562 = vector.broadcast %561 : vector<8x1xf32> to vector<8x8xf32>
    %563 = arith.subf %559, %562 : vector<8x8xf32>
    %564 = math.exp %563 : vector<8x8xf32>
    %cst_141 = arith.constant dense<0.000000e+00> : vector<8xf32>
    %565 = vector.multi_reduction <add>, %564, %cst_141 [1] : vector<8x8xf32> to vector<8xf32>
    %566 = vector.shape_cast %565 : vector<8xf32> to vector<8x1xf32>
    %567 = vector.broadcast %566 : vector<8x1xf32> to vector<8x8xf32>
    %568 = arith.divf %564, %567 : vector<8x8xf32>
    %569 = arith.subf %568, %474 : vector<8x8xf32>
    %cst_142 = arith.constant 1.250000e-01 : f32
    %570 = vector.broadcast %cst_142 : f32 to vector<8x8xf32>
    %571 = arith.mulf %569, %570 : vector<8x8xf32>
    %cst_143 = arith.constant dense<0.000000e+00> : vector<8x256xf32>
    %572 = tpu.matmul %571, %473, %cst_143 {dimension_numbers = #tpu.dot_dimension_numbers<[1], [1], [0], [0], [0, 0, 1, 0], [], []>} : vector<8x8xf32>, vector<256x8xf32>, vector<8x256xf32> -> vector<8x256xf32>
    %573 = arith.mulf %484, %572 : vector<8x256xf32>
    %574 = arith.mulf %573, %553 : vector<8x256xf32>
    %575 = arith.mulf %574, %550 : vector<8x256xf32>
    %576 = tpu.concatenate %573, %575 in 1 : vector<8x256xf32>, vector<8x256xf32> -> vector<8x512xf32>
    %cst_144 = arith.constant dense<0.000000e+00> : vector<8x32xf32>
    %577 = tpu.matmul %576, %471, %cst_144 {dimension_numbers = #tpu.dot_dimension_numbers<[1], [1], [0], [0], [0, 0, 1, 0], [], []>} : vector<8x512xf32>, vector<32x512xf32>, vector<8x32xf32> -> vector<8x32xf32>
    %578 = vector.broadcast %475 : f32 to vector<8x32xf32>
    %579 = arith.mulf %578, %577 : vector<8x32xf32>
    %580 = arith.subf %548, %579 : vector<8x32xf32>
    %c3 = arith.constant 3 : index
    %c0_145 = arith.constant 0 : index
    %c0_146 = arith.constant 0 : index
    %581 = vector.load %arg23[%c3, %c0_145, %c0_146] : memref<6x8x256xf32, #tpu.memory_space<vmem>>, vector<1x8x256xf32>
    %582 = vector.shape_cast %581 : vector<1x8x256xf32> to vector<8x256xf32>
    %cst_147 = arith.constant dense<0.000000e+00> : vector<8x512xf32>
    %583 = tpu.matmul %580, %471, %cst_147 {dimension_numbers = #tpu.dot_dimension_numbers<[1], [0], [0], [1], [0, 0, 1, 1], [], []>} : vector<8x32xf32>, vector<32x512xf32>, vector<8x512xf32> -> vector<8x512xf32>
    %584 = vector.extract_strided_slice %583 {offsets = [0, 256], sizes = [8, 256], strides = [1, 1]} : vector<8x512xf32> to vector<8x256xf32>
    %585 = math.exp %584 : vector<8x256xf32>
    %586 = vector.extract_strided_slice %583 {offsets = [0, 0], sizes = [8, 256], strides = [1, 1]} : vector<8x512xf32> to vector<8x256xf32>
    %587 = arith.mulf %585, %582 : vector<8x256xf32>
    %588 = arith.addf %586, %587 : vector<8x256xf32>
    %589 = arith.mulf %484, %588 : vector<8x256xf32>
    %cst_148 = arith.constant dense<0.000000e+00> : vector<8x8xf32>
    %590 = tpu.matmul %589, %473, %cst_148 {dimension_numbers = #tpu.dot_dimension_numbers<[1], [0], [0], [1], [0, 0, 1, 1], [], []>} : vector<8x256xf32>, vector<256x8xf32>, vector<8x8xf32> -> vector<8x8xf32>
    %591 = arith.addf %590, %482 : vector<8x8xf32>
    %cst_149 = arith.constant dense<0xFF800000> : vector<8xf32>
    %592 = vector.multi_reduction <maximumf>, %591, %cst_149 [1] : vector<8x8xf32> to vector<8xf32>
    %593 = vector.shape_cast %592 : vector<8xf32> to vector<8x1xf32>
    %594 = vector.broadcast %593 : vector<8x1xf32> to vector<8x8xf32>
    %595 = arith.subf %591, %594 : vector<8x8xf32>
    %596 = math.exp %595 : vector<8x8xf32>
    %cst_150 = arith.constant dense<0.000000e+00> : vector<8xf32>
    %597 = vector.multi_reduction <add>, %596, %cst_150 [1] : vector<8x8xf32> to vector<8xf32>
    %598 = vector.shape_cast %597 : vector<8xf32> to vector<8x1xf32>
    %599 = vector.broadcast %598 : vector<8x1xf32> to vector<8x8xf32>
    %600 = arith.divf %596, %599 : vector<8x8xf32>
    %601 = arith.subf %600, %474 : vector<8x8xf32>
    %cst_151 = arith.constant 1.250000e-01 : f32
    %602 = vector.broadcast %cst_151 : f32 to vector<8x8xf32>
    %603 = arith.mulf %601, %602 : vector<8x8xf32>
    %cst_152 = arith.constant dense<0.000000e+00> : vector<8x256xf32>
    %604 = tpu.matmul %603, %473, %cst_152 {dimension_numbers = #tpu.dot_dimension_numbers<[1], [1], [0], [0], [0, 0, 1, 0], [], []>} : vector<8x8xf32>, vector<256x8xf32>, vector<8x256xf32> -> vector<8x256xf32>
    %605 = arith.mulf %484, %604 : vector<8x256xf32>
    %606 = arith.mulf %605, %585 : vector<8x256xf32>
    %607 = arith.mulf %606, %582 : vector<8x256xf32>
    %608 = tpu.concatenate %605, %607 in 1 : vector<8x256xf32>, vector<8x256xf32> -> vector<8x512xf32>
    %cst_153 = arith.constant dense<0.000000e+00> : vector<8x32xf32>
    %609 = tpu.matmul %608, %471, %cst_153 {dimension_numbers = #tpu.dot_dimension_numbers<[1], [1], [0], [0], [0, 0, 1, 0], [], []>} : vector<8x512xf32>, vector<32x512xf32>, vector<8x32xf32> -> vector<8x32xf32>
    %610 = vector.broadcast %475 : f32 to vector<8x32xf32>
    %611 = arith.mulf %610, %609 : vector<8x32xf32>
    %612 = arith.subf %580, %611 : vector<8x32xf32>
    %c4 = arith.constant 4 : index
    %c0_154 = arith.constant 0 : index
    %c0_155 = arith.constant 0 : index
    %613 = vector.load %arg23[%c4, %c0_154, %c0_155] : memref<6x8x256xf32, #tpu.memory_space<vmem>>, vector<1x8x256xf32>
    %614 = vector.shape_cast %613 : vector<1x8x256xf32> to vector<8x256xf32>
    %cst_156 = arith.constant dense<0.000000e+00> : vector<8x512xf32>
    %615 = tpu.matmul %612, %471, %cst_156 {dimension_numbers = #tpu.dot_dimension_numbers<[1], [0], [0], [1], [0, 0, 1, 1], [], []>} : vector<8x32xf32>, vector<32x512xf32>, vector<8x512xf32> -> vector<8x512xf32>
    %616 = vector.extract_strided_slice %615 {offsets = [0, 256], sizes = [8, 256], strides = [1, 1]} : vector<8x512xf32> to vector<8x256xf32>
    %617 = math.exp %616 : vector<8x256xf32>
    %618 = vector.extract_strided_slice %615 {offsets = [0, 0], sizes = [8, 256], strides = [1, 1]} : vector<8x512xf32> to vector<8x256xf32>
    %619 = arith.mulf %617, %614 : vector<8x256xf32>
    %620 = arith.addf %618, %619 : vector<8x256xf32>
    %621 = arith.mulf %484, %620 : vector<8x256xf32>
    %cst_157 = arith.constant dense<0.000000e+00> : vector<8x8xf32>
    %622 = tpu.matmul %621, %473, %cst_157 {dimension_numbers = #tpu.dot_dimension_numbers<[1], [0], [0], [1], [0, 0, 1, 1], [], []>} : vector<8x256xf32>, vector<256x8xf32>, vector<8x8xf32> -> vector<8x8xf32>
    %623 = arith.addf %622, %482 : vector<8x8xf32>
    %cst_158 = arith.constant dense<0xFF800000> : vector<8xf32>
    %624 = vector.multi_reduction <maximumf>, %623, %cst_158 [1] : vector<8x8xf32> to vector<8xf32>
    %625 = vector.shape_cast %624 : vector<8xf32> to vector<8x1xf32>
    %626 = vector.broadcast %625 : vector<8x1xf32> to vector<8x8xf32>
    %627 = arith.subf %623, %626 : vector<8x8xf32>
    %628 = math.exp %627 : vector<8x8xf32>
    %cst_159 = arith.constant dense<0.000000e+00> : vector<8xf32>
    %629 = vector.multi_reduction <add>, %628, %cst_159 [1] : vector<8x8xf32> to vector<8xf32>
    %630 = vector.shape_cast %629 : vector<8xf32> to vector<8x1xf32>
    %631 = vector.broadcast %630 : vector<8x1xf32> to vector<8x8xf32>
    %632 = arith.divf %628, %631 : vector<8x8xf32>
    %633 = arith.subf %632, %474 : vector<8x8xf32>
    %cst_160 = arith.constant 1.250000e-01 : f32
    %634 = vector.broadcast %cst_160 : f32 to vector<8x8xf32>
    %635 = arith.mulf %633, %634 : vector<8x8xf32>
    %cst_161 = arith.constant dense<0.000000e+00> : vector<8x256xf32>
    %636 = tpu.matmul %635, %473, %cst_161 {dimension_numbers = #tpu.dot_dimension_numbers<[1], [1], [0], [0], [0, 0, 1, 0], [], []>} : vector<8x8xf32>, vector<256x8xf32>, vector<8x256xf32> -> vector<8x256xf32>
    %637 = arith.mulf %484, %636 : vector<8x256xf32>
    %638 = arith.mulf %637, %617 : vector<8x256xf32>
    %639 = arith.mulf %638, %614 : vector<8x256xf32>
    %640 = tpu.concatenate %637, %639 in 1 : vector<8x256xf32>, vector<8x256xf32> -> vector<8x512xf32>
    %cst_162 = arith.constant dense<0.000000e+00> : vector<8x32xf32>
    %641 = tpu.matmul %640, %471, %cst_162 {dimension_numbers = #tpu.dot_dimension_numbers<[1], [1], [0], [0], [0, 0, 1, 0], [], []>} : vector<8x512xf32>, vector<32x512xf32>, vector<8x32xf32> -> vector<8x32xf32>
    %642 = vector.broadcast %475 : f32 to vector<8x32xf32>
    %643 = arith.mulf %642, %641 : vector<8x32xf32>
    %644 = arith.subf %612, %643 : vector<8x32xf32>
    %645 = arith.subf %644, %455 : vector<8x32xf32>
    %646 = arith.mulf %645, %645 : vector<8x32xf32>
    %cst_163 = arith.constant dense<0.000000e+00> : vector<8xf32>
    %647 = vector.multi_reduction <add>, %646, %cst_163 [1] : vector<8x32xf32> to vector<8xf32>
    %648 = vector.shape_cast %647 : vector<8xf32> to vector<8x1xf32>
    %cst_164 = arith.constant dense<0.000000e+00> : vector<1xf32>
    %649 = vector.multi_reduction <add>, %648, %cst_164 [0] : vector<8x1xf32> to vector<1xf32>
    %650 = vector.shape_cast %649 : vector<1xf32> to vector<1x1xf32>
    %cst_165 = arith.constant 3.906250e-03 : f32
    %651 = vector.broadcast %cst_165 : f32 to vector<1x1xf32>
    %652 = arith.mulf %650, %651 : vector<1x1xf32>
    %c0_166 = arith.constant 0 : index
    %c0_167 = arith.constant 0 : index
    %653 = vector.load %arg29[%c0_166, %c0_167] : memref<1x1xf32, #tpu.memory_space<vmem>>, vector<1x1xf32>
    tpu.vector_store %arg29[%c0_166, %c0_167], %652 {strides = array<i32>} : memref<1x1xf32, #tpu.memory_space<vmem>>, vector<1x1xf32>,
    %c5 = arith.constant 5 : index
    %c0_168 = arith.constant 0 : index
    %c0_169 = arith.constant 0 : index
    %654 = vector.load %arg23[%c5, %c0_168, %c0_169] : memref<6x8x256xf32, #tpu.memory_space<vmem>>, vector<1x8x256xf32>
    %655 = vector.shape_cast %654 : vector<1x8x256xf32> to vector<8x256xf32>
    %cst_170 = arith.constant dense<0.000000e+00> : vector<8x512xf32>
    %656 = tpu.matmul %644, %471, %cst_170 {dimension_numbers = #tpu.dot_dimension_numbers<[1], [0], [0], [1], [0, 0, 1, 1], [], []>} : vector<8x32xf32>, vector<32x512xf32>, vector<8x512xf32> -> vector<8x512xf32>
    %657 = vector.extract_strided_slice %656 {offsets = [0, 256], sizes = [8, 256], strides = [1, 1]} : vector<8x512xf32> to vector<8x256xf32>
    %658 = math.exp %657 : vector<8x256xf32>
    %659 = vector.extract_strided_slice %656 {offsets = [0, 0], sizes = [8, 256], strides = [1, 1]} : vector<8x512xf32> to vector<8x256xf32>
    %660 = arith.mulf %658, %655 : vector<8x256xf32>
    %661 = arith.addf %659, %660 : vector<8x256xf32>
    %662 = arith.mulf %484, %661 : vector<8x256xf32>
    %cst_171 = arith.constant dense<0.000000e+00> : vector<8x8xf32>
    %663 = tpu.matmul %662, %473, %cst_171 {dimension_numbers = #tpu.dot_dimension_numbers<[1], [0], [0], [1], [0, 0, 1, 1], [], []>} : vector<8x256xf32>, vector<256x8xf32>, vector<8x8xf32> -> vector<8x8xf32>
    %664 = arith.addf %663, %482 : vector<8x8xf32>
    %cst_172 = arith.constant dense<0xFF800000> : vector<8xf32>
    %665 = vector.multi_reduction <maximumf>, %664, %cst_172 [1] : vector<8x8xf32> to vector<8xf32>
    %666 = vector.shape_cast %665 : vector<8xf32> to vector<8x1xf32>
    %667 = vector.broadcast %666 : vector<8x1xf32> to vector<8x8xf32>
    %668 = arith.subf %664, %667 : vector<8x8xf32>
    %669 = math.exp %668 : vector<8x8xf32>
    %cst_173 = arith.constant dense<0.000000e+00> : vector<8xf32>
    %670 = vector.multi_reduction <add>, %669, %cst_173 [1] : vector<8x8xf32> to vector<8xf32>
    %671 = vector.shape_cast %670 : vector<8xf32> to vector<8x1xf32>
    %672 = vector.broadcast %671 : vector<8x1xf32> to vector<8x8xf32>
    %673 = arith.divf %669, %672 : vector<8x8xf32>
    %674 = arith.subf %673, %474 : vector<8x8xf32>
    %cst_174 = arith.constant 1.250000e-01 : f32
    %675 = vector.broadcast %cst_174 : f32 to vector<8x8xf32>
    %676 = arith.mulf %674, %675 : vector<8x8xf32>
    %cst_175 = arith.constant dense<0.000000e+00> : vector<8x256xf32>
    %677 = tpu.matmul %676, %473, %cst_175 {dimension_numbers = #tpu.dot_dimension_numbers<[1], [1], [0], [0], [0, 0, 1, 0], [], []>} : vector<8x8xf32>, vector<256x8xf32>, vector<8x256xf32> -> vector<8x256xf32>
    %678 = arith.mulf %484, %677 : vector<8x256xf32>
    %679 = vector.broadcast %476 : f32 to vector<8x256xf32>
    %680 = arith.mulf %679, %678 : vector<8x256xf32>
    %681 = arith.subf %661, %680 : vector<8x256xf32>
    %682 = arith.mulf %484, %681 : vector<8x256xf32>
    %cst_176 = arith.constant dense<0.000000e+00> : vector<8x8xf32>
    %683 = tpu.matmul %682, %473, %cst_176 {dimension_numbers = #tpu.dot_dimension_numbers<[1], [0], [0], [1], [0, 0, 1, 1], [], []>} : vector<8x256xf32>, vector<256x8xf32>, vector<8x8xf32> -> vector<8x8xf32>
    %684 = arith.addf %683, %482 : vector<8x8xf32>
    %cst_177 = arith.constant dense<0xFF800000> : vector<8xf32>
    %685 = vector.multi_reduction <maximumf>, %684, %cst_177 [1] : vector<8x8xf32> to vector<8xf32>
    %686 = vector.shape_cast %685 : vector<8xf32> to vector<8x1xf32>
    %687 = vector.broadcast %686 : vector<8x1xf32> to vector<8x8xf32>
    %688 = arith.subf %684, %687 : vector<8x8xf32>
    %689 = math.exp %688 : vector<8x8xf32>
    %cst_178 = arith.constant dense<0.000000e+00> : vector<8xf32>
    %690 = vector.multi_reduction <add>, %689, %cst_178 [1] : vector<8x8xf32> to vector<8xf32>
    %691 = vector.shape_cast %690 : vector<8xf32> to vector<8x1xf32>
    %692 = vector.broadcast %691 : vector<8x1xf32> to vector<8x8xf32>
    %693 = arith.divf %689, %692 : vector<8x8xf32>
    %694 = arith.subf %693, %474 : vector<8x8xf32>
    %cst_179 = arith.constant 1.250000e-01 : f32
    %695 = vector.broadcast %cst_179 : f32 to vector<8x8xf32>
    %696 = arith.mulf %694, %695 : vector<8x8xf32>
    %cst_180 = arith.constant dense<0.000000e+00> : vector<8x256xf32>
    %697 = tpu.matmul %696, %473, %cst_180 {dimension_numbers = #tpu.dot_dimension_numbers<[1], [1], [0], [0], [0, 0, 1, 0], [], []>} : vector<8x8xf32>, vector<256x8xf32>, vector<8x256xf32> -> vector<8x256xf32>
    %698 = arith.mulf %484, %697 : vector<8x256xf32>
    %699 = vector.broadcast %476 : f32 to vector<8x256xf32>
    %700 = arith.mulf %699, %698 : vector<8x256xf32>
    %701 = arith.subf %681, %700 : vector<8x256xf32>
    %702 = arith.mulf %484, %701 : vector<8x256xf32>
    %cst_181 = arith.constant dense<0.000000e+00> : vector<8x8xf32>
    %703 = tpu.matmul %702, %473, %cst_181 {dimension_numbers = #tpu.dot_dimension_numbers<[1], [0], [0], [1], [0, 0, 1, 1], [], []>} : vector<8x256xf32>, vector<256x8xf32>, vector<8x8xf32> -> vector<8x8xf32>
    %704 = arith.addf %703, %482 : vector<8x8xf32>
    %cst_182 = arith.constant dense<0xFF800000> : vector<8xf32>
    %705 = vector.multi_reduction <maximumf>, %704, %cst_182 [1] : vector<8x8xf32> to vector<8xf32>
    %706 = vector.shape_cast %705 : vector<8xf32> to vector<8x1xf32>
    %707 = vector.broadcast %706 : vector<8x1xf32> to vector<8x8xf32>
    %708 = arith.subf %704, %707 : vector<8x8xf32>
    %709 = math.exp %708 : vector<8x8xf32>
    %cst_183 = arith.constant dense<0.000000e+00> : vector<8xf32>
    %710 = vector.multi_reduction <add>, %709, %cst_183 [1] : vector<8x8xf32> to vector<8xf32>
    %711 = vector.shape_cast %710 : vector<8xf32> to vector<8x1xf32>
    %712 = vector.broadcast %711 : vector<8x1xf32> to vector<8x8xf32>
    %713 = arith.divf %709, %712 : vector<8x8xf32>
    %714 = arith.subf %713, %474 : vector<8x8xf32>
    %cst_184 = arith.constant 1.250000e-01 : f32
    %715 = vector.broadcast %cst_184 : f32 to vector<8x8xf32>
    %716 = arith.mulf %714, %715 : vector<8x8xf32>
    %cst_185 = arith.constant dense<0.000000e+00> : vector<8x256xf32>
    %717 = tpu.matmul %716, %473, %cst_185 {dimension_numbers = #tpu.dot_dimension_numbers<[1], [1], [0], [0], [0, 0, 1, 0], [], []>} : vector<8x8xf32>, vector<256x8xf32>, vector<8x256xf32> -> vector<8x256xf32>
    %718 = arith.mulf %484, %717 : vector<8x256xf32>
    %719 = vector.broadcast %476 : f32 to vector<8x256xf32>
    %720 = arith.mulf %719, %718 : vector<8x256xf32>
    %721 = arith.subf %701, %720 : vector<8x256xf32>
    %722 = arith.mulf %484, %721 : vector<8x256xf32>
    %cst_186 = arith.constant dense<0.000000e+00> : vector<8x8xf32>
    %723 = tpu.matmul %722, %473, %cst_186 {dimension_numbers = #tpu.dot_dimension_numbers<[1], [0], [0], [1], [0, 0, 1, 1], [], []>} : vector<8x256xf32>, vector<256x8xf32>, vector<8x8xf32> -> vector<8x8xf32>
    %724 = arith.addf %723, %482 : vector<8x8xf32>
    %cst_187 = arith.constant dense<0xFF800000> : vector<8xf32>
    %725 = vector.multi_reduction <maximumf>, %724, %cst_187 [1] : vector<8x8xf32> to vector<8xf32>
    %726 = vector.shape_cast %725 : vector<8xf32> to vector<8x1xf32>
    %727 = vector.broadcast %726 : vector<8x1xf32> to vector<8x8xf32>
    %728 = arith.subf %724, %727 : vector<8x8xf32>
    %729 = math.exp %728 : vector<8x8xf32>
    %cst_188 = arith.constant dense<0.000000e+00> : vector<8xf32>
    %730 = vector.multi_reduction <add>, %729, %cst_188 [1] : vector<8x8xf32> to vector<8xf32>
    %731 = vector.shape_cast %730 : vector<8xf32> to vector<8x1xf32>
    %732 = vector.broadcast %731 : vector<8x1xf32> to vector<8x8xf32>
    %733 = arith.divf %729, %732 : vector<8x8xf32>
    %734 = arith.subf %733, %474 : vector<8x8xf32>
    %cst_189 = arith.constant 1.250000e-01 : f32
    %735 = vector.broadcast %cst_189 : f32 to vector<8x8xf32>
    %736 = arith.mulf %734, %735 : vector<8x8xf32>
    %cst_190 = arith.constant dense<0.000000e+00> : vector<8x256xf32>
    %737 = tpu.matmul %736, %473, %cst_190 {dimension_numbers = #tpu.dot_dimension_numbers<[1], [1], [0], [0], [0, 0, 1, 0], [], []>} : vector<8x8xf32>, vector<256x8xf32>, vector<8x256xf32> -> vector<8x256xf32>
    %738 = arith.mulf %484, %737 : vector<8x256xf32>
    %739 = vector.broadcast %476 : f32 to vector<8x256xf32>
    %740 = arith.mulf %739, %738 : vector<8x256xf32>
    %741 = arith.subf %721, %740 : vector<8x256xf32>
    %742 = arith.mulf %484, %741 : vector<8x256xf32>
    %cst_191 = arith.constant dense<0.000000e+00> : vector<8x8xf32>
    %743 = tpu.matmul %742, %473, %cst_191 {dimension_numbers = #tpu.dot_dimension_numbers<[1], [0], [0], [1], [0, 0, 1, 1], [], []>} : vector<8x256xf32>, vector<256x8xf32>, vector<8x8xf32> -> vector<8x8xf32>
    %744 = arith.addf %743, %482 : vector<8x8xf32>
    %cst_192 = arith.constant dense<0xFF800000> : vector<8xf32>
    %745 = vector.multi_reduction <maximumf>, %744, %cst_192 [1] : vector<8x8xf32> to vector<8xf32>
    %746 = vector.shape_cast %745 : vector<8xf32> to vector<8x1xf32>
    %747 = vector.broadcast %746 : vector<8x1xf32> to vector<8x8xf32>
    %748 = arith.subf %744, %747 : vector<8x8xf32>
    %749 = math.exp %748 : vector<8x8xf32>
    %cst_193 = arith.constant dense<0.000000e+00> : vector<8xf32>
    %750 = vector.multi_reduction <add>, %749, %cst_193 [1] : vector<8x8xf32> to vector<8xf32>
    %751 = vector.shape_cast %750 : vector<8xf32> to vector<8x1xf32>
    %752 = vector.broadcast %751 : vector<8x1xf32> to vector<8x8xf32>
    %753 = arith.divf %749, %752 : vector<8x8xf32>
    %754 = arith.subf %753, %474 : vector<8x8xf32>
    %cst_194 = arith.constant 1.250000e-01 : f32
    %755 = vector.broadcast %cst_194 : f32 to vector<8x8xf32>
    %756 = arith.mulf %754, %755 : vector<8x8xf32>
    %cst_195 = arith.constant dense<0.000000e+00> : vector<8x256xf32>
    %757 = tpu.matmul %756, %473, %cst_195 {dimension_numbers = #tpu.dot_dimension_numbers<[1], [1], [0], [0], [0, 0, 1, 0], [], []>} : vector<8x8xf32>, vector<256x8xf32>, vector<8x256xf32> -> vector<8x256xf32>
    %758 = arith.mulf %484, %757 : vector<8x256xf32>
    %759 = vector.broadcast %476 : f32 to vector<8x256xf32>
    %760 = arith.mulf %759, %758 : vector<8x256xf32>
    %761 = arith.subf %741, %760 : vector<8x256xf32>
    %cst_196 = arith.constant dense<0.000000e+00> : vector<8x256xf32>
    %762 = tpu.matmul %437, %472, %cst_196 {dimension_numbers = #tpu.dot_dimension_numbers<[1], [0], [0], [1], [0, 0, 1, 1], [], []>} : vector<8x32xf32>, vector<32x256xf32>, vector<8x256xf32> -> vector<8x256xf32>
    %763 = arith.mulf %762, %761 : vector<8x256xf32>
    %cst_197 = arith.constant dense<0.000000e+00> : vector<8x8xf32>
    %764 = tpu.matmul %763, %473, %cst_197 {dimension_numbers = #tpu.dot_dimension_numbers<[1], [0], [0], [1], [0, 0, 1, 1], [], []>} : vector<8x256xf32>, vector<256x8xf32>, vector<8x8xf32> -> vector<8x8xf32>
    %765 = arith.addf %764, %482 : vector<8x8xf32>
    %c0_198 = arith.constant 0 : index
    %c0_199 = arith.constant 0 : index
    %766 = vector.load %arg20[%c0_198, %c0_199] : memref<8x8xf32, #tpu.memory_space<vmem>>, vector<8x8xf32>
    %cst_200 = arith.constant dense<0xFF800000> : vector<8xf32>
    %767 = vector.multi_reduction <maximumf>, %765, %cst_200 [1] : vector<8x8xf32> to vector<8xf32>
    %768 = vector.shape_cast %767 : vector<8xf32> to vector<8x1xf32>
    %769 = vector.broadcast %768 : vector<8x1xf32> to vector<8x8xf32>
    %770 = arith.subf %765, %769 : vector<8x8xf32>
    %771 = math.exp %770 : vector<8x8xf32>
    %cst_201 = arith.constant dense<0.000000e+00> : vector<8xf32>
    %772 = vector.multi_reduction <add>, %771, %cst_201 [1] : vector<8x8xf32> to vector<8xf32>
    %773 = vector.shape_cast %772 : vector<8xf32> to vector<8x1xf32>
    %774 = math.log %773 : vector<8x1xf32>
    %775 = arith.addf %768, %774 : vector<8x1xf32>
    %776 = arith.mulf %765, %766 : vector<8x8xf32>
    %cst_202 = arith.constant dense<0.000000e+00> : vector<8xf32>
    %777 = vector.multi_reduction <add>, %776, %cst_202 [1] : vector<8x8xf32> to vector<8xf32>
    %778 = vector.shape_cast %777 : vector<8xf32> to vector<8x1xf32>
    %779 = arith.subf %775, %778 : vector<8x1xf32>
    %cst_203 = arith.constant dense<0.000000e+00> : vector<8xf32>
    %780 = vector.multi_reduction <add>, %779, %cst_203 [1] : vector<8x1xf32> to vector<8xf32>
    %781 = vector.shape_cast %780 : vector<8xf32> to vector<8x1xf32>
    %cst_204 = arith.constant dense<0.000000e+00> : vector<1xf32>
    %782 = vector.multi_reduction <add>, %781, %cst_204 [0] : vector<8x1xf32> to vector<1xf32>
    %783 = vector.shape_cast %782 : vector<1xf32> to vector<1x1xf32>
    %cst_205 = arith.constant 1.250000e-01 : f32
    %784 = vector.broadcast %cst_205 : f32 to vector<1x1xf32>
    %785 = arith.mulf %783, %784 : vector<1x1xf32>
    %c0_206 = arith.constant 0 : index
    %c0_207 = arith.constant 0 : index
    %786 = vector.load %arg26[%c0_206, %c0_207] : memref<1x1xf32, #tpu.memory_space<vmem>>, vector<1x1xf32>
    tpu.vector_store %arg26[%c0_206, %c0_207], %785 {strides = array<i32>} : memref<1x1xf32, #tpu.memory_space<vmem>>, vector<1x1xf32>,
    %787 = vector.broadcast %768 : vector<8x1xf32> to vector<8x8xf32>
    %788 = arith.cmpf oge, %765, %787 : vector<8x8xf32>
    %cst_208 = arith.constant 8.000000e+00 : f32
    %789 = vector.broadcast %cst_208 : f32 to vector<8x8xf32>
    %790 = arith.select %788, %483, %789 : vector<8x8xi1>, vector<8x8xf32>
    %cst_209 = arith.constant dense<0x7F800000> : vector<8xf32>
    %791 = vector.multi_reduction <minimumf>, %790, %cst_209 [1] : vector<8x8xf32> to vector<8xf32>
    %792 = vector.shape_cast %791 : vector<8xf32> to vector<8x1xf32>
    %c0_210 = arith.constant 0 : index
    %c0_211 = arith.constant 0 : index
    %793 = vector.load %arg21[%c0_210, %c0_211] : memref<8x1xf32, #tpu.memory_space<vmem>>, vector<8x1xf32>
    %794 = arith.cmpf oeq, %792, %793 : vector<8x1xf32>
    %795 = arith.extui %794 : vector<8x1xi1> to vector<8x1xi32>
    %796 = arith.sitofp %795 : vector<8x1xi32> to vector<8x1xf32>
    %cst_212 = arith.constant dense<0.000000e+00> : vector<8xf32>
    %797 = vector.multi_reduction <add>, %796, %cst_212 [1] : vector<8x1xf32> to vector<8xf32>
    %798 = vector.shape_cast %797 : vector<8xf32> to vector<8x1xf32>
    %cst_213 = arith.constant dense<0.000000e+00> : vector<1xf32>
    %799 = vector.multi_reduction <add>, %798, %cst_213 [0] : vector<8x1xf32> to vector<1xf32>
    %800 = vector.shape_cast %799 : vector<1xf32> to vector<1x1xf32>
    %cst_214 = arith.constant 1.250000e-01 : f32
    %801 = vector.broadcast %cst_214 : f32 to vector<1x1xf32>
    %802 = arith.mulf %800, %801 : vector<1x1xf32>
    %c0_215 = arith.constant 0 : index
    %c0_216 = arith.constant 0 : index
    %803 = vector.load %arg27[%c0_215, %c0_216] : memref<1x1xf32, #tpu.memory_space<vmem>>, vector<1x1xf32>
    tpu.vector_store %arg27[%c0_215, %c0_216], %802 {strides = array<i32>} : memref<1x1xf32, #tpu.memory_space<vmem>>, vector<1x1xf32>,
    return
  }
}

</mosaic_0001>

<llo_original>
// kernel: meta_forward.3
$region0: #{meta_forward.3}
  #allocation0 [shape = 'u32[]', space=smem, size = 0x4, offset = 0x4, fixed_abs, tag = 'smem constant byte address 0x4 - core index']
  #allocation1 [shape = 'u32[144,128]{1,0:T(1,128)}', space=vmem, size = 0x12000, scoped, tag = 'internal scratch']
  #allocation2 [shape = 'f32[1,1]{1,0:T(1,128)S(6)}', space=smem, size = 0x200, scoped, tag = 'scoped memory for meta_forward.3']
  #allocation3 [shape = 'f32[1,1]{1,0:T(1,128)S(6)}', space=smem, size = 0x200, scoped, tag = 'scoped memory for meta_forward.3']
  %s0 = inlined_call_operand.smem [shape: u32[30], index: -1, kind: input, shape index: {}]
  %s1 = sld [smem:[%s0]]
  %s2 = scalar_lea.smem %s0, 1
  %s3 = sld [smem:[%s2]]
  %s4 = scalar_lea.smem %s0, 2
  %s5 = sld [smem:[%s4]]
  %s6 = scalar_lea.smem %s0, 3
  %s7 = sld [smem:[%s6]]
  %s8 = scalar_lea.smem %s0, 4
  %s9 = sld [smem:[%s8]]
  %s10 = scalar_lea.smem %s0, 5
  %s11 = sld [smem:[%s10]]
  %s12 = scalar_lea.smem %s0, 6
  %s13 = sld [smem:[%s12]]
  %s14 = scalar_lea.smem %s0, 7
  %s15 = sld [smem:[%s14]]
  %s16 = scalar_lea.smem %s0, 8
  %s17 = sld [smem:[%s16]]
  %s18 = scalar_lea.smem %s0, 9
  %s19 = sld [smem:[%s18]]
  %s20 = scalar_lea.smem %s0, 10
  %s21 = sld [smem:[%s20]]
  %s22 = scalar_lea.smem %s0, 11
  %s23 = sld [smem:[%s22]]
  %s24 = scalar_lea.smem %s0, 12
  %s25 = sld [smem:[%s24]]
  %s26 = scalar_lea.smem %s0, 13
  %s27 = sld [smem:[%s26]]
  %s28 = scalar_lea.smem %s0, 14
  %s29 = sld [smem:[%s28]]
  %s30 = scalar_lea.smem %s0, 15
  %s31 = sld [smem:[%s30]]
  %s32 = scalar_lea.smem %s0, 16
  %s33 = sld [smem:[%s32]]
  %s34 = scalar_lea.smem %s0, 17
  %s35 = sld [smem:[%s34]]
  %s36 = scalar_lea.smem %s0, 18
  %s37 = sld [smem:[%s36]]
  %s38 = scalar_lea.smem %s0, 19
  %s39 = sld [smem:[%s38]]
  %s40 = scalar_lea.smem %s0, 20
  %s41 = sld [smem:[%s40]]
  %s42 = scalar_lea.smem %s0, 21
  %s43 = sld [smem:[%s42]]
  %s44 = scalar_lea.smem %s0, 22
  %s45 = sld [smem:[%s44]]
  %s46 = scalar_lea.smem %s0, 23
  %s47 = sld [smem:[%s46]]
  %s48 = scalar_lea.smem %s0, 24
  %s49 = sld [smem:[%s48]]
  %s50 = scalar_lea.smem %s0, 25
  %s51 = sld [smem:[%s50]]
  %s52 = scalar_lea.smem %s0, 26
  %s53 = sld [smem:[%s52]]
  %s54 = scalar_lea.smem %s0, 27
  %s55 = sld [smem:[%s54]]
  %s56 = scalar_lea.smem %s0, 28
  %s57 = sld [smem:[%s56]]
  %s58 = scalar_lea.smem %s0, 29
  %s59 = sld [smem:[%s58]]
  %60 = xla_tuple %s53, %s55, %s57, %s59
  %s61 = sld [smem:[#allocation0]]
  $region138: #{meta_forward.3} parent=0
    _
  %s63 = ssub.s32 1, %s61
  %s64 = scalar_select 0, %s63, %s61
  %65 = sst [smem:[#allocation2]] %s49
  %66 = sst [smem:[#allocation3]] %s51
  $region1: #{meta_forward.3} parent=0
    #allocation4 [shape = 'u8[512]{0}', space=vmem, size = 0x400, scoped, tag = 'output window, operand 0, single buffered']
    #allocation5 [shape = 's32[1]{0}', space=sflag, size = 0x4, scoped, tag = 'scoped memory for meta_forward.3']
    #allocation6 [shape = 'u8[512]{0}', space=vmem, size = 0x400, scoped, tag = 'output window, operand 1, single buffered']
    #allocation7 [shape = 's32[1]{0}', space=sflag, size = 0x4, scoped, tag = 'scoped memory for meta_forward.3']
    #allocation8 [shape = 'u8[512]{0}', space=vmem, size = 0x400, scoped, tag = 'output window, operand 2, single buffered']
    #allocation9 [shape = 'u8[512]{0}', space=vmem, size = 0x400, scoped, tag = 'output window, operand 3, single buffered']
    #allocation10 [shape = 's32[1]{0}', space=sflag, size = 0x4, scoped, tag = 'scoped memory for meta_forward.3']
    %67 = vsyncpa [#allocation5], 0
    %68 = vsyncpa [#allocation7], 0
    %69 = vsyncpa [#allocation10], 0
    // Predicated region
    $region2: #{meta_forward.3} parent=1 // pred_check
      _
    $region3: #{meta_forward.3} parent=1 // pred_check_branch
      %71 = sbr.rel (0) target = $region5
    $region4: #{meta_forward.3} parent=1 // pred_region
      _
    $region5: #{meta_forward.3} parent=1 // pred_fallthru
      _
    // Predicated region
    $region6: #{meta_forward.3} parent=1 // pred_check
      _
    $region7: #{meta_forward.3} parent=1 // pred_check_branch
      %73 = sbr.rel (0) target = $region9
    $region8: #{meta_forward.3} parent=1 // pred_region
      _
    $region9: #{meta_forward.3} parent=1 // pred_fallthru
      _
    // Predicated region
    $region10: #{meta_forward.3} parent=1 // pred_check
      _
    $region11: #{meta_forward.3} parent=1 // pred_check_branch
      %75 = sbr.rel (0) target = $region13
    $region12: #{meta_forward.3} parent=1 // pred_region
      _
    $region13: #{meta_forward.3} parent=1 // pred_fallthru
      _
    // Predicated region
    $region14: #{meta_forward.3} parent=1 // pred_check
      _
    $region15: #{meta_forward.3} parent=1 // pred_check_branch
      %77 = sbr.rel (0) target = $region17
    $region16: #{meta_forward.3} parent=1 // pred_region
      _
    $region17: #{meta_forward.3} parent=1 // pred_fallthru
      _
    // Predicated region
    $region18: #{meta_forward.3} parent=1 // pred_check
      _
    $region19: #{meta_forward.3} parent=1 // pred_check_branch
      %79 = sbr.rel (0) target = $region21
    $region20: #{meta_forward.3} parent=1 // pred_region
      _
    $region21: #{meta_forward.3} parent=1 // pred_fallthru
      _
    // Predicated region
    $region22: #{meta_forward.3} parent=1 // pred_check
      _
    $region23: #{meta_forward.3} parent=1 // pred_check_branch
      %81 = sbr.rel (0) target = $region25
    $region24: #{meta_forward.3} parent=1 // pred_region
      _
    $region25: #{meta_forward.3} parent=1 // pred_fallthru
      _
    // Predicated region
    $region26: #{meta_forward.3} parent=1 // pred_check
      _
    $region27: #{meta_forward.3} parent=1 // pred_check_branch
      %83 = sbr.rel (0) target = $region29
    $region28: #{meta_forward.3} parent=1 // pred_region
      _
    $region29: #{meta_forward.3} parent=1 // pred_fallthru
      _
    // Predicated region
    $region30: #{meta_forward.3} parent=1 // pred_check
      _
    $region31: #{meta_forward.3} parent=1 // pred_check_branch
      %85 = sbr.rel (0) target = $region33
    $region32: #{meta_forward.3} parent=1 // pred_region
      _
    $region33: #{meta_forward.3} parent=1 // pred_fallthru
      _
    // Predicated region
    $region34: #{meta_forward.3} parent=1 // pred_check
      _
    $region35: #{meta_forward.3} parent=1 // pred_check_branch
      %87 = sbr.rel (0) target = $region37
    $region36: #{meta_forward.3} parent=1 // pred_region
      _
    $region37: #{meta_forward.3} parent=1 // pred_fallthru
      _
    // Predicated region
    $region38: #{meta_forward.3} parent=1 // pred_check
      _
    $region39: #{meta_forward.3} parent=1 // pred_check_branch
      %89 = sbr.rel (0) target = $region41
    $region40: #{meta_forward.3} parent=1 // pred_region
      _
    $region41: #{meta_forward.3} parent=1 // pred_fallthru
      _
    // Predicated region
    $region42: #{meta_forward.3} parent=1 // pred_check
      _
    $region43: #{meta_forward.3} parent=1 // pred_check_branch
      %91 = sbr.rel (0) target = $region45
    $region44: #{meta_forward.3} parent=1 // pred_region
      _
    $region45: #{meta_forward.3} parent=1 // pred_fallthru
      _
    // Predicated region
    $region46: #{meta_forward.3} parent=1 // pred_check
      _
    $region47: #{meta_forward.3} parent=1 // pred_check_branch
      %93 = sbr.rel (0) target = $region49
    $region48: #{meta_forward.3} parent=1 // pred_region
      _
    $region49: #{meta_forward.3} parent=1 // pred_fallthru
      _
    // Predicated region
    $region50: #{meta_forward.3} parent=1 // pred_check
      _
    $region51: #{meta_forward.3} parent=1 // pred_check_branch
      %95 = sbr.rel (0) target = $region53
    $region52: #{meta_forward.3} parent=1 // pred_region
      _
    $region53: #{meta_forward.3} parent=1 // pred_fallthru
      _
    // Predicated region
    $region54: #{meta_forward.3} parent=1 // pred_check
      _
    $region55: #{meta_forward.3} parent=1 // pred_check_branch
      %97 = sbr.rel (0) target = $region57
    $region56: #{meta_forward.3} parent=1 // pred_region
      _
    $region57: #{meta_forward.3} parent=1 // pred_fallthru
      _
    // Predicated region
    $region58: #{meta_forward.3} parent=1 // pred_check
      _
    $region59: #{meta_forward.3} parent=1 // pred_check_branch
      %99 = sbr.rel (0) target = $region61
    $region60: #{meta_forward.3} parent=1 // pred_region
      _
    $region61: #{meta_forward.3} parent=1 // pred_fallthru
      _
    // Predicated region
    $region62: #{meta_forward.3} parent=1 // pred_check
      _
    $region63: #{meta_forward.3} parent=1 // pred_check_branch
      %101 = sbr.rel (0) target = $region65
    $region64: #{meta_forward.3} parent=1 // pred_region
      _
    $region65: #{meta_forward.3} parent=1 // pred_fallthru
      _
    // Predicated region
    $region66: #{meta_forward.3} parent=1 // pred_check
      _
    $region67: #{meta_forward.3} parent=1 // pred_check_branch
      %103 = sbr.rel (0) target = $region69
    $region68: #{meta_forward.3} parent=1 // pred_region
      _
    $region69: #{meta_forward.3} parent=1 // pred_fallthru
      _
    // Predicated region
    $region70: #{meta_forward.3} parent=1 // pred_check
      _
    $region71: #{meta_forward.3} parent=1 // pred_check_branch
      %105 = sbr.rel (0) target = $region73
    $region72: #{meta_forward.3} parent=1 // pred_region
      _
    $region73: #{meta_forward.3} parent=1 // pred_fallthru
      _
    // Predicated region
    $region74: #{meta_forward.3} parent=1 // pred_check
      _
    $region75: #{meta_forward.3} parent=1 // pred_check_branch
      %107 = sbr.rel (0) target = $region77
    $region76: #{meta_forward.3} parent=1 // pred_region
      _
    $region77: #{meta_forward.3} parent=1 // pred_fallthru
      _
    // Predicated region
    $region78: #{meta_forward.3} parent=1 // pred_check
      _
    $region79: #{meta_forward.3} parent=1 // pred_check_branch
      %109 = sbr.rel (0) target = $region81
    $region80: #{meta_forward.3} parent=1 // pred_region
      _
    $region81: #{meta_forward.3} parent=1 // pred_fallthru
      _
    // Predicated region
    $region82: #{meta_forward.3} parent=1 // pred_check
      _
    $region83: #{meta_forward.3} parent=1 // pred_check_branch
      %111 = sbr.rel (0) target = $region85
    $region84: #{meta_forward.3} parent=1 // pred_region
      _
    $region85: #{meta_forward.3} parent=1 // pred_fallthru
      _
    // Predicated region
    $region86: #{meta_forward.3} parent=1 // pred_check
      _
    $region87: #{meta_forward.3} parent=1 // pred_check_branch
      %113 = sbr.rel (0) target = $region89
    $region88: #{meta_forward.3} parent=1 // pred_region
      _
    $region89: #{meta_forward.3} parent=1 // pred_fallthru
      _
    // Predicated region
    $region90: #{meta_forward.3} parent=1 // pred_check
      _
    $region91: #{meta_forward.3} parent=1 // pred_check_branch
      %115 = sbr.rel (0) target = $region93
    $region92: #{meta_forward.3} parent=1 // pred_region
      _
    $region93: #{meta_forward.3} parent=1 // pred_fallthru
      _
    // Predicated region
    $region94: #{meta_forward.3} parent=1 // pred_check
      _
    $region95: #{meta_forward.3} parent=1 // pred_check_branch
      %117 = sbr.rel (0) target = $region97
    $region96: #{meta_forward.3} parent=1 // pred_region
      _
    $region97: #{meta_forward.3} parent=1 // pred_fallthru
      _
    // Predicated region
    $region98: #{meta_forward.3} parent=1 // pred_check
      _
    $region99: #{meta_forward.3} parent=1 // pred_check_branch
      %119 = sbr.rel (0) target = $region101
    $region100: #{meta_forward.3} parent=1 // pred_region
      _
    $region101: #{meta_forward.3} parent=1 // pred_fallthru
      _
    // Predicated region
    $region102: #{meta_forward.3} parent=1 // pred_check
      _
    $region103: #{meta_forward.3} parent=1 // pred_check_branch
      %121 = sbr.rel (0) target = $region105
    $region104: #{meta_forward.3} parent=1 // pred_region
      _
    $region105: #{meta_forward.3} parent=1 // pred_fallthru
      _
    %v122 = vld [vmem:[%s1] sm:$0xff]
    %v123 = vld [vmem:[%s1 + $0x8] sm:$0xff]
    %v124 = vld [vmem:[%s1 + $0x10] sm:$0xff]
    %v125 = vld [vmem:[%s1 + $0x18] sm:$0xff]
    %v126 = vld [vmem:[%s1 + $0x20] sm:$0xff]
    %v127 = vld [vmem:[%s1 + $0x28] sm:$0xff]
    %v128 = vld [vmem:[%s1 + $0x30] sm:$0xff]
    %v129 = vld [vmem:[%s1 + $0x38] sm:$0xff]
    %v130 = vld [vmem:[%s1 + $0x40] sm:$0xff]
    %v131 = vld [vmem:[%s1 + $0x48] sm:$0xff]
    %v132 = vld [vmem:[%s1 + $0x50] sm:$0xff]
    %v133 = vld [vmem:[%s1 + $0x58] sm:$0xff]
    %v134 = vld [vmem:[%s1 + $0x60] sm:$0xff]
    %v135 = vld [vmem:[%s1 + $0x68] sm:$0xff]
    %v136 = vld [vmem:[%s1 + $0x70] sm:$0xff]
    %v137 = vld [vmem:[%s1 + $0x78] sm:$0xff]
    %v138 = vld [vmem:[%s5] sm:$0xff]
    %v139 = vld [vmem:[%s5 + $0x8] sm:$0xff]
    %v140 = vld [vmem:[%s7] sm:$0x1]
    %v142 = vlaneseq
    %v143 = vshrl.u32 %v142, 7
    %v144 = vsub.s32 0, %v143
    %v145 = vrot.slane %v140, %v144
    %vm147 = vcmask 130048
    %v149 = vsel %vm147, %v122, 0
    %v152 = vsel %vm147, %v123, 0
    %v155 = vsel %vm147, %v124, 0
    %v158 = vsel %vm147, %v125, 0
    %v161 = vsel %vm147, %v126, 0
    %v164 = vsel %vm147, %v127, 0
    %v167 = vsel %vm147, %v128, 0
    %v170 = vsel %vm147, %v129, 0
    %v173 = vsel %vm147, %v130, 0
    %v176 = vsel %vm147, %v131, 0
    %v179 = vsel %vm147, %v132, 0
    %v182 = vsel %vm147, %v133, 0
    %v185 = vsel %vm147, %v134, 0
    %v188 = vsel %vm147, %v135, 0
    %v191 = vsel %vm147, %v136, 0
    %v194 = vsel %vm147, %v137, 0
    %196 = vmatprep.subr.mxu0 0.0
    %197 = vmatpush1.msra.mxu0 0.0
    %198 = vmatprep.subr.mxu0 0.0
    %199 = vmatpush1.msra.mxu0 0.0
    %200 = vmatprep.subr.mxu0 0.0
    %201 = vmatpush1.msra.mxu0 0.0
    %202 = vmatprep.subr.mxu0 0.0
    %203 = vmatpush1.msra.mxu0 0.0
    %204 = vmatprep.subr.mxu0 0.0
    %205 = vmatpush1.msra.mxu0 0.0
    %206 = vmatprep.subr.mxu0 0.0
    %207 = vmatpush1.msra.mxu0 0.0
    %208 = vmatprep.subr.mxu0 0.0
    %209 = vmatpush1.msra.mxu0 0.0
    %210 = vmatprep.subr.mxu0 0.0
    %211 = vmatpush1.msra.mxu0 0.0
    %212 = vmatprep.subr.mxu0 0.0
    %213 = vmatpush1.msra.mxu0 0.0
    %214 = vmatprep.subr.mxu0 0.0
    %215 = vmatpush1.msra.mxu0 0.0
    %216 = vmatprep.subr.mxu0 0.0
    %217 = vmatpush1.msra.mxu0 0.0
    %218 = vmatprep.subr.mxu0 0.0
    %219 = vmatpush1.msra.mxu0 0.0
    %220 = vmatprep.subr.mxu0 0.0
    %221 = vmatpush1.msra.mxu0 0.0
    %222 = vmatprep.subr.mxu0 0.0
    %223 = vmatpush1.msra.mxu0 0.0
    %224 = vmatprep.subr.mxu0 0.0
    %225 = vmatpush1.msra.mxu0 %v139
    %226 = vmatprep.subr.mxu0 0.0
    %227 = vmatpush1.msra.mxu0 %v138
    %228 = vmatprep.subr.mxu0 0.0
    %229 = vmatpush2.msra.mxu0 0.0
    %230 = vmatprep.subr.mxu0 0.0
    %231 = vmatpush2.msra.mxu0 0.0
    %232 = vmatprep.subr.mxu0 0.0
    %233 = vmatpush2.msra.mxu0 0.0
    %234 = vmatprep.subr.mxu0 0.0
    %235 = vmatpush2.msra.mxu0 0.0
    %236 = vmatprep.subr.mxu0 0.0
    %237 = vmatpush2.msra.mxu0 0.0
    %238 = vmatprep.subr.mxu0 0.0
    %239 = vmatpush2.msra.mxu0 0.0
    %240 = vmatprep.subr.mxu0 0.0
    %241 = vmatpush2.msra.mxu0 0.0
    %242 = vmatprep.subr.mxu0 0.0
    %243 = vmatpush2.msra.mxu0 0.0
    %244 = vmatprep.subr.mxu0 0.0
    %245 = vmatpush2.msra.mxu0 0.0
    %246 = vmatprep.subr.mxu0 0.0
    %247 = vmatpush2.msra.mxu0 0.0
    %248 = vmatprep.subr.mxu0 0.0
    %249 = vmatpush2.msra.mxu0 0.0
    %250 = vmatprep.subr.mxu0 0.0
    %251 = vmatpush2.msra.mxu0 0.0
    %252 = vmatprep.subr.mxu0 0.0
    %253 = vmatpush2.msra.mxu0 0.0
    %254 = vmatprep.subr.mxu0 0.0
    %255 = vmatpush2.msra.mxu0 0.0
    %256 = vmatprep.subr.mxu0 0.0
    %257 = vmatpush2.msra.mxu0 0.0
    %258 = vmatprep.subr.mxu0 0.0
    %259 = vmatpush2.msra.mxu0 0.0
    %260 = vmatprep.mubr.f32.mxu0 0.0
    %261 = vmatmul.mubr.f32.gmra.mxu0 %v149
    %v262 = vpop.f32.mrf.mxu0
    %v263 = vadd.f32 %v145, %v262
    %v264 = vpop.f32.mrf.mxu0
    %265 = vmatprep.mubr.f32.mxu0 0.0
    %266 = vmatmul.mubr.f32.gmra.mxu0 %v152
    %v267 = vpop.f32.mrf.mxu0
    %v268 = vadd.f32 %v145, %v267
    %v269 = vpop.f32.mrf.mxu0
    %270 = vmatprep.mubr.f32.mxu0 0.0
    %271 = vmatmul.mubr.f32.gmra.mxu0 %v155
    %v272 = vpop.f32.mrf.mxu0
    %v273 = vadd.f32 %v145, %v272
    %v274 = vpop.f32.mrf.mxu0
    %275 = vmatprep.mubr.f32.mxu0 0.0
    %276 = vmatmul.mubr.f32.gmra.mxu0 %v158
    %v277 = vpop.f32.mrf.mxu0
    %v278 = vadd.f32 %v145, %v277
    %v279 = vpop.f32.mrf.mxu0
    %280 = vmatprep.mubr.f32.mxu0 0.0
    %281 = vmatmul.mubr.f32.gmra.mxu0 %v161
    %v282 = vpop.f32.mrf.mxu0
    %v283 = vadd.f32 %v145, %v282
    %v284 = vpop.f32.mrf.mxu0
    %285 = vmatprep.mubr.f32.mxu0 0.0
    %286 = vmatmul.mubr.f32.gmra.mxu0 %v164
    %v287 = vpop.f32.mrf.mxu0
    %v288 = vadd.f32 %v145, %v287
    %v289 = vpop.f32.mrf.mxu0
    %290 = vmatprep.mubr.f32.mxu0 0.0
    %291 = vmatmul.mubr.f32.gmra.mxu0 %v167
    %v292 = vpop.f32.mrf.mxu0
    %v293 = vadd.f32 %v145, %v292
    %v294 = vpop.f32.mrf.mxu0
    %295 = vmatprep.mubr.f32.mxu0 0.0
    %296 = vmatmul.mubr.f32.gmra.mxu0 %v170
    %v297 = vpop.f32.mrf.mxu0
    %v298 = vadd.f32 %v145, %v297
    %v299 = vpop.f32.mrf.mxu0
    %300 = vmatprep.mubr.f32.mxu0 0.0
    %301 = vmatmul.mubr.f32.gmra.mxu0 %v173
    %v302 = vpop.f32.mrf.mxu0
    %v303 = vadd.f32 %v145, %v302
    %v304 = vpop.f32.mrf.mxu0
    %305 = vmatprep.mubr.f32.mxu0 0.0
    %306 = vmatmul.mubr.f32.gmra.mxu0 %v176
    %v307 = vpop.f32.mrf.mxu0
    %v308 = vadd.f32 %v145, %v307
    %v309 = vpop.f32.mrf.mxu0
    %310 = vmatprep.mubr.f32.mxu0 0.0
    %311 = vmatmul.mubr.f32.gmra.mxu0 %v179
    %v312 = vpop.f32.mrf.mxu0
    %v313 = vadd.f32 %v145, %v312
    %v314 = vpop.f32.mrf.mxu0
    %315 = vmatprep.mubr.f32.mxu0 0.0
    %316 = vmatmul.mubr.f32.gmra.mxu0 %v182
    %v317 = vpop.f32.mrf.mxu0
    %v318 = vadd.f32 %v145, %v317
    %v319 = vpop.f32.mrf.mxu0
    %320 = vmatprep.mubr.f32.mxu0 0.0
    %321 = vmatmul.mubr.f32.gmra.mxu0 %v185
    %v322 = vpop.f32.mrf.mxu0
    %v323 = vadd.f32 %v145, %v322
    %v324 = vpop.f32.mrf.mxu0
    %325 = vmatprep.mubr.f32.mxu0 0.0
    %326 = vmatmul.mubr.f32.gmra.mxu0 %v188
    %v327 = vpop.f32.mrf.mxu0
    %v328 = vadd.f32 %v145, %v327
    %v329 = vpop.f32.mrf.mxu0
    %330 = vmatprep.mubr.f32.mxu0 0.0
    %331 = vmatmul.mubr.f32.gmra.mxu0 %v191
    %v332 = vpop.f32.mrf.mxu0
    %v333 = vadd.f32 %v145, %v332
    %v334 = vpop.f32.mrf.mxu0
    %335 = vmatprep.mubr.f32.mxu0 0.0
    %336 = vmatmul.mubr.f32.gmra.mxu0 %v194
    %v337 = vpop.f32.mrf.mxu0
    %v338 = vadd.f32 %v145, %v337
    %v339 = vpop.f32.mrf.mxu0
    %340 = vdwg.mxu0
    %v341 = vld [vmem:[%s3] sm:$0xff]
    %v342 = vld [vmem:[%s3 + $0x8] sm:$0xff]
    %v343 = vld [vmem:[%s3 + $0x10] sm:$0xff]
    %v344 = vld [vmem:[%s3 + $0x18] sm:$0xff]
    %v345 = vld [vmem:[%s3 + $0x20] sm:$0xff]
    %v346 = vld [vmem:[%s3 + $0x28] sm:$0xff]
    %v347 = vld [vmem:[%s3 + $0x30] sm:$0xff]
    %v348 = vld [vmem:[%s3 + $0x38] sm:$0xff]
    %v349 = vld [vmem:[%s3 + $0x40] sm:$0xff]
    %v350 = vld [vmem:[%s3 + $0x48] sm:$0xff]
    %v351 = vld [vmem:[%s3 + $0x50] sm:$0xff]
    %v352 = vld [vmem:[%s3 + $0x58] sm:$0xff]
    %v353 = vld [vmem:[%s3 + $0x60] sm:$0xff]
    %v354 = vld [vmem:[%s3 + $0x68] sm:$0xff]
    %v355 = vld [vmem:[%s3 + $0x70] sm:$0xff]
    %v356 = vld [vmem:[%s3 + $0x78] sm:$0xff]
    %v357 = vmul.f32 %v263, %v341
    %v358 = vmul.f32 %v268, %v342
    %v359 = vmul.f32 %v273, %v343
    %v360 = vmul.f32 %v278, %v344
    %v361 = vmul.f32 %v283, %v345
    %v362 = vmul.f32 %v288, %v346
    %v363 = vmul.f32 %v293, %v347
    %v364 = vmul.f32 %v298, %v348
    %v365 = vmul.f32 %v303, %v349
    %v366 = vmul.f32 %v308, %v350
    %v367 = vmul.f32 %v313, %v351
    %v368 = vmul.f32 %v318, %v352
    %v369 = vmul.f32 %v323, %v353
    %v370 = vmul.f32 %v328, %v354
    %v371 = vmul.f32 %v333, %v355
    %v372 = vmul.f32 %v338, %v356
    %v373 = vld [vmem:[%s9] sm:$0xff]
    %v374 = vld [vmem:[%s9 + $0x8] sm:$0xff]
    %v375 = vld [vmem:[%s9 + $0x10] sm:$0xff]
    %v376 = vld [vmem:[%s9 + $0x18] sm:$0xff]
    %v377 = vld [vmem:[%s13] sm:$0x1]
    %v379 = vlaneseq
    %v380 = vshrl.u32 %v379, 7
    %v381 = vsub.s32 0, %v380
    %v382 = vrot.slane %v377, %v381
    %vm384 = vcmask 261120
    %v386 = vsel %vm384, %v357, 0
    %v389 = vsel %vm384, %v358, 0
    %v392 = vsel %vm384, %v359, 0
    %v395 = vsel %vm384, %v360, 0
    %v398 = vsel %vm384, %v361, 0
    %v401 = vsel %vm384, %v362, 0
    %v404 = vsel %vm384, %v363, 0
    %v407 = vsel %vm384, %v364, 0
    %v410 = vsel %vm384, %v365, 0
    %v413 = vsel %vm384, %v366, 0
    %v416 = vsel %vm384, %v367, 0
    %v419 = vsel %vm384, %v368, 0
    %v422 = vsel %vm384, %v369, 0
    %v425 = vsel %vm384, %v370, 0
    %v428 = vsel %vm384, %v371, 0
    %v431 = vsel %vm384, %v372, 0
    %433 = vmatprep.subr.mxu0 0.0
    %434 = vmatpush1.msra.mxu0 0.0
    %435 = vmatprep.subr.mxu0 0.0
    %436 = vmatpush1.msra.mxu0 0.0
    %437 = vmatprep.subr.mxu0 0.0
    %438 = vmatpush1.msra.mxu0 0.0
    %439 = vmatprep.subr.mxu0 0.0
    %440 = vmatpush1.msra.mxu0 0.0
    %441 = vmatprep.subr.mxu0 0.0
    %442 = vmatpush1.msra.mxu0 0.0
    %443 = vmatprep.subr.mxu0 0.0
    %444 = vmatpush1.msra.mxu0 0.0
    %445 = vmatprep.subr.mxu0 0.0
    %446 = vmatpush1.msra.mxu0 0.0
    %447 = vmatprep.subr.mxu0 0.0
    %448 = vmatpush1.msra.mxu0 0.0
    %449 = vmatprep.subr.mxu0 0.0
    %450 = vmatpush1.msra.mxu0 0.0
    %451 = vmatprep.subr.mxu0 0.0
    %452 = vmatpush1.msra.mxu0 0.0
    %453 = vmatprep.subr.mxu0 0.0
    %454 = vmatpush1.msra.mxu0 0.0
    %455 = vmatprep.subr.mxu0 0.0
    %456 = vmatpush1.msra.mxu0 0.0
    %457 = vmatprep.subr.mxu0 0.0
    %458 = vmatpush1.msra.mxu0 %v376
    %459 = vmatprep.subr.mxu0 0.0
    %460 = vmatpush1.msra.mxu0 %v375
    %461 = vmatprep.subr.mxu0 0.0
    %462 = vmatpush1.msra.mxu0 %v374
    %463 = vmatprep.subr.mxu0 0.0
    %464 = vmatpush1.msra.mxu0 %v373
    %465 = vmatprep.subr.mxu0 0.0
    %466 = vmatpush2.msra.mxu0 0.0
    %467 = vmatprep.subr.mxu0 0.0
    %468 = vmatpush2.msra.mxu0 0.0
    %469 = vmatprep.subr.mxu0 0.0
    %470 = vmatpush2.msra.mxu0 0.0
    %471 = vmatprep.subr.mxu0 0.0
    %472 = vmatpush2.msra.mxu0 0.0
    %473 = vmatprep.subr.mxu0 0.0
    %474 = vmatpush2.msra.mxu0 0.0
    %475 = vmatprep.subr.mxu0 0.0
    %476 = vmatpush2.msra.mxu0 0.0
    %477 = vmatprep.subr.mxu0 0.0
    %478 = vmatpush2.msra.mxu0 0.0
    %479 = vmatprep.subr.mxu0 0.0
    %480 = vmatpush2.msra.mxu0 0.0
    %481 = vmatprep.subr.mxu0 0.0
    %482 = vmatpush2.msra.mxu0 0.0
    %483 = vmatprep.subr.mxu0 0.0
    %484 = vmatpush2.msra.mxu0 0.0
    %485 = vmatprep.subr.mxu0 0.0
    %486 = vmatpush2.msra.mxu0 0.0
    %487 = vmatprep.subr.mxu0 0.0
    %488 = vmatpush2.msra.mxu0 0.0
    %489 = vmatprep.subr.mxu0 0.0
    %490 = vmatpush2.msra.mxu0 0.0
    %491 = vmatprep.subr.mxu0 0.0
    %492 = vmatpush2.msra.mxu0 0.0
    %493 = vmatprep.subr.mxu0 0.0
    %494 = vmatpush2.msra.mxu0 0.0
    %495 = vmatprep.subr.mxu0 0.0
    %496 = vmatpush2.msra.mxu0 0.0
    %497 = vmatprep.mubr.f32.mxu0 0.0
    %498 = vmatmul.mubr.f32.gmra.mxu0 %v386
    %v499 = vpop.f32.mrf.mxu0
    %v500 = vadd.f32 %v382, %v499
    %v501 = vpop.f32.mrf.mxu0
    %502 = vmatprep.mubr.f32.mxu0 0.0
    %503 = vmatmul.mubr.f32.gmra.mxu0 %v389
    %v504 = vpop.f32.mrf.mxu0
    %v505 = vadd.f32 %v382, %v504
    %v506 = vpop.f32.mrf.mxu0
    %507 = vmatprep.mubr.f32.mxu0 0.0
    %508 = vmatmul.mubr.f32.gmra.mxu0 %v392
    %v509 = vpop.f32.mrf.mxu0
    %v510 = vadd.f32 %v382, %v509
    %v511 = vpop.f32.mrf.mxu0
    %512 = vmatprep.mubr.f32.mxu0 0.0
    %513 = vmatmul.mubr.f32.gmra.mxu0 %v395
    %v514 = vpop.f32.mrf.mxu0
    %v515 = vadd.f32 %v382, %v514
    %v516 = vpop.f32.mrf.mxu0
    %517 = vmatprep.mubr.f32.mxu0 0.0
    %518 = vmatmul.mubr.f32.gmra.mxu0 %v398
    %v519 = vpop.f32.mrf.mxu0
    %v520 = vadd.f32 %v382, %v519
    %v521 = vpop.f32.mrf.mxu0
    %522 = vmatprep.mubr.f32.mxu0 0.0
    %523 = vmatmul.mubr.f32.gmra.mxu0 %v401
    %v524 = vpop.f32.mrf.mxu0
    %v525 = vadd.f32 %v382, %v524
    %v526 = vpop.f32.mrf.mxu0
    %527 = vmatprep.mubr.f32.mxu0 0.0
    %528 = vmatmul.mubr.f32.gmra.mxu0 %v404
    %v529 = vpop.f32.mrf.mxu0
    %v530 = vadd.f32 %v382, %v529
    %v531 = vpop.f32.mrf.mxu0
    %532 = vmatprep.mubr.f32.mxu0 0.0
    %533 = vmatmul.mubr.f32.gmra.mxu0 %v407
    %v534 = vpop.f32.mrf.mxu0
    %v535 = vadd.f32 %v382, %v534
    %v536 = vpop.f32.mrf.mxu0
    %537 = vmatprep.mubr.f32.mxu0 0.0
    %538 = vmatmul.mubr.f32.gmra.mxu0 %v410
    %v539 = vpop.f32.mrf.mxu0
    %v540 = vadd.f32 %v382, %v539
    %v541 = vpop.f32.mrf.mxu0
    %542 = vmatprep.mubr.f32.mxu0 0.0
    %543 = vmatmul.mubr.f32.gmra.mxu0 %v413
    %v544 = vpop.f32.mrf.mxu0
    %v545 = vadd.f32 %v382, %v544
    %v546 = vpop.f32.mrf.mxu0
    %547 = vmatprep.mubr.f32.mxu0 0.0
    %548 = vmatmul.mubr.f32.gmra.mxu0 %v416
    %v549 = vpop.f32.mrf.mxu0
    %v550 = vadd.f32 %v382, %v549
    %v551 = vpop.f32.mrf.mxu0
    %552 = vmatprep.mubr.f32.mxu0 0.0
    %553 = vmatmul.mubr.f32.gmra.mxu0 %v419
    %v554 = vpop.f32.mrf.mxu0
    %v555 = vadd.f32 %v382, %v554
    %v556 = vpop.f32.mrf.mxu0
    %557 = vmatprep.mubr.f32.mxu0 0.0
    %558 = vmatmul.mubr.f32.gmra.mxu0 %v422
    %v559 = vpop.f32.mrf.mxu0
    %v560 = vadd.f32 %v382, %v559
    %v561 = vpop.f32.mrf.mxu0
    %562 = vmatprep.mubr.f32.mxu0 0.0
    %563 = vmatmul.mubr.f32.gmra.mxu0 %v425
    %v564 = vpop.f32.mrf.mxu0
    %v565 = vadd.f32 %v382, %v564
    %v566 = vpop.f32.mrf.mxu0
    %567 = vmatprep.mubr.f32.mxu0 0.0
    %568 = vmatmul.mubr.f32.gmra.mxu0 %v428
    %v569 = vpop.f32.mrf.mxu0
    %v570 = vadd.f32 %v382, %v569
    %v571 = vpop.f32.mrf.mxu0
    %572 = vmatprep.mubr.f32.mxu0 0.0
    %573 = vmatmul.mubr.f32.gmra.mxu0 %v431
    %v574 = vpop.f32.mrf.mxu0
    %v575 = vadd.f32 %v382, %v574
    %v576 = vpop.f32.mrf.mxu0
    %577 = vdwg.mxu0
    %v578 = vld [vmem:[%s11] sm:$0xff]
    %v579 = vld [vmem:[%s11 + $0x8] sm:$0xff]
    %v580 = vld [vmem:[%s11 + $0x10] sm:$0xff]
    %v581 = vld [vmem:[%s11 + $0x18] sm:$0xff]
    %v582 = vld [vmem:[%s15] sm:$0xff]
    %v583 = vld [vmem:[%s15 + $0x8] sm:$0xff]
    %v584 = vld [vmem:[%s15 + $0x10] sm:$0xff]
    %v585 = vld [vmem:[%s15 + $0x18] sm:$0xff]
    %v586 = vld [vmem:[%s17] sm:$0xff]
    %v587 = vld [vmem:[%s17 + $0x8] sm:$0xff]
    %v588 = vld [vmem:[%s17 + $0x10] sm:$0xff]
    %v589 = vld [vmem:[%s17 + $0x18] sm:$0xff]
    %v590 = vld [vmem:[%s19] sm:$0x1]
    %v592 = vsel %vm384, 0.0, 0
    %594 = vmatprep.subr.mxu0 0.0
    %595 = vmatpush1.msra.mxu0 0.0
    %596 = vmatprep.subr.mxu0 0.0
    %597 = vmatpush1.msra.mxu0 0.0
    %598 = vmatprep.subr.mxu0 0.0
    %599 = vmatpush1.msra.mxu0 0.0
    %600 = vmatprep.subr.mxu0 0.0
    %601 = vmatpush1.msra.mxu0 0.0
    %602 = vmatprep.subr.mxu0 0.0
    %603 = vmatpush1.msra.mxu0 0.0
    %604 = vmatprep.subr.mxu0 0.0
    %605 = vmatpush1.msra.mxu0 0.0
    %606 = vmatprep.subr.mxu0 0.0
    %607 = vmatpush1.msra.mxu0 0.0
    %608 = vmatprep.subr.mxu0 0.0
    %609 = vmatpush1.msra.mxu0 0.0
    %610 = vmatprep.subr.mxu0 0.0
    %611 = vmatpush1.msra.mxu0 0.0
    %612 = vmatprep.subr.mxu0 0.0
    %613 = vmatpush1.msra.mxu0 0.0
    %614 = vmatprep.subr.mxu0 0.0
    %615 = vmatpush1.msra.mxu0 0.0
    %616 = vmatprep.subr.mxu0 0.0
    %617 = vmatpush1.msra.mxu0 0.0
    %618 = vmatprep.subr.mxu0 0.0
    %619 = vmatpush1.msra.mxu0 %v581
    %620 = vmatprep.subr.mxu0 0.0
    %621 = vmatpush1.msra.mxu0 %v580
    %622 = vmatprep.subr.mxu0 0.0
    %623 = vmatpush1.msra.mxu0 %v579
    %624 = vmatprep.subr.mxu0 0.0
    %625 = vmatpush1.msra.mxu0 %v578
    %626 = vmatprep.subr.mxu0 0.0
    %627 = vmatpush2.msra.mxu0 0.0
    %628 = vmatprep.subr.mxu0 0.0
    %629 = vmatpush2.msra.mxu0 0.0
    %630 = vmatprep.subr.mxu0 0.0
    %631 = vmatpush2.msra.mxu0 0.0
    %632 = vmatprep.subr.mxu0 0.0
    %633 = vmatpush2.msra.mxu0 0.0
    %634 = vmatprep.subr.mxu0 0.0
    %635 = vmatpush2.msra.mxu0 0.0
    %636 = vmatprep.subr.mxu0 0.0
    %637 = vmatpush2.msra.mxu0 0.0
    %638 = vmatprep.subr.mxu0 0.0
    %639 = vmatpush2.msra.mxu0 0.0
    %640 = vmatprep.subr.mxu0 0.0
    %641 = vmatpush2.msra.mxu0 0.0
    %642 = vmatprep.subr.mxu0 0.0
    %643 = vmatpush2.msra.mxu0 0.0
    %644 = vmatprep.subr.mxu0 0.0
    %645 = vmatpush2.msra.mxu0 0.0
    %646 = vmatprep.subr.mxu0 0.0
    %647 = vmatpush2.msra.mxu0 0.0
    %648 = vmatprep.subr.mxu0 0.0
    %649 = vmatpush2.msra.mxu0 0.0
    %650 = vmatprep.subr.mxu0 0.0
    %651 = vmatpush2.msra.mxu0 0.0
    %652 = vmatprep.subr.mxu0 0.0
    %653 = vmatpush2.msra.mxu0 0.0
    %654 = vmatprep.subr.mxu0 0.0
    %655 = vmatpush2.msra.mxu0 0.0
    %656 = vmatprep.subr.mxu0 0.0
    %657 = vmatpush2.msra.mxu0 0.0
    %658 = vmatprep.mubr.f32.mxu0 0.0
    %659 = vmatmul.mubr.f32.gmra.mxu0 %v592
    %v660 = vpop.f32.mrf.mxu0
    %v661 = vadd.f32 0.0, %v660
    %v662 = vpop.f32.mrf.mxu0
    %663 = vmatprep.mubr.f32.mxu0 0.0
    %664 = vmatmul.mubr.f32.gmra.mxu0 %v592
    %v665 = vpop.f32.mrf.mxu0
    %v666 = vadd.f32 0.0, %v665
    %v667 = vpop.f32.mrf.mxu0
    %668 = vdwg.mxu0
    %v669 = vadd.f32 %v500, %v661
    %v670 = vadd.f32 %v505, %v666
    %v671 = vxor.u32 %v669, 2147483648
    %v672 = vxor.u32 %v670, 2147483648
    %v673 = vmul.f32 %v671, 1.442695
    %v674 = vpow.pop %v673
    %v675 = vmul.f32 %v672, 1.442695
    %v676 = vpow.pop %v675
    %v677 = vadd.f32 %v674, 1.0
    %v678 = vadd.f32 %v676, 1.0
    %v679 = vrcp.pop %v677
    %v680 = vmul.f32 1.0, %v679
    %v681 = vrcp.pop %v678
    %v682 = vmul.f32 1.0, %v681
    %v683 = vtanh.pop %v669
    %v684 = vtanh.pop %v670
    %v685 = vmul.f32 %v680, 0.0
    %v686 = vmul.f32 %v682, 0.0
    %689 = vrot.lane.b32.xlu0 %v683, 64
    %v690 = vpop.permute.xlu0 %689
    %691 = vrot.lane.b32.xlu0 %v684, 64
    %v692 = vpop.permute.xlu0 %691
    %v695 = vmul.f32 %v680, %v690
    %v696 = vmul.f32 %v682, %v692
    %699 = vrot.lane.b32.xlu0 %v695, 32
    %v700 = vpop.permute.xlu0 %699
    %701 = vrot.lane.b32.xlu0 %v696, 32
    %v702 = vpop.permute.xlu0 %701
    %v705 = vadd.f32 %v685, %v700
    %v706 = vadd.f32 %v686, %v702
    %v707 = vtanh.pop %v705
    %v708 = vtanh.pop %v706
    %711 = vrot.lane.b32.xlu0 %v707, 64
    %v712 = vpop.permute.xlu0 %711
    %713 = vrot.lane.b32.xlu0 %v708, 64
    %v714 = vpop.permute.xlu0 %713
    %v717 = vmul.f32 %v680, %v712
    %v718 = vmul.f32 %v682, %v714
    %719 = vmatprep.subr.mxu0 0.0
    %720 = vmatpush1.msra.mxu0 0.0
    %721 = vmatprep.subr.mxu0 0.0
    %722 = vmatpush1.msra.mxu0 0.0
    %723 = vmatprep.subr.mxu0 0.0
    %724 = vmatpush1.msra.mxu0 0.0
    %725 = vmatprep.subr.mxu0 0.0
    %726 = vmatpush1.msra.mxu0 0.0
    %727 = vmatprep.subr.mxu0 0.0
    %728 = vmatpush1.msra.mxu0 0.0
    %729 = vmatprep.subr.mxu0 0.0
    %730 = vmatpush1.msra.mxu0 0.0
    %731 = vmatprep.subr.mxu0 0.0
    %732 = vmatpush1.msra.mxu0 0.0
    %733 = vmatprep.subr.mxu0 0.0
    %734 = vmatpush1.msra.mxu0 0.0
    %735 = vmatprep.subr.mxu0 0.0
    %736 = vmatpush1.msra.mxu0 0.0
    %737 = vmatprep.subr.mxu0 0.0
    %738 = vmatpush1.msra.mxu0 0.0
    %739 = vmatprep.subr.mxu0 0.0
    %740 = vmatpush1.msra.mxu0 0.0
    %741 = vmatprep.subr.mxu0 0.0
    %742 = vmatpush1.msra.mxu0 0.0
    %743 = vmatprep.subr.mxu0 0.0
    %744 = vmatpush1.msra.mxu0 %v589
    %745 = vmatprep.subr.mxu0 0.0
    %746 = vmatpush1.msra.mxu0 %v588
    %747 = vmatprep.subr.mxu0 0.0
    %748 = vmatpush1.msra.mxu0 %v587
    %749 = vmatprep.subr.mxu0 0.0
    %750 = vmatpush1.msra.mxu0 %v586
    %751 = vmatprep.subr.mxu0 0.0
    %752 = vmatpush2.msra.mxu0 0.0
    %753 = vmatprep.subr.mxu0 0.0
    %754 = vmatpush2.msra.mxu0 0.0
    %755 = vmatprep.subr.mxu0 0.0
    %756 = vmatpush2.msra.mxu0 0.0
    %757 = vmatprep.subr.mxu0 0.0
    %758 = vmatpush2.msra.mxu0 0.0
    %759 = vmatprep.subr.mxu0 0.0
    %760 = vmatpush2.msra.mxu0 0.0
    %761 = vmatprep.subr.mxu0 0.0
    %762 = vmatpush2.msra.mxu0 0.0
    %763 = vmatprep.subr.mxu0 0.0
    %764 = vmatpush2.msra.mxu0 0.0
    %765 = vmatprep.subr.mxu0 0.0
    %766 = vmatpush2.msra.mxu0 0.0
    %767 = vmatprep.subr.mxu0 0.0
    %768 = vmatpush2.msra.mxu0 0.0
    %769 = vmatprep.subr.mxu0 0.0
    %770 = vmatpush2.msra.mxu0 0.0
    %771 = vmatprep.subr.mxu0 0.0
    %772 = vmatpush2.msra.mxu0 0.0
    %773 = vmatprep.subr.mxu0 0.0
    %774 = vmatpush2.msra.mxu0 0.0
    %775 = vmatprep.subr.mxu0 0.0
    %776 = vmatpush2.msra.mxu0 0.0
    %777 = vmatprep.subr.mxu0 0.0
    %778 = vmatpush2.msra.mxu0 0.0
    %779 = vmatprep.subr.mxu0 0.0
    %780 = vmatpush2.msra.mxu0 0.0
    %781 = vmatprep.subr.mxu0 0.0
    %782 = vmatpush2.msra.mxu0 0.0
    %783 = vmatprep.mubr.f32.mxu0 0.0
    %784 = vmatmul.mubr.f32.gmra.mxu0 %v592
    %v785 = vpop.f32.mrf.mxu0
    %v786 = vadd.f32 0.0, %v785
    %v787 = vpop.f32.mrf.mxu0
    %788 = vmatprep.mubr.f32.mxu0 0.0
    %789 = vmatmul.mubr.f32.gmra.mxu0 %v592
    %v790 = vpop.f32.mrf.mxu0
    %v791 = vadd.f32 0.0, %v790
    %v792 = vpop.f32.mrf.mxu0
    %793 = vdwg.mxu0
    %796 = vrot.lane.b32.xlu0 %v717, 32
    %v797 = vpop.permute.xlu0 %796
    %798 = vrot.lane.b32.xlu0 %v718, 32
    %v799 = vpop.permute.xlu0 %798
    %v800 = vsel %vm384, %v797, 0
    %v802 = vsel %vm384, %v799, 0
    %804 = vmatprep.subr.mxu0 0.0
    %805 = vmatpush1.msra.mxu0 0.0
    %806 = vmatprep.subr.mxu0 0.0
    %807 = vmatpush1.msra.mxu0 0.0
    %808 = vmatprep.subr.mxu0 0.0
    %809 = vmatpush1.msra.mxu0 0.0
    %810 = vmatprep.subr.mxu0 0.0
    %811 = vmatpush1.msra.mxu0 0.0
    %812 = vmatprep.subr.mxu0 0.0
    %813 = vmatpush1.msra.mxu0 0.0
    %814 = vmatprep.subr.mxu0 0.0
    %815 = vmatpush1.msra.mxu0 0.0
    %816 = vmatprep.subr.mxu0 0.0
    %817 = vmatpush1.msra.mxu0 0.0
    %818 = vmatprep.subr.mxu0 0.0
    %819 = vmatpush1.msra.mxu0 0.0
    %820 = vmatprep.subr.mxu0 0.0
    %821 = vmatpush1.msra.mxu0 0.0
    %822 = vmatprep.subr.mxu0 0.0
    %823 = vmatpush1.msra.mxu0 0.0
    %824 = vmatprep.subr.mxu0 0.0
    %825 = vmatpush1.msra.mxu0 0.0
    %826 = vmatprep.subr.mxu0 0.0
    %827 = vmatpush1.msra.mxu0 0.0
    %828 = vmatprep.subr.mxu0 0.0
    %829 = vmatpush1.msra.mxu0 %v585
    %830 = vmatprep.subr.mxu0 0.0
    %831 = vmatpush1.msra.mxu0 %v584
    %832 = vmatprep.subr.mxu0 0.0
    %833 = vmatpush1.msra.mxu0 %v583
    %834 = vmatprep.subr.mxu0 0.0
    %835 = vmatpush1.msra.mxu0 %v582
    %836 = vmatprep.subr.mxu0 0.0
    %837 = vmatpush2.msra.mxu0 0.0
    %838 = vmatprep.subr.mxu0 0.0
    %839 = vmatpush2.msra.mxu0 0.0
    %840 = vmatprep.subr.mxu0 0.0
    %841 = vmatpush2.msra.mxu0 0.0
    %842 = vmatprep.subr.mxu0 0.0
    %843 = vmatpush2.msra.mxu0 0.0
    %844 = vmatprep.subr.mxu0 0.0
    %845 = vmatpush2.msra.mxu0 0.0
    %846 = vmatprep.subr.mxu0 0.0
    %847 = vmatpush2.msra.mxu0 0.0
    %848 = vmatprep.subr.mxu0 0.0
    %849 = vmatpush2.msra.mxu0 0.0
    %850 = vmatprep.subr.mxu0 0.0
    %851 = vmatpush2.msra.mxu0 0.0
    %852 = vmatprep.subr.mxu0 0.0
    %853 = vmatpush2.msra.mxu0 0.0
    %854 = vmatprep.subr.mxu0 0.0
    %855 = vmatpush2.msra.mxu0 0.0
    %856 = vmatprep.subr.mxu0 0.0
    %857 = vmatpush2.msra.mxu0 0.0
    %858 = vmatprep.subr.mxu0 0.0
    %859 = vmatpush2.msra.mxu0 0.0
    %860 = vmatprep.subr.mxu0 0.0
    %861 = vmatpush2.msra.mxu0 0.0
    %862 = vmatprep.subr.mxu0 0.0
    %863 = vmatpush2.msra.mxu0 0.0
    %864 = vmatprep.subr.mxu0 0.0
    %865 = vmatpush2.msra.mxu0 0.0
    %866 = vmatprep.subr.mxu0 0.0
    %867 = vmatpush2.msra.mxu0 0.0
    %868 = vmatprep.mubr.f32.mxu0 0.0
    %869 = vmatmul.mubr.f32.gmra.mxu0 %v800
    %v870 = vpop.f32.mrf.mxu0
    %v871 = vadd.f32 %v786, %v870
    %v872 = vpop.f32.mrf.mxu0
    %873 = vmatprep.mubr.f32.mxu0 0.0
    %874 = vmatmul.mubr.f32.gmra.mxu0 %v802
    %v875 = vpop.f32.mrf.mxu0
    %v876 = vadd.f32 %v791, %v875
    %v877 = vpop.f32.mrf.mxu0
    %878 = vdwg.mxu0
    %v880 = vlaneseq
    %v881 = vshrl.u32 %v880, 7
    %v882 = vsub.s32 0, %v881
    %v883 = vrot.slane %v590, %v882
    %v885 = vadd.f32 %v871, %v883
    %v886 = vadd.f32 %v876, %v883
    %v887 = vxor.u32 %v885, 2147483648
    %v888 = vxor.u32 %v886, 2147483648
    %v889 = vmul.f32 %v887, 1.442695
    %v890 = vpow.pop %v889
    %v891 = vmul.f32 %v888, 1.442695
    %v892 = vpow.pop %v891
    %v893 = vadd.f32 %v890, 1.0
    %v894 = vadd.f32 %v892, 1.0
    %v895 = vrcp.pop %v893
    %v896 = vmul.f32 1.0, %v895
    %v897 = vrcp.pop %v894
    %v898 = vmul.f32 1.0, %v897
    %v899 = vtanh.pop %v885
    %v900 = vtanh.pop %v886
    %v901 = vmul.f32 %v896, 0.0
    %v902 = vmul.f32 %v898, 0.0
    %905 = vrot.lane.b32.xlu0 %v899, 64
    %v906 = vpop.permute.xlu0 %905
    %907 = vrot.lane.b32.xlu0 %v900, 64
    %v908 = vpop.permute.xlu0 %907
    %v911 = vmul.f32 %v896, %v906
    %v912 = vmul.f32 %v898, %v908
    %915 = vrot.lane.b32.xlu0 %v911, 32
    %v916 = vpop.permute.xlu0 %915
    %917 = vrot.lane.b32.xlu0 %v912, 32
    %v918 = vpop.permute.xlu0 %917
    %v921 = vadd.f32 %v901, %v916
    %v922 = vadd.f32 %v902, %v918
    %v923 = vtanh.pop %v921
    %v924 = vtanh.pop %v922
    %927 = vrot.lane.b32.xlu0 %v923, 64
    %v928 = vpop.permute.xlu0 %927
    %929 = vrot.lane.b32.xlu0 %v924, 64
    %v930 = vpop.permute.xlu0 %929
    %v933 = vmul.f32 %v896, %v928
    %v934 = vmul.f32 %v898, %v930
    %935 = vmatprep.subr.mxu0 0.0
    %936 = vmatpush1.msra.mxu0 0.0
    %937 = vmatprep.subr.mxu0 0.0
    %938 = vmatpush1.msra.mxu0 0.0
    %939 = vmatprep.subr.mxu0 0.0
    %940 = vmatpush1.msra.mxu0 0.0
    %941 = vmatprep.subr.mxu0 0.0
    %942 = vmatpush1.msra.mxu0 0.0
    %943 = vmatprep.subr.mxu0 0.0
    %944 = vmatpush1.msra.mxu0 0.0
    %945 = vmatprep.subr.mxu0 0.0
    %946 = vmatpush1.msra.mxu0 0.0
    %947 = vmatprep.subr.mxu0 0.0
    %948 = vmatpush1.msra.mxu0 0.0
    %949 = vmatprep.subr.mxu0 0.0
    %950 = vmatpush1.msra.mxu0 0.0
    %951 = vmatprep.subr.mxu0 0.0
    %952 = vmatpush1.msra.mxu0 0.0
    %953 = vmatprep.subr.mxu0 0.0
    %954 = vmatpush1.msra.mxu0 0.0
    %955 = vmatprep.subr.mxu0 0.0
    %956 = vmatpush1.msra.mxu0 0.0
    %957 = vmatprep.subr.mxu0 0.0
    %958 = vmatpush1.msra.mxu0 0.0
    %959 = vmatprep.subr.mxu0 0.0
    %960 = vmatpush1.msra.mxu0 %v581
    %961 = vmatprep.subr.mxu0 0.0
    %962 = vmatpush1.msra.mxu0 %v580
    %963 = vmatprep.subr.mxu0 0.0
    %964 = vmatpush1.msra.mxu0 %v579
    %965 = vmatprep.subr.mxu0 0.0
    %966 = vmatpush1.msra.mxu0 %v578
    %967 = vmatprep.subr.mxu0 0.0
    %968 = vmatpush2.msra.mxu0 0.0
    %969 = vmatprep.subr.mxu0 0.0
    %970 = vmatpush2.msra.mxu0 0.0
    %971 = vmatprep.subr.mxu0 0.0
    %972 = vmatpush2.msra.mxu0 0.0
    %973 = vmatprep.subr.mxu0 0.0
    %974 = vmatpush2.msra.mxu0 0.0
    %975 = vmatprep.subr.mxu0 0.0
    %976 = vmatpush2.msra.mxu0 0.0
    %977 = vmatprep.subr.mxu0 0.0
    %978 = vmatpush2.msra.mxu0 0.0
    %979 = vmatprep.subr.mxu0 0.0
    %980 = vmatpush2.msra.mxu0 0.0
    %981 = vmatprep.subr.mxu0 0.0
    %982 = vmatpush2.msra.mxu0 0.0
    %983 = vmatprep.subr.mxu0 0.0
    %984 = vmatpush2.msra.mxu0 0.0
    %985 = vmatprep.subr.mxu0 0.0
    %986 = vmatpush2.msra.mxu0 0.0
    %987 = vmatprep.subr.mxu0 0.0
    %988 = vmatpush2.msra.mxu0 0.0
    %989 = vmatprep.subr.mxu0 0.0
    %990 = vmatpush2.msra.mxu0 0.0
    %991 = vmatprep.subr.mxu0 0.0
    %992 = vmatpush2.msra.mxu0 0.0
    %993 = vmatprep.subr.mxu0 0.0
    %994 = vmatpush2.msra.mxu0 0.0
    %995 = vmatprep.subr.mxu0 0.0
    %996 = vmatpush2.msra.mxu0 0.0
    %997 = vmatprep.subr.mxu0 0.0
    %998 = vmatpush2.msra.mxu0 0.0
    %999 = vmatprep.mubr.f32.mxu0 0.0
    %1000 = vmatmul.mubr.f32.gmra.mxu0 %v800
    %v1001 = vpop.f32.mrf.mxu0
    %v1002 = vadd.f32 0.0, %v1001
    %v1003 = vpop.f32.mrf.mxu0
    %1004 = vmatprep.mubr.f32.mxu0 0.0
    %1005 = vmatmul.mubr.f32.gmra.mxu0 %v802
    %v1006 = vpop.f32.mrf.mxu0
    %v1007 = vadd.f32 0.0, %v1006
    %v1008 = vpop.f32.mrf.mxu0
    %1009 = vdwg.mxu0
    %v1010 = vadd.f32 %v510, %v1002
    %v1011 = vadd.f32 %v515, %v1007
    %v1012 = vxor.u32 %v1010, 2147483648
    %v1013 = vxor.u32 %v1011, 2147483648
    %v1014 = vmul.f32 %v1012, 1.442695
    %v1015 = vpow.pop %v1014
    %v1016 = vmul.f32 %v1013, 1.442695
    %v1017 = vpow.pop %v1016
    %v1018 = vadd.f32 %v1015, 1.0
    %v1019 = vadd.f32 %v1017, 1.0
    %v1020 = vrcp.pop %v1018
    %v1021 = vmul.f32 1.0, %v1020
    %v1022 = vrcp.pop %v1019
    %v1023 = vmul.f32 1.0, %v1022
    %v1024 = vtanh.pop %v1010
    %v1025 = vtanh.pop %v1011
    %v1026 = vmul.f32 %v1021, %v705
    %v1027 = vmul.f32 %v1023, %v706
    %1030 = vrot.lane.b32.xlu0 %v1024, 64
    %v1031 = vpop.permute.xlu0 %1030
    %1032 = vrot.lane.b32.xlu0 %v1025, 64
    %v1033 = vpop.permute.xlu0 %1032
    %v1036 = vmul.f32 %v1021, %v1031
    %v1037 = vmul.f32 %v1023, %v1033
    %1040 = vrot.lane.b32.xlu0 %v1036, 32
    %v1041 = vpop.permute.xlu0 %1040
    %1042 = vrot.lane.b32.xlu0 %v1037, 32
    %v1043 = vpop.permute.xlu0 %1042
    %v1046 = vadd.f32 %v1026, %v1041
    %v1047 = vadd.f32 %v1027, %v1043
    %v1048 = vtanh.pop %v1046
    %v1049 = vtanh.pop %v1047
    %1052 = vrot.lane.b32.xlu0 %v1048, 64
    %v1053 = vpop.permute.xlu0 %1052
    %1054 = vrot.lane.b32.xlu0 %v1049, 64
    %v1055 = vpop.permute.xlu0 %1054
    %v1058 = vmul.f32 %v1021, %v1053
    %v1059 = vmul.f32 %v1023, %v1055
    %1062 = vrot.lane.b32.xlu0 %v933, 32
    %v1063 = vpop.permute.xlu0 %1062
    %1064 = vrot.lane.b32.xlu0 %v934, 32
    %v1065 = vpop.permute.xlu0 %1064
    %v1066 = vsel %vm384, %v1063, 0
    %v1068 = vsel %vm384, %v1065, 0
    %1070 = vmatprep.subr.mxu0 0.0
    %1071 = vmatpush1.msra.mxu0 0.0
    %1072 = vmatprep.subr.mxu0 0.0
    %1073 = vmatpush1.msra.mxu0 0.0
    %1074 = vmatprep.subr.mxu0 0.0
    %1075 = vmatpush1.msra.mxu0 0.0
    %1076 = vmatprep.subr.mxu0 0.0
    %1077 = vmatpush1.msra.mxu0 0.0
    %1078 = vmatprep.subr.mxu0 0.0
    %1079 = vmatpush1.msra.mxu0 0.0
    %1080 = vmatprep.subr.mxu0 0.0
    %1081 = vmatpush1.msra.mxu0 0.0
    %1082 = vmatprep.subr.mxu0 0.0
    %1083 = vmatpush1.msra.mxu0 0.0
    %1084 = vmatprep.subr.mxu0 0.0
    %1085 = vmatpush1.msra.mxu0 0.0
    %1086 = vmatprep.subr.mxu0 0.0
    %1087 = vmatpush1.msra.mxu0 0.0
    %1088 = vmatprep.subr.mxu0 0.0
    %1089 = vmatpush1.msra.mxu0 0.0
    %1090 = vmatprep.subr.mxu0 0.0
    %1091 = vmatpush1.msra.mxu0 0.0
    %1092 = vmatprep.subr.mxu0 0.0
    %1093 = vmatpush1.msra.mxu0 0.0
    %1094 = vmatprep.subr.mxu0 0.0
    %1095 = vmatpush1.msra.mxu0 %v589
    %1096 = vmatprep.subr.mxu0 0.0
    %1097 = vmatpush1.msra.mxu0 %v588
    %1098 = vmatprep.subr.mxu0 0.0
    %1099 = vmatpush1.msra.mxu0 %v587
    %1100 = vmatprep.subr.mxu0 0.0
    %1101 = vmatpush1.msra.mxu0 %v586
    %1102 = vmatprep.subr.mxu0 0.0
    %1103 = vmatpush2.msra.mxu0 0.0
    %1104 = vmatprep.subr.mxu0 0.0
    %1105 = vmatpush2.msra.mxu0 0.0
    %1106 = vmatprep.subr.mxu0 0.0
    %1107 = vmatpush2.msra.mxu0 0.0
    %1108 = vmatprep.subr.mxu0 0.0
    %1109 = vmatpush2.msra.mxu0 0.0
    %1110 = vmatprep.subr.mxu0 0.0
    %1111 = vmatpush2.msra.mxu0 0.0
    %1112 = vmatprep.subr.mxu0 0.0
    %1113 = vmatpush2.msra.mxu0 0.0
    %1114 = vmatprep.subr.mxu0 0.0
    %1115 = vmatpush2.msra.mxu0 0.0
    %1116 = vmatprep.subr.mxu0 0.0
    %1117 = vmatpush2.msra.mxu0 0.0
    %1118 = vmatprep.subr.mxu0 0.0
    %1119 = vmatpush2.msra.mxu0 0.0
    %1120 = vmatprep.subr.mxu0 0.0
    %1121 = vmatpush2.msra.mxu0 0.0
    %1122 = vmatprep.subr.mxu0 0.0
    %1123 = vmatpush2.msra.mxu0 0.0
    %1124 = vmatprep.subr.mxu0 0.0
    %1125 = vmatpush2.msra.mxu0 0.0
    %1126 = vmatprep.subr.mxu0 0.0
    %1127 = vmatpush2.msra.mxu0 0.0
    %1128 = vmatprep.subr.mxu0 0.0
    %1129 = vmatpush2.msra.mxu0 0.0
    %1130 = vmatprep.subr.mxu0 0.0
    %1131 = vmatpush2.msra.mxu0 0.0
    %1132 = vmatprep.subr.mxu0 0.0
    %1133 = vmatpush2.msra.mxu0 0.0
    %1134 = vmatprep.mubr.f32.mxu0 0.0
    %1135 = vmatmul.mubr.f32.gmra.mxu0 %v1066
    %v1136 = vpop.f32.mrf.mxu0
    %v1137 = vadd.f32 0.0, %v1136
    %v1138 = vpop.f32.mrf.mxu0
    %1139 = vmatprep.mubr.f32.mxu0 0.0
    %1140 = vmatmul.mubr.f32.gmra.mxu0 %v1068
    %v1141 = vpop.f32.mrf.mxu0
    %v1142 = vadd.f32 0.0, %v1141
    %v1143 = vpop.f32.mrf.mxu0
    %1144 = vdwg.mxu0
    %1147 = vrot.lane.b32.xlu0 %v1058, 32
    %v1148 = vpop.permute.xlu0 %1147
    %1149 = vrot.lane.b32.xlu0 %v1059, 32
    %v1150 = vpop.permute.xlu0 %1149
    %v1151 = vsel %vm384, %v1148, 0
    %v1153 = vsel %vm384, %v1150, 0
    %1155 = vmatprep.subr.mxu0 0.0
    %1156 = vmatpush1.msra.mxu0 0.0
    %1157 = vmatprep.subr.mxu0 0.0
    %1158 = vmatpush1.msra.mxu0 0.0
    %1159 = vmatprep.subr.mxu0 0.0
    %1160 = vmatpush1.msra.mxu0 0.0
    %1161 = vmatprep.subr.mxu0 0.0
    %1162 = vmatpush1.msra.mxu0 0.0
    %1163 = vmatprep.subr.mxu0 0.0
    %1164 = vmatpush1.msra.mxu0 0.0
    %1165 = vmatprep.subr.mxu0 0.0
    %1166 = vmatpush1.msra.mxu0 0.0
    %1167 = vmatprep.subr.mxu0 0.0
    %1168 = vmatpush1.msra.mxu0 0.0
    %1169 = vmatprep.subr.mxu0 0.0
    %1170 = vmatpush1.msra.mxu0 0.0
    %1171 = vmatprep.subr.mxu0 0.0
    %1172 = vmatpush1.msra.mxu0 0.0
    %1173 = vmatprep.subr.mxu0 0.0
    %1174 = vmatpush1.msra.mxu0 0.0
    %1175 = vmatprep.subr.mxu0 0.0
    %1176 = vmatpush1.msra.mxu0 0.0
    %1177 = vmatprep.subr.mxu0 0.0
    %1178 = vmatpush1.msra.mxu0 0.0
    %1179 = vmatprep.subr.mxu0 0.0
    %1180 = vmatpush1.msra.mxu0 %v585
    %1181 = vmatprep.subr.mxu0 0.0
    %1182 = vmatpush1.msra.mxu0 %v584
    %1183 = vmatprep.subr.mxu0 0.0
    %1184 = vmatpush1.msra.mxu0 %v583
    %1185 = vmatprep.subr.mxu0 0.0
    %1186 = vmatpush1.msra.mxu0 %v582
    %1187 = vmatprep.subr.mxu0 0.0
    %1188 = vmatpush2.msra.mxu0 0.0
    %1189 = vmatprep.subr.mxu0 0.0
    %1190 = vmatpush2.msra.mxu0 0.0
    %1191 = vmatprep.subr.mxu0 0.0
    %1192 = vmatpush2.msra.mxu0 0.0
    %1193 = vmatprep.subr.mxu0 0.0
    %1194 = vmatpush2.msra.mxu0 0.0
    %1195 = vmatprep.subr.mxu0 0.0
    %1196 = vmatpush2.msra.mxu0 0.0
    %1197 = vmatprep.subr.mxu0 0.0
    %1198 = vmatpush2.msra.mxu0 0.0
    %1199 = vmatprep.subr.mxu0 0.0
    %1200 = vmatpush2.msra.mxu0 0.0
    %1201 = vmatprep.subr.mxu0 0.0
    %1202 = vmatpush2.msra.mxu0 0.0
    %1203 = vmatprep.subr.mxu0 0.0
    %1204 = vmatpush2.msra.mxu0 0.0
    %1205 = vmatprep.subr.mxu0 0.0
    %1206 = vmatpush2.msra.mxu0 0.0
    %1207 = vmatprep.subr.mxu0 0.0
    %1208 = vmatpush2.msra.mxu0 0.0
    %1209 = vmatprep.subr.mxu0 0.0
    %1210 = vmatpush2.msra.mxu0 0.0
    %1211 = vmatprep.subr.mxu0 0.0
    %1212 = vmatpush2.msra.mxu0 0.0
    %1213 = vmatprep.subr.mxu0 0.0
    %1214 = vmatpush2.msra.mxu0 0.0
    %1215 = vmatprep.subr.mxu0 0.0
    %1216 = vmatpush2.msra.mxu0 0.0
    %1217 = vmatprep.subr.mxu0 0.0
    %1218 = vmatpush2.msra.mxu0 0.0
    %1219 = vmatprep.mubr.f32.mxu0 0.0
    %1220 = vmatmul.mubr.f32.gmra.mxu0 %v1151
    %v1221 = vpop.f32.mrf.mxu0
    %v1222 = vadd.f32 %v1137, %v1221
    %v1223 = vpop.f32.mrf.mxu0
    %1224 = vmatprep.mubr.f32.mxu0 0.0
    %1225 = vmatmul.mubr.f32.gmra.mxu0 %v1153
    %v1226 = vpop.f32.mrf.mxu0
    %v1227 = vadd.f32 %v1142, %v1226
    %v1228 = vpop.f32.mrf.mxu0
    %1229 = vdwg.mxu0
    %v1230 = vadd.f32 %v1222, %v883
    %v1231 = vadd.f32 %v1227, %v883
    %v1232 = vxor.u32 %v1230, 2147483648
    %v1233 = vxor.u32 %v1231, 2147483648
    %v1234 = vmul.f32 %v1232, 1.442695
    %v1235 = vpow.pop %v1234
    %v1236 = vmul.f32 %v1233, 1.442695
    %v1237 = vpow.pop %v1236
    %v1238 = vadd.f32 %v1235, 1.0
    %v1239 = vadd.f32 %v1237, 1.0
    %v1240 = vrcp.pop %v1238
    %v1241 = vmul.f32 1.0, %v1240
    %v1242 = vrcp.pop %v1239
    %v1243 = vmul.f32 1.0, %v1242
    %v1244 = vtanh.pop %v1230
    %v1245 = vtanh.pop %v1231
    %v1246 = vmul.f32 %v1241, %v921
    %v1247 = vmul.f32 %v1243, %v922
    %1250 = vrot.lane.b32.xlu0 %v1244, 64
    %v1251 = vpop.permute.xlu0 %1250
    %1252 = vrot.lane.b32.xlu0 %v1245, 64
    %v1253 = vpop.permute.xlu0 %1252
    %v1256 = vmul.f32 %v1241, %v1251
    %v1257 = vmul.f32 %v1243, %v1253
    %1260 = vrot.lane.b32.xlu0 %v1256, 32
    %v1261 = vpop.permute.xlu0 %1260
    %1262 = vrot.lane.b32.xlu0 %v1257, 32
    %v1263 = vpop.permute.xlu0 %1262
    %v1266 = vadd.f32 %v1246, %v1261
    %v1267 = vadd.f32 %v1247, %v1263
    %v1268 = vtanh.pop %v1266
    %v1269 = vtanh.pop %v1267
    %1272 = vrot.lane.b32.xlu0 %v1268, 64
    %v1273 = vpop.permute.xlu0 %1272
    %1274 = vrot.lane.b32.xlu0 %v1269, 64
    %v1275 = vpop.permute.xlu0 %1274
    %v1278 = vmul.f32 %v1241, %v1273
    %v1279 = vmul.f32 %v1243, %v1275
    %1280 = vmatprep.subr.mxu0 0.0
    %1281 = vmatpush1.msra.mxu0 0.0
    %1282 = vmatprep.subr.mxu0 0.0
    %1283 = vmatpush1.msra.mxu0 0.0
    %1284 = vmatprep.subr.mxu0 0.0
    %1285 = vmatpush1.msra.mxu0 0.0
    %1286 = vmatprep.subr.mxu0 0.0
    %1287 = vmatpush1.msra.mxu0 0.0
    %1288 = vmatprep.subr.mxu0 0.0
    %1289 = vmatpush1.msra.mxu0 0.0
    %1290 = vmatprep.subr.mxu0 0.0
    %1291 = vmatpush1.msra.mxu0 0.0
    %1292 = vmatprep.subr.mxu0 0.0
    %1293 = vmatpush1.msra.mxu0 0.0
    %1294 = vmatprep.subr.mxu0 0.0
    %1295 = vmatpush1.msra.mxu0 0.0
    %1296 = vmatprep.subr.mxu0 0.0
    %1297 = vmatpush1.msra.mxu0 0.0
    %1298 = vmatprep.subr.mxu0 0.0
    %1299 = vmatpush1.msra.mxu0 0.0
    %1300 = vmatprep.subr.mxu0 0.0
    %1301 = vmatpush1.msra.mxu0 0.0
    %1302 = vmatprep.subr.mxu0 0.0
    %1303 = vmatpush1.msra.mxu0 0.0
    %1304 = vmatprep.subr.mxu0 0.0
    %1305 = vmatpush1.msra.mxu0 %v581
    %1306 = vmatprep.subr.mxu0 0.0
    %1307 = vmatpush1.msra.mxu0 %v580
    %1308 = vmatprep.subr.mxu0 0.0
    %1309 = vmatpush1.msra.mxu0 %v579
    %1310 = vmatprep.subr.mxu0 0.0
    %1311 = vmatpush1.msra.mxu0 %v578
    %1312 = vmatprep.subr.mxu0 0.0
    %1313 = vmatpush2.msra.mxu0 0.0
    %1314 = vmatprep.subr.mxu0 0.0
    %1315 = vmatpush2.msra.mxu0 0.0
    %1316 = vmatprep.subr.mxu0 0.0
    %1317 = vmatpush2.msra.mxu0 0.0
    %1318 = vmatprep.subr.mxu0 0.0
    %1319 = vmatpush2.msra.mxu0 0.0
    %1320 = vmatprep.subr.mxu0 0.0
    %1321 = vmatpush2.msra.mxu0 0.0
    %1322 = vmatprep.subr.mxu0 0.0
    %1323 = vmatpush2.msra.mxu0 0.0
    %1324 = vmatprep.subr.mxu0 0.0
    %1325 = vmatpush2.msra.mxu0 0.0
    %1326 = vmatprep.subr.mxu0 0.0
    %1327 = vmatpush2.msra.mxu0 0.0
    %1328 = vmatprep.subr.mxu0 0.0
    %1329 = vmatpush2.msra.mxu0 0.0
    %1330 = vmatprep.subr.mxu0 0.0
    %1331 = vmatpush2.msra.mxu0 0.0
    %1332 = vmatprep.subr.mxu0 0.0
    %1333 = vmatpush2.msra.mxu0 0.0
    %1334 = vmatprep.subr.mxu0 0.0
    %1335 = vmatpush2.msra.mxu0 0.0
    %1336 = vmatprep.subr.mxu0 0.0
    %1337 = vmatpush2.msra.mxu0 0.0
    %1338 = vmatprep.subr.mxu0 0.0
    %1339 = vmatpush2.msra.mxu0 0.0
    %1340 = vmatprep.subr.mxu0 0.0
    %1341 = vmatpush2.msra.mxu0 0.0
    %1342 = vmatprep.subr.mxu0 0.0
    %1343 = vmatpush2.msra.mxu0 0.0
    %1344 = vmatprep.mubr.f32.mxu0 0.0
    %1345 = vmatmul.mubr.f32.gmra.mxu0 %v1151
    %v1346 = vpop.f32.mrf.mxu0
    %v1347 = vadd.f32 0.0, %v1346
    %v1348 = vpop.f32.mrf.mxu0
    %1349 = vmatprep.mubr.f32.mxu0 0.0
    %1350 = vmatmul.mubr.f32.gmra.mxu0 %v1153
    %v1351 = vpop.f32.mrf.mxu0
    %v1352 = vadd.f32 0.0, %v1351
    %v1353 = vpop.f32.mrf.mxu0
    %1354 = vdwg.mxu0
    %v1355 = vadd.f32 %v520, %v1347
    %v1356 = vadd.f32 %v525, %v1352
    %v1357 = vxor.u32 %v1355, 2147483648
    %v1358 = vxor.u32 %v1356, 2147483648
    %v1359 = vmul.f32 %v1357, 1.442695
    %v1360 = vpow.pop %v1359
    %v1361 = vmul.f32 %v1358, 1.442695
    %v1362 = vpow.pop %v1361
    %v1363 = vadd.f32 %v1360, 1.0
    %v1364 = vadd.f32 %v1362, 1.0
    %v1365 = vrcp.pop %v1363
    %v1366 = vmul.f32 1.0, %v1365
    %v1367 = vrcp.pop %v1364
    %v1368 = vmul.f32 1.0, %v1367
    %v1369 = vtanh.pop %v1355
    %v1370 = vtanh.pop %v1356
    %v1371 = vmul.f32 %v1366, %v1046
    %v1372 = vmul.f32 %v1368, %v1047
    %1375 = vrot.lane.b32.xlu0 %v1369, 64
    %v1376 = vpop.permute.xlu0 %1375
    %1377 = vrot.lane.b32.xlu0 %v1370, 64
    %v1378 = vpop.permute.xlu0 %1377
    %v1381 = vmul.f32 %v1366, %v1376
    %v1382 = vmul.f32 %v1368, %v1378
    %1385 = vrot.lane.b32.xlu0 %v1381, 32
    %v1386 = vpop.permute.xlu0 %1385
    %1387 = vrot.lane.b32.xlu0 %v1382, 32
    %v1388 = vpop.permute.xlu0 %1387
    %v1391 = vadd.f32 %v1371, %v1386
    %v1392 = vadd.f32 %v1372, %v1388
    %v1393 = vtanh.pop %v1391
    %v1394 = vtanh.pop %v1392
    %1397 = vrot.lane.b32.xlu0 %v1393, 64
    %v1398 = vpop.permute.xlu0 %1397
    %1399 = vrot.lane.b32.xlu0 %v1394, 64
    %v1400 = vpop.permute.xlu0 %1399
    %v1403 = vmul.f32 %v1366, %v1398
    %v1404 = vmul.f32 %v1368, %v1400
    %1407 = vrot.lane.b32.xlu0 %v1278, 32
    %v1408 = vpop.permute.xlu0 %1407
    %1409 = vrot.lane.b32.xlu0 %v1279, 32
    %v1410 = vpop.permute.xlu0 %1409
    %v1411 = vsel %vm384, %v1408, 0
    %v1413 = vsel %vm384, %v1410, 0
    %1415 = vmatprep.subr.mxu0 0.0
    %1416 = vmatpush1.msra.mxu0 0.0
    %1417 = vmatprep.subr.mxu0 0.0
    %1418 = vmatpush1.msra.mxu0 0.0
    %1419 = vmatprep.subr.mxu0 0.0
    %1420 = vmatpush1.msra.mxu0 0.0
    %1421 = vmatprep.subr.mxu0 0.0
    %1422 = vmatpush1.msra.mxu0 0.0
    %1423 = vmatprep.subr.mxu0 0.0
    %1424 = vmatpush1.msra.mxu0 0.0
    %1425 = vmatprep.subr.mxu0 0.0
    %1426 = vmatpush1.msra.mxu0 0.0
    %1427 = vmatprep.subr.mxu0 0.0
    %1428 = vmatpush1.msra.mxu0 0.0
    %1429 = vmatprep.subr.mxu0 0.0
    %1430 = vmatpush1.msra.mxu0 0.0
    %1431 = vmatprep.subr.mxu0 0.0
    %1432 = vmatpush1.msra.mxu0 0.0
    %1433 = vmatprep.subr.mxu0 0.0
    %1434 = vmatpush1.msra.mxu0 0.0
    %1435 = vmatprep.subr.mxu0 0.0
    %1436 = vmatpush1.msra.mxu0 0.0
    %1437 = vmatprep.subr.mxu0 0.0
    %1438 = vmatpush1.msra.mxu0 0.0
    %1439 = vmatprep.subr.mxu0 0.0
    %1440 = vmatpush1.msra.mxu0 %v589
    %1441 = vmatprep.subr.mxu0 0.0
    %1442 = vmatpush1.msra.mxu0 %v588
    %1443 = vmatprep.subr.mxu0 0.0
    %1444 = vmatpush1.msra.mxu0 %v587
    %1445 = vmatprep.subr.mxu0 0.0
    %1446 = vmatpush1.msra.mxu0 %v586
    %1447 = vmatprep.subr.mxu0 0.0
    %1448 = vmatpush2.msra.mxu0 0.0
    %1449 = vmatprep.subr.mxu0 0.0
    %1450 = vmatpush2.msra.mxu0 0.0
    %1451 = vmatprep.subr.mxu0 0.0
    %1452 = vmatpush2.msra.mxu0 0.0
    %1453 = vmatprep.subr.mxu0 0.0
    %1454 = vmatpush2.msra.mxu0 0.0
    %1455 = vmatprep.subr.mxu0 0.0
    %1456 = vmatpush2.msra.mxu0 0.0
    %1457 = vmatprep.subr.mxu0 0.0
    %1458 = vmatpush2.msra.mxu0 0.0
    %1459 = vmatprep.subr.mxu0 0.0
    %1460 = vmatpush2.msra.mxu0 0.0
    %1461 = vmatprep.subr.mxu0 0.0
    %1462 = vmatpush2.msra.mxu0 0.0
    %1463 = vmatprep.subr.mxu0 0.0
    %1464 = vmatpush2.msra.mxu0 0.0
    %1465 = vmatprep.subr.mxu0 0.0
    %1466 = vmatpush2.msra.mxu0 0.0
    %1467 = vmatprep.subr.mxu0 0.0
    %1468 = vmatpush2.msra.mxu0 0.0
    %1469 = vmatprep.subr.mxu0 0.0
    %1470 = vmatpush2.msra.mxu0 0.0
    %1471 = vmatprep.subr.mxu0 0.0
    %1472 = vmatpush2.msra.mxu0 0.0
    %1473 = vmatprep.subr.mxu0 0.0
    %1474 = vmatpush2.msra.mxu0 0.0
    %1475 = vmatprep.subr.mxu0 0.0
    %1476 = vmatpush2.msra.mxu0 0.0
    %1477 = vmatprep.subr.mxu0 0.0
    %1478 = vmatpush2.msra.mxu0 0.0
    %1479 = vmatprep.mubr.f32.mxu0 0.0
    %1480 = vmatmul.mubr.f32.gmra.mxu0 %v1411
    %v1481 = vpop.f32.mrf.mxu0
    %v1482 = vadd.f32 0.0, %v1481
    %v1483 = vpop.f32.mrf.mxu0
    %1484 = vmatprep.mubr.f32.mxu0 0.0
    %1485 = vmatmul.mubr.f32.gmra.mxu0 %v1413
    %v1486 = vpop.f32.mrf.mxu0
    %v1487 = vadd.f32 0.0, %v1486
    %v1488 = vpop.f32.mrf.mxu0
    %1489 = vdwg.mxu0
    %1492 = vrot.lane.b32.xlu0 %v1403, 32
    %v1493 = vpop.permute.xlu0 %1492
    %1494 = vrot.lane.b32.xlu0 %v1404, 32
    %v1495 = vpop.permute.xlu0 %1494
    %v1496 = vsel %vm384, %v1493, 0
    %v1498 = vsel %vm384, %v1495, 0
    %1500 = vmatprep.subr.mxu0 0.0
    %1501 = vmatpush1.msra.mxu0 0.0
    %1502 = vmatprep.subr.mxu0 0.0
    %1503 = vmatpush1.msra.mxu0 0.0
    %1504 = vmatprep.subr.mxu0 0.0
    %1505 = vmatpush1.msra.mxu0 0.0
    %1506 = vmatprep.subr.mxu0 0.0
    %1507 = vmatpush1.msra.mxu0 0.0
    %1508 = vmatprep.subr.mxu0 0.0
    %1509 = vmatpush1.msra.mxu0 0.0
    %1510 = vmatprep.subr.mxu0 0.0
    %1511 = vmatpush1.msra.mxu0 0.0
    %1512 = vmatprep.subr.mxu0 0.0
    %1513 = vmatpush1.msra.mxu0 0.0
    %1514 = vmatprep.subr.mxu0 0.0
    %1515 = vmatpush1.msra.mxu0 0.0
    %1516 = vmatprep.subr.mxu0 0.0
    %1517 = vmatpush1.msra.mxu0 0.0
    %1518 = vmatprep.subr.mxu0 0.0
    %1519 = vmatpush1.msra.mxu0 0.0
    %1520 = vmatprep.subr.mxu0 0.0
    %1521 = vmatpush1.msra.mxu0 0.0
    %1522 = vmatprep.subr.mxu0 0.0
    %1523 = vmatpush1.msra.mxu0 0.0
    %1524 = vmatprep.subr.mxu0 0.0
    %1525 = vmatpush1.msra.mxu0 %v585
    %1526 = vmatprep.subr.mxu0 0.0
    %1527 = vmatpush1.msra.mxu0 %v584
    %1528 = vmatprep.subr.mxu0 0.0
    %1529 = vmatpush1.msra.mxu0 %v583
    %1530 = vmatprep.subr.mxu0 0.0
    %1531 = vmatpush1.msra.mxu0 %v582
    %1532 = vmatprep.subr.mxu0 0.0
    %1533 = vmatpush2.msra.mxu0 0.0
    %1534 = vmatprep.subr.mxu0 0.0
    %1535 = vmatpush2.msra.mxu0 0.0
    %1536 = vmatprep.subr.mxu0 0.0
    %1537 = vmatpush2.msra.mxu0 0.0
    %1538 = vmatprep.subr.mxu0 0.0
    %1539 = vmatpush2.msra.mxu0 0.0
    %1540 = vmatprep.subr.mxu0 0.0
    %1541 = vmatpush2.msra.mxu0 0.0
    %1542 = vmatprep.subr.mxu0 0.0
    %1543 = vmatpush2.msra.mxu0 0.0
    %1544 = vmatprep.subr.mxu0 0.0
    %1545 = vmatpush2.msra.mxu0 0.0
    %1546 = vmatprep.subr.mxu0 0.0
    %1547 = vmatpush2.msra.mxu0 0.0
    %1548 = vmatprep.subr.mxu0 0.0
    %1549 = vmatpush2.msra.mxu0 0.0
    %1550 = vmatprep.subr.mxu0 0.0
    %1551 = vmatpush2.msra.mxu0 0.0
    %1552 = vmatprep.subr.mxu0 0.0
    %1553 = vmatpush2.msra.mxu0 0.0
    %1554 = vmatprep.subr.mxu0 0.0
    %1555 = vmatpush2.msra.mxu0 0.0
    %1556 = vmatprep.subr.mxu0 0.0
    %1557 = vmatpush2.msra.mxu0 0.0
    %1558 = vmatprep.subr.mxu0 0.0
    %1559 = vmatpush2.msra.mxu0 0.0
    %1560 = vmatprep.subr.mxu0 0.0
    %1561 = vmatpush2.msra.mxu0 0.0
    %1562 = vmatprep.subr.mxu0 0.0
    %1563 = vmatpush2.msra.mxu0 0.0
    %1564 = vmatprep.mubr.f32.mxu0 0.0
    %1565 = vmatmul.mubr.f32.gmra.mxu0 %v1496
    %v1566 = vpop.f32.mrf.mxu0
    %v1567 = vadd.f32 %v1482, %v1566
    %v1568 = vpop.f32.mrf.mxu0
    %1569 = vmatprep.mubr.f32.mxu0 0.0
    %1570 = vmatmul.mubr.f32.gmra.mxu0 %v1498
    %v1571 = vpop.f32.mrf.mxu0
    %v1572 = vadd.f32 %v1487, %v1571
    %v1573 = vpop.f32.mrf.mxu0
    %1574 = vdwg.mxu0
    %v1575 = vadd.f32 %v1567, %v883
    %v1576 = vadd.f32 %v1572, %v883
    %v1577 = vxor.u32 %v1575, 2147483648
    %v1578 = vxor.u32 %v1576, 2147483648
    %v1579 = vmul.f32 %v1577, 1.442695
    %v1580 = vpow.pop %v1579
    %v1581 = vmul.f32 %v1578, 1.442695
    %v1582 = vpow.pop %v1581
    %v1583 = vadd.f32 %v1580, 1.0
    %v1584 = vadd.f32 %v1582, 1.0
    %v1585 = vrcp.pop %v1583
    %v1586 = vmul.f32 1.0, %v1585
    %v1587 = vrcp.pop %v1584
    %v1588 = vmul.f32 1.0, %v1587
    %v1589 = vtanh.pop %v1575
    %v1590 = vtanh.pop %v1576
    %v1591 = vmul.f32 %v1586, %v1266
    %v1592 = vmul.f32 %v1588, %v1267
    %1595 = vrot.lane.b32.xlu0 %v1589, 64
    %v1596 = vpop.permute.xlu0 %1595
    %1597 = vrot.lane.b32.xlu0 %v1590, 64
    %v1598 = vpop.permute.xlu0 %1597
    %v1601 = vmul.f32 %v1586, %v1596
    %v1602 = vmul.f32 %v1588, %v1598
    %1605 = vrot.lane.b32.xlu0 %v1601, 32
    %v1606 = vpop.permute.xlu0 %1605
    %1607 = vrot.lane.b32.xlu0 %v1602, 32
    %v1608 = vpop.permute.xlu0 %1607
    %v1611 = vadd.f32 %v1591, %v1606
    %v1612 = vadd.f32 %v1592, %v1608
    %v1613 = vtanh.pop %v1611
    %v1614 = vtanh.pop %v1612
    %1617 = vrot.lane.b32.xlu0 %v1613, 64
    %v1618 = vpop.permute.xlu0 %1617
    %1619 = vrot.lane.b32.xlu0 %v1614, 64
    %v1620 = vpop.permute.xlu0 %1619
    %v1623 = vmul.f32 %v1586, %v1618
    %v1624 = vmul.f32 %v1588, %v1620
    %1625 = vmatprep.subr.mxu0 0.0
    %1626 = vmatpush1.msra.mxu0 0.0
    %1627 = vmatprep.subr.mxu0 0.0
    %1628 = vmatpush1.msra.mxu0 0.0
    %1629 = vmatprep.subr.mxu0 0.0
    %1630 = vmatpush1.msra.mxu0 0.0
    %1631 = vmatprep.subr.mxu0 0.0
    %1632 = vmatpush1.msra.mxu0 0.0
    %1633 = vmatprep.subr.mxu0 0.0
    %1634 = vmatpush1.msra.mxu0 0.0
    %1635 = vmatprep.subr.mxu0 0.0
    %1636 = vmatpush1.msra.mxu0 0.0
    %1637 = vmatprep.subr.mxu0 0.0
    %1638 = vmatpush1.msra.mxu0 0.0
    %1639 = vmatprep.subr.mxu0 0.0
    %1640 = vmatpush1.msra.mxu0 0.0
    %1641 = vmatprep.subr.mxu0 0.0
    %1642 = vmatpush1.msra.mxu0 0.0
    %1643 = vmatprep.subr.mxu0 0.0
    %1644 = vmatpush1.msra.mxu0 0.0
    %1645 = vmatprep.subr.mxu0 0.0
    %1646 = vmatpush1.msra.mxu0 0.0
    %1647 = vmatprep.subr.mxu0 0.0
    %1648 = vmatpush1.msra.mxu0 0.0
    %1649 = vmatprep.subr.mxu0 0.0
    %1650 = vmatpush1.msra.mxu0 %v581
    %1651 = vmatprep.subr.mxu0 0.0
    %1652 = vmatpush1.msra.mxu0 %v580
    %1653 = vmatprep.subr.mxu0 0.0
    %1654 = vmatpush1.msra.mxu0 %v579
    %1655 = vmatprep.subr.mxu0 0.0
    %1656 = vmatpush1.msra.mxu0 %v578
    %1657 = vmatprep.subr.mxu0 0.0
    %1658 = vmatpush2.msra.mxu0 0.0
    %1659 = vmatprep.subr.mxu0 0.0
    %1660 = vmatpush2.msra.mxu0 0.0
    %1661 = vmatprep.subr.mxu0 0.0
    %1662 = vmatpush2.msra.mxu0 0.0
    %1663 = vmatprep.subr.mxu0 0.0
    %1664 = vmatpush2.msra.mxu0 0.0
    %1665 = vmatprep.subr.mxu0 0.0
    %1666 = vmatpush2.msra.mxu0 0.0
    %1667 = vmatprep.subr.mxu0 0.0
    %1668 = vmatpush2.msra.mxu0 0.0
    %1669 = vmatprep.subr.mxu0 0.0
    %1670 = vmatpush2.msra.mxu0 0.0
    %1671 = vmatprep.subr.mxu0 0.0
    %1672 = vmatpush2.msra.mxu0 0.0
    %1673 = vmatprep.subr.mxu0 0.0
    %1674 = vmatpush2.msra.mxu0 0.0
    %1675 = vmatprep.subr.mxu0 0.0
    %1676 = vmatpush2.msra.mxu0 0.0
    %1677 = vmatprep.subr.mxu0 0.0
    %1678 = vmatpush2.msra.mxu0 0.0
    %1679 = vmatprep.subr.mxu0 0.0
    %1680 = vmatpush2.msra.mxu0 0.0
    %1681 = vmatprep.subr.mxu0 0.0
    %1682 = vmatpush2.msra.mxu0 0.0
    %1683 = vmatprep.subr.mxu0 0.0
    %1684 = vmatpush2.msra.mxu0 0.0
    %1685 = vmatprep.subr.mxu0 0.0
    %1686 = vmatpush2.msra.mxu0 0.0
    %1687 = vmatprep.subr.mxu0 0.0
    %1688 = vmatpush2.msra.mxu0 0.0
    %1689 = vmatprep.mubr.f32.mxu0 0.0
    %1690 = vmatmul.mubr.f32.gmra.mxu0 %v1496
    %v1691 = vpop.f32.mrf.mxu0
    %v1692 = vadd.f32 0.0, %v1691
    %v1693 = vpop.f32.mrf.mxu0
    %1694 = vmatprep.mubr.f32.mxu0 0.0
    %1695 = vmatmul.mubr.f32.gmra.mxu0 %v1498
    %v1696 = vpop.f32.mrf.mxu0
    %v1697 = vadd.f32 0.0, %v1696
    %v1698 = vpop.f32.mrf.mxu0
    %1699 = vdwg.mxu0
    %v1700 = vadd.f32 %v530, %v1692
    %v1701 = vadd.f32 %v535, %v1697
    %v1702 = vxor.u32 %v1700, 2147483648
    %v1703 = vxor.u32 %v1701, 2147483648
    %v1704 = vmul.f32 %v1702, 1.442695
    %v1705 = vpow.pop %v1704
    %v1706 = vmul.f32 %v1703, 1.442695
    %v1707 = vpow.pop %v1706
    %v1708 = vadd.f32 %v1705, 1.0
    %v1709 = vadd.f32 %v1707, 1.0
    %v1710 = vrcp.pop %v1708
    %v1711 = vmul.f32 1.0, %v1710
    %v1712 = vrcp.pop %v1709
    %v1713 = vmul.f32 1.0, %v1712
    %v1714 = vtanh.pop %v1700
    %v1715 = vtanh.pop %v1701
    %v1716 = vmul.f32 %v1711, %v1391
    %v1717 = vmul.f32 %v1713, %v1392
    %1720 = vrot.lane.b32.xlu0 %v1714, 64
    %v1721 = vpop.permute.xlu0 %1720
    %1722 = vrot.lane.b32.xlu0 %v1715, 64
    %v1723 = vpop.permute.xlu0 %1722
    %v1726 = vmul.f32 %v1711, %v1721
    %v1727 = vmul.f32 %v1713, %v1723
    %1730 = vrot.lane.b32.xlu0 %v1726, 32
    %v1731 = vpop.permute.xlu0 %1730
    %1732 = vrot.lane.b32.xlu0 %v1727, 32
    %v1733 = vpop.permute.xlu0 %1732
    %v1736 = vadd.f32 %v1716, %v1731
    %v1737 = vadd.f32 %v1717, %v1733
    %v1738 = vtanh.pop %v1736
    %v1739 = vtanh.pop %v1737
    %1742 = vrot.lane.b32.xlu0 %v1738, 64
    %v1743 = vpop.permute.xlu0 %1742
    %1744 = vrot.lane.b32.xlu0 %v1739, 64
    %v1745 = vpop.permute.xlu0 %1744
    %v1748 = vmul.f32 %v1711, %v1743
    %v1749 = vmul.f32 %v1713, %v1745
    %1752 = vrot.lane.b32.xlu0 %v1623, 32
    %v1753 = vpop.permute.xlu0 %1752
    %1754 = vrot.lane.b32.xlu0 %v1624, 32
    %v1755 = vpop.permute.xlu0 %1754
    %v1756 = vsel %vm384, %v1753, 0
    %v1758 = vsel %vm384, %v1755, 0
    %1760 = vmatprep.subr.mxu0 0.0
    %1761 = vmatpush1.msra.mxu0 0.0
    %1762 = vmatprep.subr.mxu0 0.0
    %1763 = vmatpush1.msra.mxu0 0.0
    %1764 = vmatprep.subr.mxu0 0.0
    %1765 = vmatpush1.msra.mxu0 0.0
    %1766 = vmatprep.subr.mxu0 0.0
    %1767 = vmatpush1.msra.mxu0 0.0
    %1768 = vmatprep.subr.mxu0 0.0
    %1769 = vmatpush1.msra.mxu0 0.0
    %1770 = vmatprep.subr.mxu0 0.0
    %1771 = vmatpush1.msra.mxu0 0.0
    %1772 = vmatprep.subr.mxu0 0.0
    %1773 = vmatpush1.msra.mxu0 0.0
    %1774 = vmatprep.subr.mxu0 0.0
    %1775 = vmatpush1.msra.mxu0 0.0
    %1776 = vmatprep.subr.mxu0 0.0
    %1777 = vmatpush1.msra.mxu0 0.0
    %1778 = vmatprep.subr.mxu0 0.0
    %1779 = vmatpush1.msra.mxu0 0.0
    %1780 = vmatprep.subr.mxu0 0.0
    %1781 = vmatpush1.msra.mxu0 0.0
    %1782 = vmatprep.subr.mxu0 0.0
    %1783 = vmatpush1.msra.mxu0 0.0
    %1784 = vmatprep.subr.mxu0 0.0
    %1785 = vmatpush1.msra.mxu0 %v589
    %1786 = vmatprep.subr.mxu0 0.0
    %1787 = vmatpush1.msra.mxu0 %v588
    %1788 = vmatprep.subr.mxu0 0.0
    %1789 = vmatpush1.msra.mxu0 %v587
    %1790 = vmatprep.subr.mxu0 0.0
    %1791 = vmatpush1.msra.mxu0 %v586
    %1792 = vmatprep.subr.mxu0 0.0
    %1793 = vmatpush2.msra.mxu0 0.0
    %1794 = vmatprep.subr.mxu0 0.0
    %1795 = vmatpush2.msra.mxu0 0.0
    %1796 = vmatprep.subr.mxu0 0.0
    %1797 = vmatpush2.msra.mxu0 0.0
    %1798 = vmatprep.subr.mxu0 0.0
    %1799 = vmatpush2.msra.mxu0 0.0
    %1800 = vmatprep.subr.mxu0 0.0
    %1801 = vmatpush2.msra.mxu0 0.0
    %1802 = vmatprep.subr.mxu0 0.0
    %1803 = vmatpush2.msra.mxu0 0.0
    %1804 = vmatprep.subr.mxu0 0.0
    %1805 = vmatpush2.msra.mxu0 0.0
    %1806 = vmatprep.subr.mxu0 0.0
    %1807 = vmatpush2.msra.mxu0 0.0
    %1808 = vmatprep.subr.mxu0 0.0
    %1809 = vmatpush2.msra.mxu0 0.0
    %1810 = vmatprep.subr.mxu0 0.0
    %1811 = vmatpush2.msra.mxu0 0.0
    %1812 = vmatprep.subr.mxu0 0.0
    %1813 = vmatpush2.msra.mxu0 0.0
    %1814 = vmatprep.subr.mxu0 0.0
    %1815 = vmatpush2.msra.mxu0 0.0
    %1816 = vmatprep.subr.mxu0 0.0
    %1817 = vmatpush2.msra.mxu0 0.0
    %1818 = vmatprep.subr.mxu0 0.0
    %1819 = vmatpush2.msra.mxu0 0.0
    %1820 = vmatprep.subr.mxu0 0.0
    %1821 = vmatpush2.msra.mxu0 0.0
    %1822 = vmatprep.subr.mxu0 0.0
    %1823 = vmatpush2.msra.mxu0 0.0
    %1824 = vmatprep.mubr.f32.mxu0 0.0
    %1825 = vmatmul.mubr.f32.gmra.mxu0 %v1756
    %v1826 = vpop.f32.mrf.mxu0
    %v1827 = vadd.f32 0.0, %v1826
    %v1828 = vpop.f32.mrf.mxu0
    %1829 = vmatprep.mubr.f32.mxu0 0.0
    %1830 = vmatmul.mubr.f32.gmra.mxu0 %v1758
    %v1831 = vpop.f32.mrf.mxu0
    %v1832 = vadd.f32 0.0, %v1831
    %v1833 = vpop.f32.mrf.mxu0
    %1834 = vdwg.mxu0
    %1837 = vrot.lane.b32.xlu0 %v1748, 32
    %v1838 = vpop.permute.xlu0 %1837
    %1839 = vrot.lane.b32.xlu0 %v1749, 32
    %v1840 = vpop.permute.xlu0 %1839
    %v1841 = vsel %vm384, %v1838, 0
    %v1843 = vsel %vm384, %v1840, 0
    %1845 = vmatprep.subr.mxu0 0.0
    %1846 = vmatpush1.msra.mxu0 0.0
    %1847 = vmatprep.subr.mxu0 0.0
    %1848 = vmatpush1.msra.mxu0 0.0
    %1849 = vmatprep.subr.mxu0 0.0
    %1850 = vmatpush1.msra.mxu0 0.0
    %1851 = vmatprep.subr.mxu0 0.0
    %1852 = vmatpush1.msra.mxu0 0.0
    %1853 = vmatprep.subr.mxu0 0.0
    %1854 = vmatpush1.msra.mxu0 0.0
    %1855 = vmatprep.subr.mxu0 0.0
    %1856 = vmatpush1.msra.mxu0 0.0
    %1857 = vmatprep.subr.mxu0 0.0
    %1858 = vmatpush1.msra.mxu0 0.0
    %1859 = vmatprep.subr.mxu0 0.0
    %1860 = vmatpush1.msra.mxu0 0.0
    %1861 = vmatprep.subr.mxu0 0.0
    %1862 = vmatpush1.msra.mxu0 0.0
    %1863 = vmatprep.subr.mxu0 0.0
    %1864 = vmatpush1.msra.mxu0 0.0
    %1865 = vmatprep.subr.mxu0 0.0
    %1866 = vmatpush1.msra.mxu0 0.0
    %1867 = vmatprep.subr.mxu0 0.0
    %1868 = vmatpush1.msra.mxu0 0.0
    %1869 = vmatprep.subr.mxu0 0.0
    %1870 = vmatpush1.msra.mxu0 %v585
    %1871 = vmatprep.subr.mxu0 0.0
    %1872 = vmatpush1.msra.mxu0 %v584
    %1873 = vmatprep.subr.mxu0 0.0
    %1874 = vmatpush1.msra.mxu0 %v583
    %1875 = vmatprep.subr.mxu0 0.0
    %1876 = vmatpush1.msra.mxu0 %v582
    %1877 = vmatprep.subr.mxu0 0.0
    %1878 = vmatpush2.msra.mxu0 0.0
    %1879 = vmatprep.subr.mxu0 0.0
    %1880 = vmatpush2.msra.mxu0 0.0
    %1881 = vmatprep.subr.mxu0 0.0
    %1882 = vmatpush2.msra.mxu0 0.0
    %1883 = vmatprep.subr.mxu0 0.0
    %1884 = vmatpush2.msra.mxu0 0.0
    %1885 = vmatprep.subr.mxu0 0.0
    %1886 = vmatpush2.msra.mxu0 0.0
    %1887 = vmatprep.subr.mxu0 0.0
    %1888 = vmatpush2.msra.mxu0 0.0
    %1889 = vmatprep.subr.mxu0 0.0
    %1890 = vmatpush2.msra.mxu0 0.0
    %1891 = vmatprep.subr.mxu0 0.0
    %1892 = vmatpush2.msra.mxu0 0.0
    %1893 = vmatprep.subr.mxu0 0.0
    %1894 = vmatpush2.msra.mxu0 0.0
    %1895 = vmatprep.subr.mxu0 0.0
    %1896 = vmatpush2.msra.mxu0 0.0
    %1897 = vmatprep.subr.mxu0 0.0
    %1898 = vmatpush2.msra.mxu0 0.0
    %1899 = vmatprep.subr.mxu0 0.0
    %1900 = vmatpush2.msra.mxu0 0.0
    %1901 = vmatprep.subr.mxu0 0.0
    %1902 = vmatpush2.msra.mxu0 0.0
    %1903 = vmatprep.subr.mxu0 0.0
    %1904 = vmatpush2.msra.mxu0 0.0
    %1905 = vmatprep.subr.mxu0 0.0
    %1906 = vmatpush2.msra.mxu0 0.0
    %1907 = vmatprep.subr.mxu0 0.0
    %1908 = vmatpush2.msra.mxu0 0.0
    %1909 = vmatprep.mubr.f32.mxu0 0.0
    %1910 = vmatmul.mubr.f32.gmra.mxu0 %v1841
    %v1911 = vpop.f32.mrf.mxu0
    %v1912 = vadd.f32 %v1827, %v1911
    %v1913 = vpop.f32.mrf.mxu0
    %1914 = vmatprep.mubr.f32.mxu0 0.0
    %1915 = vmatmul.mubr.f32.gmra.mxu0 %v1843
    %v1916 = vpop.f32.mrf.mxu0
    %v1917 = vadd.f32 %v1832, %v1916
    %v1918 = vpop.f32.mrf.mxu0
    %1919 = vdwg.mxu0
    %v1920 = vadd.f32 %v1912, %v883
    %v1921 = vadd.f32 %v1917, %v883
    %v1922 = vxor.u32 %v1920, 2147483648
    %v1923 = vxor.u32 %v1921, 2147483648
    %v1924 = vmul.f32 %v1922, 1.442695
    %v1925 = vpow.pop %v1924
    %v1926 = vmul.f32 %v1923, 1.442695
    %v1927 = vpow.pop %v1926
    %v1928 = vadd.f32 %v1925, 1.0
    %v1929 = vadd.f32 %v1927, 1.0
    %v1930 = vrcp.pop %v1928
    %v1931 = vmul.f32 1.0, %v1930
    %v1932 = vrcp.pop %v1929
    %v1933 = vmul.f32 1.0, %v1932
    %v1934 = vtanh.pop %v1920
    %v1935 = vtanh.pop %v1921
    %v1936 = vmul.f32 %v1931, %v1611
    %v1937 = vmul.f32 %v1933, %v1612
    %1940 = vrot.lane.b32.xlu0 %v1934, 64
    %v1941 = vpop.permute.xlu0 %1940
    %1942 = vrot.lane.b32.xlu0 %v1935, 64
    %v1943 = vpop.permute.xlu0 %1942
    %v1946 = vmul.f32 %v1931, %v1941
    %v1947 = vmul.f32 %v1933, %v1943
    %1950 = vrot.lane.b32.xlu0 %v1946, 32
    %v1951 = vpop.permute.xlu0 %1950
    %1952 = vrot.lane.b32.xlu0 %v1947, 32
    %v1953 = vpop.permute.xlu0 %1952
    %v1956 = vadd.f32 %v1936, %v1951
    %v1957 = vadd.f32 %v1937, %v1953
    %v1958 = vtanh.pop %v1956
    %v1959 = vtanh.pop %v1957
    %1962 = vrot.lane.b32.xlu0 %v1958, 64
    %v1963 = vpop.permute.xlu0 %1962
    %1964 = vrot.lane.b32.xlu0 %v1959, 64
    %v1965 = vpop.permute.xlu0 %1964
    %v1968 = vmul.f32 %v1931, %v1963
    %v1969 = vmul.f32 %v1933, %v1965
    %1970 = vmatprep.subr.mxu0 0.0
    %1971 = vmatpush1.msra.mxu0 0.0
    %1972 = vmatprep.subr.mxu0 0.0
    %1973 = vmatpush1.msra.mxu0 0.0
    %1974 = vmatprep.subr.mxu0 0.0
    %1975 = vmatpush1.msra.mxu0 0.0
    %1976 = vmatprep.subr.mxu0 0.0
    %1977 = vmatpush1.msra.mxu0 0.0
    %1978 = vmatprep.subr.mxu0 0.0
    %1979 = vmatpush1.msra.mxu0 0.0
    %1980 = vmatprep.subr.mxu0 0.0
    %1981 = vmatpush1.msra.mxu0 0.0
    %1982 = vmatprep.subr.mxu0 0.0
    %1983 = vmatpush1.msra.mxu0 0.0
    %1984 = vmatprep.subr.mxu0 0.0
    %1985 = vmatpush1.msra.mxu0 0.0
    %1986 = vmatprep.subr.mxu0 0.0
    %1987 = vmatpush1.msra.mxu0 0.0
    %1988 = vmatprep.subr.mxu0 0.0
    %1989 = vmatpush1.msra.mxu0 0.0
    %1990 = vmatprep.subr.mxu0 0.0
    %1991 = vmatpush1.msra.mxu0 0.0
    %1992 = vmatprep.subr.mxu0 0.0
    %1993 = vmatpush1.msra.mxu0 0.0
    %1994 = vmatprep.subr.mxu0 0.0
    %1995 = vmatpush1.msra.mxu0 %v581
    %1996 = vmatprep.subr.mxu0 0.0
    %1997 = vmatpush1.msra.mxu0 %v580
    %1998 = vmatprep.subr.mxu0 0.0
    %1999 = vmatpush1.msra.mxu0 %v579
    %2000 = vmatprep.subr.mxu0 0.0
    %2001 = vmatpush1.msra.mxu0 %v578
    %2002 = vmatprep.subr.mxu0 0.0
    %2003 = vmatpush2.msra.mxu0 0.0
    %2004 = vmatprep.subr.mxu0 0.0
    %2005 = vmatpush2.msra.mxu0 0.0
    %2006 = vmatprep.subr.mxu0 0.0
    %2007 = vmatpush2.msra.mxu0 0.0
    %2008 = vmatprep.subr.mxu0 0.0
    %2009 = vmatpush2.msra.mxu0 0.0
    %2010 = vmatprep.subr.mxu0 0.0
    %2011 = vmatpush2.msra.mxu0 0.0
    %2012 = vmatprep.subr.mxu0 0.0
    %2013 = vmatpush2.msra.mxu0 0.0
    %2014 = vmatprep.subr.mxu0 0.0
    %2015 = vmatpush2.msra.mxu0 0.0
    %2016 = vmatprep.subr.mxu0 0.0
    %2017 = vmatpush2.msra.mxu0 0.0
    %2018 = vmatprep.subr.mxu0 0.0
    %2019 = vmatpush2.msra.mxu0 0.0
    %2020 = vmatprep.subr.mxu0 0.0
    %2021 = vmatpush2.msra.mxu0 0.0
    %2022 = vmatprep.subr.mxu0 0.0
    %2023 = vmatpush2.msra.mxu0 0.0
    %2024 = vmatprep.subr.mxu0 0.0
    %2025 = vmatpush2.msra.mxu0 0.0
    %2026 = vmatprep.subr.mxu0 0.0
    %2027 = vmatpush2.msra.mxu0 0.0
    %2028 = vmatprep.subr.mxu0 0.0
    %2029 = vmatpush2.msra.mxu0 0.0
    %2030 = vmatprep.subr.mxu0 0.0
    %2031 = vmatpush2.msra.mxu0 0.0
    %2032 = vmatprep.subr.mxu0 0.0
    %2033 = vmatpush2.msra.mxu0 0.0
    %2034 = vmatprep.mubr.f32.mxu0 0.0
    %2035 = vmatmul.mubr.f32.gmra.mxu0 %v1841
    %v2036 = vpop.f32.mrf.mxu0
    %v2037 = vadd.f32 0.0, %v2036
    %v2038 = vpop.f32.mrf.mxu0
    %2039 = vmatprep.mubr.f32.mxu0 0.0
    %2040 = vmatmul.mubr.f32.gmra.mxu0 %v1843
    %v2041 = vpop.f32.mrf.mxu0
    %v2042 = vadd.f32 0.0, %v2041
    %v2043 = vpop.f32.mrf.mxu0
    %2044 = vdwg.mxu0
    %v2045 = vadd.f32 %v540, %v2037
    %v2046 = vadd.f32 %v545, %v2042
    %v2047 = vxor.u32 %v2045, 2147483648
    %v2048 = vxor.u32 %v2046, 2147483648
    %v2049 = vmul.f32 %v2047, 1.442695
    %v2050 = vpow.pop %v2049
    %v2051 = vmul.f32 %v2048, 1.442695
    %v2052 = vpow.pop %v2051
    %v2053 = vadd.f32 %v2050, 1.0
    %v2054 = vadd.f32 %v2052, 1.0
    %v2055 = vrcp.pop %v2053
    %v2056 = vmul.f32 1.0, %v2055
    %v2057 = vrcp.pop %v2054
    %v2058 = vmul.f32 1.0, %v2057
    %v2059 = vtanh.pop %v2045
    %v2060 = vtanh.pop %v2046
    %v2061 = vmul.f32 %v2056, %v1736
    %v2062 = vmul.f32 %v2058, %v1737
    %2065 = vrot.lane.b32.xlu0 %v2059, 64
    %v2066 = vpop.permute.xlu0 %2065
    %2067 = vrot.lane.b32.xlu0 %v2060, 64
    %v2068 = vpop.permute.xlu0 %2067
    %v2071 = vmul.f32 %v2056, %v2066
    %v2072 = vmul.f32 %v2058, %v2068
    %2075 = vrot.lane.b32.xlu0 %v2071, 32
    %v2076 = vpop.permute.xlu0 %2075
    %2077 = vrot.lane.b32.xlu0 %v2072, 32
    %v2078 = vpop.permute.xlu0 %2077
    %v2081 = vadd.f32 %v2061, %v2076
    %v2082 = vadd.f32 %v2062, %v2078
    %v2083 = vtanh.pop %v2081
    %v2084 = vtanh.pop %v2082
    %2087 = vrot.lane.b32.xlu0 %v2083, 64
    %v2088 = vpop.permute.xlu0 %2087
    %2089 = vrot.lane.b32.xlu0 %v2084, 64
    %v2090 = vpop.permute.xlu0 %2089
    %v2093 = vmul.f32 %v2056, %v2088
    %v2094 = vmul.f32 %v2058, %v2090
    %2097 = vrot.lane.b32.xlu0 %v1968, 32
    %v2098 = vpop.permute.xlu0 %2097
    %2099 = vrot.lane.b32.xlu0 %v1969, 32
    %v2100 = vpop.permute.xlu0 %2099
    %v2101 = vsel %vm384, %v2098, 0
    %v2103 = vsel %vm384, %v2100, 0
    %2105 = vmatprep.subr.mxu0 0.0
    %2106 = vmatpush1.msra.mxu0 0.0
    %2107 = vmatprep.subr.mxu0 0.0
    %2108 = vmatpush1.msra.mxu0 0.0
    %2109 = vmatprep.subr.mxu0 0.0
    %2110 = vmatpush1.msra.mxu0 0.0
    %2111 = vmatprep.subr.mxu0 0.0
    %2112 = vmatpush1.msra.mxu0 0.0
    %2113 = vmatprep.subr.mxu0 0.0
    %2114 = vmatpush1.msra.mxu0 0.0
    %2115 = vmatprep.subr.mxu0 0.0
    %2116 = vmatpush1.msra.mxu0 0.0
    %2117 = vmatprep.subr.mxu0 0.0
    %2118 = vmatpush1.msra.mxu0 0.0
    %2119 = vmatprep.subr.mxu0 0.0
    %2120 = vmatpush1.msra.mxu0 0.0
    %2121 = vmatprep.subr.mxu0 0.0
    %2122 = vmatpush1.msra.mxu0 0.0
    %2123 = vmatprep.subr.mxu0 0.0
    %2124 = vmatpush1.msra.mxu0 0.0
    %2125 = vmatprep.subr.mxu0 0.0
    %2126 = vmatpush1.msra.mxu0 0.0
    %2127 = vmatprep.subr.mxu0 0.0
    %2128 = vmatpush1.msra.mxu0 0.0
    %2129 = vmatprep.subr.mxu0 0.0
    %2130 = vmatpush1.msra.mxu0 %v589
    %2131 = vmatprep.subr.mxu0 0.0
    %2132 = vmatpush1.msra.mxu0 %v588
    %2133 = vmatprep.subr.mxu0 0.0
    %2134 = vmatpush1.msra.mxu0 %v587
    %2135 = vmatprep.subr.mxu0 0.0
    %2136 = vmatpush1.msra.mxu0 %v586
    %2137 = vmatprep.subr.mxu0 0.0
    %2138 = vmatpush2.msra.mxu0 0.0
    %2139 = vmatprep.subr.mxu0 0.0
    %2140 = vmatpush2.msra.mxu0 0.0
    %2141 = vmatprep.subr.mxu0 0.0
    %2142 = vmatpush2.msra.mxu0 0.0
    %2143 = vmatprep.subr.mxu0 0.0
    %2144 = vmatpush2.msra.mxu0 0.0
    %2145 = vmatprep.subr.mxu0 0.0
    %2146 = vmatpush2.msra.mxu0 0.0
    %2147 = vmatprep.subr.mxu0 0.0
    %2148 = vmatpush2.msra.mxu0 0.0
    %2149 = vmatprep.subr.mxu0 0.0
    %2150 = vmatpush2.msra.mxu0 0.0
    %2151 = vmatprep.subr.mxu0 0.0
    %2152 = vmatpush2.msra.mxu0 0.0
    %2153 = vmatprep.subr.mxu0 0.0
    %2154 = vmatpush2.msra.mxu0 0.0
    %2155 = vmatprep.subr.mxu0 0.0
    %2156 = vmatpush2.msra.mxu0 0.0
    %2157 = vmatprep.subr.mxu0 0.0
    %2158 = vmatpush2.msra.mxu0 0.0
    %2159 = vmatprep.subr.mxu0 0.0
    %2160 = vmatpush2.msra.mxu0 0.0
    %2161 = vmatprep.subr.mxu0 0.0
    %2162 = vmatpush2.msra.mxu0 0.0
    %2163 = vmatprep.subr.mxu0 0.0
    %2164 = vmatpush2.msra.mxu0 0.0
    %2165 = vmatprep.subr.mxu0 0.0
    %2166 = vmatpush2.msra.mxu0 0.0
    %2167 = vmatprep.subr.mxu0 0.0
    %2168 = vmatpush2.msra.mxu0 0.0
    %2169 = vmatprep.mubr.f32.mxu0 0.0
    %2170 = vmatmul.mubr.f32.gmra.mxu0 %v2101
    %v2171 = vpop.f32.mrf.mxu0
    %v2172 = vadd.f32 0.0, %v2171
    %v2173 = vpop.f32.mrf.mxu0
    %2174 = vmatprep.mubr.f32.mxu0 0.0
    %2175 = vmatmul.mubr.f32.gmra.mxu0 %v2103
    %v2176 = vpop.f32.mrf.mxu0
    %v2177 = vadd.f32 0.0, %v2176
    %v2178 = vpop.f32.mrf.mxu0
    %2179 = vdwg.mxu0
    %2182 = vrot.lane.b32.xlu0 %v2093, 32
    %v2183 = vpop.permute.xlu0 %2182
    %2184 = vrot.lane.b32.xlu0 %v2094, 32
    %v2185 = vpop.permute.xlu0 %2184
    %v2186 = vsel %vm384, %v2183, 0
    %v2188 = vsel %vm384, %v2185, 0
    %2190 = vmatprep.subr.mxu0 0.0
    %2191 = vmatpush1.msra.mxu0 0.0
    %2192 = vmatprep.subr.mxu0 0.0
    %2193 = vmatpush1.msra.mxu0 0.0
    %2194 = vmatprep.subr.mxu0 0.0
    %2195 = vmatpush1.msra.mxu0 0.0
    %2196 = vmatprep.subr.mxu0 0.0
    %2197 = vmatpush1.msra.mxu0 0.0
    %2198 = vmatprep.subr.mxu0 0.0
    %2199 = vmatpush1.msra.mxu0 0.0
    %2200 = vmatprep.subr.mxu0 0.0
    %2201 = vmatpush1.msra.mxu0 0.0
    %2202 = vmatprep.subr.mxu0 0.0
    %2203 = vmatpush1.msra.mxu0 0.0
    %2204 = vmatprep.subr.mxu0 0.0
    %2205 = vmatpush1.msra.mxu0 0.0
    %2206 = vmatprep.subr.mxu0 0.0
    %2207 = vmatpush1.msra.mxu0 0.0
    %2208 = vmatprep.subr.mxu0 0.0
    %2209 = vmatpush1.msra.mxu0 0.0
    %2210 = vmatprep.subr.mxu0 0.0
    %2211 = vmatpush1.msra.mxu0 0.0
    %2212 = vmatprep.subr.mxu0 0.0
    %2213 = vmatpush1.msra.mxu0 0.0
    %2214 = vmatprep.subr.mxu0 0.0
    %2215 = vmatpush1.msra.mxu0 %v585
    %2216 = vmatprep.subr.mxu0 0.0
    %2217 = vmatpush1.msra.mxu0 %v584
    %2218 = vmatprep.subr.mxu0 0.0
    %2219 = vmatpush1.msra.mxu0 %v583
    %2220 = vmatprep.subr.mxu0 0.0
    %2221 = vmatpush1.msra.mxu0 %v582
    %2222 = vmatprep.subr.mxu0 0.0
    %2223 = vmatpush2.msra.mxu0 0.0
    %2224 = vmatprep.subr.mxu0 0.0
    %2225 = vmatpush2.msra.mxu0 0.0
    %2226 = vmatprep.subr.mxu0 0.0
    %2227 = vmatpush2.msra.mxu0 0.0
    %2228 = vmatprep.subr.mxu0 0.0
    %2229 = vmatpush2.msra.mxu0 0.0
    %2230 = vmatprep.subr.mxu0 0.0
    %2231 = vmatpush2.msra.mxu0 0.0
    %2232 = vmatprep.subr.mxu0 0.0
    %2233 = vmatpush2.msra.mxu0 0.0
    %2234 = vmatprep.subr.mxu0 0.0
    %2235 = vmatpush2.msra.mxu0 0.0
    %2236 = vmatprep.subr.mxu0 0.0
    %2237 = vmatpush2.msra.mxu0 0.0
    %2238 = vmatprep.subr.mxu0 0.0
    %2239 = vmatpush2.msra.mxu0 0.0
    %2240 = vmatprep.subr.mxu0 0.0
    %2241 = vmatpush2.msra.mxu0 0.0
    %2242 = vmatprep.subr.mxu0 0.0
    %2243 = vmatpush2.msra.mxu0 0.0
    %2244 = vmatprep.subr.mxu0 0.0
    %2245 = vmatpush2.msra.mxu0 0.0
    %2246 = vmatprep.subr.mxu0 0.0
    %2247 = vmatpush2.msra.mxu0 0.0
    %2248 = vmatprep.subr.mxu0 0.0
    %2249 = vmatpush2.msra.mxu0 0.0
    %2250 = vmatprep.subr.mxu0 0.0
    %2251 = vmatpush2.msra.mxu0 0.0
    %2252 = vmatprep.subr.mxu0 0.0
    %2253 = vmatpush2.msra.mxu0 0.0
    %2254 = vmatprep.mubr.f32.mxu0 0.0
    %2255 = vmatmul.mubr.f32.gmra.mxu0 %v2186
    %v2256 = vpop.f32.mrf.mxu0
    %v2257 = vadd.f32 %v2172, %v2256
    %v2258 = vpop.f32.mrf.mxu0
    %2259 = vmatprep.mubr.f32.mxu0 0.0
    %2260 = vmatmul.mubr.f32.gmra.mxu0 %v2188
    %v2261 = vpop.f32.mrf.mxu0
    %v2262 = vadd.f32 %v2177, %v2261
    %v2263 = vpop.f32.mrf.mxu0
    %2264 = vdwg.mxu0
    %v2265 = vadd.f32 %v2257, %v883
    %v2266 = vadd.f32 %v2262, %v883
    %v2267 = vxor.u32 %v2265, 2147483648
    %v2268 = vxor.u32 %v2266, 2147483648
    %v2269 = vmul.f32 %v2267, 1.442695
    %v2270 = vpow.pop %v2269
    %v2271 = vmul.f32 %v2268, 1.442695
    %v2272 = vpow.pop %v2271
    %v2273 = vadd.f32 %v2270, 1.0
    %v2274 = vadd.f32 %v2272, 1.0
    %v2275 = vrcp.pop %v2273
    %v2276 = vmul.f32 1.0, %v2275
    %v2277 = vrcp.pop %v2274
    %v2278 = vmul.f32 1.0, %v2277
    %v2279 = vtanh.pop %v2265
    %v2280 = vtanh.pop %v2266
    %v2281 = vmul.f32 %v2276, %v1956
    %v2282 = vmul.f32 %v2278, %v1957
    %2285 = vrot.lane.b32.xlu0 %v2279, 64
    %v2286 = vpop.permute.xlu0 %2285
    %2287 = vrot.lane.b32.xlu0 %v2280, 64
    %v2288 = vpop.permute.xlu0 %2287
    %v2291 = vmul.f32 %v2276, %v2286
    %v2292 = vmul.f32 %v2278, %v2288
    %2295 = vrot.lane.b32.xlu0 %v2291, 32
    %v2296 = vpop.permute.xlu0 %2295
    %2297 = vrot.lane.b32.xlu0 %v2292, 32
    %v2298 = vpop.permute.xlu0 %2297
    %v2301 = vadd.f32 %v2281, %v2296
    %v2302 = vadd.f32 %v2282, %v2298
    %v2303 = vtanh.pop %v2301
    %v2304 = vtanh.pop %v2302
    %2307 = vrot.lane.b32.xlu0 %v2303, 64
    %v2308 = vpop.permute.xlu0 %2307
    %2309 = vrot.lane.b32.xlu0 %v2304, 64
    %v2310 = vpop.permute.xlu0 %2309
    %v2313 = vmul.f32 %v2276, %v2308
    %v2314 = vmul.f32 %v2278, %v2310
    %2315 = vmatprep.subr.mxu0 0.0
    %2316 = vmatpush1.msra.mxu0 0.0
    %2317 = vmatprep.subr.mxu0 0.0
    %2318 = vmatpush1.msra.mxu0 0.0
    %2319 = vmatprep.subr.mxu0 0.0
    %2320 = vmatpush1.msra.mxu0 0.0
    %2321 = vmatprep.subr.mxu0 0.0
    %2322 = vmatpush1.msra.mxu0 0.0
    %2323 = vmatprep.subr.mxu0 0.0
    %2324 = vmatpush1.msra.mxu0 0.0
    %2325 = vmatprep.subr.mxu0 0.0
    %2326 = vmatpush1.msra.mxu0 0.0
    %2327 = vmatprep.subr.mxu0 0.0
    %2328 = vmatpush1.msra.mxu0 0.0
    %2329 = vmatprep.subr.mxu0 0.0
    %2330 = vmatpush1.msra.mxu0 0.0
    %2331 = vmatprep.subr.mxu0 0.0
    %2332 = vmatpush1.msra.mxu0 0.0
    %2333 = vmatprep.subr.mxu0 0.0
    %2334 = vmatpush1.msra.mxu0 0.0
    %2335 = vmatprep.subr.mxu0 0.0
    %2336 = vmatpush1.msra.mxu0 0.0
    %2337 = vmatprep.subr.mxu0 0.0
    %2338 = vmatpush1.msra.mxu0 0.0
    %2339 = vmatprep.subr.mxu0 0.0
    %2340 = vmatpush1.msra.mxu0 %v581
    %2341 = vmatprep.subr.mxu0 0.0
    %2342 = vmatpush1.msra.mxu0 %v580
    %2343 = vmatprep.subr.mxu0 0.0
    %2344 = vmatpush1.msra.mxu0 %v579
    %2345 = vmatprep.subr.mxu0 0.0
    %2346 = vmatpush1.msra.mxu0 %v578
    %2347 = vmatprep.subr.mxu0 0.0
    %2348 = vmatpush2.msra.mxu0 0.0
    %2349 = vmatprep.subr.mxu0 0.0
    %2350 = vmatpush2.msra.mxu0 0.0
    %2351 = vmatprep.subr.mxu0 0.0
    %2352 = vmatpush2.msra.mxu0 0.0
    %2353 = vmatprep.subr.mxu0 0.0
    %2354 = vmatpush2.msra.mxu0 0.0
    %2355 = vmatprep.subr.mxu0 0.0
    %2356 = vmatpush2.msra.mxu0 0.0
    %2357 = vmatprep.subr.mxu0 0.0
    %2358 = vmatpush2.msra.mxu0 0.0
    %2359 = vmatprep.subr.mxu0 0.0
    %2360 = vmatpush2.msra.mxu0 0.0
    %2361 = vmatprep.subr.mxu0 0.0
    %2362 = vmatpush2.msra.mxu0 0.0
    %2363 = vmatprep.subr.mxu0 0.0
    %2364 = vmatpush2.msra.mxu0 0.0
    %2365 = vmatprep.subr.mxu0 0.0
    %2366 = vmatpush2.msra.mxu0 0.0
    %2367 = vmatprep.subr.mxu0 0.0
    %2368 = vmatpush2.msra.mxu0 0.0
    %2369 = vmatprep.subr.mxu0 0.0
    %2370 = vmatpush2.msra.mxu0 0.0
    %2371 = vmatprep.subr.mxu0 0.0
    %2372 = vmatpush2.msra.mxu0 0.0
    %2373 = vmatprep.subr.mxu0 0.0
    %2374 = vmatpush2.msra.mxu0 0.0
    %2375 = vmatprep.subr.mxu0 0.0
    %2376 = vmatpush2.msra.mxu0 0.0
    %2377 = vmatprep.subr.mxu0 0.0
    %2378 = vmatpush2.msra.mxu0 0.0
    %2379 = vmatprep.mubr.f32.mxu0 0.0
    %2380 = vmatmul.mubr.f32.gmra.mxu0 %v2186
    %v2381 = vpop.f32.mrf.mxu0
    %v2382 = vadd.f32 0.0, %v2381
    %v2383 = vpop.f32.mrf.mxu0
    %2384 = vmatprep.mubr.f32.mxu0 0.0
    %2385 = vmatmul.mubr.f32.gmra.mxu0 %v2188
    %v2386 = vpop.f32.mrf.mxu0
    %v2387 = vadd.f32 0.0, %v2386
    %v2388 = vpop.f32.mrf.mxu0
    %2389 = vdwg.mxu0
    %v2390 = vadd.f32 %v550, %v2382
    %v2391 = vadd.f32 %v555, %v2387
    %v2392 = vxor.u32 %v2390, 2147483648
    %v2393 = vxor.u32 %v2391, 2147483648
    %v2394 = vmul.f32 %v2392, 1.442695
    %v2395 = vpow.pop %v2394
    %v2396 = vmul.f32 %v2393, 1.442695
    %v2397 = vpow.pop %v2396
    %v2398 = vadd.f32 %v2395, 1.0
    %v2399 = vadd.f32 %v2397, 1.0
    %v2400 = vrcp.pop %v2398
    %v2401 = vmul.f32 1.0, %v2400
    %v2402 = vrcp.pop %v2399
    %v2403 = vmul.f32 1.0, %v2402
    %v2404 = vtanh.pop %v2390
    %v2405 = vtanh.pop %v2391
    %v2406 = vmul.f32 %v2401, %v2081
    %v2407 = vmul.f32 %v2403, %v2082
    %2410 = vrot.lane.b32.xlu0 %v2404, 64
    %v2411 = vpop.permute.xlu0 %2410
    %2412 = vrot.lane.b32.xlu0 %v2405, 64
    %v2413 = vpop.permute.xlu0 %2412
    %v2416 = vmul.f32 %v2401, %v2411
    %v2417 = vmul.f32 %v2403, %v2413
    %2420 = vrot.lane.b32.xlu0 %v2416, 32
    %v2421 = vpop.permute.xlu0 %2420
    %2422 = vrot.lane.b32.xlu0 %v2417, 32
    %v2423 = vpop.permute.xlu0 %2422
    %v2426 = vadd.f32 %v2406, %v2421
    %v2427 = vadd.f32 %v2407, %v2423
    %v2428 = vtanh.pop %v2426
    %v2429 = vtanh.pop %v2427
    %2432 = vrot.lane.b32.xlu0 %v2428, 64
    %v2433 = vpop.permute.xlu0 %2432
    %2434 = vrot.lane.b32.xlu0 %v2429, 64
    %v2435 = vpop.permute.xlu0 %2434
    %v2438 = vmul.f32 %v2401, %v2433
    %v2439 = vmul.f32 %v2403, %v2435
    %2442 = vrot.lane.b32.xlu0 %v2313, 32
    %v2443 = vpop.permute.xlu0 %2442
    %2444 = vrot.lane.b32.xlu0 %v2314, 32
    %v2445 = vpop.permute.xlu0 %2444
    %v2446 = vsel %vm384, %v2443, 0
    %v2448 = vsel %vm384, %v2445, 0
    %2450 = vmatprep.subr.mxu0 0.0
    %2451 = vmatpush1.msra.mxu0 0.0
    %2452 = vmatprep.subr.mxu0 0.0
    %2453 = vmatpush1.msra.mxu0 0.0
    %2454 = vmatprep.subr.mxu0 0.0
    %2455 = vmatpush1.msra.mxu0 0.0
    %2456 = vmatprep.subr.mxu0 0.0
    %2457 = vmatpush1.msra.mxu0 0.0
    %2458 = vmatprep.subr.mxu0 0.0
    %2459 = vmatpush1.msra.mxu0 0.0
    %2460 = vmatprep.subr.mxu0 0.0
    %2461 = vmatpush1.msra.mxu0 0.0
    %2462 = vmatprep.subr.mxu0 0.0
    %2463 = vmatpush1.msra.mxu0 0.0
    %2464 = vmatprep.subr.mxu0 0.0
    %2465 = vmatpush1.msra.mxu0 0.0
    %2466 = vmatprep.subr.mxu0 0.0
    %2467 = vmatpush1.msra.mxu0 0.0
    %2468 = vmatprep.subr.mxu0 0.0
    %2469 = vmatpush1.msra.mxu0 0.0
    %2470 = vmatprep.subr.mxu0 0.0
    %2471 = vmatpush1.msra.mxu0 0.0
    %2472 = vmatprep.subr.mxu0 0.0
    %2473 = vmatpush1.msra.mxu0 0.0
    %2474 = vmatprep.subr.mxu0 0.0
    %2475 = vmatpush1.msra.mxu0 %v589
    %2476 = vmatprep.subr.mxu0 0.0
    %2477 = vmatpush1.msra.mxu0 %v588
    %2478 = vmatprep.subr.mxu0 0.0
    %2479 = vmatpush1.msra.mxu0 %v587
    %2480 = vmatprep.subr.mxu0 0.0
    %2481 = vmatpush1.msra.mxu0 %v586
    %2482 = vmatprep.subr.mxu0 0.0
    %2483 = vmatpush2.msra.mxu0 0.0
    %2484 = vmatprep.subr.mxu0 0.0
    %2485 = vmatpush2.msra.mxu0 0.0
    %2486 = vmatprep.subr.mxu0 0.0
    %2487 = vmatpush2.msra.mxu0 0.0
    %2488 = vmatprep.subr.mxu0 0.0
    %2489 = vmatpush2.msra.mxu0 0.0
    %2490 = vmatprep.subr.mxu0 0.0
    %2491 = vmatpush2.msra.mxu0 0.0
    %2492 = vmatprep.subr.mxu0 0.0
    %2493 = vmatpush2.msra.mxu0 0.0
    %2494 = vmatprep.subr.mxu0 0.0
    %2495 = vmatpush2.msra.mxu0 0.0
    %2496 = vmatprep.subr.mxu0 0.0
    %2497 = vmatpush2.msra.mxu0 0.0
    %2498 = vmatprep.subr.mxu0 0.0
    %2499 = vmatpush2.msra.mxu0 0.0
    %2500 = vmatprep.subr.mxu0 0.0
    %2501 = vmatpush2.msra.mxu0 0.0
    %2502 = vmatprep.subr.mxu0 0.0
    %2503 = vmatpush2.msra.mxu0 0.0
    %2504 = vmatprep.subr.mxu0 0.0
    %2505 = vmatpush2.msra.mxu0 0.0
    %2506 = vmatprep.subr.mxu0 0.0
    %2507 = vmatpush2.msra.mxu0 0.0
    %2508 = vmatprep.subr.mxu0 0.0
    %2509 = vmatpush2.msra.mxu0 0.0
    %2510 = vmatprep.subr.mxu0 0.0
    %2511 = vmatpush2.msra.mxu0 0.0
    %2512 = vmatprep.subr.mxu0 0.0
    %2513 = vmatpush2.msra.mxu0 0.0
    %2514 = vmatprep.mubr.f32.mxu0 0.0
    %2515 = vmatmul.mubr.f32.gmra.mxu0 %v2446
    %v2516 = vpop.f32.mrf.mxu0
    %v2517 = vadd.f32 0.0, %v2516
    %v2518 = vpop.f32.mrf.mxu0
    %2519 = vmatprep.mubr.f32.mxu0 0.0
    %2520 = vmatmul.mubr.f32.gmra.mxu0 %v2448
    %v2521 = vpop.f32.mrf.mxu0
    %v2522 = vadd.f32 0.0, %v2521
    %v2523 = vpop.f32.mrf.mxu0
    %2524 = vdwg.mxu0
    %2527 = vrot.lane.b32.xlu0 %v2438, 32
    %v2528 = vpop.permute.xlu0 %2527
    %2529 = vrot.lane.b32.xlu0 %v2439, 32
    %v2530 = vpop.permute.xlu0 %2529
    %v2531 = vsel %vm384, %v2528, 0
    %v2533 = vsel %vm384, %v2530, 0
    %2535 = vmatprep.subr.mxu0 0.0
    %2536 = vmatpush1.msra.mxu0 0.0
    %2537 = vmatprep.subr.mxu0 0.0
    %2538 = vmatpush1.msra.mxu0 0.0
    %2539 = vmatprep.subr.mxu0 0.0
    %2540 = vmatpush1.msra.mxu0 0.0
    %2541 = vmatprep.subr.mxu0 0.0
    %2542 = vmatpush1.msra.mxu0 0.0
    %2543 = vmatprep.subr.mxu0 0.0
    %2544 = vmatpush1.msra.mxu0 0.0
    %2545 = vmatprep.subr.mxu0 0.0
    %2546 = vmatpush1.msra.mxu0 0.0
    %2547 = vmatprep.subr.mxu0 0.0
    %2548 = vmatpush1.msra.mxu0 0.0
    %2549 = vmatprep.subr.mxu0 0.0
    %2550 = vmatpush1.msra.mxu0 0.0
    %2551 = vmatprep.subr.mxu0 0.0
    %2552 = vmatpush1.msra.mxu0 0.0
    %2553 = vmatprep.subr.mxu0 0.0
    %2554 = vmatpush1.msra.mxu0 0.0
    %2555 = vmatprep.subr.mxu0 0.0
    %2556 = vmatpush1.msra.mxu0 0.0
    %2557 = vmatprep.subr.mxu0 0.0
    %2558 = vmatpush1.msra.mxu0 0.0
    %2559 = vmatprep.subr.mxu0 0.0
    %2560 = vmatpush1.msra.mxu0 %v585
    %2561 = vmatprep.subr.mxu0 0.0
    %2562 = vmatpush1.msra.mxu0 %v584
    %2563 = vmatprep.subr.mxu0 0.0
    %2564 = vmatpush1.msra.mxu0 %v583
    %2565 = vmatprep.subr.mxu0 0.0
    %2566 = vmatpush1.msra.mxu0 %v582
    %2567 = vmatprep.subr.mxu0 0.0
    %2568 = vmatpush2.msra.mxu0 0.0
    %2569 = vmatprep.subr.mxu0 0.0
    %2570 = vmatpush2.msra.mxu0 0.0
    %2571 = vmatprep.subr.mxu0 0.0
    %2572 = vmatpush2.msra.mxu0 0.0
    %2573 = vmatprep.subr.mxu0 0.0
    %2574 = vmatpush2.msra.mxu0 0.0
    %2575 = vmatprep.subr.mxu0 0.0
    %2576 = vmatpush2.msra.mxu0 0.0
    %2577 = vmatprep.subr.mxu0 0.0
    %2578 = vmatpush2.msra.mxu0 0.0
    %2579 = vmatprep.subr.mxu0 0.0
    %2580 = vmatpush2.msra.mxu0 0.0
    %2581 = vmatprep.subr.mxu0 0.0
    %2582 = vmatpush2.msra.mxu0 0.0
    %2583 = vmatprep.subr.mxu0 0.0
    %2584 = vmatpush2.msra.mxu0 0.0
    %2585 = vmatprep.subr.mxu0 0.0
    %2586 = vmatpush2.msra.mxu0 0.0
    %2587 = vmatprep.subr.mxu0 0.0
    %2588 = vmatpush2.msra.mxu0 0.0
    %2589 = vmatprep.subr.mxu0 0.0
    %2590 = vmatpush2.msra.mxu0 0.0
    %2591 = vmatprep.subr.mxu0 0.0
    %2592 = vmatpush2.msra.mxu0 0.0
    %2593 = vmatprep.subr.mxu0 0.0
    %2594 = vmatpush2.msra.mxu0 0.0
    %2595 = vmatprep.subr.mxu0 0.0
    %2596 = vmatpush2.msra.mxu0 0.0
    %2597 = vmatprep.subr.mxu0 0.0
    %2598 = vmatpush2.msra.mxu0 0.0
    %2599 = vmatprep.mubr.f32.mxu0 0.0
    %2600 = vmatmul.mubr.f32.gmra.mxu0 %v2531
    %v2601 = vpop.f32.mrf.mxu0
    %v2602 = vadd.f32 %v2517, %v2601
    %v2603 = vpop.f32.mrf.mxu0
    %2604 = vmatprep.mubr.f32.mxu0 0.0
    %2605 = vmatmul.mubr.f32.gmra.mxu0 %v2533
    %v2606 = vpop.f32.mrf.mxu0
    %v2607 = vadd.f32 %v2522, %v2606
    %v2608 = vpop.f32.mrf.mxu0
    %2609 = vdwg.mxu0
    %v2610 = vadd.f32 %v2602, %v883
    %v2611 = vadd.f32 %v2607, %v883
    %v2612 = vxor.u32 %v2610, 2147483648
    %v2613 = vxor.u32 %v2611, 2147483648
    %v2614 = vmul.f32 %v2612, 1.442695
    %v2615 = vpow.pop %v2614
    %v2616 = vmul.f32 %v2613, 1.442695
    %v2617 = vpow.pop %v2616
    %v2618 = vadd.f32 %v2615, 1.0
    %v2619 = vadd.f32 %v2617, 1.0
    %v2620 = vrcp.pop %v2618
    %v2621 = vmul.f32 1.0, %v2620
    %v2622 = vrcp.pop %v2619
    %v2623 = vmul.f32 1.0, %v2622
    %v2624 = vtanh.pop %v2610
    %v2625 = vtanh.pop %v2611
    %v2626 = vmul.f32 %v2621, %v2301
    %v2627 = vmul.f32 %v2623, %v2302
    %2630 = vrot.lane.b32.xlu0 %v2624, 64
    %v2631 = vpop.permute.xlu0 %2630
    %2632 = vrot.lane.b32.xlu0 %v2625, 64
    %v2633 = vpop.permute.xlu0 %2632
    %v2636 = vmul.f32 %v2621, %v2631
    %v2637 = vmul.f32 %v2623, %v2633
    %2640 = vrot.lane.b32.xlu0 %v2636, 32
    %v2641 = vpop.permute.xlu0 %2640
    %2642 = vrot.lane.b32.xlu0 %v2637, 32
    %v2643 = vpop.permute.xlu0 %2642
    %v2646 = vadd.f32 %v2626, %v2641
    %v2647 = vadd.f32 %v2627, %v2643
    %v2648 = vtanh.pop %v2646
    %v2649 = vtanh.pop %v2647
    %2652 = vrot.lane.b32.xlu0 %v2648, 64
    %v2653 = vpop.permute.xlu0 %2652
    %2654 = vrot.lane.b32.xlu0 %v2649, 64
    %v2655 = vpop.permute.xlu0 %2654
    %v2658 = vmul.f32 %v2621, %v2653
    %v2659 = vmul.f32 %v2623, %v2655
    %2660 = vmatprep.subr.mxu0 0.0
    %2661 = vmatpush1.msra.mxu0 0.0
    %2662 = vmatprep.subr.mxu0 0.0
    %2663 = vmatpush1.msra.mxu0 0.0
    %2664 = vmatprep.subr.mxu0 0.0
    %2665 = vmatpush1.msra.mxu0 0.0
    %2666 = vmatprep.subr.mxu0 0.0
    %2667 = vmatpush1.msra.mxu0 0.0
    %2668 = vmatprep.subr.mxu0 0.0
    %2669 = vmatpush1.msra.mxu0 0.0
    %2670 = vmatprep.subr.mxu0 0.0
    %2671 = vmatpush1.msra.mxu0 0.0
    %2672 = vmatprep.subr.mxu0 0.0
    %2673 = vmatpush1.msra.mxu0 0.0
    %2674 = vmatprep.subr.mxu0 0.0
    %2675 = vmatpush1.msra.mxu0 0.0
    %2676 = vmatprep.subr.mxu0 0.0
    %2677 = vmatpush1.msra.mxu0 0.0
    %2678 = vmatprep.subr.mxu0 0.0
    %2679 = vmatpush1.msra.mxu0 0.0
    %2680 = vmatprep.subr.mxu0 0.0
    %2681 = vmatpush1.msra.mxu0 0.0
    %2682 = vmatprep.subr.mxu0 0.0
    %2683 = vmatpush1.msra.mxu0 0.0
    %2684 = vmatprep.subr.mxu0 0.0
    %2685 = vmatpush1.msra.mxu0 %v581
    %2686 = vmatprep.subr.mxu0 0.0
    %2687 = vmatpush1.msra.mxu0 %v580
    %2688 = vmatprep.subr.mxu0 0.0
    %2689 = vmatpush1.msra.mxu0 %v579
    %2690 = vmatprep.subr.mxu0 0.0
    %2691 = vmatpush1.msra.mxu0 %v578
    %2692 = vmatprep.subr.mxu0 0.0
    %2693 = vmatpush2.msra.mxu0 0.0
    %2694 = vmatprep.subr.mxu0 0.0
    %2695 = vmatpush2.msra.mxu0 0.0
    %2696 = vmatprep.subr.mxu0 0.0
    %2697 = vmatpush2.msra.mxu0 0.0
    %2698 = vmatprep.subr.mxu0 0.0
    %2699 = vmatpush2.msra.mxu0 0.0
    %2700 = vmatprep.subr.mxu0 0.0
    %2701 = vmatpush2.msra.mxu0 0.0
    %2702 = vmatprep.subr.mxu0 0.0
    %2703 = vmatpush2.msra.mxu0 0.0
    %2704 = vmatprep.subr.mxu0 0.0
    %2705 = vmatpush2.msra.mxu0 0.0
    %2706 = vmatprep.subr.mxu0 0.0
    %2707 = vmatpush2.msra.mxu0 0.0
    %2708 = vmatprep.subr.mxu0 0.0
    %2709 = vmatpush2.msra.mxu0 0.0
    %2710 = vmatprep.subr.mxu0 0.0
    %2711 = vmatpush2.msra.mxu0 0.0
    %2712 = vmatprep.subr.mxu0 0.0
    %2713 = vmatpush2.msra.mxu0 0.0
    %2714 = vmatprep.subr.mxu0 0.0
    %2715 = vmatpush2.msra.mxu0 0.0
    %2716 = vmatprep.subr.mxu0 0.0
    %2717 = vmatpush2.msra.mxu0 0.0
    %2718 = vmatprep.subr.mxu0 0.0
    %2719 = vmatpush2.msra.mxu0 0.0
    %2720 = vmatprep.subr.mxu0 0.0
    %2721 = vmatpush2.msra.mxu0 0.0
    %2722 = vmatprep.subr.mxu0 0.0
    %2723 = vmatpush2.msra.mxu0 0.0
    %2724 = vmatprep.mubr.f32.mxu0 0.0
    %2725 = vmatmul.mubr.f32.gmra.mxu0 %v2531
    %v2726 = vpop.f32.mrf.mxu0
    %v2727 = vadd.f32 0.0, %v2726
    %v2728 = vpop.f32.mrf.mxu0
    %2729 = vmatprep.mubr.f32.mxu0 0.0
    %2730 = vmatmul.mubr.f32.gmra.mxu0 %v2533
    %v2731 = vpop.f32.mrf.mxu0
    %v2732 = vadd.f32 0.0, %v2731
    %v2733 = vpop.f32.mrf.mxu0
    %2734 = vdwg.mxu0
    %v2735 = vadd.f32 %v560, %v2727
    %v2736 = vadd.f32 %v565, %v2732
    %v2737 = vxor.u32 %v2735, 2147483648
    %v2738 = vxor.u32 %v2736, 2147483648
    %v2739 = vmul.f32 %v2737, 1.442695
    %v2740 = vpow.pop %v2739
    %v2741 = vmul.f32 %v2738, 1.442695
    %v2742 = vpow.pop %v2741
    %v2743 = vadd.f32 %v2740, 1.0
    %v2744 = vadd.f32 %v2742, 1.0
    %v2745 = vrcp.pop %v2743
    %v2746 = vmul.f32 1.0, %v2745
    %v2747 = vrcp.pop %v2744
    %v2748 = vmul.f32 1.0, %v2747
    %v2749 = vtanh.pop %v2735
    %v2750 = vtanh.pop %v2736
    %v2751 = vmul.f32 %v2746, %v2426
    %v2752 = vmul.f32 %v2748, %v2427
    %2755 = vrot.lane.b32.xlu0 %v2749, 64
    %v2756 = vpop.permute.xlu0 %2755
    %2757 = vrot.lane.b32.xlu0 %v2750, 64
    %v2758 = vpop.permute.xlu0 %2757
    %v2761 = vmul.f32 %v2746, %v2756
    %v2762 = vmul.f32 %v2748, %v2758
    %2765 = vrot.lane.b32.xlu0 %v2761, 32
    %v2766 = vpop.permute.xlu0 %2765
    %2767 = vrot.lane.b32.xlu0 %v2762, 32
    %v2768 = vpop.permute.xlu0 %2767
    %v2771 = vadd.f32 %v2751, %v2766
    %v2772 = vadd.f32 %v2752, %v2768
    %v2773 = vtanh.pop %v2771
    %v2774 = vtanh.pop %v2772
    %2777 = vrot.lane.b32.xlu0 %v2773, 64
    %v2778 = vpop.permute.xlu0 %2777
    %2779 = vrot.lane.b32.xlu0 %v2774, 64
    %v2780 = vpop.permute.xlu0 %2779
    %v2783 = vmul.f32 %v2746, %v2778
    %v2784 = vmul.f32 %v2748, %v2780
    %2787 = vrot.lane.b32.xlu0 %v2658, 32
    %v2788 = vpop.permute.xlu0 %2787
    %2789 = vrot.lane.b32.xlu0 %v2659, 32
    %v2790 = vpop.permute.xlu0 %2789
    %v2791 = vsel %vm384, %v2788, 0
    %v2793 = vsel %vm384, %v2790, 0
    %2795 = vmatprep.subr.mxu0 0.0
    %2796 = vmatpush1.msra.mxu0 0.0
    %2797 = vmatprep.subr.mxu0 0.0
    %2798 = vmatpush1.msra.mxu0 0.0
    %2799 = vmatprep.subr.mxu0 0.0
    %2800 = vmatpush1.msra.mxu0 0.0
    %2801 = vmatprep.subr.mxu0 0.0
    %2802 = vmatpush1.msra.mxu0 0.0
    %2803 = vmatprep.subr.mxu0 0.0
    %2804 = vmatpush1.msra.mxu0 0.0
    %2805 = vmatprep.subr.mxu0 0.0
    %2806 = vmatpush1.msra.mxu0 0.0
    %2807 = vmatprep.subr.mxu0 0.0
    %2808 = vmatpush1.msra.mxu0 0.0
    %2809 = vmatprep.subr.mxu0 0.0
    %2810 = vmatpush1.msra.mxu0 0.0
    %2811 = vmatprep.subr.mxu0 0.0
    %2812 = vmatpush1.msra.mxu0 0.0
    %2813 = vmatprep.subr.mxu0 0.0
    %2814 = vmatpush1.msra.mxu0 0.0
    %2815 = vmatprep.subr.mxu0 0.0
    %2816 = vmatpush1.msra.mxu0 0.0
    %2817 = vmatprep.subr.mxu0 0.0
    %2818 = vmatpush1.msra.mxu0 0.0
    %2819 = vmatprep.subr.mxu0 0.0
    %2820 = vmatpush1.msra.mxu0 %v589
    %2821 = vmatprep.subr.mxu0 0.0
    %2822 = vmatpush1.msra.mxu0 %v588
    %2823 = vmatprep.subr.mxu0 0.0
    %2824 = vmatpush1.msra.mxu0 %v587
    %2825 = vmatprep.subr.mxu0 0.0
    %2826 = vmatpush1.msra.mxu0 %v586
    %2827 = vmatprep.subr.mxu0 0.0
    %2828 = vmatpush2.msra.mxu0 0.0
    %2829 = vmatprep.subr.mxu0 0.0
    %2830 = vmatpush2.msra.mxu0 0.0
    %2831 = vmatprep.subr.mxu0 0.0
    %2832 = vmatpush2.msra.mxu0 0.0
    %2833 = vmatprep.subr.mxu0 0.0
    %2834 = vmatpush2.msra.mxu0 0.0
    %2835 = vmatprep.subr.mxu0 0.0
    %2836 = vmatpush2.msra.mxu0 0.0
    %2837 = vmatprep.subr.mxu0 0.0
    %2838 = vmatpush2.msra.mxu0 0.0
    %2839 = vmatprep.subr.mxu0 0.0
    %2840 = vmatpush2.msra.mxu0 0.0
    %2841 = vmatprep.subr.mxu0 0.0
    %2842 = vmatpush2.msra.mxu0 0.0
    %2843 = vmatprep.subr.mxu0 0.0
    %2844 = vmatpush2.msra.mxu0 0.0
    %2845 = vmatprep.subr.mxu0 0.0
    %2846 = vmatpush2.msra.mxu0 0.0
    %2847 = vmatprep.subr.mxu0 0.0
    %2848 = vmatpush2.msra.mxu0 0.0
    %2849 = vmatprep.subr.mxu0 0.0
    %2850 = vmatpush2.msra.mxu0 0.0
    %2851 = vmatprep.subr.mxu0 0.0
    %2852 = vmatpush2.msra.mxu0 0.0
    %2853 = vmatprep.subr.mxu0 0.0
    %2854 = vmatpush2.msra.mxu0 0.0
    %2855 = vmatprep.subr.mxu0 0.0
    %2856 = vmatpush2.msra.mxu0 0.0
    %2857 = vmatprep.subr.mxu0 0.0
    %2858 = vmatpush2.msra.mxu0 0.0
    %2859 = vmatprep.mubr.f32.mxu0 0.0
    %2860 = vmatmul.mubr.f32.gmra.mxu0 %v2791
    %v2861 = vpop.f32.mrf.mxu0
    %v2862 = vadd.f32 0.0, %v2861
    %v2863 = vpop.f32.mrf.mxu0
    %2864 = vmatprep.mubr.f32.mxu0 0.0
    %2865 = vmatmul.mubr.f32.gmra.mxu0 %v2793
    %v2866 = vpop.f32.mrf.mxu0
    %v2867 = vadd.f32 0.0, %v2866
    %v2868 = vpop.f32.mrf.mxu0
    %2869 = vdwg.mxu0
    %2872 = vrot.lane.b32.xlu0 %v2783, 32
    %v2873 = vpop.permute.xlu0 %2872
    %2874 = vrot.lane.b32.xlu0 %v2784, 32
    %v2875 = vpop.permute.xlu0 %2874
    %v2876 = vsel %vm384, %v2873, 0
    %v2878 = vsel %vm384, %v2875, 0
    %2880 = vmatprep.subr.mxu0 0.0
    %2881 = vmatpush1.msra.mxu0 0.0
    %2882 = vmatprep.subr.mxu0 0.0
    %2883 = vmatpush1.msra.mxu0 0.0
    %2884 = vmatprep.subr.mxu0 0.0
    %2885 = vmatpush1.msra.mxu0 0.0
    %2886 = vmatprep.subr.mxu0 0.0
    %2887 = vmatpush1.msra.mxu0 0.0
    %2888 = vmatprep.subr.mxu0 0.0
    %2889 = vmatpush1.msra.mxu0 0.0
    %2890 = vmatprep.subr.mxu0 0.0
    %2891 = vmatpush1.msra.mxu0 0.0
    %2892 = vmatprep.subr.mxu0 0.0
    %2893 = vmatpush1.msra.mxu0 0.0
    %2894 = vmatprep.subr.mxu0 0.0
    %2895 = vmatpush1.msra.mxu0 0.0
    %2896 = vmatprep.subr.mxu0 0.0
    %2897 = vmatpush1.msra.mxu0 0.0
    %2898 = vmatprep.subr.mxu0 0.0
    %2899 = vmatpush1.msra.mxu0 0.0
    %2900 = vmatprep.subr.mxu0 0.0
    %2901 = vmatpush1.msra.mxu0 0.0
    %2902 = vmatprep.subr.mxu0 0.0
    %2903 = vmatpush1.msra.mxu0 0.0
    %2904 = vmatprep.subr.mxu0 0.0
    %2905 = vmatpush1.msra.mxu0 %v585
    %2906 = vmatprep.subr.mxu0 0.0
    %2907 = vmatpush1.msra.mxu0 %v584
    %2908 = vmatprep.subr.mxu0 0.0
    %2909 = vmatpush1.msra.mxu0 %v583
    %2910 = vmatprep.subr.mxu0 0.0
    %2911 = vmatpush1.msra.mxu0 %v582
    %2912 = vmatprep.subr.mxu0 0.0
    %2913 = vmatpush2.msra.mxu0 0.0
    %2914 = vmatprep.subr.mxu0 0.0
    %2915 = vmatpush2.msra.mxu0 0.0
    %2916 = vmatprep.subr.mxu0 0.0
    %2917 = vmatpush2.msra.mxu0 0.0
    %2918 = vmatprep.subr.mxu0 0.0
    %2919 = vmatpush2.msra.mxu0 0.0
    %2920 = vmatprep.subr.mxu0 0.0
    %2921 = vmatpush2.msra.mxu0 0.0
    %2922 = vmatprep.subr.mxu0 0.0
    %2923 = vmatpush2.msra.mxu0 0.0
    %2924 = vmatprep.subr.mxu0 0.0
    %2925 = vmatpush2.msra.mxu0 0.0
    %2926 = vmatprep.subr.mxu0 0.0
    %2927 = vmatpush2.msra.mxu0 0.0
    %2928 = vmatprep.subr.mxu0 0.0
    %2929 = vmatpush2.msra.mxu0 0.0
    %2930 = vmatprep.subr.mxu0 0.0
    %2931 = vmatpush2.msra.mxu0 0.0
    %2932 = vmatprep.subr.mxu0 0.0
    %2933 = vmatpush2.msra.mxu0 0.0
    %2934 = vmatprep.subr.mxu0 0.0
    %2935 = vmatpush2.msra.mxu0 0.0
    %2936 = vmatprep.subr.mxu0 0.0
    %2937 = vmatpush2.msra.mxu0 0.0
    %2938 = vmatprep.subr.mxu0 0.0
    %2939 = vmatpush2.msra.mxu0 0.0
    %2940 = vmatprep.subr.mxu0 0.0
    %2941 = vmatpush2.msra.mxu0 0.0
    %2942 = vmatprep.subr.mxu0 0.0
    %2943 = vmatpush2.msra.mxu0 0.0
    %2944 = vmatprep.mubr.f32.mxu0 0.0
    %2945 = vmatmul.mubr.f32.gmra.mxu0 %v2876
    %v2946 = vpop.f32.mrf.mxu0
    %v2947 = vadd.f32 %v2862, %v2946
    %v2948 = vpop.f32.mrf.mxu0
    %2949 = vmatprep.mubr.f32.mxu0 0.0
    %2950 = vmatmul.mubr.f32.gmra.mxu0 %v2878
    %v2951 = vpop.f32.mrf.mxu0
    %v2952 = vadd.f32 %v2867, %v2951
    %v2953 = vpop.f32.mrf.mxu0
    %2954 = vdwg.mxu0
    %v2955 = vadd.f32 %v2947, %v883
    %v2956 = vadd.f32 %v2952, %v883
    %v2957 = vxor.u32 %v2955, 2147483648
    %v2958 = vxor.u32 %v2956, 2147483648
    %v2959 = vmul.f32 %v2957, 1.442695
    %v2960 = vpow.pop %v2959
    %v2961 = vmul.f32 %v2958, 1.442695
    %v2962 = vpow.pop %v2961
    %v2963 = vadd.f32 %v2960, 1.0
    %v2964 = vadd.f32 %v2962, 1.0
    %v2965 = vrcp.pop %v2963
    %v2966 = vmul.f32 1.0, %v2965
    %v2967 = vrcp.pop %v2964
    %v2968 = vmul.f32 1.0, %v2967
    %v2969 = vtanh.pop %v2955
    %v2970 = vtanh.pop %v2956
    %v2971 = vmul.f32 %v2966, %v2646
    %v2972 = vmul.f32 %v2968, %v2647
    %2975 = vrot.lane.b32.xlu0 %v2969, 64
    %v2976 = vpop.permute.xlu0 %2975
    %2977 = vrot.lane.b32.xlu0 %v2970, 64
    %v2978 = vpop.permute.xlu0 %2977
    %v2981 = vmul.f32 %v2966, %v2976
    %v2982 = vmul.f32 %v2968, %v2978
    %2985 = vrot.lane.b32.xlu0 %v2981, 32
    %v2986 = vpop.permute.xlu0 %2985
    %2987 = vrot.lane.b32.xlu0 %v2982, 32
    %v2988 = vpop.permute.xlu0 %2987
    %v2991 = vadd.f32 %v2971, %v2986
    %v2992 = vadd.f32 %v2972, %v2988
    %v2993 = vtanh.pop %v2991
    %v2994 = vtanh.pop %v2992
    %2997 = vrot.lane.b32.xlu0 %v2993, 64
    %v2998 = vpop.permute.xlu0 %2997
    %2999 = vrot.lane.b32.xlu0 %v2994, 64
    %v3000 = vpop.permute.xlu0 %2999
    %v3003 = vmul.f32 %v2966, %v2998
    %v3004 = vmul.f32 %v2968, %v3000
    %3005 = vmatprep.subr.mxu0 0.0
    %3006 = vmatpush1.msra.mxu0 0.0
    %3007 = vmatprep.subr.mxu0 0.0
    %3008 = vmatpush1.msra.mxu0 0.0
    %3009 = vmatprep.subr.mxu0 0.0
    %3010 = vmatpush1.msra.mxu0 0.0
    %3011 = vmatprep.subr.mxu0 0.0
    %3012 = vmatpush1.msra.mxu0 0.0
    %3013 = vmatprep.subr.mxu0 0.0
    %3014 = vmatpush1.msra.mxu0 0.0
    %3015 = vmatprep.subr.mxu0 0.0
    %3016 = vmatpush1.msra.mxu0 0.0
    %3017 = vmatprep.subr.mxu0 0.0
    %3018 = vmatpush1.msra.mxu0 0.0
    %3019 = vmatprep.subr.mxu0 0.0
    %3020 = vmatpush1.msra.mxu0 0.0
    %3021 = vmatprep.subr.mxu0 0.0
    %3022 = vmatpush1.msra.mxu0 0.0
    %3023 = vmatprep.subr.mxu0 0.0
    %3024 = vmatpush1.msra.mxu0 0.0
    %3025 = vmatprep.subr.mxu0 0.0
    %3026 = vmatpush1.msra.mxu0 0.0
    %3027 = vmatprep.subr.mxu0 0.0
    %3028 = vmatpush1.msra.mxu0 0.0
    %3029 = vmatprep.subr.mxu0 0.0
    %3030 = vmatpush1.msra.mxu0 %v581
    %3031 = vmatprep.subr.mxu0 0.0
    %3032 = vmatpush1.msra.mxu0 %v580
    %3033 = vmatprep.subr.mxu0 0.0
    %3034 = vmatpush1.msra.mxu0 %v579
    %3035 = vmatprep.subr.mxu0 0.0
    %3036 = vmatpush1.msra.mxu0 %v578
    %3037 = vmatprep.subr.mxu0 0.0
    %3038 = vmatpush2.msra.mxu0 0.0
    %3039 = vmatprep.subr.mxu0 0.0
    %3040 = vmatpush2.msra.mxu0 0.0
    %3041 = vmatprep.subr.mxu0 0.0
    %3042 = vmatpush2.msra.mxu0 0.0
    %3043 = vmatprep.subr.mxu0 0.0
    %3044 = vmatpush2.msra.mxu0 0.0
    %3045 = vmatprep.subr.mxu0 0.0
    %3046 = vmatpush2.msra.mxu0 0.0
    %3047 = vmatprep.subr.mxu0 0.0
    %3048 = vmatpush2.msra.mxu0 0.0
    %3049 = vmatprep.subr.mxu0 0.0
    %3050 = vmatpush2.msra.mxu0 0.0
    %3051 = vmatprep.subr.mxu0 0.0
    %3052 = vmatpush2.msra.mxu0 0.0
    %3053 = vmatprep.subr.mxu0 0.0
    %3054 = vmatpush2.msra.mxu0 0.0
    %3055 = vmatprep.subr.mxu0 0.0
    %3056 = vmatpush2.msra.mxu0 0.0
    %3057 = vmatprep.subr.mxu0 0.0
    %3058 = vmatpush2.msra.mxu0 0.0
    %3059 = vmatprep.subr.mxu0 0.0
    %3060 = vmatpush2.msra.mxu0 0.0
    %3061 = vmatprep.subr.mxu0 0.0
    %3062 = vmatpush2.msra.mxu0 0.0
    %3063 = vmatprep.subr.mxu0 0.0
    %3064 = vmatpush2.msra.mxu0 0.0
    %3065 = vmatprep.subr.mxu0 0.0
    %3066 = vmatpush2.msra.mxu0 0.0
    %3067 = vmatprep.subr.mxu0 0.0
    %3068 = vmatpush2.msra.mxu0 0.0
    %3069 = vmatprep.mubr.f32.mxu0 0.0
    %3070 = vmatmul.mubr.f32.gmra.mxu0 %v2876
    %v3071 = vpop.f32.mrf.mxu0
    %v3072 = vadd.f32 0.0, %v3071
    %v3073 = vpop.f32.mrf.mxu0
    %3074 = vmatprep.mubr.f32.mxu0 0.0
    %3075 = vmatmul.mubr.f32.gmra.mxu0 %v2878
    %v3076 = vpop.f32.mrf.mxu0
    %v3077 = vadd.f32 0.0, %v3076
    %v3078 = vpop.f32.mrf.mxu0
    %3079 = vdwg.mxu0
    %v3080 = vadd.f32 %v570, %v3072
    %v3081 = vadd.f32 %v575, %v3077
    %v3082 = vxor.u32 %v3080, 2147483648
    %v3083 = vxor.u32 %v3081, 2147483648
    %v3084 = vmul.f32 %v3082, 1.442695
    %v3085 = vpow.pop %v3084
    %v3086 = vmul.f32 %v3083, 1.442695
    %v3087 = vpow.pop %v3086
    %v3088 = vadd.f32 %v3085, 1.0
    %v3089 = vadd.f32 %v3087, 1.0
    %v3090 = vrcp.pop %v3088
    %v3091 = vmul.f32 1.0, %v3090
    %v3092 = vrcp.pop %v3089
    %v3093 = vmul.f32 1.0, %v3092
    %v3094 = vtanh.pop %v3080
    %v3095 = vtanh.pop %v3081
    %v3096 = vmul.f32 %v3091, %v2771
    %v3097 = vmul.f32 %v3093, %v2772
    %3100 = vrot.lane.b32.xlu0 %v3094, 64
    %v3101 = vpop.permute.xlu0 %3100
    %3102 = vrot.lane.b32.xlu0 %v3095, 64
    %v3103 = vpop.permute.xlu0 %3102
    %v3106 = vmul.f32 %v3091, %v3101
    %v3107 = vmul.f32 %v3093, %v3103
    %3110 = vrot.lane.b32.xlu0 %v3106, 32
    %v3111 = vpop.permute.xlu0 %3110
    %3112 = vrot.lane.b32.xlu0 %v3107, 32
    %v3113 = vpop.permute.xlu0 %3112
    %v3116 = vadd.f32 %v3096, %v3111
    %v3117 = vadd.f32 %v3097, %v3113
    %v3118 = vtanh.pop %v3116
    %v3119 = vtanh.pop %v3117
    %3122 = vrot.lane.b32.xlu0 %v3118, 64
    %v3123 = vpop.permute.xlu0 %3122
    %3124 = vrot.lane.b32.xlu0 %v3119, 64
    %v3125 = vpop.permute.xlu0 %3124
    %v3128 = vmul.f32 %v3091, %v3123
    %v3129 = vmul.f32 %v3093, %v3125
    %3132 = vrot.lane.b32.xlu0 %v3003, 32
    %v3133 = vpop.permute.xlu0 %3132
    %3134 = vrot.lane.b32.xlu0 %v3004, 32
    %v3135 = vpop.permute.xlu0 %3134
    %v3136 = vsel %vm384, %v3133, 0
    %v3138 = vsel %vm384, %v3135, 0
    %3140 = vmatprep.subr.mxu0 0.0
    %3141 = vmatpush1.msra.mxu0 0.0
    %3142 = vmatprep.subr.mxu0 0.0
    %3143 = vmatpush1.msra.mxu0 0.0
    %3144 = vmatprep.subr.mxu0 0.0
    %3145 = vmatpush1.msra.mxu0 0.0
    %3146 = vmatprep.subr.mxu0 0.0
    %3147 = vmatpush1.msra.mxu0 0.0
    %3148 = vmatprep.subr.mxu0 0.0
    %3149 = vmatpush1.msra.mxu0 0.0
    %3150 = vmatprep.subr.mxu0 0.0
    %3151 = vmatpush1.msra.mxu0 0.0
    %3152 = vmatprep.subr.mxu0 0.0
    %3153 = vmatpush1.msra.mxu0 0.0
    %3154 = vmatprep.subr.mxu0 0.0
    %3155 = vmatpush1.msra.mxu0 0.0
    %3156 = vmatprep.subr.mxu0 0.0
    %3157 = vmatpush1.msra.mxu0 0.0
    %3158 = vmatprep.subr.mxu0 0.0
    %3159 = vmatpush1.msra.mxu0 0.0
    %3160 = vmatprep.subr.mxu0 0.0
    %3161 = vmatpush1.msra.mxu0 0.0
    %3162 = vmatprep.subr.mxu0 0.0
    %3163 = vmatpush1.msra.mxu0 0.0
    %3164 = vmatprep.subr.mxu0 0.0
    %3165 = vmatpush1.msra.mxu0 %v589
    %3166 = vmatprep.subr.mxu0 0.0
    %3167 = vmatpush1.msra.mxu0 %v588
    %3168 = vmatprep.subr.mxu0 0.0
    %3169 = vmatpush1.msra.mxu0 %v587
    %3170 = vmatprep.subr.mxu0 0.0
    %3171 = vmatpush1.msra.mxu0 %v586
    %3172 = vmatprep.subr.mxu0 0.0
    %3173 = vmatpush2.msra.mxu0 0.0
    %3174 = vmatprep.subr.mxu0 0.0
    %3175 = vmatpush2.msra.mxu0 0.0
    %3176 = vmatprep.subr.mxu0 0.0
    %3177 = vmatpush2.msra.mxu0 0.0
    %3178 = vmatprep.subr.mxu0 0.0
    %3179 = vmatpush2.msra.mxu0 0.0
    %3180 = vmatprep.subr.mxu0 0.0
    %3181 = vmatpush2.msra.mxu0 0.0
    %3182 = vmatprep.subr.mxu0 0.0
    %3183 = vmatpush2.msra.mxu0 0.0
    %3184 = vmatprep.subr.mxu0 0.0
    %3185 = vmatpush2.msra.mxu0 0.0
    %3186 = vmatprep.subr.mxu0 0.0
    %3187 = vmatpush2.msra.mxu0 0.0
    %3188 = vmatprep.subr.mxu0 0.0
    %3189 = vmatpush2.msra.mxu0 0.0
    %3190 = vmatprep.subr.mxu0 0.0
    %3191 = vmatpush2.msra.mxu0 0.0
    %3192 = vmatprep.subr.mxu0 0.0
    %3193 = vmatpush2.msra.mxu0 0.0
    %3194 = vmatprep.subr.mxu0 0.0
    %3195 = vmatpush2.msra.mxu0 0.0
    %3196 = vmatprep.subr.mxu0 0.0
    %3197 = vmatpush2.msra.mxu0 0.0
    %3198 = vmatprep.subr.mxu0 0.0
    %3199 = vmatpush2.msra.mxu0 0.0
    %3200 = vmatprep.subr.mxu0 0.0
    %3201 = vmatpush2.msra.mxu0 0.0
    %3202 = vmatprep.subr.mxu0 0.0
    %3203 = vmatpush2.msra.mxu0 0.0
    %3204 = vmatprep.mubr.f32.mxu0 0.0
    %3205 = vmatmul.mubr.f32.gmra.mxu0 %v3136
    %v3206 = vpop.f32.mrf.mxu0
    %v3207 = vadd.f32 0.0, %v3206
    %v3208 = vpop.f32.mrf.mxu0
    %3209 = vmatprep.mubr.f32.mxu0 0.0
    %3210 = vmatmul.mubr.f32.gmra.mxu0 %v3138
    %v3211 = vpop.f32.mrf.mxu0
    %v3212 = vadd.f32 0.0, %v3211
    %v3213 = vpop.f32.mrf.mxu0
    %3214 = vdwg.mxu0
    %3217 = vrot.lane.b32.xlu0 %v3128, 32
    %v3218 = vpop.permute.xlu0 %3217
    %3219 = vrot.lane.b32.xlu0 %v3129, 32
    %v3220 = vpop.permute.xlu0 %3219
    %v3221 = vsel %vm384, %v3218, 0
    %v3223 = vsel %vm384, %v3220, 0
    %3225 = vmatprep.subr.mxu0 0.0
    %3226 = vmatpush1.msra.mxu0 0.0
    %3227 = vmatprep.subr.mxu0 0.0
    %3228 = vmatpush1.msra.mxu0 0.0
    %3229 = vmatprep.subr.mxu0 0.0
    %3230 = vmatpush1.msra.mxu0 0.0
    %3231 = vmatprep.subr.mxu0 0.0
    %3232 = vmatpush1.msra.mxu0 0.0
    %3233 = vmatprep.subr.mxu0 0.0
    %3234 = vmatpush1.msra.mxu0 0.0
    %3235 = vmatprep.subr.mxu0 0.0
    %3236 = vmatpush1.msra.mxu0 0.0
    %3237 = vmatprep.subr.mxu0 0.0
    %3238 = vmatpush1.msra.mxu0 0.0
    %3239 = vmatprep.subr.mxu0 0.0
    %3240 = vmatpush1.msra.mxu0 0.0
    %3241 = vmatprep.subr.mxu0 0.0
    %3242 = vmatpush1.msra.mxu0 0.0
    %3243 = vmatprep.subr.mxu0 0.0
    %3244 = vmatpush1.msra.mxu0 0.0
    %3245 = vmatprep.subr.mxu0 0.0
    %3246 = vmatpush1.msra.mxu0 0.0
    %3247 = vmatprep.subr.mxu0 0.0
    %3248 = vmatpush1.msra.mxu0 0.0
    %3249 = vmatprep.subr.mxu0 0.0
    %3250 = vmatpush1.msra.mxu0 %v585
    %3251 = vmatprep.subr.mxu0 0.0
    %3252 = vmatpush1.msra.mxu0 %v584
    %3253 = vmatprep.subr.mxu0 0.0
    %3254 = vmatpush1.msra.mxu0 %v583
    %3255 = vmatprep.subr.mxu0 0.0
    %3256 = vmatpush1.msra.mxu0 %v582
    %3257 = vmatprep.subr.mxu0 0.0
    %3258 = vmatpush2.msra.mxu0 0.0
    %3259 = vmatprep.subr.mxu0 0.0
    %3260 = vmatpush2.msra.mxu0 0.0
    %3261 = vmatprep.subr.mxu0 0.0
    %3262 = vmatpush2.msra.mxu0 0.0
    %3263 = vmatprep.subr.mxu0 0.0
    %3264 = vmatpush2.msra.mxu0 0.0
    %3265 = vmatprep.subr.mxu0 0.0
    %3266 = vmatpush2.msra.mxu0 0.0
    %3267 = vmatprep.subr.mxu0 0.0
    %3268 = vmatpush2.msra.mxu0 0.0
    %3269 = vmatprep.subr.mxu0 0.0
    %3270 = vmatpush2.msra.mxu0 0.0
    %3271 = vmatprep.subr.mxu0 0.0
    %3272 = vmatpush2.msra.mxu0 0.0
    %3273 = vmatprep.subr.mxu0 0.0
    %3274 = vmatpush2.msra.mxu0 0.0
    %3275 = vmatprep.subr.mxu0 0.0
    %3276 = vmatpush2.msra.mxu0 0.0
    %3277 = vmatprep.subr.mxu0 0.0
    %3278 = vmatpush2.msra.mxu0 0.0
    %3279 = vmatprep.subr.mxu0 0.0
    %3280 = vmatpush2.msra.mxu0 0.0
    %3281 = vmatprep.subr.mxu0 0.0
    %3282 = vmatpush2.msra.mxu0 0.0
    %3283 = vmatprep.subr.mxu0 0.0
    %3284 = vmatpush2.msra.mxu0 0.0
    %3285 = vmatprep.subr.mxu0 0.0
    %3286 = vmatpush2.msra.mxu0 0.0
    %3287 = vmatprep.subr.mxu0 0.0
    %3288 = vmatpush2.msra.mxu0 0.0
    %3289 = vmatprep.mubr.f32.mxu0 0.0
    %3290 = vmatmul.mubr.f32.gmra.mxu0 %v3221
    %v3291 = vpop.f32.mrf.mxu0
    %v3292 = vadd.f32 %v3207, %v3291
    %v3293 = vpop.f32.mrf.mxu0
    %3294 = vmatprep.mubr.f32.mxu0 0.0
    %3295 = vmatmul.mubr.f32.gmra.mxu0 %v3223
    %v3296 = vpop.f32.mrf.mxu0
    %v3297 = vadd.f32 %v3212, %v3296
    %v3298 = vpop.f32.mrf.mxu0
    %3299 = vdwg.mxu0
    %v3300 = vadd.f32 %v3292, %v883
    %v3301 = vadd.f32 %v3297, %v883
    %v3302 = vxor.u32 %v3300, 2147483648
    %v3303 = vxor.u32 %v3301, 2147483648
    %v3304 = vmul.f32 %v3302, 1.442695
    %v3305 = vpow.pop %v3304
    %v3306 = vmul.f32 %v3303, 1.442695
    %v3307 = vpow.pop %v3306
    %v3308 = vadd.f32 %v3305, 1.0
    %v3309 = vadd.f32 %v3307, 1.0
    %v3310 = vrcp.pop %v3308
    %v3311 = vmul.f32 1.0, %v3310
    %v3312 = vrcp.pop %v3309
    %v3313 = vmul.f32 1.0, %v3312
    %v3314 = vtanh.pop %v3300
    %v3315 = vtanh.pop %v3301
    %v3316 = vmul.f32 %v3311, %v2991
    %v3317 = vmul.f32 %v3313, %v2992
    %3320 = vrot.lane.b32.xlu0 %v3314, 64
    %v3321 = vpop.permute.xlu0 %3320
    %3322 = vrot.lane.b32.xlu0 %v3315, 64
    %v3323 = vpop.permute.xlu0 %3322
    %v3326 = vmul.f32 %v3311, %v3321
    %v3327 = vmul.f32 %v3313, %v3323
    %3330 = vrot.lane.b32.xlu0 %v3326, 32
    %v3331 = vpop.permute.xlu0 %3330
    %3332 = vrot.lane.b32.xlu0 %v3327, 32
    %v3333 = vpop.permute.xlu0 %3332
    %v3336 = vadd.f32 %v3316, %v3331
    %v3337 = vadd.f32 %v3317, %v3333
    %v3338 = vtanh.pop %v3336
    %v3339 = vtanh.pop %v3337
    %3342 = vrot.lane.b32.xlu0 %v3338, 64
    %v3343 = vpop.permute.xlu0 %3342
    %3344 = vrot.lane.b32.xlu0 %v3339, 64
    %v3345 = vpop.permute.xlu0 %3344
    %v3348 = vmul.f32 %v3311, %v3343
    %v3349 = vmul.f32 %v3313, %v3345
    %v3350 = vmul.f32 %v933, %v3348
    %v3351 = vmul.f32 %v934, %v3349
    %3354 = vrot.lane.b32.xlu0 %v3350, 32
    %v3355 = vpop.permute.xlu0 %3354
    %3356 = vrot.lane.b32.xlu0 %v3351, 32
    %v3357 = vpop.permute.xlu0 %3356
    %v3360 = vsel %vm384, %v3355, 0.0
    %3361 = vadd.xlane.f32.xlu0 %v3360
    %v3362 = vpop.xlane.xlu0 %3361
    %v3363 = vsel %vm384, %v3357, 0.0
    %3364 = vadd.xlane.f32.xlu0 %v3363
    %v3365 = vpop.xlane.xlu0 %3364
    %v3366 = vmul.f32 %v1278, %v3348
    %v3367 = vmul.f32 %v1279, %v3349
    %3370 = vrot.lane.b32.xlu0 %v3366, 32
    %v3371 = vpop.permute.xlu0 %3370
    %3372 = vrot.lane.b32.xlu0 %v3367, 32
    %v3373 = vpop.permute.xlu0 %3372
    %v3376 = vsel %vm384, %v3371, 0.0
    %3377 = vadd.xlane.f32.xlu0 %v3376
    %v3378 = vpop.xlane.xlu0 %3377
    %v3379 = vsel %vm384, %v3373, 0.0
    %3380 = vadd.xlane.f32.xlu0 %v3379
    %v3381 = vpop.xlane.xlu0 %3380
    %v3382 = vmul.f32 %v1623, %v3348
    %v3383 = vmul.f32 %v1624, %v3349
    %3386 = vrot.lane.b32.xlu0 %v3382, 32
    %v3387 = vpop.permute.xlu0 %3386
    %3388 = vrot.lane.b32.xlu0 %v3383, 32
    %v3389 = vpop.permute.xlu0 %3388
    %v3392 = vsel %vm384, %v3387, 0.0
    %3393 = vadd.xlane.f32.xlu0 %v3392
    %v3394 = vpop.xlane.xlu0 %3393
    %v3395 = vsel %vm384, %v3389, 0.0
    %3396 = vadd.xlane.f32.xlu0 %v3395
    %v3397 = vpop.xlane.xlu0 %3396
    %v3398 = vmul.f32 %v1968, %v3348
    %v3399 = vmul.f32 %v1969, %v3349
    %3402 = vrot.lane.b32.xlu0 %v3398, 32
    %v3403 = vpop.permute.xlu0 %3402
    %3404 = vrot.lane.b32.xlu0 %v3399, 32
    %v3405 = vpop.permute.xlu0 %3404
    %v3408 = vsel %vm384, %v3403, 0.0
    %3409 = vadd.xlane.f32.xlu0 %v3408
    %v3410 = vpop.xlane.xlu0 %3409
    %v3411 = vsel %vm384, %v3405, 0.0
    %3412 = vadd.xlane.f32.xlu0 %v3411
    %v3413 = vpop.xlane.xlu0 %3412
    %v3414 = vmul.f32 %v2313, %v3348
    %v3415 = vmul.f32 %v2314, %v3349
    %3418 = vrot.lane.b32.xlu0 %v3414, 32
    %v3419 = vpop.permute.xlu0 %3418
    %3420 = vrot.lane.b32.xlu0 %v3415, 32
    %v3421 = vpop.permute.xlu0 %3420
    %v3424 = vsel %vm384, %v3419, 0.0
    %3425 = vadd.xlane.f32.xlu0 %v3424
    %v3426 = vpop.xlane.xlu0 %3425
    %v3427 = vsel %vm384, %v3421, 0.0
    %3428 = vadd.xlane.f32.xlu0 %v3427
    %v3429 = vpop.xlane.xlu0 %3428
    %v3430 = vmul.f32 %v2658, %v3348
    %v3431 = vmul.f32 %v2659, %v3349
    %3434 = vrot.lane.b32.xlu0 %v3430, 32
    %v3435 = vpop.permute.xlu0 %3434
    %3436 = vrot.lane.b32.xlu0 %v3431, 32
    %v3437 = vpop.permute.xlu0 %3436
    %v3440 = vsel %vm384, %v3435, 0.0
    %3441 = vadd.xlane.f32.xlu0 %v3440
    %v3442 = vpop.xlane.xlu0 %3441
    %v3443 = vsel %vm384, %v3437, 0.0
    %3444 = vadd.xlane.f32.xlu0 %v3443
    %v3445 = vpop.xlane.xlu0 %3444
    %v3446 = vmul.f32 %v3003, %v3348
    %v3447 = vmul.f32 %v3004, %v3349
    %3450 = vrot.lane.b32.xlu0 %v3446, 32
    %v3451 = vpop.permute.xlu0 %3450
    %3452 = vrot.lane.b32.xlu0 %v3447, 32
    %v3453 = vpop.permute.xlu0 %3452
    %v3456 = vsel %vm384, %v3451, 0.0
    %3457 = vadd.xlane.f32.xlu0 %v3456
    %v3458 = vpop.xlane.xlu0 %3457
    %v3459 = vsel %vm384, %v3453, 0.0
    %3460 = vadd.xlane.f32.xlu0 %v3459
    %v3461 = vpop.xlane.xlu0 %3460
    %v3462 = vmul.f32 %v3348, %v3348
    %v3463 = vmul.f32 %v3349, %v3349
    %3466 = vrot.lane.b32.xlu0 %v3462, 32
    %v3467 = vpop.permute.xlu0 %3466
    %3468 = vrot.lane.b32.xlu0 %v3463, 32
    %v3469 = vpop.permute.xlu0 %3468
    %v3472 = vsel %vm384, %v3467, 0.0
    %3473 = vadd.xlane.f32.xlu0 %v3472
    %v3474 = vpop.xlane.xlu0 %3473
    %v3475 = vsel %vm384, %v3469, 0.0
    %3476 = vadd.xlane.f32.xlu0 %v3475
    %v3477 = vpop.xlane.xlu0 %3476
    %v3478 = vmax.f32 %v3362, %v3378
    %v3479 = vmax.f32 %v3365, %v3381
    %v3480 = vmax.f32 %v3478, %v3394
    %v3481 = vmax.f32 %v3479, %v3397
    %v3482 = vmax.f32 %v3480, %v3410
    %v3483 = vmax.f32 %v3481, %v3413
    %v3484 = vmax.f32 %v3482, %v3426
    %v3485 = vmax.f32 %v3483, %v3429
    %v3486 = vmax.f32 %v3484, %v3442
    %v3487 = vmax.f32 %v3485, %v3445
    %v3488 = vmax.f32 %v3486, %v3458
    %v3489 = vmax.f32 %v3487, %v3461
    %v3490 = vmax.f32 %v3488, %v3474
    %v3491 = vmax.f32 %v3489, %v3477
    %v3492 = vsub.f32 %v3362, %v3490
    %v3493 = vsub.f32 %v3365, %v3491
    %v3494 = vmul.f32 %v3492, 1.442695
    %v3495 = vpow.pop %v3494
    %v3496 = vmul.f32 %v3493, 1.442695
    %v3497 = vpow.pop %v3496
    %v3498 = vsub.f32 %v3378, %v3490
    %v3499 = vsub.f32 %v3381, %v3491
    %v3500 = vmul.f32 %v3498, 1.442695
    %v3501 = vpow.pop %v3500
    %v3502 = vmul.f32 %v3499, 1.442695
    %v3503 = vpow.pop %v3502
    %v3504 = vsub.f32 %v3394, %v3490
    %v3505 = vsub.f32 %v3397, %v3491
    %v3506 = vmul.f32 %v3504, 1.442695
    %v3507 = vpow.pop %v3506
    %v3508 = vmul.f32 %v3505, 1.442695
    %v3509 = vpow.pop %v3508
    %v3510 = vsub.f32 %v3410, %v3490
    %v3511 = vsub.f32 %v3413, %v3491
    %v3512 = vmul.f32 %v3510, 1.442695
    %v3513 = vpow.pop %v3512
    %v3514 = vmul.f32 %v3511, 1.442695
    %v3515 = vpow.pop %v3514
    %v3516 = vsub.f32 %v3426, %v3490
    %v3517 = vsub.f32 %v3429, %v3491
    %v3518 = vmul.f32 %v3516, 1.442695
    %v3519 = vpow.pop %v3518
    %v3520 = vmul.f32 %v3517, 1.442695
    %v3521 = vpow.pop %v3520
    %v3522 = vsub.f32 %v3442, %v3490
    %v3523 = vsub.f32 %v3445, %v3491
    %v3524 = vmul.f32 %v3522, 1.442695
    %v3525 = vpow.pop %v3524
    %v3526 = vmul.f32 %v3523, 1.442695
    %v3527 = vpow.pop %v3526
    %v3528 = vsub.f32 %v3458, %v3490
    %v3529 = vsub.f32 %v3461, %v3491
    %v3530 = vmul.f32 %v3528, 1.442695
    %v3531 = vpow.pop %v3530
    %v3532 = vmul.f32 %v3529, 1.442695
    %v3533 = vpow.pop %v3532
    %v3534 = vsub.f32 %v3474, %v3490
    %v3535 = vsub.f32 %v3477, %v3491
    %v3536 = vmul.f32 %v3534, 1.442695
    %v3537 = vpow.pop %v3536
    %v3538 = vmul.f32 %v3535, 1.442695
    %v3539 = vpow.pop %v3538
    %v3540 = vadd.f32 %v3495, %v3501
    %v3541 = vadd.f32 %v3497, %v3503
    %v3542 = vadd.f32 %v3540, %v3507
    %v3543 = vadd.f32 %v3541, %v3509
    %v3544 = vadd.f32 %v3542, %v3513
    %v3545 = vadd.f32 %v3543, %v3515
    %v3546 = vadd.f32 %v3544, %v3519
    %v3547 = vadd.f32 %v3545, %v3521
    %v3548 = vadd.f32 %v3546, %v3525
    %v3549 = vadd.f32 %v3547, %v3527
    %v3550 = vadd.f32 %v3548, %v3531
    %v3551 = vadd.f32 %v3549, %v3533
    %v3552 = vadd.f32 %v3550, %v3537
    %v3553 = vadd.f32 %v3551, %v3539
    %v3554 = vrcp.pop %v3552
    %v3555 = vmul.f32 1.0, %v3554
    %v3556 = vrcp.pop %v3553
    %v3557 = vmul.f32 1.0, %v3556
    %v3558 = vmul.f32 %v3495, %v3555
    %v3559 = vmul.f32 %v3497, %v3557
    %v3560 = vmul.f32 %v3558, %v933
    %v3561 = vmul.f32 %v3559, %v934
    %v3562 = vmul.f32 %v3501, %v3555
    %v3563 = vmul.f32 %v3503, %v3557
    %v3564 = vmul.f32 %v3562, %v1278
    %v3565 = vmul.f32 %v3563, %v1279
    %v3566 = vadd.f32 %v3560, %v3564
    %v3567 = vadd.f32 %v3561, %v3565
    %v3568 = vmul.f32 %v3507, %v3555
    %v3569 = vmul.f32 %v3509, %v3557
    %v3570 = vmul.f32 %v3568, %v1623
    %v3571 = vmul.f32 %v3569, %v1624
    %v3572 = vadd.f32 %v3566, %v3570
    %v3573 = vadd.f32 %v3567, %v3571
    %v3574 = vmul.f32 %v3513, %v3555
    %v3575 = vmul.f32 %v3515, %v3557
    %v3576 = vmul.f32 %v3574, %v1968
    %v3577 = vmul.f32 %v3575, %v1969
    %v3578 = vadd.f32 %v3572, %v3576
    %v3579 = vadd.f32 %v3573, %v3577
    %v3580 = vmul.f32 %v3519, %v3555
    %v3581 = vmul.f32 %v3521, %v3557
    %v3582 = vmul.f32 %v3580, %v2313
    %v3583 = vmul.f32 %v3581, %v2314
    %v3584 = vadd.f32 %v3578, %v3582
    %v3585 = vadd.f32 %v3579, %v3583
    %v3586 = vmul.f32 %v3525, %v3555
    %v3587 = vmul.f32 %v3527, %v3557
    %v3588 = vmul.f32 %v3586, %v2658
    %v3589 = vmul.f32 %v3587, %v2659
    %v3590 = vadd.f32 %v3584, %v3588
    %v3591 = vadd.f32 %v3585, %v3589
    %v3592 = vmul.f32 %v3531, %v3555
    %v3593 = vmul.f32 %v3533, %v3557
    %v3594 = vmul.f32 %v3592, %v3003
    %v3595 = vmul.f32 %v3593, %v3004
    %v3596 = vadd.f32 %v3590, %v3594
    %v3597 = vadd.f32 %v3591, %v3595
    %v3598 = vmul.f32 %v3537, %v3555
    %v3599 = vmul.f32 %v3539, %v3557
    %v3600 = vmul.f32 %v3598, %v3348
    %v3601 = vmul.f32 %v3599, %v3349
    %v3602 = vadd.f32 %v3596, %v3600
    %v3603 = vadd.f32 %v3597, %v3601
    %3606 = vrot.lane.b32.xlu0 %v3602, 32
    %v3607 = vpop.permute.xlu0 %3606
    %3608 = vrot.lane.b32.xlu0 %v3603, 32
    %v3609 = vpop.permute.xlu0 %3608
    %v3612 = vsel %vm384, %v3607, 0.0
    %3613 = vadd.xlane.f32.xlu0 %v3612
    %v3614 = vpop.xlane.xlu0 %3613
    %v3615 = vsel %vm384, %v3609, 0.0
    %3616 = vadd.xlane.f32.xlu0 %v3615
    %v3617 = vpop.xlane.xlu0 %3616
    %v3618 = vrcp.pop 32.0
    %v3619 = vmul.f32 %v3614, %v3618
    %v3620 = vmul.f32 %v3617, %v3618
    %v3621 = vsub.f32 %v3602, %v3619
    %v3622 = vsub.f32 %v3603, %v3620
    %v3623 = vmul.f32 %v3621, %v3621
    %v3624 = vmul.f32 %v3622, %v3622
    %3627 = vrot.lane.b32.xlu0 %v3623, 32
    %v3628 = vpop.permute.xlu0 %3627
    %3629 = vrot.lane.b32.xlu0 %v3624, 32
    %v3630 = vpop.permute.xlu0 %3629
    %v3633 = vsel %vm384, %v3628, 0.0
    %3634 = vadd.xlane.f32.xlu0 %v3633
    %v3635 = vpop.xlane.xlu0 %3634
    %v3636 = vsel %vm384, %v3630, 0.0
    %3637 = vadd.xlane.f32.xlu0 %v3636
    %v3638 = vpop.xlane.xlu0 %3637
    %v3639 = vmul.f32 %v3635, %v3618
    %v3640 = vmul.f32 %v3638, %v3618
    %v3641 = vadd.f32 %v3639, 1e-05
    %v3642 = vadd.f32 %v3640, 1e-05
    %v3643 = vrsqrt.pop %v3641
    %v3644 = vrsqrt.pop %v3642
    %v3645 = vmul.f32 %v3621, %v3643
    %v3646 = vmul.f32 %v3622, %v3644
    %v3647 = vld [vmem:[%s21] sm:$0x1]
    %v3649 = vlaneseq
    %v3650 = vshrl.u32 %v3649, 7
    %v3651 = vsub.s32 0, %v3650
    %v3652 = vrot.slane %v3647, %v3651
    %3653 = vrot.lane.b32.xlu0 %v3652, 96
    %v3654 = vpop.permute.xlu0 %3653
    %v3656 = vmul.f32 %v3645, %v3654
    %v3657 = vmul.f32 %v3646, %v3654
    %v3658 = vld [vmem:[%s23] sm:$0x1]
    %v3660 = vlaneseq
    %v3661 = vshrl.u32 %v3660, 7
    %v3662 = vsub.s32 0, %v3661
    %v3663 = vrot.slane %v3658, %v3662
    %3664 = vrot.lane.b32.xlu0 %v3663, 96
    %v3665 = vpop.permute.xlu0 %3664
    %v3667 = vadd.f32 %v3656, %v3665
    %v3668 = vadd.f32 %v3657, %v3665
    %v3669 = vld [vmem:[%s25] sm:$0xff]
    %v3670 = vld [vmem:[%s25 + $0x8] sm:$0xff]
    %v3671 = vld [vmem:[%s25 + $0x10] sm:$0xff]
    %v3672 = vld [vmem:[%s25 + $0x18] sm:$0xff]
    %v3673 = vld [vmem:[%s27] sm:$0x1]
    %v3675 = vlaneseq
    %v3676 = vshrl.u32 %v3675, 7
    %v3677 = vsub.s32 0, %v3676
    %v3678 = vrot.slane %v3673, %v3677
    %3681 = vrot.lane.b32.xlu0 %v3667, 32
    %v3682 = vpop.permute.xlu0 %3681
    %v3683 = vsel %vm384, %v3682, 0
    %3685 = vmatprep.subr.mxu0 0.0
    %3686 = vmatpush1.msra.mxu0 0.0
    %3687 = vmatprep.subr.mxu0 0.0
    %3688 = vmatpush1.msra.mxu0 0.0
    %3689 = vmatprep.subr.mxu0 0.0
    %3690 = vmatpush1.msra.mxu0 0.0
    %3691 = vmatprep.subr.mxu0 0.0
    %3692 = vmatpush1.msra.mxu0 0.0
    %3693 = vmatprep.subr.mxu0 0.0
    %3694 = vmatpush1.msra.mxu0 0.0
    %3695 = vmatprep.subr.mxu0 0.0
    %3696 = vmatpush1.msra.mxu0 0.0
    %3697 = vmatprep.subr.mxu0 0.0
    %3698 = vmatpush1.msra.mxu0 0.0
    %3699 = vmatprep.subr.mxu0 0.0
    %3700 = vmatpush1.msra.mxu0 0.0
    %3701 = vmatprep.subr.mxu0 0.0
    %3702 = vmatpush1.msra.mxu0 0.0
    %3703 = vmatprep.subr.mxu0 0.0
    %3704 = vmatpush1.msra.mxu0 0.0
    %3705 = vmatprep.subr.mxu0 0.0
    %3706 = vmatpush1.msra.mxu0 0.0
    %3707 = vmatprep.subr.mxu0 0.0
    %3708 = vmatpush1.msra.mxu0 0.0
    %3709 = vmatprep.subr.mxu0 0.0
    %3710 = vmatpush1.msra.mxu0 %v3672
    %3711 = vmatprep.subr.mxu0 0.0
    %3712 = vmatpush1.msra.mxu0 %v3671
    %3713 = vmatprep.subr.mxu0 0.0
    %3714 = vmatpush1.msra.mxu0 %v3670
    %3715 = vmatprep.subr.mxu0 0.0
    %3716 = vmatpush1.msra.mxu0 %v3669
    %3717 = vmatprep.subr.mxu0 0.0
    %3718 = vmatpush2.msra.mxu0 0.0
    %3719 = vmatprep.subr.mxu0 0.0
    %3720 = vmatpush2.msra.mxu0 0.0
    %3721 = vmatprep.subr.mxu0 0.0
    %3722 = vmatpush2.msra.mxu0 0.0
    %3723 = vmatprep.subr.mxu0 0.0
    %3724 = vmatpush2.msra.mxu0 0.0
    %3725 = vmatprep.subr.mxu0 0.0
    %3726 = vmatpush2.msra.mxu0 0.0
    %3727 = vmatprep.subr.mxu0 0.0
    %3728 = vmatpush2.msra.mxu0 0.0
    %3729 = vmatprep.subr.mxu0 0.0
    %3730 = vmatpush2.msra.mxu0 0.0
    %3731 = vmatprep.subr.mxu0 0.0
    %3732 = vmatpush2.msra.mxu0 0.0
    %3733 = vmatprep.subr.mxu0 0.0
    %3734 = vmatpush2.msra.mxu0 0.0
    %3735 = vmatprep.subr.mxu0 0.0
    %3736 = vmatpush2.msra.mxu0 0.0
    %3737 = vmatprep.subr.mxu0 0.0
    %3738 = vmatpush2.msra.mxu0 0.0
    %3739 = vmatprep.subr.mxu0 0.0
    %3740 = vmatpush2.msra.mxu0 0.0
    %3741 = vmatprep.subr.mxu0 0.0
    %3742 = vmatpush2.msra.mxu0 0.0
    %3743 = vmatprep.subr.mxu0 0.0
    %3744 = vmatpush2.msra.mxu0 0.0
    %3745 = vmatprep.subr.mxu0 0.0
    %3746 = vmatpush2.msra.mxu0 0.0
    %3747 = vmatprep.subr.mxu0 0.0
    %3748 = vmatpush2.msra.mxu0 0.0
    %3749 = vmatprep.mubr.f32.mxu0 0.0
    %3750 = vmatmul.mubr.f32.gmra.mxu0 %v3683
    %v3751 = vpop.f32.mrf.mxu0
    %v3752 = vadd.f32 %v3678, %v3751
    %v3753 = vpop.f32.mrf.mxu0
    %3754 = vdwg.mxu0
    %v3755 = vmax.f32 %v3752, 0.0
    %v3756 = vld [vmem:[%s29] sm:$0xff]
    %v3757 = vld [vmem:[%s29 + $0x8] sm:$0xff]
    %v3758 = vld [vmem:[%s29 + $0x10] sm:$0xff]
    %v3759 = vld [vmem:[%s29 + $0x18] sm:$0xff]
    %v3760 = vld [vmem:[%s29 + $0x20] sm:$0xff]
    %v3761 = vld [vmem:[%s29 + $0x28] sm:$0xff]
    %v3762 = vld [vmem:[%s29 + $0x30] sm:$0xff]
    %v3763 = vld [vmem:[%s29 + $0x38] sm:$0xff]
    %v3764 = vld [vmem:[%s31] sm:$0x1]
    %v3766 = vlaneseq
    %v3767 = vshrl.u32 %v3766, 7
    %v3768 = vsub.s32 0, %v3767
    %v3769 = vrot.slane %v3764, %v3768
    %vm3771 = vcmask 523264
    %v3773 = vsel %vm3771, %v3755, 0
    %3775 = vmatprep.subr.mxu0 0.0
    %3776 = vmatpush1.msra.mxu0 0.0
    %3777 = vmatprep.subr.mxu0 0.0
    %3778 = vmatpush1.msra.mxu0 0.0
    %3779 = vmatprep.subr.mxu0 0.0
    %3780 = vmatpush1.msra.mxu0 0.0
    %3781 = vmatprep.subr.mxu0 0.0
    %3782 = vmatpush1.msra.mxu0 0.0
    %3783 = vmatprep.subr.mxu0 0.0
    %3784 = vmatpush1.msra.mxu0 0.0
    %3785 = vmatprep.subr.mxu0 0.0
    %3786 = vmatpush1.msra.mxu0 0.0
    %3787 = vmatprep.subr.mxu0 0.0
    %3788 = vmatpush1.msra.mxu0 0.0
    %3789 = vmatprep.subr.mxu0 0.0
    %3790 = vmatpush1.msra.mxu0 0.0
    %3791 = vmatprep.subr.mxu0 0.0
    %3792 = vmatpush1.msra.mxu0 %v3763
    %3793 = vmatprep.subr.mxu0 0.0
    %3794 = vmatpush1.msra.mxu0 %v3762
    %3795 = vmatprep.subr.mxu0 0.0
    %3796 = vmatpush1.msra.mxu0 %v3761
    %3797 = vmatprep.subr.mxu0 0.0
    %3798 = vmatpush1.msra.mxu0 %v3760
    %3799 = vmatprep.subr.mxu0 0.0
    %3800 = vmatpush1.msra.mxu0 %v3759
    %3801 = vmatprep.subr.mxu0 0.0
    %3802 = vmatpush1.msra.mxu0 %v3758
    %3803 = vmatprep.subr.mxu0 0.0
    %3804 = vmatpush1.msra.mxu0 %v3757
    %3805 = vmatprep.subr.mxu0 0.0
    %3806 = vmatpush1.msra.mxu0 %v3756
    %3807 = vmatprep.subr.mxu0 0.0
    %3808 = vmatpush2.msra.mxu0 0.0
    %3809 = vmatprep.subr.mxu0 0.0
    %3810 = vmatpush2.msra.mxu0 0.0
    %3811 = vmatprep.subr.mxu0 0.0
    %3812 = vmatpush2.msra.mxu0 0.0
    %3813 = vmatprep.subr.mxu0 0.0
    %3814 = vmatpush2.msra.mxu0 0.0
    %3815 = vmatprep.subr.mxu0 0.0
    %3816 = vmatpush2.msra.mxu0 0.0
    %3817 = vmatprep.subr.mxu0 0.0
    %3818 = vmatpush2.msra.mxu0 0.0
    %3819 = vmatprep.subr.mxu0 0.0
    %3820 = vmatpush2.msra.mxu0 0.0
    %3821 = vmatprep.subr.mxu0 0.0
    %3822 = vmatpush2.msra.mxu0 0.0
    %3823 = vmatprep.subr.mxu0 0.0
    %3824 = vmatpush2.msra.mxu0 0.0
    %3825 = vmatprep.subr.mxu0 0.0
    %3826 = vmatpush2.msra.mxu0 0.0
    %3827 = vmatprep.subr.mxu0 0.0
    %3828 = vmatpush2.msra.mxu0 0.0
    %3829 = vmatprep.subr.mxu0 0.0
    %3830 = vmatpush2.msra.mxu0 0.0
    %3831 = vmatprep.subr.mxu0 0.0
    %3832 = vmatpush2.msra.mxu0 0.0
    %3833 = vmatprep.subr.mxu0 0.0
    %3834 = vmatpush2.msra.mxu0 0.0
    %3835 = vmatprep.subr.mxu0 0.0
    %3836 = vmatpush2.msra.mxu0 0.0
    %3837 = vmatprep.subr.mxu0 0.0
    %3838 = vmatpush2.msra.mxu0 0.0
    %3839 = vmatprep.mubr.f32.mxu0 0.0
    %3840 = vmatmul.mubr.f32.gmra.mxu0 %v3773
    %v3841 = vpop.f32.mrf.mxu0
    %v3842 = vadd.f32 %v3769, %v3841
    %v3843 = vpop.f32.mrf.mxu0
    %3844 = vdwg.mxu0
    %v3845 = vld [vmem:[%s45] sm:$0xff]
    %v3846 = vmul.f32 %v3842, 1.442695
    %v3847 = vpow.pop %v3846
    %3849 = vrot.lane.b32.xlu0 %v3845, 32
    %v3850 = vpop.permute.xlu0 %3849
    %v3852 = vmul.f32 %v3847, %v3850
    %3854 = vrot.lane.b32.xlu0 %v3852, 96
    %v3855 = vpop.permute.xlu0 %3854
    %v3857 = vadd.f32 %v3842, %v3855
    %v3858 = vmul.f32 %v3857, 0.5
    %v3859 = vmul.f32 %v3858, %v3857
    %v3860 = vmul.f32 %v3845, 0.5
    %v3861 = vmul.f32 %v3860, %v3845
    %v3862 = vsub.f32 %v3859, %v3861
    %3864 = vrot.lane.b32.xlu0 %v3842, 96
    %v3865 = vpop.permute.xlu0 %3864
    %v3867 = vsub.f32 %v3862, %v3865
    %v3868 = vsel %vm384, %v3867, 0.0
    %3869 = vadd.xlane.f32.xlu0 %v3868
    %v3870 = vpop.xlane.xlu0 %3869
    %v3871 = vrot.slane %v3870, 4
    %v3872 = vadd.f32 %v3870, %v3871
    %v3873 = vrot.slane %v3872, 2
    %v3874 = vadd.f32 %v3872, %v3873
    %v3875 = vrot.slane %v3874, 1
    %v3876 = vadd.f32 %v3874, %v3875
    %v3877 = vmul.f32 %v3876, 0.00390625
    %vm3878 = vcmask 0
    %3879 = vst.msk [vmem:[#allocation8] sm:$0x1] %vm3878, %v3877
    %v3880 = vld [vmem:[%s33] sm:$0xff]
    %v3881 = vld [vmem:[%s33 + $0x8] sm:$0xff]
    %v3882 = vld [vmem:[%s33 + $0x10] sm:$0xff]
    %v3883 = vld [vmem:[%s33 + $0x18] sm:$0xff]
    %v3884 = vld [vmem:[%s33 + $0x20] sm:$0xff]
    %v3885 = vld [vmem:[%s33 + $0x28] sm:$0xff]
    %v3886 = vld [vmem:[%s33 + $0x30] sm:$0xff]
    %v3887 = vld [vmem:[%s33 + $0x38] sm:$0xff]
    %v3888 = vld [vmem:[%s33 + $0x40] sm:$0xff]
    %v3889 = vld [vmem:[%s33 + $0x48] sm:$0xff]
    %v3890 = vld [vmem:[%s33 + $0x50] sm:$0xff]
    %v3891 = vld [vmem:[%s33 + $0x58] sm:$0xff]
    %v3892 = vld [vmem:[%s33 + $0x60] sm:$0xff]
    %v3893 = vld [vmem:[%s33 + $0x68] sm:$0xff]
    %v3894 = vld [vmem:[%s33 + $0x70] sm:$0xff]
    %v3895 = vld [vmem:[%s33 + $0x78] sm:$0xff]
    %v3896 = vld [vmem:[%s35] sm:$0xff]
    %v3897 = vld [vmem:[%s35 + $0x8] sm:$0xff]
    %v3898 = vld [vmem:[%s35 + $0x10] sm:$0xff]
    %v3899 = vld [vmem:[%s35 + $0x18] sm:$0xff]
    %v3900 = vld [vmem:[%s35 + $0x20] sm:$0xff]
    %v3901 = vld [vmem:[%s35 + $0x28] sm:$0xff]
    %v3902 = vld [vmem:[%s35 + $0x30] sm:$0xff]
    %v3903 = vld [vmem:[%s35 + $0x38] sm:$0xff]
    %v3904 = vld [vmem:[%s37] sm:$0xff]
    %v3905 = vld [vmem:[%s37 + $0x8] sm:$0xff]
    %v3906 = vld [vmem:[%s37 + $0x10] sm:$0xff]
    %v3907 = vld [vmem:[%s37 + $0x18] sm:$0xff]
    %v3908 = vld [vmem:[%s37 + $0x20] sm:$0xff]
    %v3909 = vld [vmem:[%s37 + $0x28] sm:$0xff]
    %v3910 = vld [vmem:[%s37 + $0x30] sm:$0xff]
    %v3911 = vld [vmem:[%s37 + $0x38] sm:$0xff]
    %v3912 = vld [vmem:[%s37 + $0x40] sm:$0xff]
    %v3913 = vld [vmem:[%s37 + $0x48] sm:$0xff]
    %v3914 = vld [vmem:[%s37 + $0x50] sm:$0xff]
    %v3915 = vld [vmem:[%s37 + $0x58] sm:$0xff]
    %v3916 = vld [vmem:[%s37 + $0x60] sm:$0xff]
    %v3917 = vld [vmem:[%s37 + $0x68] sm:$0xff]
    %v3918 = vld [vmem:[%s37 + $0x70] sm:$0xff]
    %v3919 = vld [vmem:[%s37 + $0x78] sm:$0xff]
    %v3920 = vld [vmem:[%s37 + $0x80] sm:$0xff]
    %v3921 = vld [vmem:[%s37 + $0x88] sm:$0xff]
    %v3922 = vld [vmem:[%s37 + $0x90] sm:$0xff]
    %v3923 = vld [vmem:[%s37 + $0x98] sm:$0xff]
    %v3924 = vld [vmem:[%s37 + $0xa0] sm:$0xff]
    %v3925 = vld [vmem:[%s37 + $0xa8] sm:$0xff]
    %v3926 = vld [vmem:[%s37 + $0xb0] sm:$0xff]
    %v3927 = vld [vmem:[%s37 + $0xb8] sm:$0xff]
    %v3928 = vld [vmem:[%s37 + $0xc0] sm:$0xff]
    %v3929 = vld [vmem:[%s37 + $0xc8] sm:$0xff]
    %v3930 = vld [vmem:[%s37 + $0xd0] sm:$0xff]
    %v3931 = vld [vmem:[%s37 + $0xd8] sm:$0xff]
    %v3932 = vld [vmem:[%s37 + $0xe0] sm:$0xff]
    %v3933 = vld [vmem:[%s37 + $0xe8] sm:$0xff]
    %v3934 = vld [vmem:[%s37 + $0xf0] sm:$0xff]
    %v3935 = vld [vmem:[%s37 + $0xf8] sm:$0xff]
    %v3936 = vld [vmem:[%s39] sm:$0xff]
    %s3937 = sld [smem:[#allocation2]]
    %s3938 = sld [smem:[#allocation3]]
    %v3939 = vlaneseq
    %v3940 = vand.u32 %v3939, 127
    %vm3941 = vcmp.lt.s32.totalorder %v3940, 5
    %v3942 = vsel %vm3941, 0.0, -1e+30
    %v3943 = vcvt.s32.f32 %v3940
    %3944 = vmatprep.subr.mxu0 0.0
    %3945 = vmatpush1.msra.mxu0 0.0
    %3946 = vmatprep.subr.mxu0 0.0
    %3947 = vmatpush1.msra.mxu0 0.0
    %3948 = vmatprep.subr.mxu0 0.0
    %3949 = vmatpush1.msra.mxu0 0.0
    %3950 = vmatprep.subr.mxu0 0.0
    %3951 = vmatpush1.msra.mxu0 0.0
    %3952 = vmatprep.subr.mxu0 0.0
    %3953 = vmatpush1.msra.mxu0 0.0
    %3954 = vmatprep.subr.mxu0 0.0
    %3955 = vmatpush1.msra.mxu0 0.0
    %3956 = vmatprep.subr.mxu0 0.0
    %3957 = vmatpush1.msra.mxu0 0.0
    %3958 = vmatprep.subr.mxu0 0.0
    %3959 = vmatpush1.msra.mxu0 0.0
    %3960 = vmatprep.subr.mxu0 0.0
    %3961 = vmatpush1.msra.mxu0 0.0
    %3962 = vmatprep.subr.mxu0 0.0
    %3963 = vmatpush1.msra.mxu0 0.0
    %3964 = vmatprep.subr.mxu0 0.0
    %3965 = vmatpush1.msra.mxu0 0.0
    %3966 = vmatprep.subr.mxu0 0.0
    %3967 = vmatpush1.msra.mxu0 0.0
    %3968 = vmatprep.subr.mxu0 %v3903
    %3969 = vmatpush1.msra.mxu0 %v3902
    %3970 = vmatprep.subr.mxu0 %v3901
    %3971 = vmatpush1.msra.mxu0 %v3900
    %3972 = vmatprep.subr.mxu0 %v3899
    %3973 = vmatpush1.msra.mxu0 %v3898
    %3974 = vmatprep.subr.mxu0 %v3897
    %3975 = vmatpush1.msra.mxu0 %v3896
    %3976 = vmatprep.subr.mxu0 0.0
    %3977 = vmatpush2.msra.mxu0 0.0
    %3978 = vmatprep.subr.mxu0 0.0
    %3979 = vmatpush2.msra.mxu0 0.0
    %3980 = vmatprep.subr.mxu0 0.0
    %3981 = vmatpush2.msra.mxu0 0.0
    %3982 = vmatprep.subr.mxu0 0.0
    %3983 = vmatpush2.msra.mxu0 0.0
    %3984 = vmatprep.subr.mxu0 0.0
    %3985 = vmatpush2.msra.mxu0 0.0
    %3986 = vmatprep.subr.mxu0 0.0
    %3987 = vmatpush2.msra.mxu0 0.0
    %3988 = vmatprep.subr.mxu0 0.0
    %3989 = vmatpush2.msra.mxu0 0.0
    %3990 = vmatprep.subr.mxu0 0.0
    %3991 = vmatpush2.msra.mxu0 0.0
    %3992 = vmatprep.subr.mxu0 0.0
    %3993 = vmatpush2.msra.mxu0 0.0
    %3994 = vmatprep.subr.mxu0 0.0
    %3995 = vmatpush2.msra.mxu0 0.0
    %3996 = vmatprep.subr.mxu0 0.0
    %3997 = vmatpush2.msra.mxu0 0.0
    %3998 = vmatprep.subr.mxu0 0.0
    %3999 = vmatpush2.msra.mxu0 0.0
    %4000 = vmatprep.subr.mxu0 0.0
    %4001 = vmatpush2.msra.mxu0 0.0
    %4002 = vmatprep.subr.mxu0 0.0
    %4003 = vmatpush2.msra.mxu0 0.0
    %4004 = vmatprep.subr.mxu0 0.0
    %4005 = vmatpush2.msra.mxu0 0.0
    %4006 = vmatprep.subr.mxu0 0.0
    %4007 = vmatpush2.msra.mxu0 0.0
    %4008 = vmatprep.mubr.f32.mxu0 0.0
    %4009 = vmatmul.mubr.f32.gmra.mxu0 %v3683
    %v4010 = vpop.f32.mrf.mxu0
    %v4011 = vadd.f32 0.0, %v4010
    %v4012 = vpop.f32.mrf.mxu0
    %v4013 = vadd.f32 0.0, %v4012
    %4014 = vdwg.mxu0
    %v4015 = vld [vmem:[%s47] sm:$0xff]
    %v4016 = vld [vmem:[%s47 + $0x8] sm:$0xff]
    %v4018 = vsel %vm384, %v3857, 0
    %4020 = vmatprep.subr.mxu0 0.0
    %4021 = vmatpush1.msra.mxu0 0.0
    %4022 = vmatprep.subr.mxu0 0.0
    %4023 = vmatpush1.msra.mxu0 0.0
    %4024 = vmatprep.subr.mxu0 0.0
    %4025 = vmatpush1.msra.mxu0 0.0
    %4026 = vmatprep.subr.mxu0 0.0
    %4027 = vmatpush1.msra.mxu0 0.0
    %4028 = vmatprep.subr.mxu0 0.0
    %4029 = vmatpush1.msra.mxu0 0.0
    %4030 = vmatprep.subr.mxu0 0.0
    %4031 = vmatpush1.msra.mxu0 0.0
    %4032 = vmatprep.subr.mxu0 0.0
    %4033 = vmatpush1.msra.mxu0 0.0
    %4034 = vmatprep.subr.mxu0 0.0
    %4035 = vmatpush1.msra.mxu0 0.0
    %4036 = vmatprep.subr.mxu0 0.0
    %4037 = vmatpush1.msra.mxu0 0.0
    %4038 = vmatprep.subr.mxu0 0.0
    %4039 = vmatpush1.msra.mxu0 0.0
    %4040 = vmatprep.subr.mxu0 0.0
    %4041 = vmatpush1.msra.mxu0 0.0
    %4042 = vmatprep.subr.mxu0 0.0
    %4043 = vmatpush1.msra.mxu0 0.0
    %4044 = vmatprep.subr.mxu0 %v3893
    %4045 = vmatpush1.msra.mxu0 %v3892
    %4046 = vmatprep.subr.mxu0 %v3889
    %4047 = vmatpush1.msra.mxu0 %v3888
    %4048 = vmatprep.subr.mxu0 %v3885
    %4049 = vmatpush1.msra.mxu0 %v3884
    %4050 = vmatprep.subr.mxu0 %v3881
    %4051 = vmatpush1.msra.mxu0 %v3880
    %4052 = vmatprep.subr.mxu0 0.0
    %4053 = vmatpush2.msra.mxu0 0.0
    %4054 = vmatprep.subr.mxu0 0.0
    %4055 = vmatpush2.msra.mxu0 0.0
    %4056 = vmatprep.subr.mxu0 0.0
    %4057 = vmatpush2.msra.mxu0 0.0
    %4058 = vmatprep.subr.mxu0 0.0
    %4059 = vmatpush2.msra.mxu0 0.0
    %4060 = vmatprep.subr.mxu0 0.0
    %4061 = vmatpush2.msra.mxu0 0.0
    %4062 = vmatprep.subr.mxu0 0.0
    %4063 = vmatpush2.msra.mxu0 0.0
    %4064 = vmatprep.subr.mxu0 0.0
    %4065 = vmatpush2.msra.mxu0 0.0
    %4066 = vmatprep.subr.mxu0 0.0
    %4067 = vmatpush2.msra.mxu0 0.0
    %4068 = vmatprep.subr.mxu0 0.0
    %4069 = vmatpush2.msra.mxu0 0.0
    %4070 = vmatprep.subr.mxu0 0.0
    %4071 = vmatpush2.msra.mxu0 0.0
    %4072 = vmatprep.subr.mxu0 0.0
    %4073 = vmatpush2.msra.mxu0 0.0
    %4074 = vmatprep.subr.mxu0 0.0
    %4075 = vmatpush2.msra.mxu0 0.0
    %4076 = vmatprep.subr.mxu0 0.0
    %4077 = vmatpush2.msra.mxu0 0.0
    %4078 = vmatprep.subr.mxu0 0.0
    %4079 = vmatpush2.msra.mxu0 0.0
    %4080 = vmatprep.subr.mxu0 0.0
    %4081 = vmatpush2.msra.mxu0 0.0
    %4082 = vmatprep.subr.mxu0 0.0
    %4083 = vmatpush2.msra.mxu0 0.0
    %4084 = vmatprep.mubr.f32.mxu0 0.0
    %4085 = vmatmul.mubr.f32.gmra.mxu0 %v4018
    %v4086 = vpop.f32.mrf.mxu0
    %v4087 = vadd.f32 0.0, %v4086
    %v4088 = vpop.f32.mrf.mxu0
    %v4089 = vadd.f32 0.0, %v4088
    %4090 = vdwg.mxu0
    %4091 = vmatprep.subr.mxu0 0.0
    %4092 = vmatpush1.msra.mxu0 0.0
    %4093 = vmatprep.subr.mxu0 0.0
    %4094 = vmatpush1.msra.mxu0 0.0
    %4095 = vmatprep.subr.mxu0 0.0
    %4096 = vmatpush1.msra.mxu0 0.0
    %4097 = vmatprep.subr.mxu0 0.0
    %4098 = vmatpush1.msra.mxu0 0.0
    %4099 = vmatprep.subr.mxu0 0.0
    %4100 = vmatpush1.msra.mxu0 0.0
    %4101 = vmatprep.subr.mxu0 0.0
    %4102 = vmatpush1.msra.mxu0 0.0
    %4103 = vmatprep.subr.mxu0 0.0
    %4104 = vmatpush1.msra.mxu0 0.0
    %4105 = vmatprep.subr.mxu0 0.0
    %4106 = vmatpush1.msra.mxu0 0.0
    %4107 = vmatprep.subr.mxu0 0.0
    %4108 = vmatpush1.msra.mxu0 0.0
    %4109 = vmatprep.subr.mxu0 0.0
    %4110 = vmatpush1.msra.mxu0 0.0
    %4111 = vmatprep.subr.mxu0 0.0
    %4112 = vmatpush1.msra.mxu0 0.0
    %4113 = vmatprep.subr.mxu0 0.0
    %4114 = vmatpush1.msra.mxu0 0.0
    %4115 = vmatprep.subr.mxu0 %v3895
    %4116 = vmatpush1.msra.mxu0 %v3894
    %4117 = vmatprep.subr.mxu0 %v3891
    %4118 = vmatpush1.msra.mxu0 %v3890
    %4119 = vmatprep.subr.mxu0 %v3887
    %4120 = vmatpush1.msra.mxu0 %v3886
    %4121 = vmatprep.subr.mxu0 %v3883
    %4122 = vmatpush1.msra.mxu0 %v3882
    %4123 = vmatprep.subr.mxu0 0.0
    %4124 = vmatpush2.msra.mxu0 0.0
    %4125 = vmatprep.subr.mxu0 0.0
    %4126 = vmatpush2.msra.mxu0 0.0
    %4127 = vmatprep.subr.mxu0 0.0
    %4128 = vmatpush2.msra.mxu0 0.0
    %4129 = vmatprep.subr.mxu0 0.0
    %4130 = vmatpush2.msra.mxu0 0.0
    %4131 = vmatprep.subr.mxu0 0.0
    %4132 = vmatpush2.msra.mxu0 0.0
    %4133 = vmatprep.subr.mxu0 0.0
    %4134 = vmatpush2.msra.mxu0 0.0
    %4135 = vmatprep.subr.mxu0 0.0
    %4136 = vmatpush2.msra.mxu0 0.0
    %4137 = vmatprep.subr.mxu0 0.0
    %4138 = vmatpush2.msra.mxu0 0.0
    %4139 = vmatprep.subr.mxu0 0.0
    %4140 = vmatpush2.msra.mxu0 0.0
    %4141 = vmatprep.subr.mxu0 0.0
    %4142 = vmatpush2.msra.mxu0 0.0
    %4143 = vmatprep.subr.mxu0 0.0
    %4144 = vmatpush2.msra.mxu0 0.0
    %4145 = vmatprep.subr.mxu0 0.0
    %4146 = vmatpush2.msra.mxu0 0.0
    %4147 = vmatprep.subr.mxu0 0.0
    %4148 = vmatpush2.msra.mxu0 0.0
    %4149 = vmatprep.subr.mxu0 0.0
    %4150 = vmatpush2.msra.mxu0 0.0
    %4151 = vmatprep.subr.mxu0 0.0
    %4152 = vmatpush2.msra.mxu0 0.0
    %4153 = vmatprep.subr.mxu0 0.0
    %4154 = vmatpush2.msra.mxu0 0.0
    %4155 = vmatprep.mubr.f32.mxu0 0.0
    %4156 = vmatmul.mubr.f32.gmra.mxu0 %v4018
    %v4157 = vpop.f32.mrf.mxu0
    %v4158 = vadd.f32 0.0, %v4157
    %v4159 = vpop.f32.mrf.mxu0
    %v4160 = vadd.f32 0.0, %v4159
    %4161 = vdwg.mxu0
    %v4162 = vmul.f32 %v4158, 1.442695
    %v4163 = vpow.pop %v4162
    %v4164 = vmul.f32 %v4160, 1.442695
    %v4165 = vpow.pop %v4164
    %v4166 = vmul.f32 %v4163, %v4015
    %v4167 = vmul.f32 %v4165, %v4016
    %v4168 = vadd.f32 %v4087, %v4166
    %v4169 = vadd.f32 %v4089, %v4167
    %v4170 = vmul.f32 %v4011, %v4168
    %v4171 = vmul.f32 %v4013, %v4169
    %4172 = vmatprep.subr.mxu0 0.0
    %4173 = vmatpush1.msra.mxu0 %v3919
    %4174 = vmatprep.subr.mxu0 0.0
    %4175 = vmatpush1.msra.mxu0 %v3918
    %4176 = vmatprep.subr.mxu0 0.0
    %4177 = vmatpush1.msra.mxu0 %v3917
    %4178 = vmatprep.subr.mxu0 0.0
    %4179 = vmatpush1.msra.mxu0 %v3916
    %4180 = vmatprep.subr.mxu0 0.0
    %4181 = vmatpush1.msra.mxu0 %v3915
    %4182 = vmatprep.subr.mxu0 0.0
    %4183 = vmatpush1.msra.mxu0 %v3914
    %4184 = vmatprep.subr.mxu0 0.0
    %4185 = vmatpush1.msra.mxu0 %v3913
    %4186 = vmatprep.subr.mxu0 0.0
    %4187 = vmatpush1.msra.mxu0 %v3912
    %4188 = vmatprep.subr.mxu0 0.0
    %4189 = vmatpush1.msra.mxu0 %v3911
    %4190 = vmatprep.subr.mxu0 0.0
    %4191 = vmatpush1.msra.mxu0 %v3910
    %4192 = vmatprep.subr.mxu0 0.0
    %4193 = vmatpush1.msra.mxu0 %v3909
    %4194 = vmatprep.subr.mxu0 0.0
    %4195 = vmatpush1.msra.mxu0 %v3908
    %4196 = vmatprep.subr.mxu0 0.0
    %4197 = vmatpush1.msra.mxu0 %v3907
    %4198 = vmatprep.subr.mxu0 0.0
    %4199 = vmatpush1.msra.mxu0 %v3906
    %4200 = vmatprep.subr.mxu0 0.0
    %4201 = vmatpush1.msra.mxu0 %v3905
    %4202 = vmatprep.subr.mxu0 0.0
    %4203 = vmatpush1.msra.mxu0 %v3904
    %4204 = vmatprep.subr.mxu0 0.0
    %4205 = vmatpush2.msra.mxu0 %v3935
    %4206 = vmatprep.subr.mxu0 0.0
    %4207 = vmatpush2.msra.mxu0 %v3934
    %4208 = vmatprep.subr.mxu0 0.0
    %4209 = vmatpush2.msra.mxu0 %v3933
    %4210 = vmatprep.subr.mxu0 0.0
    %4211 = vmatpush2.msra.mxu0 %v3932
    %4212 = vmatprep.subr.mxu0 0.0
    %4213 = vmatpush2.msra.mxu0 %v3931
    %4214 = vmatprep.subr.mxu0 0.0
    %4215 = vmatpush2.msra.mxu0 %v3930
    %4216 = vmatprep.subr.mxu0 0.0
    %4217 = vmatpush2.msra.mxu0 %v3929
    %4218 = vmatprep.subr.mxu0 0.0
    %4219 = vmatpush2.msra.mxu0 %v3928
    %4220 = vmatprep.subr.mxu0 0.0
    %4221 = vmatpush2.msra.mxu0 %v3927
    %4222 = vmatprep.subr.mxu0 0.0
    %4223 = vmatpush2.msra.mxu0 %v3926
    %4224 = vmatprep.subr.mxu0 0.0
    %4225 = vmatpush2.msra.mxu0 %v3925
    %4226 = vmatprep.subr.mxu0 0.0
    %4227 = vmatpush2.msra.mxu0 %v3924
    %4228 = vmatprep.subr.mxu0 0.0
    %4229 = vmatpush2.msra.mxu0 %v3923
    %4230 = vmatprep.subr.mxu0 0.0
    %4231 = vmatpush2.msra.mxu0 %v3922
    %4232 = vmatprep.subr.mxu0 0.0
    %4233 = vmatpush2.msra.mxu0 %v3921
    %4234 = vmatprep.subr.mxu0 0.0
    %4235 = vmatpush2.msra.mxu0 %v3920
    %4236 = vmatprep.mubr.f32.mxu0 %v4171
    %4237 = vmatmul.mubr.f32.gmra.mxu0 %v4170
    %v4238 = vpop.f32.mrf.mxu0
    %v4239 = vadd.f32 %v3942, %v4238
    %v4240 = vpop.f32.mrf.mxu0
    %4241 = vdwg.mxu0
    %vm4242 = vcmask 64512
    %v4243 = vsel %vm4242, %v4239, -inf
    %4244 = vmax.xlane.f32.xlu0 %v4243
    %v4245 = vpop.xlane.xlu0 %4244
    %v4246 = vsub.f32 %v4239, %v4245
    %v4247 = vmul.f32 %v4246, 1.442695
    %v4248 = vpow.pop %v4247
    %v4249 = vsel %vm4242, %v4248, 0.0
    %4250 = vadd.xlane.f32.xlu0 %v4249
    %v4251 = vpop.xlane.xlu0 %4250
    %v4252 = vrcp.pop %v4251
    %v4253 = vmul.f32 %v4248, %v4252
    %v4254 = vsub.f32 %v4253, %v3936
    %v4255 = vmul.f32 %v4254, 0.125
    %v4257 = vsel %vm4242, %v4255, 0
    %v4260 = vsel %vm4242, %v3904, 0
    %v4263 = vsel %vm4242, %v3905, 0
    %v4266 = vsel %vm4242, %v3906, 0
    %v4269 = vsel %vm4242, %v3907, 0
    %v4272 = vsel %vm4242, %v3908, 0
    %v4275 = vsel %vm4242, %v3909, 0
    %v4278 = vsel %vm4242, %v3910, 0
    %v4281 = vsel %vm4242, %v3911, 0
    %v4284 = vsel %vm4242, %v3912, 0
    %v4287 = vsel %vm4242, %v3913, 0
    %v4290 = vsel %vm4242, %v3914, 0
    %v4293 = vsel %vm4242, %v3915, 0
    %v4296 = vsel %vm4242, %v3916, 0
    %v4299 = vsel %vm4242, %v3917, 0
    %v4302 = vsel %vm4242, %v3918, 0
    %v4305 = vsel %vm4242, %v3919, 0
    %v4308 = vsel %vm4242, %v3920, 0
    %v4311 = vsel %vm4242, %v3921, 0
    %v4314 = vsel %vm4242, %v3922, 0
    %v4317 = vsel %vm4242, %v3923, 0
    %v4320 = vsel %vm4242, %v3924, 0
    %v4323 = vsel %vm4242, %v3925, 0
    %v4326 = vsel %vm4242, %v3926, 0
    %v4329 = vsel %vm4242, %v3927, 0
    %v4332 = vsel %vm4242, %v3928, 0
    %v4335 = vsel %vm4242, %v3929, 0
    %v4338 = vsel %vm4242, %v3930, 0
    %v4341 = vsel %vm4242, %v3931, 0
    %v4344 = vsel %vm4242, %v3932, 0
    %v4347 = vsel %vm4242, %v3933, 0
    %v4350 = vsel %vm4242, %v3934, 0
    %v4353 = vsel %vm4242, %v3935, 0
    %4355 = vmatprep.subr.mxu0 0.0
    %4356 = vmatpush1.xpose.msra.mxu0 %v4305
    %4357 = vmatprep.subr.mxu0 0.0
    %4358 = vmatpush1.xpose.msra.mxu0 %v4302
    %4359 = vmatprep.subr.mxu0 0.0
    %4360 = vmatpush1.xpose.msra.mxu0 %v4299
    %4361 = vmatprep.subr.mxu0 0.0
    %4362 = vmatpush1.xpose.msra.mxu0 %v4296
    %4363 = vmatprep.subr.mxu0 0.0
    %4364 = vmatpush1.xpose.msra.mxu0 %v4293
    %4365 = vmatprep.subr.mxu0 0.0
    %4366 = vmatpush1.xpose.msra.mxu0 %v4290
    %4367 = vmatprep.subr.mxu0 0.0
    %4368 = vmatpush1.xpose.msra.mxu0 %v4287
    %4369 = vmatprep.subr.mxu0 0.0
    %4370 = vmatpush1.xpose.msra.mxu0 %v4284
    %4371 = vmatprep.subr.mxu0 0.0
    %4372 = vmatpush1.xpose.msra.mxu0 %v4281
    %4373 = vmatprep.subr.mxu0 0.0
    %4374 = vmatpush1.xpose.msra.mxu0 %v4278
    %4375 = vmatprep.subr.mxu0 0.0
    %4376 = vmatpush1.xpose.msra.mxu0 %v4275
    %4377 = vmatprep.subr.mxu0 0.0
    %4378 = vmatpush1.xpose.msra.mxu0 %v4272
    %4379 = vmatprep.subr.mxu0 0.0
    %4380 = vmatpush1.xpose.msra.mxu0 %v4269
    %4381 = vmatprep.subr.mxu0 0.0
    %4382 = vmatpush1.xpose.msra.mxu0 %v4266
    %4383 = vmatprep.subr.mxu0 0.0
    %4384 = vmatpush1.xpose.msra.mxu0 %v4263
    %4385 = vmatprep.subr.mxu0 0.0
    %4386 = vmatpush1.xpose.msra.mxu0 %v4260
    %4387 = vmatprep.subr.mxu0 0.0
    %4388 = vmatpush2.xpose.msra.mxu0 %v4353
    %4389 = vmatprep.subr.mxu0 0.0
    %4390 = vmatpush2.xpose.msra.mxu0 %v4350
    %4391 = vmatprep.subr.mxu0 0.0
    %4392 = vmatpush2.xpose.msra.mxu0 %v4347
    %4393 = vmatprep.subr.mxu0 0.0
    %4394 = vmatpush2.xpose.msra.mxu0 %v4344
    %4395 = vmatprep.subr.mxu0 0.0
    %4396 = vmatpush2.xpose.msra.mxu0 %v4341
    %4397 = vmatprep.subr.mxu0 0.0
    %4398 = vmatpush2.xpose.msra.mxu0 %v4338
    %4399 = vmatprep.subr.mxu0 0.0
    %4400 = vmatpush2.xpose.msra.mxu0 %v4335
    %4401 = vmatprep.subr.mxu0 0.0
    %4402 = vmatpush2.xpose.msra.mxu0 %v4332
    %4403 = vmatprep.subr.mxu0 0.0
    %4404 = vmatpush2.xpose.msra.mxu0 %v4329
    %4405 = vmatprep.subr.mxu0 0.0
    %4406 = vmatpush2.xpose.msra.mxu0 %v4326
    %4407 = vmatprep.subr.mxu0 0.0
    %4408 = vmatpush2.xpose.msra.mxu0 %v4323
    %4409 = vmatprep.subr.mxu0 0.0
    %4410 = vmatpush2.xpose.msra.mxu0 %v4320
    %4411 = vmatprep.subr.mxu0 0.0
    %4412 = vmatpush2.xpose.msra.mxu0 %v4317
    %4413 = vmatprep.subr.mxu0 0.0
    %4414 = vmatpush2.xpose.msra.mxu0 %v4314
    %4415 = vmatprep.subr.mxu0 0.0
    %4416 = vmatpush2.xpose.msra.mxu0 %v4311
    %4417 = vmatprep.subr.mxu0 0.0
    %4418 = vmatpush2.xpose.msra.mxu0 %v4308
    %4419 = vmatprep.mubr.f32.mxu0 0.0
    %4420 = vmatmul.mubr.f32.gmra.mxu0 %v4257
    %v4421 = vpop.f32.mrf.mxu0
    %v4422 = vadd.f32 0.0, %v4421
    %v4423 = vpop.f32.mrf.mxu0
    %v4424 = vadd.f32 0.0, %v4423
    %4425 = vdwg.mxu0
    %v4426 = vmul.f32 %v4011, %v4422
    %v4427 = vmul.f32 %v4013, %v4424
    %v4428 = vmul.f32 %v4426, %v4163
    %v4429 = vmul.f32 %v4427, %v4165
    %v4430 = vmul.f32 %v4428, %v4015
    %v4431 = vmul.f32 %v4429, %v4016
    %4432 = vmatprep.subr.mxu0 0.0
    %4433 = vmatpush1.xpose.msra.mxu0 0.0
    %4434 = vmatprep.subr.mxu0 0.0
    %4435 = vmatpush1.xpose.msra.mxu0 0.0
    %4436 = vmatprep.subr.mxu0 0.0
    %4437 = vmatpush1.xpose.msra.mxu0 0.0
    %4438 = vmatprep.subr.mxu0 0.0
    %4439 = vmatpush1.xpose.msra.mxu0 0.0
    %4440 = vmatprep.subr.mxu0 0.0
    %4441 = vmatpush1.xpose.msra.mxu0 0.0
    %4442 = vmatprep.subr.mxu0 0.0
    %4443 = vmatpush1.xpose.msra.mxu0 0.0
    %4444 = vmatprep.subr.mxu0 0.0
    %4445 = vmatpush1.xpose.msra.mxu0 0.0
    %4446 = vmatprep.subr.mxu0 0.0
    %4447 = vmatpush1.xpose.msra.mxu0 0.0
    %4448 = vmatprep.subr.mxu0 0.0
    %4449 = vmatpush1.xpose.msra.mxu0 0.0
    %4450 = vmatprep.subr.mxu0 0.0
    %4451 = vmatpush1.xpose.msra.mxu0 0.0
    %4452 = vmatprep.subr.mxu0 0.0
    %4453 = vmatpush1.xpose.msra.mxu0 0.0
    %4454 = vmatprep.subr.mxu0 0.0
    %4455 = vmatpush1.xpose.msra.mxu0 0.0
    %4456 = vmatprep.subr.mxu0 %v3893
    %4457 = vmatpush1.xpose.msra.mxu0 %v3892
    %4458 = vmatprep.subr.mxu0 %v3889
    %4459 = vmatpush1.xpose.msra.mxu0 %v3888
    %4460 = vmatprep.subr.mxu0 %v3885
    %4461 = vmatpush1.xpose.msra.mxu0 %v3884
    %4462 = vmatprep.subr.mxu0 %v3881
    %4463 = vmatpush1.xpose.msra.mxu0 %v3880
    %4464 = vmatprep.subr.mxu0 0.0
    %4465 = vmatpush2.xpose.msra.mxu0 0.0
    %4466 = vmatprep.subr.mxu0 0.0
    %4467 = vmatpush2.xpose.msra.mxu0 0.0
    %4468 = vmatprep.subr.mxu0 0.0
    %4469 = vmatpush2.xpose.msra.mxu0 0.0
    %4470 = vmatprep.subr.mxu0 0.0
    %4471 = vmatpush2.xpose.msra.mxu0 0.0
    %4472 = vmatprep.subr.mxu0 0.0
    %4473 = vmatpush2.xpose.msra.mxu0 0.0
    %4474 = vmatprep.subr.mxu0 0.0
    %4475 = vmatpush2.xpose.msra.mxu0 0.0
    %4476 = vmatprep.subr.mxu0 0.0
    %4477 = vmatpush2.xpose.msra.mxu0 0.0
    %4478 = vmatprep.subr.mxu0 0.0
    %4479 = vmatpush2.xpose.msra.mxu0 0.0
    %4480 = vmatprep.subr.mxu0 0.0
    %4481 = vmatpush2.xpose.msra.mxu0 0.0
    %4482 = vmatprep.subr.mxu0 0.0
    %4483 = vmatpush2.xpose.msra.mxu0 0.0
    %4484 = vmatprep.subr.mxu0 0.0
    %4485 = vmatpush2.xpose.msra.mxu0 0.0
    %4486 = vmatprep.subr.mxu0 0.0
    %4487 = vmatpush2.xpose.msra.mxu0 0.0
    %4488 = vmatprep.subr.mxu0 0.0
    %4489 = vmatpush2.xpose.msra.mxu0 0.0
    %4490 = vmatprep.subr.mxu0 0.0
    %4491 = vmatpush2.xpose.msra.mxu0 0.0
    %4492 = vmatprep.subr.mxu0 0.0
    %4493 = vmatpush2.xpose.msra.mxu0 0.0
    %4494 = vmatprep.subr.mxu0 0.0
    %4495 = vmatpush2.xpose.msra.mxu0 0.0
    %4496 = vmatprep.mubr.f32.mxu0 %v4427
    %4497 = vmatmul.mubr.f32.gmra.mxu0 %v4426
    %v4498 = vpop.f32.mrf.mxu0
    %v4499 = vadd.f32 0.0, %v4498
    %v4500 = vpop.f32.mrf.mxu0
    %4501 = vdwg.mxu0
    %4502 = vmatprep.subr.mxu0 0.0
    %4503 = vmatpush1.xpose.msra.mxu0 0.0
    %4504 = vmatprep.subr.mxu0 0.0
    %4505 = vmatpush1.xpose.msra.mxu0 0.0
    %4506 = vmatprep.subr.mxu0 0.0
    %4507 = vmatpush1.xpose.msra.mxu0 0.0
    %4508 = vmatprep.subr.mxu0 0.0
    %4509 = vmatpush1.xpose.msra.mxu0 0.0
    %4510 = vmatprep.subr.mxu0 0.0
    %4511 = vmatpush1.xpose.msra.mxu0 0.0
    %4512 = vmatprep.subr.mxu0 0.0
    %4513 = vmatpush1.xpose.msra.mxu0 0.0
    %4514 = vmatprep.subr.mxu0 0.0
    %4515 = vmatpush1.xpose.msra.mxu0 0.0
    %4516 = vmatprep.subr.mxu0 0.0
    %4517 = vmatpush1.xpose.msra.mxu0 0.0
    %4518 = vmatprep.subr.mxu0 0.0
    %4519 = vmatpush1.xpose.msra.mxu0 0.0
    %4520 = vmatprep.subr.mxu0 0.0
    %4521 = vmatpush1.xpose.msra.mxu0 0.0
    %4522 = vmatprep.subr.mxu0 0.0
    %4523 = vmatpush1.xpose.msra.mxu0 0.0
    %4524 = vmatprep.subr.mxu0 0.0
    %4525 = vmatpush1.xpose.msra.mxu0 0.0
    %4526 = vmatprep.subr.mxu0 %v3895
    %4527 = vmatpush1.xpose.msra.mxu0 %v3894
    %4528 = vmatprep.subr.mxu0 %v3891
    %4529 = vmatpush1.xpose.msra.mxu0 %v3890
    %4530 = vmatprep.subr.mxu0 %v3887
    %4531 = vmatpush1.xpose.msra.mxu0 %v3886
    %4532 = vmatprep.subr.mxu0 %v3883
    %4533 = vmatpush1.xpose.msra.mxu0 %v3882
    %4534 = vmatprep.subr.mxu0 0.0
    %4535 = vmatpush2.xpose.msra.mxu0 0.0
    %4536 = vmatprep.subr.mxu0 0.0
    %4537 = vmatpush2.xpose.msra.mxu0 0.0
    %4538 = vmatprep.subr.mxu0 0.0
    %4539 = vmatpush2.xpose.msra.mxu0 0.0
    %4540 = vmatprep.subr.mxu0 0.0
    %4541 = vmatpush2.xpose.msra.mxu0 0.0
    %4542 = vmatprep.subr.mxu0 0.0
    %4543 = vmatpush2.xpose.msra.mxu0 0.0
    %4544 = vmatprep.subr.mxu0 0.0
    %4545 = vmatpush2.xpose.msra.mxu0 0.0
    %4546 = vmatprep.subr.mxu0 0.0
    %4547 = vmatpush2.xpose.msra.mxu0 0.0
    %4548 = vmatprep.subr.mxu0 0.0
    %4549 = vmatpush2.xpose.msra.mxu0 0.0
    %4550 = vmatprep.subr.mxu0 0.0
    %4551 = vmatpush2.xpose.msra.mxu0 0.0
    %4552 = vmatprep.subr.mxu0 0.0
    %4553 = vmatpush2.xpose.msra.mxu0 0.0
    %4554 = vmatprep.subr.mxu0 0.0
    %4555 = vmatpush2.xpose.msra.mxu0 0.0
    %4556 = vmatprep.subr.mxu0 0.0
    %4557 = vmatpush2.xpose.msra.mxu0 0.0
    %4558 = vmatprep.subr.mxu0 0.0
    %4559 = vmatpush2.xpose.msra.mxu0 0.0
    %4560 = vmatprep.subr.mxu0 0.0
    %4561 = vmatpush2.xpose.msra.mxu0 0.0
    %4562 = vmatprep.subr.mxu0 0.0
    %4563 = vmatpush2.xpose.msra.mxu0 0.0
    %4564 = vmatprep.subr.mxu0 0.0
    %4565 = vmatpush2.xpose.msra.mxu0 0.0
    %4566 = vmatprep.mubr.f32.mxu0 %v4431
    %4567 = vmatmul.mubr.f32.gmra.mxu0 %v4430
    %v4568 = vpop.f32.mrf.mxu0
    %v4569 = vadd.f32 %v4499, %v4568
    %v4570 = vpop.f32.mrf.mxu0
    %4571 = vdwg.mxu0
    %v4572 = vstv %s3937
    %v4573 = vmul.f32 %v4572, %v4569
    %v4574 = vsub.f32 %v3857, %v4573
    %s4575 = scalar_lea.vmem %s47, 16
    %v4576 = vld [vmem:[%s4575] sm:$0xff]
    %v4577 = vld [vmem:[%s4575 + $0x8] sm:$0xff]
    %v4579 = vsel %vm384, %v4574, 0
    %4581 = vmatprep.subr.mxu0 0.0
    %4582 = vmatpush1.msra.mxu0 0.0
    %4583 = vmatprep.subr.mxu0 0.0
    %4584 = vmatpush1.msra.mxu0 0.0
    %4585 = vmatprep.subr.mxu0 0.0
    %4586 = vmatpush1.msra.mxu0 0.0
    %4587 = vmatprep.subr.mxu0 0.0
    %4588 = vmatpush1.msra.mxu0 0.0
    %4589 = vmatprep.subr.mxu0 0.0
    %4590 = vmatpush1.msra.mxu0 0.0
    %4591 = vmatprep.subr.mxu0 0.0
    %4592 = vmatpush1.msra.mxu0 0.0
    %4593 = vmatprep.subr.mxu0 0.0
    %4594 = vmatpush1.msra.mxu0 0.0
    %4595 = vmatprep.subr.mxu0 0.0
    %4596 = vmatpush1.msra.mxu0 0.0
    %4597 = vmatprep.subr.mxu0 0.0
    %4598 = vmatpush1.msra.mxu0 0.0
    %4599 = vmatprep.subr.mxu0 0.0
    %4600 = vmatpush1.msra.mxu0 0.0
    %4601 = vmatprep.subr.mxu0 0.0
    %4602 = vmatpush1.msra.mxu0 0.0
    %4603 = vmatprep.subr.mxu0 0.0
    %4604 = vmatpush1.msra.mxu0 0.0
    %4605 = vmatprep.subr.mxu0 %v3893
    %4606 = vmatpush1.msra.mxu0 %v3892
    %4607 = vmatprep.subr.mxu0 %v3889
    %4608 = vmatpush1.msra.mxu0 %v3888
    %4609 = vmatprep.subr.mxu0 %v3885
    %4610 = vmatpush1.msra.mxu0 %v3884
    %4611 = vmatprep.subr.mxu0 %v3881
    %4612 = vmatpush1.msra.mxu0 %v3880
    %4613 = vmatprep.subr.mxu0 0.0
    %4614 = vmatpush2.msra.mxu0 0.0
    %4615 = vmatprep.subr.mxu0 0.0
    %4616 = vmatpush2.msra.mxu0 0.0
    %4617 = vmatprep.subr.mxu0 0.0
    %4618 = vmatpush2.msra.mxu0 0.0
    %4619 = vmatprep.subr.mxu0 0.0
    %4620 = vmatpush2.msra.mxu0 0.0
    %4621 = vmatprep.subr.mxu0 0.0
    %4622 = vmatpush2.msra.mxu0 0.0
    %4623 = vmatprep.subr.mxu0 0.0
    %4624 = vmatpush2.msra.mxu0 0.0
    %4625 = vmatprep.subr.mxu0 0.0
    %4626 = vmatpush2.msra.mxu0 0.0
    %4627 = vmatprep.subr.mxu0 0.0
    %4628 = vmatpush2.msra.mxu0 0.0
    %4629 = vmatprep.subr.mxu0 0.0
    %4630 = vmatpush2.msra.mxu0 0.0
    %4631 = vmatprep.subr.mxu0 0.0
    %4632 = vmatpush2.msra.mxu0 0.0
    %4633 = vmatprep.subr.mxu0 0.0
    %4634 = vmatpush2.msra.mxu0 0.0
    %4635 = vmatprep.subr.mxu0 0.0
    %4636 = vmatpush2.msra.mxu0 0.0
    %4637 = vmatprep.subr.mxu0 0.0
    %4638 = vmatpush2.msra.mxu0 0.0
    %4639 = vmatprep.subr.mxu0 0.0
    %4640 = vmatpush2.msra.mxu0 0.0
    %4641 = vmatprep.subr.mxu0 0.0
    %4642 = vmatpush2.msra.mxu0 0.0
    %4643 = vmatprep.subr.mxu0 0.0
    %4644 = vmatpush2.msra.mxu0 0.0
    %4645 = vmatprep.mubr.f32.mxu0 0.0
    %4646 = vmatmul.mubr.f32.gmra.mxu0 %v4579
    %v4647 = vpop.f32.mrf.mxu0
    %v4648 = vadd.f32 0.0, %v4647
    %v4649 = vpop.f32.mrf.mxu0
    %v4650 = vadd.f32 0.0, %v4649
    %4651 = vdwg.mxu0
    %4652 = vmatprep.subr.mxu0 0.0
    %4653 = vmatpush1.msra.mxu0 0.0
    %4654 = vmatprep.subr.mxu0 0.0
    %4655 = vmatpush1.msra.mxu0 0.0
    %4656 = vmatprep.subr.mxu0 0.0
    %4657 = vmatpush1.msra.mxu0 0.0
    %4658 = vmatprep.subr.mxu0 0.0
    %4659 = vmatpush1.msra.mxu0 0.0
    %4660 = vmatprep.subr.mxu0 0.0
    %4661 = vmatpush1.msra.mxu0 0.0
    %4662 = vmatprep.subr.mxu0 0.0
    %4663 = vmatpush1.msra.mxu0 0.0
    %4664 = vmatprep.subr.mxu0 0.0
    %4665 = vmatpush1.msra.mxu0 0.0
    %4666 = vmatprep.subr.mxu0 0.0
    %4667 = vmatpush1.msra.mxu0 0.0
    %4668 = vmatprep.subr.mxu0 0.0
    %4669 = vmatpush1.msra.mxu0 0.0
    %4670 = vmatprep.subr.mxu0 0.0
    %4671 = vmatpush1.msra.mxu0 0.0
    %4672 = vmatprep.subr.mxu0 0.0
    %4673 = vmatpush1.msra.mxu0 0.0
    %4674 = vmatprep.subr.mxu0 0.0
    %4675 = vmatpush1.msra.mxu0 0.0
    %4676 = vmatprep.subr.mxu0 %v3895
    %4677 = vmatpush1.msra.mxu0 %v3894
    %4678 = vmatprep.subr.mxu0 %v3891
    %4679 = vmatpush1.msra.mxu0 %v3890
    %4680 = vmatprep.subr.mxu0 %v3887
    %4681 = vmatpush1.msra.mxu0 %v3886
    %4682 = vmatprep.subr.mxu0 %v3883
    %4683 = vmatpush1.msra.mxu0 %v3882
    %4684 = vmatprep.subr.mxu0 0.0
    %4685 = vmatpush2.msra.mxu0 0.0
    %4686 = vmatprep.subr.mxu0 0.0
    %4687 = vmatpush2.msra.mxu0 0.0
    %4688 = vmatprep.subr.mxu0 0.0
    %4689 = vmatpush2.msra.mxu0 0.0
    %4690 = vmatprep.subr.mxu0 0.0
    %4691 = vmatpush2.msra.mxu0 0.0
    %4692 = vmatprep.subr.mxu0 0.0
    %4693 = vmatpush2.msra.mxu0 0.0
    %4694 = vmatprep.subr.mxu0 0.0
    %4695 = vmatpush2.msra.mxu0 0.0
    %4696 = vmatprep.subr.mxu0 0.0
    %4697 = vmatpush2.msra.mxu0 0.0
    %4698 = vmatprep.subr.mxu0 0.0
    %4699 = vmatpush2.msra.mxu0 0.0
    %4700 = vmatprep.subr.mxu0 0.0
    %4701 = vmatpush2.msra.mxu0 0.0
    %4702 = vmatprep.subr.mxu0 0.0
    %4703 = vmatpush2.msra.mxu0 0.0
    %4704 = vmatprep.subr.mxu0 0.0
    %4705 = vmatpush2.msra.mxu0 0.0
    %4706 = vmatprep.subr.mxu0 0.0
    %4707 = vmatpush2.msra.mxu0 0.0
    %4708 = vmatprep.subr.mxu0 0.0
    %4709 = vmatpush2.msra.mxu0 0.0
    %4710 = vmatprep.subr.mxu0 0.0
    %4711 = vmatpush2.msra.mxu0 0.0
    %4712 = vmatprep.subr.mxu0 0.0
    %4713 = vmatpush2.msra.mxu0 0.0
    %4714 = vmatprep.subr.mxu0 0.0
    %4715 = vmatpush2.msra.mxu0 0.0
    %4716 = vmatprep.mubr.f32.mxu0 0.0
    %4717 = vmatmul.mubr.f32.gmra.mxu0 %v4579
    %v4718 = vpop.f32.mrf.mxu0
    %v4719 = vadd.f32 0.0, %v4718
    %v4720 = vpop.f32.mrf.mxu0
    %v4721 = vadd.f32 0.0, %v4720
    %4722 = vdwg.mxu0
    %v4723 = vmul.f32 %v4719, 1.442695
    %v4724 = vpow.pop %v4723
    %v4725 = vmul.f32 %v4721, 1.442695
    %v4726 = vpow.pop %v4725
    %v4727 = vmul.f32 %v4724, %v4576
    %v4728 = vmul.f32 %v4726, %v4577
    %v4729 = vadd.f32 %v4648, %v4727
    %v4730 = vadd.f32 %v4650, %v4728
    %v4731 = vmul.f32 %v4011, %v4729
    %v4732 = vmul.f32 %v4013, %v4730
    %4733 = vmatprep.subr.mxu0 0.0
    %4734 = vmatpush1.msra.mxu0 %v3919
    %4735 = vmatprep.subr.mxu0 0.0
    %4736 = vmatpush1.msra.mxu0 %v3918
    %4737 = vmatprep.subr.mxu0 0.0
    %4738 = vmatpush1.msra.mxu0 %v3917
    %4739 = vmatprep.subr.mxu0 0.0
    %4740 = vmatpush1.msra.mxu0 %v3916
    %4741 = vmatprep.subr.mxu0 0.0
    %4742 = vmatpush1.msra.mxu0 %v3915
    %4743 = vmatprep.subr.mxu0 0.0
    %4744 = vmatpush1.msra.mxu0 %v3914
    %4745 = vmatprep.subr.mxu0 0.0
    %4746 = vmatpush1.msra.mxu0 %v3913
    %4747 = vmatprep.subr.mxu0 0.0
    %4748 = vmatpush1.msra.mxu0 %v3912
    %4749 = vmatprep.subr.mxu0 0.0
    %4750 = vmatpush1.msra.mxu0 %v3911
    %4751 = vmatprep.subr.mxu0 0.0
    %4752 = vmatpush1.msra.mxu0 %v3910
    %4753 = vmatprep.subr.mxu0 0.0
    %4754 = vmatpush1.msra.mxu0 %v3909
    %4755 = vmatprep.subr.mxu0 0.0
    %4756 = vmatpush1.msra.mxu0 %v3908
    %4757 = vmatprep.subr.mxu0 0.0
    %4758 = vmatpush1.msra.mxu0 %v3907
    %4759 = vmatprep.subr.mxu0 0.0
    %4760 = vmatpush1.msra.mxu0 %v3906
    %4761 = vmatprep.subr.mxu0 0.0
    %4762 = vmatpush1.msra.mxu0 %v3905
    %4763 = vmatprep.subr.mxu0 0.0
    %4764 = vmatpush1.msra.mxu0 %v3904
    %4765 = vmatprep.subr.mxu0 0.0
    %4766 = vmatpush2.msra.mxu0 %v3935
    %4767 = vmatprep.subr.mxu0 0.0
    %4768 = vmatpush2.msra.mxu0 %v3934
    %4769 = vmatprep.subr.mxu0 0.0
    %4770 = vmatpush2.msra.mxu0 %v3933
    %4771 = vmatprep.subr.mxu0 0.0
    %4772 = vmatpush2.msra.mxu0 %v3932
    %4773 = vmatprep.subr.mxu0 0.0
    %4774 = vmatpush2.msra.mxu0 %v3931
    %4775 = vmatprep.subr.mxu0 0.0
    %4776 = vmatpush2.msra.mxu0 %v3930
    %4777 = vmatprep.subr.mxu0 0.0
    %4778 = vmatpush2.msra.mxu0 %v3929
    %4779 = vmatprep.subr.mxu0 0.0
    %4780 = vmatpush2.msra.mxu0 %v3928
    %4781 = vmatprep.subr.mxu0 0.0
    %4782 = vmatpush2.msra.mxu0 %v3927
    %4783 = vmatprep.subr.mxu0 0.0
    %4784 = vmatpush2.msra.mxu0 %v3926
    %4785 = vmatprep.subr.mxu0 0.0
    %4786 = vmatpush2.msra.mxu0 %v3925
    %4787 = vmatprep.subr.mxu0 0.0
    %4788 = vmatpush2.msra.mxu0 %v3924
    %4789 = vmatprep.subr.mxu0 0.0
    %4790 = vmatpush2.msra.mxu0 %v3923
    %4791 = vmatprep.subr.mxu0 0.0
    %4792 = vmatpush2.msra.mxu0 %v3922
    %4793 = vmatprep.subr.mxu0 0.0
    %4794 = vmatpush2.msra.mxu0 %v3921
    %4795 = vmatprep.subr.mxu0 0.0
    %4796 = vmatpush2.msra.mxu0 %v3920
    %4797 = vmatprep.mubr.f32.mxu0 %v4732
    %4798 = vmatmul.mubr.f32.gmra.mxu0 %v4731
    %v4799 = vpop.f32.mrf.mxu0
    %v4800 = vadd.f32 %v3942, %v4799
    %v4801 = vpop.f32.mrf.mxu0
    %4802 = vdwg.mxu0
    %v4803 = vsel %vm4242, %v4800, -inf
    %4804 = vmax.xlane.f32.xlu0 %v4803
    %v4805 = vpop.xlane.xlu0 %4804
    %v4806 = vsub.f32 %v4800, %v4805
    %v4807 = vmul.f32 %v4806, 1.442695
    %v4808 = vpow.pop %v4807
    %v4809 = vsel %vm4242, %v4808, 0.0
    %4810 = vadd.xlane.f32.xlu0 %v4809
    %v4811 = vpop.xlane.xlu0 %4810
    %v4812 = vrcp.pop %v4811
    %v4813 = vmul.f32 %v4808, %v4812
    %v4814 = vsub.f32 %v4813, %v3936
    %v4815 = vmul.f32 %v4814, 0.125
    %v4817 = vsel %vm4242, %v4815, 0
    %4819 = vmatprep.subr.mxu0 0.0
    %4820 = vmatpush1.xpose.msra.mxu0 %v4305
    %4821 = vmatprep.subr.mxu0 0.0
    %4822 = vmatpush1.xpose.msra.mxu0 %v4302
    %4823 = vmatprep.subr.mxu0 0.0
    %4824 = vmatpush1.xpose.msra.mxu0 %v4299
    %4825 = vmatprep.subr.mxu0 0.0
    %4826 = vmatpush1.xpose.msra.mxu0 %v4296
    %4827 = vmatprep.subr.mxu0 0.0
    %4828 = vmatpush1.xpose.msra.mxu0 %v4293
    %4829 = vmatprep.subr.mxu0 0.0
    %4830 = vmatpush1.xpose.msra.mxu0 %v4290
    %4831 = vmatprep.subr.mxu0 0.0
    %4832 = vmatpush1.xpose.msra.mxu0 %v4287
    %4833 = vmatprep.subr.mxu0 0.0
    %4834 = vmatpush1.xpose.msra.mxu0 %v4284
    %4835 = vmatprep.subr.mxu0 0.0
    %4836 = vmatpush1.xpose.msra.mxu0 %v4281
    %4837 = vmatprep.subr.mxu0 0.0
    %4838 = vmatpush1.xpose.msra.mxu0 %v4278
    %4839 = vmatprep.subr.mxu0 0.0
    %4840 = vmatpush1.xpose.msra.mxu0 %v4275
    %4841 = vmatprep.subr.mxu0 0.0
    %4842 = vmatpush1.xpose.msra.mxu0 %v4272
    %4843 = vmatprep.subr.mxu0 0.0
    %4844 = vmatpush1.xpose.msra.mxu0 %v4269
    %4845 = vmatprep.subr.mxu0 0.0
    %4846 = vmatpush1.xpose.msra.mxu0 %v4266
    %4847 = vmatprep.subr.mxu0 0.0
    %4848 = vmatpush1.xpose.msra.mxu0 %v4263
    %4849 = vmatprep.subr.mxu0 0.0
    %4850 = vmatpush1.xpose.msra.mxu0 %v4260
    %4851 = vmatprep.subr.mxu0 0.0
    %4852 = vmatpush2.xpose.msra.mxu0 %v4353
    %4853 = vmatprep.subr.mxu0 0.0
    %4854 = vmatpush2.xpose.msra.mxu0 %v4350
    %4855 = vmatprep.subr.mxu0 0.0
    %4856 = vmatpush2.xpose.msra.mxu0 %v4347
    %4857 = vmatprep.subr.mxu0 0.0
    %4858 = vmatpush2.xpose.msra.mxu0 %v4344
    %4859 = vmatprep.subr.mxu0 0.0
    %4860 = vmatpush2.xpose.msra.mxu0 %v4341
    %4861 = vmatprep.subr.mxu0 0.0
    %4862 = vmatpush2.xpose.msra.mxu0 %v4338
    %4863 = vmatprep.subr.mxu0 0.0
    %4864 = vmatpush2.xpose.msra.mxu0 %v4335
    %4865 = vmatprep.subr.mxu0 0.0
    %4866 = vmatpush2.xpose.msra.mxu0 %v4332
    %4867 = vmatprep.subr.mxu0 0.0
    %4868 = vmatpush2.xpose.msra.mxu0 %v4329
    %4869 = vmatprep.subr.mxu0 0.0
    %4870 = vmatpush2.xpose.msra.mxu0 %v4326
    %4871 = vmatprep.subr.mxu0 0.0
    %4872 = vmatpush2.xpose.msra.mxu0 %v4323
    %4873 = vmatprep.subr.mxu0 0.0
    %4874 = vmatpush2.xpose.msra.mxu0 %v4320
    %4875 = vmatprep.subr.mxu0 0.0
    %4876 = vmatpush2.xpose.msra.mxu0 %v4317
    %4877 = vmatprep.subr.mxu0 0.0
    %4878 = vmatpush2.xpose.msra.mxu0 %v4314
    %4879 = vmatprep.subr.mxu0 0.0
    %4880 = vmatpush2.xpose.msra.mxu0 %v4311
    %4881 = vmatprep.subr.mxu0 0.0
    %4882 = vmatpush2.xpose.msra.mxu0 %v4308
    %4883 = vmatprep.mubr.f32.mxu0 0.0
    %4884 = vmatmul.mubr.f32.gmra.mxu0 %v4817
    %v4885 = vpop.f32.mrf.mxu0
    %v4886 = vadd.f32 0.0, %v4885
    %v4887 = vpop.f32.mrf.mxu0
    %v4888 = vadd.f32 0.0, %v4887
    %4889 = vdwg.mxu0
    %v4890 = vmul.f32 %v4011, %v4886
    %v4891 = vmul.f32 %v4013, %v4888
    %v4892 = vmul.f32 %v4890, %v4724
    %v4893 = vmul.f32 %v4891, %v4726
    %v4894 = vmul.f32 %v4892, %v4576
    %v4895 = vmul.f32 %v4893, %v4577
    %4896 = vmatprep.subr.mxu0 0.0
    %4897 = vmatpush1.xpose.msra.mxu0 0.0
    %4898 = vmatprep.subr.mxu0 0.0
    %4899 = vmatpush1.xpose.msra.mxu0 0.0
    %4900 = vmatprep.subr.mxu0 0.0
    %4901 = vmatpush1.xpose.msra.mxu0 0.0
    %4902 = vmatprep.subr.mxu0 0.0
    %4903 = vmatpush1.xpose.msra.mxu0 0.0
    %4904 = vmatprep.subr.mxu0 0.0
    %4905 = vmatpush1.xpose.msra.mxu0 0.0
    %4906 = vmatprep.subr.mxu0 0.0
    %4907 = vmatpush1.xpose.msra.mxu0 0.0
    %4908 = vmatprep.subr.mxu0 0.0
    %4909 = vmatpush1.xpose.msra.mxu0 0.0
    %4910 = vmatprep.subr.mxu0 0.0
    %4911 = vmatpush1.xpose.msra.mxu0 0.0
    %4912 = vmatprep.subr.mxu0 0.0
    %4913 = vmatpush1.xpose.msra.mxu0 0.0
    %4914 = vmatprep.subr.mxu0 0.0
    %4915 = vmatpush1.xpose.msra.mxu0 0.0
    %4916 = vmatprep.subr.mxu0 0.0
    %4917 = vmatpush1.xpose.msra.mxu0 0.0
    %4918 = vmatprep.subr.mxu0 0.0
    %4919 = vmatpush1.xpose.msra.mxu0 0.0
    %4920 = vmatprep.subr.mxu0 %v3893
    %4921 = vmatpush1.xpose.msra.mxu0 %v3892
    %4922 = vmatprep.subr.mxu0 %v3889
    %4923 = vmatpush1.xpose.msra.mxu0 %v3888
    %4924 = vmatprep.subr.mxu0 %v3885
    %4925 = vmatpush1.xpose.msra.mxu0 %v3884
    %4926 = vmatprep.subr.mxu0 %v3881
    %4927 = vmatpush1.xpose.msra.mxu0 %v3880
    %4928 = vmatprep.subr.mxu0 0.0
    %4929 = vmatpush2.xpose.msra.mxu0 0.0
    %4930 = vmatprep.subr.mxu0 0.0
    %4931 = vmatpush2.xpose.msra.mxu0 0.0
    %4932 = vmatprep.subr.mxu0 0.0
    %4933 = vmatpush2.xpose.msra.mxu0 0.0
    %4934 = vmatprep.subr.mxu0 0.0
    %4935 = vmatpush2.xpose.msra.mxu0 0.0
    %4936 = vmatprep.subr.mxu0 0.0
    %4937 = vmatpush2.xpose.msra.mxu0 0.0
    %4938 = vmatprep.subr.mxu0 0.0
    %4939 = vmatpush2.xpose.msra.mxu0 0.0
    %4940 = vmatprep.subr.mxu0 0.0
    %4941 = vmatpush2.xpose.msra.mxu0 0.0
    %4942 = vmatprep.subr.mxu0 0.0
    %4943 = vmatpush2.xpose.msra.mxu0 0.0
    %4944 = vmatprep.subr.mxu0 0.0
    %4945 = vmatpush2.xpose.msra.mxu0 0.0
    %4946 = vmatprep.subr.mxu0 0.0
    %4947 = vmatpush2.xpose.msra.mxu0 0.0
    %4948 = vmatprep.subr.mxu0 0.0
    %4949 = vmatpush2.xpose.msra.mxu0 0.0
    %4950 = vmatprep.subr.mxu0 0.0
    %4951 = vmatpush2.xpose.msra.mxu0 0.0
    %4952 = vmatprep.subr.mxu0 0.0
    %4953 = vmatpush2.xpose.msra.mxu0 0.0
    %4954 = vmatprep.subr.mxu0 0.0
    %4955 = vmatpush2.xpose.msra.mxu0 0.0
    %4956 = vmatprep.subr.mxu0 0.0
    %4957 = vmatpush2.xpose.msra.mxu0 0.0
    %4958 = vmatprep.subr.mxu0 0.0
    %4959 = vmatpush2.xpose.msra.mxu0 0.0
    %4960 = vmatprep.mubr.f32.mxu0 %v4891
    %4961 = vmatmul.mubr.f32.gmra.mxu0 %v4890
    %v4962 = vpop.f32.mrf.mxu0
    %v4963 = vadd.f32 0.0, %v4962
    %v4964 = vpop.f32.mrf.mxu0
    %4965 = vdwg.mxu0
    %4966 = vmatprep.subr.mxu0 0.0
    %4967 = vmatpush1.xpose.msra.mxu0 0.0
    %4968 = vmatprep.subr.mxu0 0.0
    %4969 = vmatpush1.xpose.msra.mxu0 0.0
    %4970 = vmatprep.subr.mxu0 0.0
    %4971 = vmatpush1.xpose.msra.mxu0 0.0
    %4972 = vmatprep.subr.mxu0 0.0
    %4973 = vmatpush1.xpose.msra.mxu0 0.0
    %4974 = vmatprep.subr.mxu0 0.0
    %4975 = vmatpush1.xpose.msra.mxu0 0.0
    %4976 = vmatprep.subr.mxu0 0.0
    %4977 = vmatpush1.xpose.msra.mxu0 0.0
    %4978 = vmatprep.subr.mxu0 0.0
    %4979 = vmatpush1.xpose.msra.mxu0 0.0
    %4980 = vmatprep.subr.mxu0 0.0
    %4981 = vmatpush1.xpose.msra.mxu0 0.0
    %4982 = vmatprep.subr.mxu0 0.0
    %4983 = vmatpush1.xpose.msra.mxu0 0.0
    %4984 = vmatprep.subr.mxu0 0.0
    %4985 = vmatpush1.xpose.msra.mxu0 0.0
    %4986 = vmatprep.subr.mxu0 0.0
    %4987 = vmatpush1.xpose.msra.mxu0 0.0
    %4988 = vmatprep.subr.mxu0 0.0
    %4989 = vmatpush1.xpose.msra.mxu0 0.0
    %4990 = vmatprep.subr.mxu0 %v3895
    %4991 = vmatpush1.xpose.msra.mxu0 %v3894
    %4992 = vmatprep.subr.mxu0 %v3891
    %4993 = vmatpush1.xpose.msra.mxu0 %v3890
    %4994 = vmatprep.subr.mxu0 %v3887
    %4995 = vmatpush1.xpose.msra.mxu0 %v3886
    %4996 = vmatprep.subr.mxu0 %v3883
    %4997 = vmatpush1.xpose.msra.mxu0 %v3882
    %4998 = vmatprep.subr.mxu0 0.0
    %4999 = vmatpush2.xpose.msra.mxu0 0.0
    %5000 = vmatprep.subr.mxu0 0.0
    %5001 = vmatpush2.xpose.msra.mxu0 0.0
    %5002 = vmatprep.subr.mxu0 0.0
    %5003 = vmatpush2.xpose.msra.mxu0 0.0
    %5004 = vmatprep.subr.mxu0 0.0
    %5005 = vmatpush2.xpose.msra.mxu0 0.0
    %5006 = vmatprep.subr.mxu0 0.0
    %5007 = vmatpush2.xpose.msra.mxu0 0.0
    %5008 = vmatprep.subr.mxu0 0.0
    %5009 = vmatpush2.xpose.msra.mxu0 0.0
    %5010 = vmatprep.subr.mxu0 0.0
    %5011 = vmatpush2.xpose.msra.mxu0 0.0
    %5012 = vmatprep.subr.mxu0 0.0
    %5013 = vmatpush2.xpose.msra.mxu0 0.0
    %5014 = vmatprep.subr.mxu0 0.0
    %5015 = vmatpush2.xpose.msra.mxu0 0.0
    %5016 = vmatprep.subr.mxu0 0.0
    %5017 = vmatpush2.xpose.msra.mxu0 0.0
    %5018 = vmatprep.subr.mxu0 0.0
    %5019 = vmatpush2.xpose.msra.mxu0 0.0
    %5020 = vmatprep.subr.mxu0 0.0
    %5021 = vmatpush2.xpose.msra.mxu0 0.0
    %5022 = vmatprep.subr.mxu0 0.0
    %5023 = vmatpush2.xpose.msra.mxu0 0.0
    %5024 = vmatprep.subr.mxu0 0.0
    %5025 = vmatpush2.xpose.msra.mxu0 0.0
    %5026 = vmatprep.subr.mxu0 0.0
    %5027 = vmatpush2.xpose.msra.mxu0 0.0
    %5028 = vmatprep.subr.mxu0 0.0
    %5029 = vmatpush2.xpose.msra.mxu0 0.0
    %5030 = vmatprep.mubr.f32.mxu0 %v4895
    %5031 = vmatmul.mubr.f32.gmra.mxu0 %v4894
    %v5032 = vpop.f32.mrf.mxu0
    %v5033 = vadd.f32 %v4963, %v5032
    %v5034 = vpop.f32.mrf.mxu0
    %5035 = vdwg.mxu0
    %v5036 = vmul.f32 %v4572, %v5033
    %v5037 = vsub.f32 %v4574, %v5036
    %s5038 = scalar_lea.vmem %s47, 32
    %v5039 = vld [vmem:[%s5038] sm:$0xff]
    %v5040 = vld [vmem:[%s5038 + $0x8] sm:$0xff]
    %v5042 = vsel %vm384, %v5037, 0
    %5044 = vmatprep.subr.mxu0 0.0
    %5045 = vmatpush1.msra.mxu0 0.0
    %5046 = vmatprep.subr.mxu0 0.0
    %5047 = vmatpush1.msra.mxu0 0.0
    %5048 = vmatprep.subr.mxu0 0.0
    %5049 = vmatpush1.msra.mxu0 0.0
    %5050 = vmatprep.subr.mxu0 0.0
    %5051 = vmatpush1.msra.mxu0 0.0
    %5052 = vmatprep.subr.mxu0 0.0
    %5053 = vmatpush1.msra.mxu0 0.0
    %5054 = vmatprep.subr.mxu0 0.0
    %5055 = vmatpush1.msra.mxu0 0.0
    %5056 = vmatprep.subr.mxu0 0.0
    %5057 = vmatpush1.msra.mxu0 0.0
    %5058 = vmatprep.subr.mxu0 0.0
    %5059 = vmatpush1.msra.mxu0 0.0
    %5060 = vmatprep.subr.mxu0 0.0
    %5061 = vmatpush1.msra.mxu0 0.0
    %5062 = vmatprep.subr.mxu0 0.0
    %5063 = vmatpush1.msra.mxu0 0.0
    %5064 = vmatprep.subr.mxu0 0.0
    %5065 = vmatpush1.msra.mxu0 0.0
    %5066 = vmatprep.subr.mxu0 0.0
    %5067 = vmatpush1.msra.mxu0 0.0
    %5068 = vmatprep.subr.mxu0 %v3893
    %5069 = vmatpush1.msra.mxu0 %v3892
    %5070 = vmatprep.subr.mxu0 %v3889
    %5071 = vmatpush1.msra.mxu0 %v3888
    %5072 = vmatprep.subr.mxu0 %v3885
    %5073 = vmatpush1.msra.mxu0 %v3884
    %5074 = vmatprep.subr.mxu0 %v3881
    %5075 = vmatpush1.msra.mxu0 %v3880
    %5076 = vmatprep.subr.mxu0 0.0
    %5077 = vmatpush2.msra.mxu0 0.0
    %5078 = vmatprep.subr.mxu0 0.0
    %5079 = vmatpush2.msra.mxu0 0.0
    %5080 = vmatprep.subr.mxu0 0.0
    %5081 = vmatpush2.msra.mxu0 0.0
    %5082 = vmatprep.subr.mxu0 0.0
    %5083 = vmatpush2.msra.mxu0 0.0
    %5084 = vmatprep.subr.mxu0 0.0
    %5085 = vmatpush2.msra.mxu0 0.0
    %5086 = vmatprep.subr.mxu0 0.0
    %5087 = vmatpush2.msra.mxu0 0.0
    %5088 = vmatprep.subr.mxu0 0.0
    %5089 = vmatpush2.msra.mxu0 0.0
    %5090 = vmatprep.subr.mxu0 0.0
    %5091 = vmatpush2.msra.mxu0 0.0
    %5092 = vmatprep.subr.mxu0 0.0
    %5093 = vmatpush2.msra.mxu0 0.0
    %5094 = vmatprep.subr.mxu0 0.0
    %5095 = vmatpush2.msra.mxu0 0.0
    %5096 = vmatprep.subr.mxu0 0.0
    %5097 = vmatpush2.msra.mxu0 0.0
    %5098 = vmatprep.subr.mxu0 0.0
    %5099 = vmatpush2.msra.mxu0 0.0
    %5100 = vmatprep.subr.mxu0 0.0
    %5101 = vmatpush2.msra.mxu0 0.0
    %5102 = vmatprep.subr.mxu0 0.0
    %5103 = vmatpush2.msra.mxu0 0.0
    %5104 = vmatprep.subr.mxu0 0.0
    %5105 = vmatpush2.msra.mxu0 0.0
    %5106 = vmatprep.subr.mxu0 0.0
    %5107 = vmatpush2.msra.mxu0 0.0
    %5108 = vmatprep.mubr.f32.mxu0 0.0
    %5109 = vmatmul.mubr.f32.gmra.mxu0 %v5042
    %v5110 = vpop.f32.mrf.mxu0
    %v5111 = vadd.f32 0.0, %v5110
    %v5112 = vpop.f32.mrf.mxu0
    %v5113 = vadd.f32 0.0, %v5112
    %5114 = vdwg.mxu0
    %5115 = vmatprep.subr.mxu0 0.0
    %5116 = vmatpush1.msra.mxu0 0.0
    %5117 = vmatprep.subr.mxu0 0.0
    %5118 = vmatpush1.msra.mxu0 0.0
    %5119 = vmatprep.subr.mxu0 0.0
    %5120 = vmatpush1.msra.mxu0 0.0
    %5121 = vmatprep.subr.mxu0 0.0
    %5122 = vmatpush1.msra.mxu0 0.0
    %5123 = vmatprep.subr.mxu0 0.0
    %5124 = vmatpush1.msra.mxu0 0.0
    %5125 = vmatprep.subr.mxu0 0.0
    %5126 = vmatpush1.msra.mxu0 0.0
    %5127 = vmatprep.subr.mxu0 0.0
    %5128 = vmatpush1.msra.mxu0 0.0
    %5129 = vmatprep.subr.mxu0 0.0
    %5130 = vmatpush1.msra.mxu0 0.0
    %5131 = vmatprep.subr.mxu0 0.0
    %5132 = vmatpush1.msra.mxu0 0.0
    %5133 = vmatprep.subr.mxu0 0.0
    %5134 = vmatpush1.msra.mxu0 0.0
    %5135 = vmatprep.subr.mxu0 0.0
    %5136 = vmatpush1.msra.mxu0 0.0
    %5137 = vmatprep.subr.mxu0 0.0
    %5138 = vmatpush1.msra.mxu0 0.0
    %5139 = vmatprep.subr.mxu0 %v3895
    %5140 = vmatpush1.msra.mxu0 %v3894
    %5141 = vmatprep.subr.mxu0 %v3891
    %5142 = vmatpush1.msra.mxu0 %v3890
    %5143 = vmatprep.subr.mxu0 %v3887
    %5144 = vmatpush1.msra.mxu0 %v3886
    %5145 = vmatprep.subr.mxu0 %v3883
    %5146 = vmatpush1.msra.mxu0 %v3882
    %5147 = vmatprep.subr.mxu0 0.0
    %5148 = vmatpush2.msra.mxu0 0.0
    %5149 = vmatprep.subr.mxu0 0.0
    %5150 = vmatpush2.msra.mxu0 0.0
    %5151 = vmatprep.subr.mxu0 0.0
    %5152 = vmatpush2.msra.mxu0 0.0
    %5153 = vmatprep.subr.mxu0 0.0
    %5154 = vmatpush2.msra.mxu0 0.0
    %5155 = vmatprep.subr.mxu0 0.0
    %5156 = vmatpush2.msra.mxu0 0.0
    %5157 = vmatprep.subr.mxu0 0.0
    %5158 = vmatpush2.msra.mxu0 0.0
    %5159 = vmatprep.subr.mxu0 0.0
    %5160 = vmatpush2.msra.mxu0 0.0
    %5161 = vmatprep.subr.mxu0 0.0
    %5162 = vmatpush2.msra.mxu0 0.0
    %5163 = vmatprep.subr.mxu0 0.0
    %5164 = vmatpush2.msra.mxu0 0.0
    %5165 = vmatprep.subr.mxu0 0.0
    %5166 = vmatpush2.msra.mxu0 0.0
    %5167 = vmatprep.subr.mxu0 0.0
    %5168 = vmatpush2.msra.mxu0 0.0
    %5169 = vmatprep.subr.mxu0 0.0
    %5170 = vmatpush2.msra.mxu0 0.0
    %5171 = vmatprep.subr.mxu0 0.0
    %5172 = vmatpush2.msra.mxu0 0.0
    %5173 = vmatprep.subr.mxu0 0.0
    %5174 = vmatpush2.msra.mxu0 0.0
    %5175 = vmatprep.subr.mxu0 0.0
    %5176 = vmatpush2.msra.mxu0 0.0
    %5177 = vmatprep.subr.mxu0 0.0
    %5178 = vmatpush2.msra.mxu0 0.0
    %5179 = vmatprep.mubr.f32.mxu0 0.0
    %5180 = vmatmul.mubr.f32.gmra.mxu0 %v5042
    %v5181 = vpop.f32.mrf.mxu0
    %v5182 = vadd.f32 0.0, %v5181
    %v5183 = vpop.f32.mrf.mxu0
    %v5184 = vadd.f32 0.0, %v5183
    %5185 = vdwg.mxu0
    %v5186 = vmul.f32 %v5182, 1.442695
    %v5187 = vpow.pop %v5186
    %v5188 = vmul.f32 %v5184, 1.442695
    %v5189 = vpow.pop %v5188
    %v5190 = vmul.f32 %v5187, %v5039
    %v5191 = vmul.f32 %v5189, %v5040
    %v5192 = vadd.f32 %v5111, %v5190
    %v5193 = vadd.f32 %v5113, %v5191
    %v5194 = vmul.f32 %v4011, %v5192
    %v5195 = vmul.f32 %v4013, %v5193
    %5196 = vmatprep.subr.mxu0 0.0
    %5197 = vmatpush1.msra.mxu0 %v3919
    %5198 = vmatprep.subr.mxu0 0.0
    %5199 = vmatpush1.msra.mxu0 %v3918
    %5200 = vmatprep.subr.mxu0 0.0
    %5201 = vmatpush1.msra.mxu0 %v3917
    %5202 = vmatprep.subr.mxu0 0.0
    %5203 = vmatpush1.msra.mxu0 %v3916
    %5204 = vmatprep.subr.mxu0 0.0
    %5205 = vmatpush1.msra.mxu0 %v3915
    %5206 = vmatprep.subr.mxu0 0.0
    %5207 = vmatpush1.msra.mxu0 %v3914
    %5208 = vmatprep.subr.mxu0 0.0
    %5209 = vmatpush1.msra.mxu0 %v3913
    %5210 = vmatprep.subr.mxu0 0.0
    %5211 = vmatpush1.msra.mxu0 %v3912
    %5212 = vmatprep.subr.mxu0 0.0
    %5213 = vmatpush1.msra.mxu0 %v3911
    %5214 = vmatprep.subr.mxu0 0.0
    %5215 = vmatpush1.msra.mxu0 %v3910
    %5216 = vmatprep.subr.mxu0 0.0
    %5217 = vmatpush1.msra.mxu0 %v3909
    %5218 = vmatprep.subr.mxu0 0.0
    %5219 = vmatpush1.msra.mxu0 %v3908
    %5220 = vmatprep.subr.mxu0 0.0
    %5221 = vmatpush1.msra.mxu0 %v3907
    %5222 = vmatprep.subr.mxu0 0.0
    %5223 = vmatpush1.msra.mxu0 %v3906
    %5224 = vmatprep.subr.mxu0 0.0
    %5225 = vmatpush1.msra.mxu0 %v3905
    %5226 = vmatprep.subr.mxu0 0.0
    %5227 = vmatpush1.msra.mxu0 %v3904
    %5228 = vmatprep.subr.mxu0 0.0
    %5229 = vmatpush2.msra.mxu0 %v3935
    %5230 = vmatprep.subr.mxu0 0.0
    %5231 = vmatpush2.msra.mxu0 %v3934
    %5232 = vmatprep.subr.mxu0 0.0
    %5233 = vmatpush2.msra.mxu0 %v3933
    %5234 = vmatprep.subr.mxu0 0.0
    %5235 = vmatpush2.msra.mxu0 %v3932
    %5236 = vmatprep.subr.mxu0 0.0
    %5237 = vmatpush2.msra.mxu0 %v3931
    %5238 = vmatprep.subr.mxu0 0.0
    %5239 = vmatpush2.msra.mxu0 %v3930
    %5240 = vmatprep.subr.mxu0 0.0
    %5241 = vmatpush2.msra.mxu0 %v3929
    %5242 = vmatprep.subr.mxu0 0.0
    %5243 = vmatpush2.msra.mxu0 %v3928
    %5244 = vmatprep.subr.mxu0 0.0
    %5245 = vmatpush2.msra.mxu0 %v3927
    %5246 = vmatprep.subr.mxu0 0.0
    %5247 = vmatpush2.msra.mxu0 %v3926
    %5248 = vmatprep.subr.mxu0 0.0
    %5249 = vmatpush2.msra.mxu0 %v3925
    %5250 = vmatprep.subr.mxu0 0.0
    %5251 = vmatpush2.msra.mxu0 %v3924
    %5252 = vmatprep.subr.mxu0 0.0
    %5253 = vmatpush2.msra.mxu0 %v3923
    %5254 = vmatprep.subr.mxu0 0.0
    %5255 = vmatpush2.msra.mxu0 %v3922
    %5256 = vmatprep.subr.mxu0 0.0
    %5257 = vmatpush2.msra.mxu0 %v3921
    %5258 = vmatprep.subr.mxu0 0.0
    %5259 = vmatpush2.msra.mxu0 %v3920
    %5260 = vmatprep.mubr.f32.mxu0 %v5195
    %5261 = vmatmul.mubr.f32.gmra.mxu0 %v5194
    %v5262 = vpop.f32.mrf.mxu0
    %v5263 = vadd.f32 %v3942, %v5262
    %v5264 = vpop.f32.mrf.mxu0
    %5265 = vdwg.mxu0
    %v5266 = vsel %vm4242, %v5263, -inf
    %5267 = vmax.xlane.f32.xlu0 %v5266
    %v5268 = vpop.xlane.xlu0 %5267
    %v5269 = vsub.f32 %v5263, %v5268
    %v5270 = vmul.f32 %v5269, 1.442695
    %v5271 = vpow.pop %v5270
    %v5272 = vsel %vm4242, %v5271, 0.0
    %5273 = vadd.xlane.f32.xlu0 %v5272
    %v5274 = vpop.xlane.xlu0 %5273
    %v5275 = vrcp.pop %v5274
    %v5276 = vmul.f32 %v5271, %v5275
    %v5277 = vsub.f32 %v5276, %v3936
    %v5278 = vmul.f32 %v5277, 0.125
    %v5280 = vsel %vm4242, %v5278, 0
    %5282 = vmatprep.subr.mxu0 0.0
    %5283 = vmatpush1.xpose.msra.mxu0 %v4305
    %5284 = vmatprep.subr.mxu0 0.0
    %5285 = vmatpush1.xpose.msra.mxu0 %v4302
    %5286 = vmatprep.subr.mxu0 0.0
    %5287 = vmatpush1.xpose.msra.mxu0 %v4299
    %5288 = vmatprep.subr.mxu0 0.0
    %5289 = vmatpush1.xpose.msra.mxu0 %v4296
    %5290 = vmatprep.subr.mxu0 0.0
    %5291 = vmatpush1.xpose.msra.mxu0 %v4293
    %5292 = vmatprep.subr.mxu0 0.0
    %5293 = vmatpush1.xpose.msra.mxu0 %v4290
    %5294 = vmatprep.subr.mxu0 0.0
    %5295 = vmatpush1.xpose.msra.mxu0 %v4287
    %5296 = vmatprep.subr.mxu0 0.0
    %5297 = vmatpush1.xpose.msra.mxu0 %v4284
    %5298 = vmatprep.subr.mxu0 0.0
    %5299 = vmatpush1.xpose.msra.mxu0 %v4281
    %5300 = vmatprep.subr.mxu0 0.0
    %5301 = vmatpush1.xpose.msra.mxu0 %v4278
    %5302 = vmatprep.subr.mxu0 0.0
    %5303 = vmatpush1.xpose.msra.mxu0 %v4275
    %5304 = vmatprep.subr.mxu0 0.0
    %5305 = vmatpush1.xpose.msra.mxu0 %v4272
    %5306 = vmatprep.subr.mxu0 0.0
    %5307 = vmatpush1.xpose.msra.mxu0 %v4269
    %5308 = vmatprep.subr.mxu0 0.0
    %5309 = vmatpush1.xpose.msra.mxu0 %v4266
    %5310 = vmatprep.subr.mxu0 0.0
    %5311 = vmatpush1.xpose.msra.mxu0 %v4263
    %5312 = vmatprep.subr.mxu0 0.0
    %5313 = vmatpush1.xpose.msra.mxu0 %v4260
    %5314 = vmatprep.subr.mxu0 0.0
    %5315 = vmatpush2.xpose.msra.mxu0 %v4353
    %5316 = vmatprep.subr.mxu0 0.0
    %5317 = vmatpush2.xpose.msra.mxu0 %v4350
    %5318 = vmatprep.subr.mxu0 0.0
    %5319 = vmatpush2.xpose.msra.mxu0 %v4347
    %5320 = vmatprep.subr.mxu0 0.0
    %5321 = vmatpush2.xpose.msra.mxu0 %v4344
    %5322 = vmatprep.subr.mxu0 0.0
    %5323 = vmatpush2.xpose.msra.mxu0 %v4341
    %5324 = vmatprep.subr.mxu0 0.0
    %5325 = vmatpush2.xpose.msra.mxu0 %v4338
    %5326 = vmatprep.subr.mxu0 0.0
    %5327 = vmatpush2.xpose.msra.mxu0 %v4335
    %5328 = vmatprep.subr.mxu0 0.0
    %5329 = vmatpush2.xpose.msra.mxu0 %v4332
    %5330 = vmatprep.subr.mxu0 0.0
    %5331 = vmatpush2.xpose.msra.mxu0 %v4329
    %5332 = vmatprep.subr.mxu0 0.0
    %5333 = vmatpush2.xpose.msra.mxu0 %v4326
    %5334 = vmatprep.subr.mxu0 0.0
    %5335 = vmatpush2.xpose.msra.mxu0 %v4323
    %5336 = vmatprep.subr.mxu0 0.0
    %5337 = vmatpush2.xpose.msra.mxu0 %v4320
    %5338 = vmatprep.subr.mxu0 0.0
    %5339 = vmatpush2.xpose.msra.mxu0 %v4317
    %5340 = vmatprep.subr.mxu0 0.0
    %5341 = vmatpush2.xpose.msra.mxu0 %v4314
    %5342 = vmatprep.subr.mxu0 0.0
    %5343 = vmatpush2.xpose.msra.mxu0 %v4311
    %5344 = vmatprep.subr.mxu0 0.0
    %5345 = vmatpush2.xpose.msra.mxu0 %v4308
    %5346 = vmatprep.mubr.f32.mxu0 0.0
    %5347 = vmatmul.mubr.f32.gmra.mxu0 %v5280
    %v5348 = vpop.f32.mrf.mxu0
    %v5349 = vadd.f32 0.0, %v5348
    %v5350 = vpop.f32.mrf.mxu0
    %v5351 = vadd.f32 0.0, %v5350
    %5352 = vdwg.mxu0
    %v5353 = vmul.f32 %v4011, %v5349
    %v5354 = vmul.f32 %v4013, %v5351
    %v5355 = vmul.f32 %v5353, %v5187
    %v5356 = vmul.f32 %v5354, %v5189
    %v5357 = vmul.f32 %v5355, %v5039
    %v5358 = vmul.f32 %v5356, %v5040
    %5359 = vmatprep.subr.mxu0 0.0
    %5360 = vmatpush1.xpose.msra.mxu0 0.0
    %5361 = vmatprep.subr.mxu0 0.0
    %5362 = vmatpush1.xpose.msra.mxu0 0.0
    %5363 = vmatprep.subr.mxu0 0.0
    %5364 = vmatpush1.xpose.msra.mxu0 0.0
    %5365 = vmatprep.subr.mxu0 0.0
    %5366 = vmatpush1.xpose.msra.mxu0 0.0
    %5367 = vmatprep.subr.mxu0 0.0
    %5368 = vmatpush1.xpose.msra.mxu0 0.0
    %5369 = vmatprep.subr.mxu0 0.0
    %5370 = vmatpush1.xpose.msra.mxu0 0.0
    %5371 = vmatprep.subr.mxu0 0.0
    %5372 = vmatpush1.xpose.msra.mxu0 0.0
    %5373 = vmatprep.subr.mxu0 0.0
    %5374 = vmatpush1.xpose.msra.mxu0 0.0
    %5375 = vmatprep.subr.mxu0 0.0
    %5376 = vmatpush1.xpose.msra.mxu0 0.0
    %5377 = vmatprep.subr.mxu0 0.0
    %5378 = vmatpush1.xpose.msra.mxu0 0.0
    %5379 = vmatprep.subr.mxu0 0.0
    %5380 = vmatpush1.xpose.msra.mxu0 0.0
    %5381 = vmatprep.subr.mxu0 0.0
    %5382 = vmatpush1.xpose.msra.mxu0 0.0
    %5383 = vmatprep.subr.mxu0 %v3893
    %5384 = vmatpush1.xpose.msra.mxu0 %v3892
    %5385 = vmatprep.subr.mxu0 %v3889
    %5386 = vmatpush1.xpose.msra.mxu0 %v3888
    %5387 = vmatprep.subr.mxu0 %v3885
    %5388 = vmatpush1.xpose.msra.mxu0 %v3884
    %5389 = vmatprep.subr.mxu0 %v3881
    %5390 = vmatpush1.xpose.msra.mxu0 %v3880
    %5391 = vmatprep.subr.mxu0 0.0
    %5392 = vmatpush2.xpose.msra.mxu0 0.0
    %5393 = vmatprep.subr.mxu0 0.0
    %5394 = vmatpush2.xpose.msra.mxu0 0.0
    %5395 = vmatprep.subr.mxu0 0.0
    %5396 = vmatpush2.xpose.msra.mxu0 0.0
    %5397 = vmatprep.subr.mxu0 0.0
    %5398 = vmatpush2.xpose.msra.mxu0 0.0
    %5399 = vmatprep.subr.mxu0 0.0
    %5400 = vmatpush2.xpose.msra.mxu0 0.0
    %5401 = vmatprep.subr.mxu0 0.0
    %5402 = vmatpush2.xpose.msra.mxu0 0.0
    %5403 = vmatprep.subr.mxu0 0.0
    %5404 = vmatpush2.xpose.msra.mxu0 0.0
    %5405 = vmatprep.subr.mxu0 0.0
    %5406 = vmatpush2.xpose.msra.mxu0 0.0
    %5407 = vmatprep.subr.mxu0 0.0
    %5408 = vmatpush2.xpose.msra.mxu0 0.0
    %5409 = vmatprep.subr.mxu0 0.0
    %5410 = vmatpush2.xpose.msra.mxu0 0.0
    %5411 = vmatprep.subr.mxu0 0.0
    %5412 = vmatpush2.xpose.msra.mxu0 0.0
    %5413 = vmatprep.subr.mxu0 0.0
    %5414 = vmatpush2.xpose.msra.mxu0 0.0
    %5415 = vmatprep.subr.mxu0 0.0
    %5416 = vmatpush2.xpose.msra.mxu0 0.0
    %5417 = vmatprep.subr.mxu0 0.0
    %5418 = vmatpush2.xpose.msra.mxu0 0.0
    %5419 = vmatprep.subr.mxu0 0.0
    %5420 = vmatpush2.xpose.msra.mxu0 0.0
    %5421 = vmatprep.subr.mxu0 0.0
    %5422 = vmatpush2.xpose.msra.mxu0 0.0
    %5423 = vmatprep.mubr.f32.mxu0 %v5354
    %5424 = vmatmul.mubr.f32.gmra.mxu0 %v5353
    %v5425 = vpop.f32.mrf.mxu0
    %v5426 = vadd.f32 0.0, %v5425
    %v5427 = vpop.f32.mrf.mxu0
    %5428 = vdwg.mxu0
    %5429 = vmatprep.subr.mxu0 0.0
    %5430 = vmatpush1.xpose.msra.mxu0 0.0
    %5431 = vmatprep.subr.mxu0 0.0
    %5432 = vmatpush1.xpose.msra.mxu0 0.0
    %5433 = vmatprep.subr.mxu0 0.0
    %5434 = vmatpush1.xpose.msra.mxu0 0.0
    %5435 = vmatprep.subr.mxu0 0.0
    %5436 = vmatpush1.xpose.msra.mxu0 0.0
    %5437 = vmatprep.subr.mxu0 0.0
    %5438 = vmatpush1.xpose.msra.mxu0 0.0
    %5439 = vmatprep.subr.mxu0 0.0
    %5440 = vmatpush1.xpose.msra.mxu0 0.0
    %5441 = vmatprep.subr.mxu0 0.0
    %5442 = vmatpush1.xpose.msra.mxu0 0.0
    %5443 = vmatprep.subr.mxu0 0.0
    %5444 = vmatpush1.xpose.msra.mxu0 0.0
    %5445 = vmatprep.subr.mxu0 0.0
    %5446 = vmatpush1.xpose.msra.mxu0 0.0
    %5447 = vmatprep.subr.mxu0 0.0
    %5448 = vmatpush1.xpose.msra.mxu0 0.0
    %5449 = vmatprep.subr.mxu0 0.0
    %5450 = vmatpush1.xpose.msra.mxu0 0.0
    %5451 = vmatprep.subr.mxu0 0.0
    %5452 = vmatpush1.xpose.msra.mxu0 0.0
    %5453 = vmatprep.subr.mxu0 %v3895
    %5454 = vmatpush1.xpose.msra.mxu0 %v3894
    %5455 = vmatprep.subr.mxu0 %v3891
    %5456 = vmatpush1.xpose.msra.mxu0 %v3890
    %5457 = vmatprep.subr.mxu0 %v3887
    %5458 = vmatpush1.xpose.msra.mxu0 %v3886
    %5459 = vmatprep.subr.mxu0 %v3883
    %5460 = vmatpush1.xpose.msra.mxu0 %v3882
    %5461 = vmatprep.subr.mxu0 0.0
    %5462 = vmatpush2.xpose.msra.mxu0 0.0
    %5463 = vmatprep.subr.mxu0 0.0
    %5464 = vmatpush2.xpose.msra.mxu0 0.0
    %5465 = vmatprep.subr.mxu0 0.0
    %5466 = vmatpush2.xpose.msra.mxu0 0.0
    %5467 = vmatprep.subr.mxu0 0.0
    %5468 = vmatpush2.xpose.msra.mxu0 0.0
    %5469 = vmatprep.subr.mxu0 0.0
    %5470 = vmatpush2.xpose.msra.mxu0 0.0
    %5471 = vmatprep.subr.mxu0 0.0
    %5472 = vmatpush2.xpose.msra.mxu0 0.0
    %5473 = vmatprep.subr.mxu0 0.0
    %5474 = vmatpush2.xpose.msra.mxu0 0.0
    %5475 = vmatprep.subr.mxu0 0.0
    %5476 = vmatpush2.xpose.msra.mxu0 0.0
    %5477 = vmatprep.subr.mxu0 0.0
    %5478 = vmatpush2.xpose.msra.mxu0 0.0
    %5479 = vmatprep.subr.mxu0 0.0
    %5480 = vmatpush2.xpose.msra.mxu0 0.0
    %5481 = vmatprep.subr.mxu0 0.0
    %5482 = vmatpush2.xpose.msra.mxu0 0.0
    %5483 = vmatprep.subr.mxu0 0.0
    %5484 = vmatpush2.xpose.msra.mxu0 0.0
    %5485 = vmatprep.subr.mxu0 0.0
    %5486 = vmatpush2.xpose.msra.mxu0 0.0
    %5487 = vmatprep.subr.mxu0 0.0
    %5488 = vmatpush2.xpose.msra.mxu0 0.0
    %5489 = vmatprep.subr.mxu0 0.0
    %5490 = vmatpush2.xpose.msra.mxu0 0.0
    %5491 = vmatprep.subr.mxu0 0.0
    %5492 = vmatpush2.xpose.msra.mxu0 0.0
    %5493 = vmatprep.mubr.f32.mxu0 %v5358
    %5494 = vmatmul.mubr.f32.gmra.mxu0 %v5357
    %v5495 = vpop.f32.mrf.mxu0
    %v5496 = vadd.f32 %v5426, %v5495
    %v5497 = vpop.f32.mrf.mxu0
    %5498 = vdwg.mxu0
    %v5499 = vmul.f32 %v4572, %v5496
    %v5500 = vsub.f32 %v5037, %v5499
    %s5501 = scalar_lea.vmem %s47, 48
    %v5502 = vld [vmem:[%s5501] sm:$0xff]
    %v5503 = vld [vmem:[%s5501 + $0x8] sm:$0xff]
    %v5505 = vsel %vm384, %v5500, 0
    %5507 = vmatprep.subr.mxu0 0.0
    %5508 = vmatpush1.msra.mxu0 0.0
    %5509 = vmatprep.subr.mxu0 0.0
    %5510 = vmatpush1.msra.mxu0 0.0
    %5511 = vmatprep.subr.mxu0 0.0
    %5512 = vmatpush1.msra.mxu0 0.0
    %5513 = vmatprep.subr.mxu0 0.0
    %5514 = vmatpush1.msra.mxu0 0.0
    %5515 = vmatprep.subr.mxu0 0.0
    %5516 = vmatpush1.msra.mxu0 0.0
    %5517 = vmatprep.subr.mxu0 0.0
    %5518 = vmatpush1.msra.mxu0 0.0
    %5519 = vmatprep.subr.mxu0 0.0
    %5520 = vmatpush1.msra.mxu0 0.0
    %5521 = vmatprep.subr.mxu0 0.0
    %5522 = vmatpush1.msra.mxu0 0.0
    %5523 = vmatprep.subr.mxu0 0.0
    %5524 = vmatpush1.msra.mxu0 0.0
    %5525 = vmatprep.subr.mxu0 0.0
    %5526 = vmatpush1.msra.mxu0 0.0
    %5527 = vmatprep.subr.mxu0 0.0
    %5528 = vmatpush1.msra.mxu0 0.0
    %5529 = vmatprep.subr.mxu0 0.0
    %5530 = vmatpush1.msra.mxu0 0.0
    %5531 = vmatprep.subr.mxu0 %v3893
    %5532 = vmatpush1.msra.mxu0 %v3892
    %5533 = vmatprep.subr.mxu0 %v3889
    %5534 = vmatpush1.msra.mxu0 %v3888
    %5535 = vmatprep.subr.mxu0 %v3885
    %5536 = vmatpush1.msra.mxu0 %v3884
    %5537 = vmatprep.subr.mxu0 %v3881
    %5538 = vmatpush1.msra.mxu0 %v3880
    %5539 = vmatprep.subr.mxu0 0.0
    %5540 = vmatpush2.msra.mxu0 0.0
    %5541 = vmatprep.subr.mxu0 0.0
    %5542 = vmatpush2.msra.mxu0 0.0
    %5543 = vmatprep.subr.mxu0 0.0
    %5544 = vmatpush2.msra.mxu0 0.0
    %5545 = vmatprep.subr.mxu0 0.0
    %5546 = vmatpush2.msra.mxu0 0.0
    %5547 = vmatprep.subr.mxu0 0.0
    %5548 = vmatpush2.msra.mxu0 0.0
    %5549 = vmatprep.subr.mxu0 0.0
    %5550 = vmatpush2.msra.mxu0 0.0
    %5551 = vmatprep.subr.mxu0 0.0
    %5552 = vmatpush2.msra.mxu0 0.0
    %5553 = vmatprep.subr.mxu0 0.0
    %5554 = vmatpush2.msra.mxu0 0.0
    %5555 = vmatprep.subr.mxu0 0.0
    %5556 = vmatpush2.msra.mxu0 0.0
    %5557 = vmatprep.subr.mxu0 0.0
    %5558 = vmatpush2.msra.mxu0 0.0
    %5559 = vmatprep.subr.mxu0 0.0
    %5560 = vmatpush2.msra.mxu0 0.0
    %5561 = vmatprep.subr.mxu0 0.0
    %5562 = vmatpush2.msra.mxu0 0.0
    %5563 = vmatprep.subr.mxu0 0.0
    %5564 = vmatpush2.msra.mxu0 0.0
    %5565 = vmatprep.subr.mxu0 0.0
    %5566 = vmatpush2.msra.mxu0 0.0
    %5567 = vmatprep.subr.mxu0 0.0
    %5568 = vmatpush2.msra.mxu0 0.0
    %5569 = vmatprep.subr.mxu0 0.0
    %5570 = vmatpush2.msra.mxu0 0.0
    %5571 = vmatprep.mubr.f32.mxu0 0.0
    %5572 = vmatmul.mubr.f32.gmra.mxu0 %v5505
    %v5573 = vpop.f32.mrf.mxu0
    %v5574 = vadd.f32 0.0, %v5573
    %v5575 = vpop.f32.mrf.mxu0
    %v5576 = vadd.f32 0.0, %v5575
    %5577 = vdwg.mxu0
    %5578 = vmatprep.subr.mxu0 0.0
    %5579 = vmatpush1.msra.mxu0 0.0
    %5580 = vmatprep.subr.mxu0 0.0
    %5581 = vmatpush1.msra.mxu0 0.0
    %5582 = vmatprep.subr.mxu0 0.0
    %5583 = vmatpush1.msra.mxu0 0.0
    %5584 = vmatprep.subr.mxu0 0.0
    %5585 = vmatpush1.msra.mxu0 0.0
    %5586 = vmatprep.subr.mxu0 0.0
    %5587 = vmatpush1.msra.mxu0 0.0
    %5588 = vmatprep.subr.mxu0 0.0
    %5589 = vmatpush1.msra.mxu0 0.0
    %5590 = vmatprep.subr.mxu0 0.0
    %5591 = vmatpush1.msra.mxu0 0.0
    %5592 = vmatprep.subr.mxu0 0.0
    %5593 = vmatpush1.msra.mxu0 0.0
    %5594 = vmatprep.subr.mxu0 0.0
    %5595 = vmatpush1.msra.mxu0 0.0
    %5596 = vmatprep.subr.mxu0 0.0
    %5597 = vmatpush1.msra.mxu0 0.0
    %5598 = vmatprep.subr.mxu0 0.0
    %5599 = vmatpush1.msra.mxu0 0.0
    %5600 = vmatprep.subr.mxu0 0.0
    %5601 = vmatpush1.msra.mxu0 0.0
    %5602 = vmatprep.subr.mxu0 %v3895
    %5603 = vmatpush1.msra.mxu0 %v3894
    %5604 = vmatprep.subr.mxu0 %v3891
    %5605 = vmatpush1.msra.mxu0 %v3890
    %5606 = vmatprep.subr.mxu0 %v3887
    %5607 = vmatpush1.msra.mxu0 %v3886
    %5608 = vmatprep.subr.mxu0 %v3883
    %5609 = vmatpush1.msra.mxu0 %v3882
    %5610 = vmatprep.subr.mxu0 0.0
    %5611 = vmatpush2.msra.mxu0 0.0
    %5612 = vmatprep.subr.mxu0 0.0
    %5613 = vmatpush2.msra.mxu0 0.0
    %5614 = vmatprep.subr.mxu0 0.0
    %5615 = vmatpush2.msra.mxu0 0.0
    %5616 = vmatprep.subr.mxu0 0.0
    %5617 = vmatpush2.msra.mxu0 0.0
    %5618 = vmatprep.subr.mxu0 0.0
    %5619 = vmatpush2.msra.mxu0 0.0
    %5620 = vmatprep.subr.mxu0 0.0
    %5621 = vmatpush2.msra.mxu0 0.0
    %5622 = vmatprep.subr.mxu0 0.0
    %5623 = vmatpush2.msra.mxu0 0.0
    %5624 = vmatprep.subr.mxu0 0.0
    %5625 = vmatpush2.msra.mxu0 0.0
    %5626 = vmatprep.subr.mxu0 0.0
    %5627 = vmatpush2.msra.mxu0 0.0
    %5628 = vmatprep.subr.mxu0 0.0
    %5629 = vmatpush2.msra.mxu0 0.0
    %5630 = vmatprep.subr.mxu0 0.0
    %5631 = vmatpush2.msra.mxu0 0.0
    %5632 = vmatprep.subr.mxu0 0.0
    %5633 = vmatpush2.msra.mxu0 0.0
    %5634 = vmatprep.subr.mxu0 0.0
    %5635 = vmatpush2.msra.mxu0 0.0
    %5636 = vmatprep.subr.mxu0 0.0
    %5637 = vmatpush2.msra.mxu0 0.0
    %5638 = vmatprep.subr.mxu0 0.0
    %5639 = vmatpush2.msra.mxu0 0.0
    %5640 = vmatprep.subr.mxu0 0.0
    %5641 = vmatpush2.msra.mxu0 0.0
    %5642 = vmatprep.mubr.f32.mxu0 0.0
    %5643 = vmatmul.mubr.f32.gmra.mxu0 %v5505
    %v5644 = vpop.f32.mrf.mxu0
    %v5645 = vadd.f32 0.0, %v5644
    %v5646 = vpop.f32.mrf.mxu0
    %v5647 = vadd.f32 0.0, %v5646
    %5648 = vdwg.mxu0
    %v5649 = vmul.f32 %v5645, 1.442695
    %v5650 = vpow.pop %v5649
    %v5651 = vmul.f32 %v5647, 1.442695
    %v5652 = vpow.pop %v5651
    %v5653 = vmul.f32 %v5650, %v5502
    %v5654 = vmul.f32 %v5652, %v5503
    %v5655 = vadd.f32 %v5574, %v5653
    %v5656 = vadd.f32 %v5576, %v5654
    %v5657 = vmul.f32 %v4011, %v5655
    %v5658 = vmul.f32 %v4013, %v5656
    %5659 = vmatprep.subr.mxu0 0.0
    %5660 = vmatpush1.msra.mxu0 %v3919
    %5661 = vmatprep.subr.mxu0 0.0
    %5662 = vmatpush1.msra.mxu0 %v3918
    %5663 = vmatprep.subr.mxu0 0.0
    %5664 = vmatpush1.msra.mxu0 %v3917
    %5665 = vmatprep.subr.mxu0 0.0
    %5666 = vmatpush1.msra.mxu0 %v3916
    %5667 = vmatprep.subr.mxu0 0.0
    %5668 = vmatpush1.msra.mxu0 %v3915
    %5669 = vmatprep.subr.mxu0 0.0
    %5670 = vmatpush1.msra.mxu0 %v3914
    %5671 = vmatprep.subr.mxu0 0.0
    %5672 = vmatpush1.msra.mxu0 %v3913
    %5673 = vmatprep.subr.mxu0 0.0
    %5674 = vmatpush1.msra.mxu0 %v3912
    %5675 = vmatprep.subr.mxu0 0.0
    %5676 = vmatpush1.msra.mxu0 %v3911
    %5677 = vmatprep.subr.mxu0 0.0
    %5678 = vmatpush1.msra.mxu0 %v3910
    %5679 = vmatprep.subr.mxu0 0.0
    %5680 = vmatpush1.msra.mxu0 %v3909
    %5681 = vmatprep.subr.mxu0 0.0
    %5682 = vmatpush1.msra.mxu0 %v3908
    %5683 = vmatprep.subr.mxu0 0.0
    %5684 = vmatpush1.msra.mxu0 %v3907
    %5685 = vmatprep.subr.mxu0 0.0
    %5686 = vmatpush1.msra.mxu0 %v3906
    %5687 = vmatprep.subr.mxu0 0.0
    %5688 = vmatpush1.msra.mxu0 %v3905
    %5689 = vmatprep.subr.mxu0 0.0
    %5690 = vmatpush1.msra.mxu0 %v3904
    %5691 = vmatprep.subr.mxu0 0.0
    %5692 = vmatpush2.msra.mxu0 %v3935
    %5693 = vmatprep.subr.mxu0 0.0
    %5694 = vmatpush2.msra.mxu0 %v3934
    %5695 = vmatprep.subr.mxu0 0.0
    %5696 = vmatpush2.msra.mxu0 %v3933
    %5697 = vmatprep.subr.mxu0 0.0
    %5698 = vmatpush2.msra.mxu0 %v3932
    %5699 = vmatprep.subr.mxu0 0.0
    %5700 = vmatpush2.msra.mxu0 %v3931
    %5701 = vmatprep.subr.mxu0 0.0
    %5702 = vmatpush2.msra.mxu0 %v3930
    %5703 = vmatprep.subr.mxu0 0.0
    %5704 = vmatpush2.msra.mxu0 %v3929
    %5705 = vmatprep.subr.mxu0 0.0
    %5706 = vmatpush2.msra.mxu0 %v3928
    %5707 = vmatprep.subr.mxu0 0.0
    %5708 = vmatpush2.msra.mxu0 %v3927
    %5709 = vmatprep.subr.mxu0 0.0
    %5710 = vmatpush2.msra.mxu0 %v3926
    %5711 = vmatprep.subr.mxu0 0.0
    %5712 = vmatpush2.msra.mxu0 %v3925
    %5713 = vmatprep.subr.mxu0 0.0
    %5714 = vmatpush2.msra.mxu0 %v3924
    %5715 = vmatprep.subr.mxu0 0.0
    %5716 = vmatpush2.msra.mxu0 %v3923
    %5717 = vmatprep.subr.mxu0 0.0
    %5718 = vmatpush2.msra.mxu0 %v3922
    %5719 = vmatprep.subr.mxu0 0.0
    %5720 = vmatpush2.msra.mxu0 %v3921
    %5721 = vmatprep.subr.mxu0 0.0
    %5722 = vmatpush2.msra.mxu0 %v3920
    %5723 = vmatprep.mubr.f32.mxu0 %v5658
    %5724 = vmatmul.mubr.f32.gmra.mxu0 %v5657
    %v5725 = vpop.f32.mrf.mxu0
    %v5726 = vadd.f32 %v3942, %v5725
    %v5727 = vpop.f32.mrf.mxu0
    %5728 = vdwg.mxu0
    %v5729 = vsel %vm4242, %v5726, -inf
    %5730 = vmax.xlane.f32.xlu0 %v5729
    %v5731 = vpop.xlane.xlu0 %5730
    %v5732 = vsub.f32 %v5726, %v5731
    %v5733 = vmul.f32 %v5732, 1.442695
    %v5734 = vpow.pop %v5733
    %v5735 = vsel %vm4242, %v5734, 0.0
    %5736 = vadd.xlane.f32.xlu0 %v5735
    %v5737 = vpop.xlane.xlu0 %5736
    %v5738 = vrcp.pop %v5737
    %v5739 = vmul.f32 %v5734, %v5738
    %v5740 = vsub.f32 %v5739, %v3936
    %v5741 = vmul.f32 %v5740, 0.125
    %v5743 = vsel %vm4242, %v5741, 0
    %5745 = vmatprep.subr.mxu0 0.0
    %5746 = vmatpush1.xpose.msra.mxu0 %v4305
    %5747 = vmatprep.subr.mxu0 0.0
    %5748 = vmatpush1.xpose.msra.mxu0 %v4302
    %5749 = vmatprep.subr.mxu0 0.0
    %5750 = vmatpush1.xpose.msra.mxu0 %v4299
    %5751 = vmatprep.subr.mxu0 0.0
    %5752 = vmatpush1.xpose.msra.mxu0 %v4296
    %5753 = vmatprep.subr.mxu0 0.0
    %5754 = vmatpush1.xpose.msra.mxu0 %v4293
    %5755 = vmatprep.subr.mxu0 0.0
    %5756 = vmatpush1.xpose.msra.mxu0 %v4290
    %5757 = vmatprep.subr.mxu0 0.0
    %5758 = vmatpush1.xpose.msra.mxu0 %v4287
    %5759 = vmatprep.subr.mxu0 0.0
    %5760 = vmatpush1.xpose.msra.mxu0 %v4284
    %5761 = vmatprep.subr.mxu0 0.0
    %5762 = vmatpush1.xpose.msra.mxu0 %v4281
    %5763 = vmatprep.subr.mxu0 0.0
    %5764 = vmatpush1.xpose.msra.mxu0 %v4278
    %5765 = vmatprep.subr.mxu0 0.0
    %5766 = vmatpush1.xpose.msra.mxu0 %v4275
    %5767 = vmatprep.subr.mxu0 0.0
    %5768 = vmatpush1.xpose.msra.mxu0 %v4272
    %5769 = vmatprep.subr.mxu0 0.0
    %5770 = vmatpush1.xpose.msra.mxu0 %v4269
    %5771 = vmatprep.subr.mxu0 0.0
    %5772 = vmatpush1.xpose.msra.mxu0 %v4266
    %5773 = vmatprep.subr.mxu0 0.0
    %5774 = vmatpush1.xpose.msra.mxu0 %v4263
    %5775 = vmatprep.subr.mxu0 0.0
    %5776 = vmatpush1.xpose.msra.mxu0 %v4260
    %5777 = vmatprep.subr.mxu0 0.0
    %5778 = vmatpush2.xpose.msra.mxu0 %v4353
    %5779 = vmatprep.subr.mxu0 0.0
    %5780 = vmatpush2.xpose.msra.mxu0 %v4350
    %5781 = vmatprep.subr.mxu0 0.0
    %5782 = vmatpush2.xpose.msra.mxu0 %v4347
    %5783 = vmatprep.subr.mxu0 0.0
    %5784 = vmatpush2.xpose.msra.mxu0 %v4344
    %5785 = vmatprep.subr.mxu0 0.0
    %5786 = vmatpush2.xpose.msra.mxu0 %v4341
    %5787 = vmatprep.subr.mxu0 0.0
    %5788 = vmatpush2.xpose.msra.mxu0 %v4338
    %5789 = vmatprep.subr.mxu0 0.0
    %5790 = vmatpush2.xpose.msra.mxu0 %v4335
    %5791 = vmatprep.subr.mxu0 0.0
    %5792 = vmatpush2.xpose.msra.mxu0 %v4332
    %5793 = vmatprep.subr.mxu0 0.0
    %5794 = vmatpush2.xpose.msra.mxu0 %v4329
    %5795 = vmatprep.subr.mxu0 0.0
    %5796 = vmatpush2.xpose.msra.mxu0 %v4326
    %5797 = vmatprep.subr.mxu0 0.0
    %5798 = vmatpush2.xpose.msra.mxu0 %v4323
    %5799 = vmatprep.subr.mxu0 0.0
    %5800 = vmatpush2.xpose.msra.mxu0 %v4320
    %5801 = vmatprep.subr.mxu0 0.0
    %5802 = vmatpush2.xpose.msra.mxu0 %v4317
    %5803 = vmatprep.subr.mxu0 0.0
    %5804 = vmatpush2.xpose.msra.mxu0 %v4314
    %5805 = vmatprep.subr.mxu0 0.0
    %5806 = vmatpush2.xpose.msra.mxu0 %v4311
    %5807 = vmatprep.subr.mxu0 0.0
    %5808 = vmatpush2.xpose.msra.mxu0 %v4308
    %5809 = vmatprep.mubr.f32.mxu0 0.0
    %5810 = vmatmul.mubr.f32.gmra.mxu0 %v5743
    %v5811 = vpop.f32.mrf.mxu0
    %v5812 = vadd.f32 0.0, %v5811
    %v5813 = vpop.f32.mrf.mxu0
    %v5814 = vadd.f32 0.0, %v5813
    %5815 = vdwg.mxu0
    %v5816 = vmul.f32 %v4011, %v5812
    %v5817 = vmul.f32 %v4013, %v5814
    %v5818 = vmul.f32 %v5816, %v5650
    %v5819 = vmul.f32 %v5817, %v5652
    %v5820 = vmul.f32 %v5818, %v5502
    %v5821 = vmul.f32 %v5819, %v5503
    %5822 = vmatprep.subr.mxu0 0.0
    %5823 = vmatpush1.xpose.msra.mxu0 0.0
    %5824 = vmatprep.subr.mxu0 0.0
    %5825 = vmatpush1.xpose.msra.mxu0 0.0
    %5826 = vmatprep.subr.mxu0 0.0
    %5827 = vmatpush1.xpose.msra.mxu0 0.0
    %5828 = vmatprep.subr.mxu0 0.0
    %5829 = vmatpush1.xpose.msra.mxu0 0.0
    %5830 = vmatprep.subr.mxu0 0.0
    %5831 = vmatpush1.xpose.msra.mxu0 0.0
    %5832 = vmatprep.subr.mxu0 0.0
    %5833 = vmatpush1.xpose.msra.mxu0 0.0
    %5834 = vmatprep.subr.mxu0 0.0
    %5835 = vmatpush1.xpose.msra.mxu0 0.0
    %5836 = vmatprep.subr.mxu0 0.0
    %5837 = vmatpush1.xpose.msra.mxu0 0.0
    %5838 = vmatprep.subr.mxu0 0.0
    %5839 = vmatpush1.xpose.msra.mxu0 0.0
    %5840 = vmatprep.subr.mxu0 0.0
    %5841 = vmatpush1.xpose.msra.mxu0 0.0
    %5842 = vmatprep.subr.mxu0 0.0
    %5843 = vmatpush1.xpose.msra.mxu0 0.0
    %5844 = vmatprep.subr.mxu0 0.0
    %5845 = vmatpush1.xpose.msra.mxu0 0.0
    %5846 = vmatprep.subr.mxu0 %v3893
    %5847 = vmatpush1.xpose.msra.mxu0 %v3892
    %5848 = vmatprep.subr.mxu0 %v3889
    %5849 = vmatpush1.xpose.msra.mxu0 %v3888
    %5850 = vmatprep.subr.mxu0 %v3885
    %5851 = vmatpush1.xpose.msra.mxu0 %v3884
    %5852 = vmatprep.subr.mxu0 %v3881
    %5853 = vmatpush1.xpose.msra.mxu0 %v3880
    %5854 = vmatprep.subr.mxu0 0.0
    %5855 = vmatpush2.xpose.msra.mxu0 0.0
    %5856 = vmatprep.subr.mxu0 0.0
    %5857 = vmatpush2.xpose.msra.mxu0 0.0
    %5858 = vmatprep.subr.mxu0 0.0
    %5859 = vmatpush2.xpose.msra.mxu0 0.0
    %5860 = vmatprep.subr.mxu0 0.0
    %5861 = vmatpush2.xpose.msra.mxu0 0.0
    %5862 = vmatprep.subr.mxu0 0.0
    %5863 = vmatpush2.xpose.msra.mxu0 0.0
    %5864 = vmatprep.subr.mxu0 0.0
    %5865 = vmatpush2.xpose.msra.mxu0 0.0
    %5866 = vmatprep.subr.mxu0 0.0
    %5867 = vmatpush2.xpose.msra.mxu0 0.0
    %5868 = vmatprep.subr.mxu0 0.0
    %5869 = vmatpush2.xpose.msra.mxu0 0.0
    %5870 = vmatprep.subr.mxu0 0.0
    %5871 = vmatpush2.xpose.msra.mxu0 0.0
    %5872 = vmatprep.subr.mxu0 0.0
    %5873 = vmatpush2.xpose.msra.mxu0 0.0
    %5874 = vmatprep.subr.mxu0 0.0
    %5875 = vmatpush2.xpose.msra.mxu0 0.0
    %5876 = vmatprep.subr.mxu0 0.0
    %5877 = vmatpush2.xpose.msra.mxu0 0.0
    %5878 = vmatprep.subr.mxu0 0.0
    %5879 = vmatpush2.xpose.msra.mxu0 0.0
    %5880 = vmatprep.subr.mxu0 0.0
    %5881 = vmatpush2.xpose.msra.mxu0 0.0
    %5882 = vmatprep.subr.mxu0 0.0
    %5883 = vmatpush2.xpose.msra.mxu0 0.0
    %5884 = vmatprep.subr.mxu0 0.0
    %5885 = vmatpush2.xpose.msra.mxu0 0.0
    %5886 = vmatprep.mubr.f32.mxu0 %v5817
    %5887 = vmatmul.mubr.f32.gmra.mxu0 %v5816
    %v5888 = vpop.f32.mrf.mxu0
    %v5889 = vadd.f32 0.0, %v5888
    %v5890 = vpop.f32.mrf.mxu0
    %5891 = vdwg.mxu0
    %5892 = vmatprep.subr.mxu0 0.0
    %5893 = vmatpush1.xpose.msra.mxu0 0.0
    %5894 = vmatprep.subr.mxu0 0.0
    %5895 = vmatpush1.xpose.msra.mxu0 0.0
    %5896 = vmatprep.subr.mxu0 0.0
    %5897 = vmatpush1.xpose.msra.mxu0 0.0
    %5898 = vmatprep.subr.mxu0 0.0
    %5899 = vmatpush1.xpose.msra.mxu0 0.0
    %5900 = vmatprep.subr.mxu0 0.0
    %5901 = vmatpush1.xpose.msra.mxu0 0.0
    %5902 = vmatprep.subr.mxu0 0.0
    %5903 = vmatpush1.xpose.msra.mxu0 0.0
    %5904 = vmatprep.subr.mxu0 0.0
    %5905 = vmatpush1.xpose.msra.mxu0 0.0
    %5906 = vmatprep.subr.mxu0 0.0
    %5907 = vmatpush1.xpose.msra.mxu0 0.0
    %5908 = vmatprep.subr.mxu0 0.0
    %5909 = vmatpush1.xpose.msra.mxu0 0.0
    %5910 = vmatprep.subr.mxu0 0.0
    %5911 = vmatpush1.xpose.msra.mxu0 0.0
    %5912 = vmatprep.subr.mxu0 0.0
    %5913 = vmatpush1.xpose.msra.mxu0 0.0
    %5914 = vmatprep.subr.mxu0 0.0
    %5915 = vmatpush1.xpose.msra.mxu0 0.0
    %5916 = vmatprep.subr.mxu0 %v3895
    %5917 = vmatpush1.xpose.msra.mxu0 %v3894
    %5918 = vmatprep.subr.mxu0 %v3891
    %5919 = vmatpush1.xpose.msra.mxu0 %v3890
    %5920 = vmatprep.subr.mxu0 %v3887
    %5921 = vmatpush1.xpose.msra.mxu0 %v3886
    %5922 = vmatprep.subr.mxu0 %v3883
    %5923 = vmatpush1.xpose.msra.mxu0 %v3882
    %5924 = vmatprep.subr.mxu0 0.0
    %5925 = vmatpush2.xpose.msra.mxu0 0.0
    %5926 = vmatprep.subr.mxu0 0.0
    %5927 = vmatpush2.xpose.msra.mxu0 0.0
    %5928 = vmatprep.subr.mxu0 0.0
    %5929 = vmatpush2.xpose.msra.mxu0 0.0
    %5930 = vmatprep.subr.mxu0 0.0
    %5931 = vmatpush2.xpose.msra.mxu0 0.0
    %5932 = vmatprep.subr.mxu0 0.0
    %5933 = vmatpush2.xpose.msra.mxu0 0.0
    %5934 = vmatprep.subr.mxu0 0.0
    %5935 = vmatpush2.xpose.msra.mxu0 0.0
    %5936 = vmatprep.subr.mxu0 0.0
    %5937 = vmatpush2.xpose.msra.mxu0 0.0
    %5938 = vmatprep.subr.mxu0 0.0
    %5939 = vmatpush2.xpose.msra.mxu0 0.0
    %5940 = vmatprep.subr.mxu0 0.0
    %5941 = vmatpush2.xpose.msra.mxu0 0.0
    %5942 = vmatprep.subr.mxu0 0.0
    %5943 = vmatpush2.xpose.msra.mxu0 0.0
    %5944 = vmatprep.subr.mxu0 0.0
    %5945 = vmatpush2.xpose.msra.mxu0 0.0
    %5946 = vmatprep.subr.mxu0 0.0
    %5947 = vmatpush2.xpose.msra.mxu0 0.0
    %5948 = vmatprep.subr.mxu0 0.0
    %5949 = vmatpush2.xpose.msra.mxu0 0.0
    %5950 = vmatprep.subr.mxu0 0.0
    %5951 = vmatpush2.xpose.msra.mxu0 0.0
    %5952 = vmatprep.subr.mxu0 0.0
    %5953 = vmatpush2.xpose.msra.mxu0 0.0
    %5954 = vmatprep.subr.mxu0 0.0
    %5955 = vmatpush2.xpose.msra.mxu0 0.0
    %5956 = vmatprep.mubr.f32.mxu0 %v5821
    %5957 = vmatmul.mubr.f32.gmra.mxu0 %v5820
    %v5958 = vpop.f32.mrf.mxu0
    %v5959 = vadd.f32 %v5889, %v5958
    %v5960 = vpop.f32.mrf.mxu0
    %5961 = vdwg.mxu0
    %v5962 = vmul.f32 %v4572, %v5959
    %v5963 = vsub.f32 %v5500, %v5962
    %s5964 = scalar_lea.vmem %s47, 64
    %v5965 = vld [vmem:[%s5964] sm:$0xff]
    %v5966 = vld [vmem:[%s5964 + $0x8] sm:$0xff]
    %v5968 = vsel %vm384, %v5963, 0
    %5970 = vmatprep.subr.mxu0 0.0
    %5971 = vmatpush1.msra.mxu0 0.0
    %5972 = vmatprep.subr.mxu0 0.0
    %5973 = vmatpush1.msra.mxu0 0.0
    %5974 = vmatprep.subr.mxu0 0.0
    %5975 = vmatpush1.msra.mxu0 0.0
    %5976 = vmatprep.subr.mxu0 0.0
    %5977 = vmatpush1.msra.mxu0 0.0
    %5978 = vmatprep.subr.mxu0 0.0
    %5979 = vmatpush1.msra.mxu0 0.0
    %5980 = vmatprep.subr.mxu0 0.0
    %5981 = vmatpush1.msra.mxu0 0.0
    %5982 = vmatprep.subr.mxu0 0.0
    %5983 = vmatpush1.msra.mxu0 0.0
    %5984 = vmatprep.subr.mxu0 0.0
    %5985 = vmatpush1.msra.mxu0 0.0
    %5986 = vmatprep.subr.mxu0 0.0
    %5987 = vmatpush1.msra.mxu0 0.0
    %5988 = vmatprep.subr.mxu0 0.0
    %5989 = vmatpush1.msra.mxu0 0.0
    %5990 = vmatprep.subr.mxu0 0.0
    %5991 = vmatpush1.msra.mxu0 0.0
    %5992 = vmatprep.subr.mxu0 0.0
    %5993 = vmatpush1.msra.mxu0 0.0
    %5994 = vmatprep.subr.mxu0 %v3893
    %5995 = vmatpush1.msra.mxu0 %v3892
    %5996 = vmatprep.subr.mxu0 %v3889
    %5997 = vmatpush1.msra.mxu0 %v3888
    %5998 = vmatprep.subr.mxu0 %v3885
    %5999 = vmatpush1.msra.mxu0 %v3884
    %6000 = vmatprep.subr.mxu0 %v3881
    %6001 = vmatpush1.msra.mxu0 %v3880
    %6002 = vmatprep.subr.mxu0 0.0
    %6003 = vmatpush2.msra.mxu0 0.0
    %6004 = vmatprep.subr.mxu0 0.0
    %6005 = vmatpush2.msra.mxu0 0.0
    %6006 = vmatprep.subr.mxu0 0.0
    %6007 = vmatpush2.msra.mxu0 0.0
    %6008 = vmatprep.subr.mxu0 0.0
    %6009 = vmatpush2.msra.mxu0 0.0
    %6010 = vmatprep.subr.mxu0 0.0
    %6011 = vmatpush2.msra.mxu0 0.0
    %6012 = vmatprep.subr.mxu0 0.0
    %6013 = vmatpush2.msra.mxu0 0.0
    %6014 = vmatprep.subr.mxu0 0.0
    %6015 = vmatpush2.msra.mxu0 0.0
    %6016 = vmatprep.subr.mxu0 0.0
    %6017 = vmatpush2.msra.mxu0 0.0
    %6018 = vmatprep.subr.mxu0 0.0
    %6019 = vmatpush2.msra.mxu0 0.0
    %6020 = vmatprep.subr.mxu0 0.0
    %6021 = vmatpush2.msra.mxu0 0.0
    %6022 = vmatprep.subr.mxu0 0.0
    %6023 = vmatpush2.msra.mxu0 0.0
    %6024 = vmatprep.subr.mxu0 0.0
    %6025 = vmatpush2.msra.mxu0 0.0
    %6026 = vmatprep.subr.mxu0 0.0
    %6027 = vmatpush2.msra.mxu0 0.0
    %6028 = vmatprep.subr.mxu0 0.0
    %6029 = vmatpush2.msra.mxu0 0.0
    %6030 = vmatprep.subr.mxu0 0.0
    %6031 = vmatpush2.msra.mxu0 0.0
    %6032 = vmatprep.subr.mxu0 0.0
    %6033 = vmatpush2.msra.mxu0 0.0
    %6034 = vmatprep.mubr.f32.mxu0 0.0
    %6035 = vmatmul.mubr.f32.gmra.mxu0 %v5968
    %v6036 = vpop.f32.mrf.mxu0
    %v6037 = vadd.f32 0.0, %v6036
    %v6038 = vpop.f32.mrf.mxu0
    %v6039 = vadd.f32 0.0, %v6038
    %6040 = vdwg.mxu0
    %6041 = vmatprep.subr.mxu0 0.0
    %6042 = vmatpush1.msra.mxu0 0.0
    %6043 = vmatprep.subr.mxu0 0.0
    %6044 = vmatpush1.msra.mxu0 0.0
    %6045 = vmatprep.subr.mxu0 0.0
    %6046 = vmatpush1.msra.mxu0 0.0
    %6047 = vmatprep.subr.mxu0 0.0
    %6048 = vmatpush1.msra.mxu0 0.0
    %6049 = vmatprep.subr.mxu0 0.0
    %6050 = vmatpush1.msra.mxu0 0.0
    %6051 = vmatprep.subr.mxu0 0.0
    %6052 = vmatpush1.msra.mxu0 0.0
    %6053 = vmatprep.subr.mxu0 0.0
    %6054 = vmatpush1.msra.mxu0 0.0
    %6055 = vmatprep.subr.mxu0 0.0
    %6056 = vmatpush1.msra.mxu0 0.0
    %6057 = vmatprep.subr.mxu0 0.0
    %6058 = vmatpush1.msra.mxu0 0.0
    %6059 = vmatprep.subr.mxu0 0.0
    %6060 = vmatpush1.msra.mxu0 0.0
    %6061 = vmatprep.subr.mxu0 0.0
    %6062 = vmatpush1.msra.mxu0 0.0
    %6063 = vmatprep.subr.mxu0 0.0
    %6064 = vmatpush1.msra.mxu0 0.0
    %6065 = vmatprep.subr.mxu0 %v3895
    %6066 = vmatpush1.msra.mxu0 %v3894
    %6067 = vmatprep.subr.mxu0 %v3891
    %6068 = vmatpush1.msra.mxu0 %v3890
    %6069 = vmatprep.subr.mxu0 %v3887
    %6070 = vmatpush1.msra.mxu0 %v3886
    %6071 = vmatprep.subr.mxu0 %v3883
    %6072 = vmatpush1.msra.mxu0 %v3882
    %6073 = vmatprep.subr.mxu0 0.0
    %6074 = vmatpush2.msra.mxu0 0.0
    %6075 = vmatprep.subr.mxu0 0.0
    %6076 = vmatpush2.msra.mxu0 0.0
    %6077 = vmatprep.subr.mxu0 0.0
    %6078 = vmatpush2.msra.mxu0 0.0
    %6079 = vmatprep.subr.mxu0 0.0
    %6080 = vmatpush2.msra.mxu0 0.0
    %6081 = vmatprep.subr.mxu0 0.0
    %6082 = vmatpush2.msra.mxu0 0.0
    %6083 = vmatprep.subr.mxu0 0.0
    %6084 = vmatpush2.msra.mxu0 0.0
    %6085 = vmatprep.subr.mxu0 0.0
    %6086 = vmatpush2.msra.mxu0 0.0
    %6087 = vmatprep.subr.mxu0 0.0
    %6088 = vmatpush2.msra.mxu0 0.0
    %6089 = vmatprep.subr.mxu0 0.0
    %6090 = vmatpush2.msra.mxu0 0.0
    %6091 = vmatprep.subr.mxu0 0.0
    %6092 = vmatpush2.msra.mxu0 0.0
    %6093 = vmatprep.subr.mxu0 0.0
    %6094 = vmatpush2.msra.mxu0 0.0
    %6095 = vmatprep.subr.mxu0 0.0
    %6096 = vmatpush2.msra.mxu0 0.0
    %6097 = vmatprep.subr.mxu0 0.0
    %6098 = vmatpush2.msra.mxu0 0.0
    %6099 = vmatprep.subr.mxu0 0.0
    %6100 = vmatpush2.msra.mxu0 0.0
    %6101 = vmatprep.subr.mxu0 0.0
    %6102 = vmatpush2.msra.mxu0 0.0
    %6103 = vmatprep.subr.mxu0 0.0
    %6104 = vmatpush2.msra.mxu0 0.0
    %6105 = vmatprep.mubr.f32.mxu0 0.0
    %6106 = vmatmul.mubr.f32.gmra.mxu0 %v5968
    %v6107 = vpop.f32.mrf.mxu0
    %v6108 = vadd.f32 0.0, %v6107
    %v6109 = vpop.f32.mrf.mxu0
    %v6110 = vadd.f32 0.0, %v6109
    %6111 = vdwg.mxu0
    %v6112 = vmul.f32 %v6108, 1.442695
    %v6113 = vpow.pop %v6112
    %v6114 = vmul.f32 %v6110, 1.442695
    %v6115 = vpow.pop %v6114
    %v6116 = vmul.f32 %v6113, %v5965
    %v6117 = vmul.f32 %v6115, %v5966
    %v6118 = vadd.f32 %v6037, %v6116
    %v6119 = vadd.f32 %v6039, %v6117
    %v6120 = vmul.f32 %v4011, %v6118
    %v6121 = vmul.f32 %v4013, %v6119
    %6122 = vmatprep.subr.mxu0 0.0
    %6123 = vmatpush1.msra.mxu0 %v3919
    %6124 = vmatprep.subr.mxu0 0.0
    %6125 = vmatpush1.msra.mxu0 %v3918
    %6126 = vmatprep.subr.mxu0 0.0
    %6127 = vmatpush1.msra.mxu0 %v3917
    %6128 = vmatprep.subr.mxu0 0.0
    %6129 = vmatpush1.msra.mxu0 %v3916
    %6130 = vmatprep.subr.mxu0 0.0
    %6131 = vmatpush1.msra.mxu0 %v3915
    %6132 = vmatprep.subr.mxu0 0.0
    %6133 = vmatpush1.msra.mxu0 %v3914
    %6134 = vmatprep.subr.mxu0 0.0
    %6135 = vmatpush1.msra.mxu0 %v3913
    %6136 = vmatprep.subr.mxu0 0.0
    %6137 = vmatpush1.msra.mxu0 %v3912
    %6138 = vmatprep.subr.mxu0 0.0
    %6139 = vmatpush1.msra.mxu0 %v3911
    %6140 = vmatprep.subr.mxu0 0.0
    %6141 = vmatpush1.msra.mxu0 %v3910
    %6142 = vmatprep.subr.mxu0 0.0
    %6143 = vmatpush1.msra.mxu0 %v3909
    %6144 = vmatprep.subr.mxu0 0.0
    %6145 = vmatpush1.msra.mxu0 %v3908
    %6146 = vmatprep.subr.mxu0 0.0
    %6147 = vmatpush1.msra.mxu0 %v3907
    %6148 = vmatprep.subr.mxu0 0.0
    %6149 = vmatpush1.msra.mxu0 %v3906
    %6150 = vmatprep.subr.mxu0 0.0
    %6151 = vmatpush1.msra.mxu0 %v3905
    %6152 = vmatprep.subr.mxu0 0.0
    %6153 = vmatpush1.msra.mxu0 %v3904
    %6154 = vmatprep.subr.mxu0 0.0
    %6155 = vmatpush2.msra.mxu0 %v3935
    %6156 = vmatprep.subr.mxu0 0.0
    %6157 = vmatpush2.msra.mxu0 %v3934
    %6158 = vmatprep.subr.mxu0 0.0
    %6159 = vmatpush2.msra.mxu0 %v3933
    %6160 = vmatprep.subr.mxu0 0.0
    %6161 = vmatpush2.msra.mxu0 %v3932
    %6162 = vmatprep.subr.mxu0 0.0
    %6163 = vmatpush2.msra.mxu0 %v3931
    %6164 = vmatprep.subr.mxu0 0.0
    %6165 = vmatpush2.msra.mxu0 %v3930
    %6166 = vmatprep.subr.mxu0 0.0
    %6167 = vmatpush2.msra.mxu0 %v3929
    %6168 = vmatprep.subr.mxu0 0.0
    %6169 = vmatpush2.msra.mxu0 %v3928
    %6170 = vmatprep.subr.mxu0 0.0
    %6171 = vmatpush2.msra.mxu0 %v3927
    %6172 = vmatprep.subr.mxu0 0.0
    %6173 = vmatpush2.msra.mxu0 %v3926
    %6174 = vmatprep.subr.mxu0 0.0
    %6175 = vmatpush2.msra.mxu0 %v3925
    %6176 = vmatprep.subr.mxu0 0.0
    %6177 = vmatpush2.msra.mxu0 %v3924
    %6178 = vmatprep.subr.mxu0 0.0
    %6179 = vmatpush2.msra.mxu0 %v3923
    %6180 = vmatprep.subr.mxu0 0.0
    %6181 = vmatpush2.msra.mxu0 %v3922
    %6182 = vmatprep.subr.mxu0 0.0
    %6183 = vmatpush2.msra.mxu0 %v3921
    %6184 = vmatprep.subr.mxu0 0.0
    %6185 = vmatpush2.msra.mxu0 %v3920
    %6186 = vmatprep.mubr.f32.mxu0 %v6121
    %6187 = vmatmul.mubr.f32.gmra.mxu0 %v6120
    %v6188 = vpop.f32.mrf.mxu0
    %v6189 = vadd.f32 %v3942, %v6188
    %v6190 = vpop.f32.mrf.mxu0
    %6191 = vdwg.mxu0
    %v6192 = vsel %vm4242, %v6189, -inf
    %6193 = vmax.xlane.f32.xlu0 %v6192
    %v6194 = vpop.xlane.xlu0 %6193
    %v6195 = vsub.f32 %v6189, %v6194
    %v6196 = vmul.f32 %v6195, 1.442695
    %v6197 = vpow.pop %v6196
    %v6198 = vsel %vm4242, %v6197, 0.0
    %6199 = vadd.xlane.f32.xlu0 %v6198
    %v6200 = vpop.xlane.xlu0 %6199
    %v6201 = vrcp.pop %v6200
    %v6202 = vmul.f32 %v6197, %v6201
    %v6203 = vsub.f32 %v6202, %v3936
    %v6204 = vmul.f32 %v6203, 0.125
    %v6206 = vsel %vm4242, %v6204, 0
    %6208 = vmatprep.subr.mxu0 0.0
    %6209 = vmatpush1.xpose.msra.mxu0 %v4305
    %6210 = vmatprep.subr.mxu0 0.0
    %6211 = vmatpush1.xpose.msra.mxu0 %v4302
    %6212 = vmatprep.subr.mxu0 0.0
    %6213 = vmatpush1.xpose.msra.mxu0 %v4299
    %6214 = vmatprep.subr.mxu0 0.0
    %6215 = vmatpush1.xpose.msra.mxu0 %v4296
    %6216 = vmatprep.subr.mxu0 0.0
    %6217 = vmatpush1.xpose.msra.mxu0 %v4293
    %6218 = vmatprep.subr.mxu0 0.0
    %6219 = vmatpush1.xpose.msra.mxu0 %v4290
    %6220 = vmatprep.subr.mxu0 0.0
    %6221 = vmatpush1.xpose.msra.mxu0 %v4287
    %6222 = vmatprep.subr.mxu0 0.0
    %6223 = vmatpush1.xpose.msra.mxu0 %v4284
    %6224 = vmatprep.subr.mxu0 0.0
    %6225 = vmatpush1.xpose.msra.mxu0 %v4281
    %6226 = vmatprep.subr.mxu0 0.0
    %6227 = vmatpush1.xpose.msra.mxu0 %v4278
    %6228 = vmatprep.subr.mxu0 0.0
    %6229 = vmatpush1.xpose.msra.mxu0 %v4275
    %6230 = vmatprep.subr.mxu0 0.0
    %6231 = vmatpush1.xpose.msra.mxu0 %v4272
    %6232 = vmatprep.subr.mxu0 0.0
    %6233 = vmatpush1.xpose.msra.mxu0 %v4269
    %6234 = vmatprep.subr.mxu0 0.0
    %6235 = vmatpush1.xpose.msra.mxu0 %v4266
    %6236 = vmatprep.subr.mxu0 0.0
    %6237 = vmatpush1.xpose.msra.mxu0 %v4263
    %6238 = vmatprep.subr.mxu0 0.0
    %6239 = vmatpush1.xpose.msra.mxu0 %v4260
    %6240 = vmatprep.subr.mxu0 0.0
    %6241 = vmatpush2.xpose.msra.mxu0 %v4353
    %6242 = vmatprep.subr.mxu0 0.0
    %6243 = vmatpush2.xpose.msra.mxu0 %v4350
    %6244 = vmatprep.subr.mxu0 0.0
    %6245 = vmatpush2.xpose.msra.mxu0 %v4347
    %6246 = vmatprep.subr.mxu0 0.0
    %6247 = vmatpush2.xpose.msra.mxu0 %v4344
    %6248 = vmatprep.subr.mxu0 0.0
    %6249 = vmatpush2.xpose.msra.mxu0 %v4341
    %6250 = vmatprep.subr.mxu0 0.0
    %6251 = vmatpush2.xpose.msra.mxu0 %v4338
    %6252 = vmatprep.subr.mxu0 0.0
    %6253 = vmatpush2.xpose.msra.mxu0 %v4335
    %6254 = vmatprep.subr.mxu0 0.0
    %6255 = vmatpush2.xpose.msra.mxu0 %v4332
    %6256 = vmatprep.subr.mxu0 0.0
    %6257 = vmatpush2.xpose.msra.mxu0 %v4329
    %6258 = vmatprep.subr.mxu0 0.0
    %6259 = vmatpush2.xpose.msra.mxu0 %v4326
    %6260 = vmatprep.subr.mxu0 0.0
    %6261 = vmatpush2.xpose.msra.mxu0 %v4323
    %6262 = vmatprep.subr.mxu0 0.0
    %6263 = vmatpush2.xpose.msra.mxu0 %v4320
    %6264 = vmatprep.subr.mxu0 0.0
    %6265 = vmatpush2.xpose.msra.mxu0 %v4317
    %6266 = vmatprep.subr.mxu0 0.0
    %6267 = vmatpush2.xpose.msra.mxu0 %v4314
    %6268 = vmatprep.subr.mxu0 0.0
    %6269 = vmatpush2.xpose.msra.mxu0 %v4311
    %6270 = vmatprep.subr.mxu0 0.0
    %6271 = vmatpush2.xpose.msra.mxu0 %v4308
    %6272 = vmatprep.mubr.f32.mxu0 0.0
    %6273 = vmatmul.mubr.f32.gmra.mxu0 %v6206
    %v6274 = vpop.f32.mrf.mxu0
    %v6275 = vadd.f32 0.0, %v6274
    %v6276 = vpop.f32.mrf.mxu0
    %v6277 = vadd.f32 0.0, %v6276
    %6278 = vdwg.mxu0
    %v6279 = vmul.f32 %v4011, %v6275
    %v6280 = vmul.f32 %v4013, %v6277
    %v6281 = vmul.f32 %v6279, %v6113
    %v6282 = vmul.f32 %v6280, %v6115
    %v6283 = vmul.f32 %v6281, %v5965
    %v6284 = vmul.f32 %v6282, %v5966
    %6285 = vmatprep.subr.mxu0 0.0
    %6286 = vmatpush1.xpose.msra.mxu0 0.0
    %6287 = vmatprep.subr.mxu0 0.0
    %6288 = vmatpush1.xpose.msra.mxu0 0.0
    %6289 = vmatprep.subr.mxu0 0.0
    %6290 = vmatpush1.xpose.msra.mxu0 0.0
    %6291 = vmatprep.subr.mxu0 0.0
    %6292 = vmatpush1.xpose.msra.mxu0 0.0
    %6293 = vmatprep.subr.mxu0 0.0
    %6294 = vmatpush1.xpose.msra.mxu0 0.0
    %6295 = vmatprep.subr.mxu0 0.0
    %6296 = vmatpush1.xpose.msra.mxu0 0.0
    %6297 = vmatprep.subr.mxu0 0.0
    %6298 = vmatpush1.xpose.msra.mxu0 0.0
    %6299 = vmatprep.subr.mxu0 0.0
    %6300 = vmatpush1.xpose.msra.mxu0 0.0
    %6301 = vmatprep.subr.mxu0 0.0
    %6302 = vmatpush1.xpose.msra.mxu0 0.0
    %6303 = vmatprep.subr.mxu0 0.0
    %6304 = vmatpush1.xpose.msra.mxu0 0.0
    %6305 = vmatprep.subr.mxu0 0.0
    %6306 = vmatpush1.xpose.msra.mxu0 0.0
    %6307 = vmatprep.subr.mxu0 0.0
    %6308 = vmatpush1.xpose.msra.mxu0 0.0
    %6309 = vmatprep.subr.mxu0 %v3893
    %6310 = vmatpush1.xpose.msra.mxu0 %v3892
    %6311 = vmatprep.subr.mxu0 %v3889
    %6312 = vmatpush1.xpose.msra.mxu0 %v3888
    %6313 = vmatprep.subr.mxu0 %v3885
    %6314 = vmatpush1.xpose.msra.mxu0 %v3884
    %6315 = vmatprep.subr.mxu0 %v3881
    %6316 = vmatpush1.xpose.msra.mxu0 %v3880
    %6317 = vmatprep.subr.mxu0 0.0
    %6318 = vmatpush2.xpose.msra.mxu0 0.0
    %6319 = vmatprep.subr.mxu0 0.0
    %6320 = vmatpush2.xpose.msra.mxu0 0.0
    %6321 = vmatprep.subr.mxu0 0.0
    %6322 = vmatpush2.xpose.msra.mxu0 0.0
    %6323 = vmatprep.subr.mxu0 0.0
    %6324 = vmatpush2.xpose.msra.mxu0 0.0
    %6325 = vmatprep.subr.mxu0 0.0
    %6326 = vmatpush2.xpose.msra.mxu0 0.0
    %6327 = vmatprep.subr.mxu0 0.0
    %6328 = vmatpush2.xpose.msra.mxu0 0.0
    %6329 = vmatprep.subr.mxu0 0.0
    %6330 = vmatpush2.xpose.msra.mxu0 0.0
    %6331 = vmatprep.subr.mxu0 0.0
    %6332 = vmatpush2.xpose.msra.mxu0 0.0
    %6333 = vmatprep.subr.mxu0 0.0
    %6334 = vmatpush2.xpose.msra.mxu0 0.0
    %6335 = vmatprep.subr.mxu0 0.0
    %6336 = vmatpush2.xpose.msra.mxu0 0.0
    %6337 = vmatprep.subr.mxu0 0.0
    %6338 = vmatpush2.xpose.msra.mxu0 0.0
    %6339 = vmatprep.subr.mxu0 0.0
    %6340 = vmatpush2.xpose.msra.mxu0 0.0
    %6341 = vmatprep.subr.mxu0 0.0
    %6342 = vmatpush2.xpose.msra.mxu0 0.0
    %6343 = vmatprep.subr.mxu0 0.0
    %6344 = vmatpush2.xpose.msra.mxu0 0.0
    %6345 = vmatprep.subr.mxu0 0.0
    %6346 = vmatpush2.xpose.msra.mxu0 0.0
    %6347 = vmatprep.subr.mxu0 0.0
    %6348 = vmatpush2.xpose.msra.mxu0 0.0
    %6349 = vmatprep.mubr.f32.mxu0 %v6280
    %6350 = vmatmul.mubr.f32.gmra.mxu0 %v6279
    %v6351 = vpop.f32.mrf.mxu0
    %v6352 = vadd.f32 0.0, %v6351
    %v6353 = vpop.f32.mrf.mxu0
    %6354 = vdwg.mxu0
    %6355 = vmatprep.subr.mxu0 0.0
    %6356 = vmatpush1.xpose.msra.mxu0 0.0
    %6357 = vmatprep.subr.mxu0 0.0
    %6358 = vmatpush1.xpose.msra.mxu0 0.0
    %6359 = vmatprep.subr.mxu0 0.0
    %6360 = vmatpush1.xpose.msra.mxu0 0.0
    %6361 = vmatprep.subr.mxu0 0.0
    %6362 = vmatpush1.xpose.msra.mxu0 0.0
    %6363 = vmatprep.subr.mxu0 0.0
    %6364 = vmatpush1.xpose.msra.mxu0 0.0
    %6365 = vmatprep.subr.mxu0 0.0
    %6366 = vmatpush1.xpose.msra.mxu0 0.0
    %6367 = vmatprep.subr.mxu0 0.0
    %6368 = vmatpush1.xpose.msra.mxu0 0.0
    %6369 = vmatprep.subr.mxu0 0.0
    %6370 = vmatpush1.xpose.msra.mxu0 0.0
    %6371 = vmatprep.subr.mxu0 0.0
    %6372 = vmatpush1.xpose.msra.mxu0 0.0
    %6373 = vmatprep.subr.mxu0 0.0
    %6374 = vmatpush1.xpose.msra.mxu0 0.0
    %6375 = vmatprep.subr.mxu0 0.0
    %6376 = vmatpush1.xpose.msra.mxu0 0.0
    %6377 = vmatprep.subr.mxu0 0.0
    %6378 = vmatpush1.xpose.msra.mxu0 0.0
    %6379 = vmatprep.subr.mxu0 %v3895
    %6380 = vmatpush1.xpose.msra.mxu0 %v3894
    %6381 = vmatprep.subr.mxu0 %v3891
    %6382 = vmatpush1.xpose.msra.mxu0 %v3890
    %6383 = vmatprep.subr.mxu0 %v3887
    %6384 = vmatpush1.xpose.msra.mxu0 %v3886
    %6385 = vmatprep.subr.mxu0 %v3883
    %6386 = vmatpush1.xpose.msra.mxu0 %v3882
    %6387 = vmatprep.subr.mxu0 0.0
    %6388 = vmatpush2.xpose.msra.mxu0 0.0
    %6389 = vmatprep.subr.mxu0 0.0
    %6390 = vmatpush2.xpose.msra.mxu0 0.0
    %6391 = vmatprep.subr.mxu0 0.0
    %6392 = vmatpush2.xpose.msra.mxu0 0.0
    %6393 = vmatprep.subr.mxu0 0.0
    %6394 = vmatpush2.xpose.msra.mxu0 0.0
    %6395 = vmatprep.subr.mxu0 0.0
    %6396 = vmatpush2.xpose.msra.mxu0 0.0
    %6397 = vmatprep.subr.mxu0 0.0
    %6398 = vmatpush2.xpose.msra.mxu0 0.0
    %6399 = vmatprep.subr.mxu0 0.0
    %6400 = vmatpush2.xpose.msra.mxu0 0.0
    %6401 = vmatprep.subr.mxu0 0.0
    %6402 = vmatpush2.xpose.msra.mxu0 0.0
    %6403 = vmatprep.subr.mxu0 0.0
    %6404 = vmatpush2.xpose.msra.mxu0 0.0
    %6405 = vmatprep.subr.mxu0 0.0
    %6406 = vmatpush2.xpose.msra.mxu0 0.0
    %6407 = vmatprep.subr.mxu0 0.0
    %6408 = vmatpush2.xpose.msra.mxu0 0.0
    %6409 = vmatprep.subr.mxu0 0.0
    %6410 = vmatpush2.xpose.msra.mxu0 0.0
    %6411 = vmatprep.subr.mxu0 0.0
    %6412 = vmatpush2.xpose.msra.mxu0 0.0
    %6413 = vmatprep.subr.mxu0 0.0
    %6414 = vmatpush2.xpose.msra.mxu0 0.0
    %6415 = vmatprep.subr.mxu0 0.0
    %6416 = vmatpush2.xpose.msra.mxu0 0.0
    %6417 = vmatprep.subr.mxu0 0.0
    %6418 = vmatpush2.xpose.msra.mxu0 0.0
    %6419 = vmatprep.mubr.f32.mxu0 %v6284
    %6420 = vmatmul.mubr.f32.gmra.mxu0 %v6283
    %v6421 = vpop.f32.mrf.mxu0
    %v6422 = vadd.f32 %v6352, %v6421
    %v6423 = vpop.f32.mrf.mxu0
    %6424 = vdwg.mxu0
    %v6425 = vmul.f32 %v4572, %v6422
    %v6426 = vsub.f32 %v5963, %v6425
    %v6427 = vsub.f32 %v6426, %v3857
    %v6428 = vmul.f32 %v6427, %v6427
    %v6429 = vsel %vm384, %v6428, 0.0
    %6430 = vadd.xlane.f32.xlu0 %v6429
    %v6431 = vpop.xlane.xlu0 %6430
    %v6432 = vrot.slane %v6431, 4
    %v6433 = vadd.f32 %v6431, %v6432
    %v6434 = vrot.slane %v6433, 2
    %v6435 = vadd.f32 %v6433, %v6434
    %v6436 = vrot.slane %v6435, 1
    %v6437 = vadd.f32 %v6435, %v6436
    %v6438 = vmul.f32 %v6437, 0.00390625
    %6439 = vst.msk [vmem:[#allocation9] sm:$0x1] %vm3878, %v6438
    %s6440 = scalar_lea.vmem %s47, 80
    %v6441 = vld [vmem:[%s6440] sm:$0xff]
    %v6442 = vld [vmem:[%s6440 + $0x8] sm:$0xff]
    %v6444 = vsel %vm384, %v6426, 0
    %6446 = vmatprep.subr.mxu0 0.0
    %6447 = vmatpush1.msra.mxu0 0.0
    %6448 = vmatprep.subr.mxu0 0.0
    %6449 = vmatpush1.msra.mxu0 0.0
    %6450 = vmatprep.subr.mxu0 0.0
    %6451 = vmatpush1.msra.mxu0 0.0
    %6452 = vmatprep.subr.mxu0 0.0
    %6453 = vmatpush1.msra.mxu0 0.0
    %6454 = vmatprep.subr.mxu0 0.0
    %6455 = vmatpush1.msra.mxu0 0.0
    %6456 = vmatprep.subr.mxu0 0.0
    %6457 = vmatpush1.msra.mxu0 0.0
    %6458 = vmatprep.subr.mxu0 0.0
    %6459 = vmatpush1.msra.mxu0 0.0
    %6460 = vmatprep.subr.mxu0 0.0
    %6461 = vmatpush1.msra.mxu0 0.0
    %6462 = vmatprep.subr.mxu0 0.0
    %6463 = vmatpush1.msra.mxu0 0.0
    %6464 = vmatprep.subr.mxu0 0.0
    %6465 = vmatpush1.msra.mxu0 0.0
    %6466 = vmatprep.subr.mxu0 0.0
    %6467 = vmatpush1.msra.mxu0 0.0
    %6468 = vmatprep.subr.mxu0 0.0
    %6469 = vmatpush1.msra.mxu0 0.0
    %6470 = vmatprep.subr.mxu0 %v3893
    %6471 = vmatpush1.msra.mxu0 %v3892
    %6472 = vmatprep.subr.mxu0 %v3889
    %6473 = vmatpush1.msra.mxu0 %v3888
    %6474 = vmatprep.subr.mxu0 %v3885
    %6475 = vmatpush1.msra.mxu0 %v3884
    %6476 = vmatprep.subr.mxu0 %v3881
    %6477 = vmatpush1.msra.mxu0 %v3880
    %6478 = vmatprep.subr.mxu0 0.0
    %6479 = vmatpush2.msra.mxu0 0.0
    %6480 = vmatprep.subr.mxu0 0.0
    %6481 = vmatpush2.msra.mxu0 0.0
    %6482 = vmatprep.subr.mxu0 0.0
    %6483 = vmatpush2.msra.mxu0 0.0
    %6484 = vmatprep.subr.mxu0 0.0
    %6485 = vmatpush2.msra.mxu0 0.0
    %6486 = vmatprep.subr.mxu0 0.0
    %6487 = vmatpush2.msra.mxu0 0.0
    %6488 = vmatprep.subr.mxu0 0.0
    %6489 = vmatpush2.msra.mxu0 0.0
    %6490 = vmatprep.subr.mxu0 0.0
    %6491 = vmatpush2.msra.mxu0 0.0
    %6492 = vmatprep.subr.mxu0 0.0
    %6493 = vmatpush2.msra.mxu0 0.0
    %6494 = vmatprep.subr.mxu0 0.0
    %6495 = vmatpush2.msra.mxu0 0.0
    %6496 = vmatprep.subr.mxu0 0.0
    %6497 = vmatpush2.msra.mxu0 0.0
    %6498 = vmatprep.subr.mxu0 0.0
    %6499 = vmatpush2.msra.mxu0 0.0
    %6500 = vmatprep.subr.mxu0 0.0
    %6501 = vmatpush2.msra.mxu0 0.0
    %6502 = vmatprep.subr.mxu0 0.0
    %6503 = vmatpush2.msra.mxu0 0.0
    %6504 = vmatprep.subr.mxu0 0.0
    %6505 = vmatpush2.msra.mxu0 0.0
    %6506 = vmatprep.subr.mxu0 0.0
    %6507 = vmatpush2.msra.mxu0 0.0
    %6508 = vmatprep.subr.mxu0 0.0
    %6509 = vmatpush2.msra.mxu0 0.0
    %6510 = vmatprep.mubr.f32.mxu0 0.0
    %6511 = vmatmul.mubr.f32.gmra.mxu0 %v6444
    %v6512 = vpop.f32.mrf.mxu0
    %v6513 = vadd.f32 0.0, %v6512
    %v6514 = vpop.f32.mrf.mxu0
    %v6515 = vadd.f32 0.0, %v6514
    %6516 = vdwg.mxu0
    %6517 = vmatprep.subr.mxu0 0.0
    %6518 = vmatpush1.msra.mxu0 0.0
    %6519 = vmatprep.subr.mxu0 0.0
    %6520 = vmatpush1.msra.mxu0 0.0
    %6521 = vmatprep.subr.mxu0 0.0
    %6522 = vmatpush1.msra.mxu0 0.0
    %6523 = vmatprep.subr.mxu0 0.0
    %6524 = vmatpush1.msra.mxu0 0.0
    %6525 = vmatprep.subr.mxu0 0.0
    %6526 = vmatpush1.msra.mxu0 0.0
    %6527 = vmatprep.subr.mxu0 0.0
    %6528 = vmatpush1.msra.mxu0 0.0
    %6529 = vmatprep.subr.mxu0 0.0
    %6530 = vmatpush1.msra.mxu0 0.0
    %6531 = vmatprep.subr.mxu0 0.0
    %6532 = vmatpush1.msra.mxu0 0.0
    %6533 = vmatprep.subr.mxu0 0.0
    %6534 = vmatpush1.msra.mxu0 0.0
    %6535 = vmatprep.subr.mxu0 0.0
    %6536 = vmatpush1.msra.mxu0 0.0
    %6537 = vmatprep.subr.mxu0 0.0
    %6538 = vmatpush1.msra.mxu0 0.0
    %6539 = vmatprep.subr.mxu0 0.0
    %6540 = vmatpush1.msra.mxu0 0.0
    %6541 = vmatprep.subr.mxu0 %v3895
    %6542 = vmatpush1.msra.mxu0 %v3894
    %6543 = vmatprep.subr.mxu0 %v3891
    %6544 = vmatpush1.msra.mxu0 %v3890
    %6545 = vmatprep.subr.mxu0 %v3887
    %6546 = vmatpush1.msra.mxu0 %v3886
    %6547 = vmatprep.subr.mxu0 %v3883
    %6548 = vmatpush1.msra.mxu0 %v3882
    %6549 = vmatprep.subr.mxu0 0.0
    %6550 = vmatpush2.msra.mxu0 0.0
    %6551 = vmatprep.subr.mxu0 0.0
    %6552 = vmatpush2.msra.mxu0 0.0
    %6553 = vmatprep.subr.mxu0 0.0
    %6554 = vmatpush2.msra.mxu0 0.0
    %6555 = vmatprep.subr.mxu0 0.0
    %6556 = vmatpush2.msra.mxu0 0.0
    %6557 = vmatprep.subr.mxu0 0.0
    %6558 = vmatpush2.msra.mxu0 0.0
    %6559 = vmatprep.subr.mxu0 0.0
    %6560 = vmatpush2.msra.mxu0 0.0
    %6561 = vmatprep.subr.mxu0 0.0
    %6562 = vmatpush2.msra.mxu0 0.0
    %6563 = vmatprep.subr.mxu0 0.0
    %6564 = vmatpush2.msra.mxu0 0.0
    %6565 = vmatprep.subr.mxu0 0.0
    %6566 = vmatpush2.msra.mxu0 0.0
    %6567 = vmatprep.subr.mxu0 0.0
    %6568 = vmatpush2.msra.mxu0 0.0
    %6569 = vmatprep.subr.mxu0 0.0
    %6570 = vmatpush2.msra.mxu0 0.0
    %6571 = vmatprep.subr.mxu0 0.0
    %6572 = vmatpush2.msra.mxu0 0.0
    %6573 = vmatprep.subr.mxu0 0.0
    %6574 = vmatpush2.msra.mxu0 0.0
    %6575 = vmatprep.subr.mxu0 0.0
    %6576 = vmatpush2.msra.mxu0 0.0
    %6577 = vmatprep.subr.mxu0 0.0
    %6578 = vmatpush2.msra.mxu0 0.0
    %6579 = vmatprep.subr.mxu0 0.0
    %6580 = vmatpush2.msra.mxu0 0.0
    %6581 = vmatprep.mubr.f32.mxu0 0.0
    %6582 = vmatmul.mubr.f32.gmra.mxu0 %v6444
    %v6583 = vpop.f32.mrf.mxu0
    %v6584 = vadd.f32 0.0, %v6583
    %v6585 = vpop.f32.mrf.mxu0
    %v6586 = vadd.f32 0.0, %v6585
    %6587 = vdwg.mxu0
    %v6588 = vmul.f32 %v6584, 1.442695
    %v6589 = vpow.pop %v6588
    %v6590 = vmul.f32 %v6586, 1.442695
    %v6591 = vpow.pop %v6590
    %v6592 = vmul.f32 %v6589, %v6441
    %v6593 = vmul.f32 %v6591, %v6442
    %v6594 = vadd.f32 %v6513, %v6592
    %v6595 = vadd.f32 %v6515, %v6593
    %v6596 = vmul.f32 %v4011, %v6594
    %v6597 = vmul.f32 %v4013, %v6595
    %6598 = vmatprep.subr.mxu0 0.0
    %6599 = vmatpush1.msra.mxu0 %v3919
    %6600 = vmatprep.subr.mxu0 0.0
    %6601 = vmatpush1.msra.mxu0 %v3918
    %6602 = vmatprep.subr.mxu0 0.0
    %6603 = vmatpush1.msra.mxu0 %v3917
    %6604 = vmatprep.subr.mxu0 0.0
    %6605 = vmatpush1.msra.mxu0 %v3916
    %6606 = vmatprep.subr.mxu0 0.0
    %6607 = vmatpush1.msra.mxu0 %v3915
    %6608 = vmatprep.subr.mxu0 0.0
    %6609 = vmatpush1.msra.mxu0 %v3914
    %6610 = vmatprep.subr.mxu0 0.0
    %6611 = vmatpush1.msra.mxu0 %v3913
    %6612 = vmatprep.subr.mxu0 0.0
    %6613 = vmatpush1.msra.mxu0 %v3912
    %6614 = vmatprep.subr.mxu0 0.0
    %6615 = vmatpush1.msra.mxu0 %v3911
    %6616 = vmatprep.subr.mxu0 0.0
    %6617 = vmatpush1.msra.mxu0 %v3910
    %6618 = vmatprep.subr.mxu0 0.0
    %6619 = vmatpush1.msra.mxu0 %v3909
    %6620 = vmatprep.subr.mxu0 0.0
    %6621 = vmatpush1.msra.mxu0 %v3908
    %6622 = vmatprep.subr.mxu0 0.0
    %6623 = vmatpush1.msra.mxu0 %v3907
    %6624 = vmatprep.subr.mxu0 0.0
    %6625 = vmatpush1.msra.mxu0 %v3906
    %6626 = vmatprep.subr.mxu0 0.0
    %6627 = vmatpush1.msra.mxu0 %v3905
    %6628 = vmatprep.subr.mxu0 0.0
    %6629 = vmatpush1.msra.mxu0 %v3904
    %6630 = vmatprep.subr.mxu0 0.0
    %6631 = vmatpush2.msra.mxu0 %v3935
    %6632 = vmatprep.subr.mxu0 0.0
    %6633 = vmatpush2.msra.mxu0 %v3934
    %6634 = vmatprep.subr.mxu0 0.0
    %6635 = vmatpush2.msra.mxu0 %v3933
    %6636 = vmatprep.subr.mxu0 0.0
    %6637 = vmatpush2.msra.mxu0 %v3932
    %6638 = vmatprep.subr.mxu0 0.0
    %6639 = vmatpush2.msra.mxu0 %v3931
    %6640 = vmatprep.subr.mxu0 0.0
    %6641 = vmatpush2.msra.mxu0 %v3930
    %6642 = vmatprep.subr.mxu0 0.0
    %6643 = vmatpush2.msra.mxu0 %v3929
    %6644 = vmatprep.subr.mxu0 0.0
    %6645 = vmatpush2.msra.mxu0 %v3928
    %6646 = vmatprep.subr.mxu0 0.0
    %6647 = vmatpush2.msra.mxu0 %v3927
    %6648 = vmatprep.subr.mxu0 0.0
    %6649 = vmatpush2.msra.mxu0 %v3926
    %6650 = vmatprep.subr.mxu0 0.0
    %6651 = vmatpush2.msra.mxu0 %v3925
    %6652 = vmatprep.subr.mxu0 0.0
    %6653 = vmatpush2.msra.mxu0 %v3924
    %6654 = vmatprep.subr.mxu0 0.0
    %6655 = vmatpush2.msra.mxu0 %v3923
    %6656 = vmatprep.subr.mxu0 0.0
    %6657 = vmatpush2.msra.mxu0 %v3922
    %6658 = vmatprep.subr.mxu0 0.0
    %6659 = vmatpush2.msra.mxu0 %v3921
    %6660 = vmatprep.subr.mxu0 0.0
    %6661 = vmatpush2.msra.mxu0 %v3920
    %6662 = vmatprep.mubr.f32.mxu0 %v6597
    %6663 = vmatmul.mubr.f32.gmra.mxu0 %v6596
    %v6664 = vpop.f32.mrf.mxu0
    %v6665 = vadd.f32 %v3942, %v6664
    %v6666 = vpop.f32.mrf.mxu0
    %6667 = vdwg.mxu0
    %v6668 = vsel %vm4242, %v6665, -inf
    %6669 = vmax.xlane.f32.xlu0 %v6668
    %v6670 = vpop.xlane.xlu0 %6669
    %v6671 = vsub.f32 %v6665, %v6670
    %v6672 = vmul.f32 %v6671, 1.442695
    %v6673 = vpow.pop %v6672
    %v6674 = vsel %vm4242, %v6673, 0.0
    %6675 = vadd.xlane.f32.xlu0 %v6674
    %v6676 = vpop.xlane.xlu0 %6675
    %v6677 = vrcp.pop %v6676
    %v6678 = vmul.f32 %v6673, %v6677
    %v6679 = vsub.f32 %v6678, %v3936
    %v6680 = vmul.f32 %v6679, 0.125
    %v6682 = vsel %vm4242, %v6680, 0
    %6684 = vmatprep.subr.mxu0 0.0
    %6685 = vmatpush1.xpose.msra.mxu0 %v4305
    %6686 = vmatprep.subr.mxu0 0.0
    %6687 = vmatpush1.xpose.msra.mxu0 %v4302
    %6688 = vmatprep.subr.mxu0 0.0
    %6689 = vmatpush1.xpose.msra.mxu0 %v4299
    %6690 = vmatprep.subr.mxu0 0.0
    %6691 = vmatpush1.xpose.msra.mxu0 %v4296
    %6692 = vmatprep.subr.mxu0 0.0
    %6693 = vmatpush1.xpose.msra.mxu0 %v4293
    %6694 = vmatprep.subr.mxu0 0.0
    %6695 = vmatpush1.xpose.msra.mxu0 %v4290
    %6696 = vmatprep.subr.mxu0 0.0
    %6697 = vmatpush1.xpose.msra.mxu0 %v4287
    %6698 = vmatprep.subr.mxu0 0.0
    %6699 = vmatpush1.xpose.msra.mxu0 %v4284
    %6700 = vmatprep.subr.mxu0 0.0
    %6701 = vmatpush1.xpose.msra.mxu0 %v4281
    %6702 = vmatprep.subr.mxu0 0.0
    %6703 = vmatpush1.xpose.msra.mxu0 %v4278
    %6704 = vmatprep.subr.mxu0 0.0
    %6705 = vmatpush1.xpose.msra.mxu0 %v4275
    %6706 = vmatprep.subr.mxu0 0.0
    %6707 = vmatpush1.xpose.msra.mxu0 %v4272
    %6708 = vmatprep.subr.mxu0 0.0
    %6709 = vmatpush1.xpose.msra.mxu0 %v4269
    %6710 = vmatprep.subr.mxu0 0.0
    %6711 = vmatpush1.xpose.msra.mxu0 %v4266
    %6712 = vmatprep.subr.mxu0 0.0
    %6713 = vmatpush1.xpose.msra.mxu0 %v4263
    %6714 = vmatprep.subr.mxu0 0.0
    %6715 = vmatpush1.xpose.msra.mxu0 %v4260
    %6716 = vmatprep.subr.mxu0 0.0
    %6717 = vmatpush2.xpose.msra.mxu0 %v4353
    %6718 = vmatprep.subr.mxu0 0.0
    %6719 = vmatpush2.xpose.msra.mxu0 %v4350
    %6720 = vmatprep.subr.mxu0 0.0
    %6721 = vmatpush2.xpose.msra.mxu0 %v4347
    %6722 = vmatprep.subr.mxu0 0.0
    %6723 = vmatpush2.xpose.msra.mxu0 %v4344
    %6724 = vmatprep.subr.mxu0 0.0
    %6725 = vmatpush2.xpose.msra.mxu0 %v4341
    %6726 = vmatprep.subr.mxu0 0.0
    %6727 = vmatpush2.xpose.msra.mxu0 %v4338
    %6728 = vmatprep.subr.mxu0 0.0
    %6729 = vmatpush2.xpose.msra.mxu0 %v4335
    %6730 = vmatprep.subr.mxu0 0.0
    %6731 = vmatpush2.xpose.msra.mxu0 %v4332
    %6732 = vmatprep.subr.mxu0 0.0
    %6733 = vmatpush2.xpose.msra.mxu0 %v4329
    %6734 = vmatprep.subr.mxu0 0.0
    %6735 = vmatpush2.xpose.msra.mxu0 %v4326
    %6736 = vmatprep.subr.mxu0 0.0
    %6737 = vmatpush2.xpose.msra.mxu0 %v4323
    %6738 = vmatprep.subr.mxu0 0.0
    %6739 = vmatpush2.xpose.msra.mxu0 %v4320
    %6740 = vmatprep.subr.mxu0 0.0
    %6741 = vmatpush2.xpose.msra.mxu0 %v4317
    %6742 = vmatprep.subr.mxu0 0.0
    %6743 = vmatpush2.xpose.msra.mxu0 %v4314
    %6744 = vmatprep.subr.mxu0 0.0
    %6745 = vmatpush2.xpose.msra.mxu0 %v4311
    %6746 = vmatprep.subr.mxu0 0.0
    %6747 = vmatpush2.xpose.msra.mxu0 %v4308
    %6748 = vmatprep.mubr.f32.mxu0 0.0
    %6749 = vmatmul.mubr.f32.gmra.mxu0 %v6682
    %v6750 = vpop.f32.mrf.mxu0
    %v6751 = vadd.f32 0.0, %v6750
    %v6752 = vpop.f32.mrf.mxu0
    %v6753 = vadd.f32 0.0, %v6752
    %6754 = vdwg.mxu0
    %v6755 = vmul.f32 %v4011, %v6751
    %v6756 = vmul.f32 %v4013, %v6753
    %v6757 = vstv %s3938
    %v6758 = vmul.f32 %v6757, %v6755
    %v6759 = vmul.f32 %v6757, %v6756
    %v6760 = vsub.f32 %v6594, %v6758
    %v6761 = vsub.f32 %v6595, %v6759
    %v6762 = vmul.f32 %v4011, %v6760
    %v6763 = vmul.f32 %v4013, %v6761
    %6764 = vmatprep.subr.mxu0 0.0
    %6765 = vmatpush1.msra.mxu0 %v3919
    %6766 = vmatprep.subr.mxu0 0.0
    %6767 = vmatpush1.msra.mxu0 %v3918
    %6768 = vmatprep.subr.mxu0 0.0
    %6769 = vmatpush1.msra.mxu0 %v3917
    %6770 = vmatprep.subr.mxu0 0.0
    %6771 = vmatpush1.msra.mxu0 %v3916
    %6772 = vmatprep.subr.mxu0 0.0
    %6773 = vmatpush1.msra.mxu0 %v3915
    %6774 = vmatprep.subr.mxu0 0.0
    %6775 = vmatpush1.msra.mxu0 %v3914
    %6776 = vmatprep.subr.mxu0 0.0
    %6777 = vmatpush1.msra.mxu0 %v3913
    %6778 = vmatprep.subr.mxu0 0.0
    %6779 = vmatpush1.msra.mxu0 %v3912
    %6780 = vmatprep.subr.mxu0 0.0
    %6781 = vmatpush1.msra.mxu0 %v3911
    %6782 = vmatprep.subr.mxu0 0.0
    %6783 = vmatpush1.msra.mxu0 %v3910
    %6784 = vmatprep.subr.mxu0 0.0
    %6785 = vmatpush1.msra.mxu0 %v3909
    %6786 = vmatprep.subr.mxu0 0.0
    %6787 = vmatpush1.msra.mxu0 %v3908
    %6788 = vmatprep.subr.mxu0 0.0
    %6789 = vmatpush1.msra.mxu0 %v3907
    %6790 = vmatprep.subr.mxu0 0.0
    %6791 = vmatpush1.msra.mxu0 %v3906
    %6792 = vmatprep.subr.mxu0 0.0
    %6793 = vmatpush1.msra.mxu0 %v3905
    %6794 = vmatprep.subr.mxu0 0.0
    %6795 = vmatpush1.msra.mxu0 %v3904
    %6796 = vmatprep.subr.mxu0 0.0
    %6797 = vmatpush2.msra.mxu0 %v3935
    %6798 = vmatprep.subr.mxu0 0.0
    %6799 = vmatpush2.msra.mxu0 %v3934
    %6800 = vmatprep.subr.mxu0 0.0
    %6801 = vmatpush2.msra.mxu0 %v3933
    %6802 = vmatprep.subr.mxu0 0.0
    %6803 = vmatpush2.msra.mxu0 %v3932
    %6804 = vmatprep.subr.mxu0 0.0
    %6805 = vmatpush2.msra.mxu0 %v3931
    %6806 = vmatprep.subr.mxu0 0.0
    %6807 = vmatpush2.msra.mxu0 %v3930
    %6808 = vmatprep.subr.mxu0 0.0
    %6809 = vmatpush2.msra.mxu0 %v3929
    %6810 = vmatprep.subr.mxu0 0.0
    %6811 = vmatpush2.msra.mxu0 %v3928
    %6812 = vmatprep.subr.mxu0 0.0
    %6813 = vmatpush2.msra.mxu0 %v3927
    %6814 = vmatprep.subr.mxu0 0.0
    %6815 = vmatpush2.msra.mxu0 %v3926
    %6816 = vmatprep.subr.mxu0 0.0
    %6817 = vmatpush2.msra.mxu0 %v3925
    %6818 = vmatprep.subr.mxu0 0.0
    %6819 = vmatpush2.msra.mxu0 %v3924
    %6820 = vmatprep.subr.mxu0 0.0
    %6821 = vmatpush2.msra.mxu0 %v3923
    %6822 = vmatprep.subr.mxu0 0.0
    %6823 = vmatpush2.msra.mxu0 %v3922
    %6824 = vmatprep.subr.mxu0 0.0
    %6825 = vmatpush2.msra.mxu0 %v3921
    %6826 = vmatprep.subr.mxu0 0.0
    %6827 = vmatpush2.msra.mxu0 %v3920
    %6828 = vmatprep.mubr.f32.mxu0 %v6763
    %6829 = vmatmul.mubr.f32.gmra.mxu0 %v6762
    %v6830 = vpop.f32.mrf.mxu0
    %v6831 = vadd.f32 %v3942, %v6830
    %v6832 = vpop.f32.mrf.mxu0
    %6833 = vdwg.mxu0
    %v6834 = vsel %vm4242, %v6831, -inf
    %6835 = vmax.xlane.f32.xlu0 %v6834
    %v6836 = vpop.xlane.xlu0 %6835
    %v6837 = vsub.f32 %v6831, %v6836
    %v6838 = vmul.f32 %v6837, 1.442695
    %v6839 = vpow.pop %v6838
    %v6840 = vsel %vm4242, %v6839, 0.0
    %6841 = vadd.xlane.f32.xlu0 %v6840
    %v6842 = vpop.xlane.xlu0 %6841
    %v6843 = vrcp.pop %v6842
    %v6844 = vmul.f32 %v6839, %v6843
    %v6845 = vsub.f32 %v6844, %v3936
    %v6846 = vmul.f32 %v6845, 0.125
    %v6848 = vsel %vm4242, %v6846, 0
    %6850 = vmatprep.subr.mxu0 0.0
    %6851 = vmatpush1.xpose.msra.mxu0 %v4305
    %6852 = vmatprep.subr.mxu0 0.0
    %6853 = vmatpush1.xpose.msra.mxu0 %v4302
    %6854 = vmatprep.subr.mxu0 0.0
    %6855 = vmatpush1.xpose.msra.mxu0 %v4299
    %6856 = vmatprep.subr.mxu0 0.0
    %6857 = vmatpush1.xpose.msra.mxu0 %v4296
    %6858 = vmatprep.subr.mxu0 0.0
    %6859 = vmatpush1.xpose.msra.mxu0 %v4293
    %6860 = vmatprep.subr.mxu0 0.0
    %6861 = vmatpush1.xpose.msra.mxu0 %v4290
    %6862 = vmatprep.subr.mxu0 0.0
    %6863 = vmatpush1.xpose.msra.mxu0 %v4287
    %6864 = vmatprep.subr.mxu0 0.0
    %6865 = vmatpush1.xpose.msra.mxu0 %v4284
    %6866 = vmatprep.subr.mxu0 0.0
    %6867 = vmatpush1.xpose.msra.mxu0 %v4281
    %6868 = vmatprep.subr.mxu0 0.0
    %6869 = vmatpush1.xpose.msra.mxu0 %v4278
    %6870 = vmatprep.subr.mxu0 0.0
    %6871 = vmatpush1.xpose.msra.mxu0 %v4275
    %6872 = vmatprep.subr.mxu0 0.0
    %6873 = vmatpush1.xpose.msra.mxu0 %v4272
    %6874 = vmatprep.subr.mxu0 0.0
    %6875 = vmatpush1.xpose.msra.mxu0 %v4269
    %6876 = vmatprep.subr.mxu0 0.0
    %6877 = vmatpush1.xpose.msra.mxu0 %v4266
    %6878 = vmatprep.subr.mxu0 0.0
    %6879 = vmatpush1.xpose.msra.mxu0 %v4263
    %6880 = vmatprep.subr.mxu0 0.0
    %6881 = vmatpush1.xpose.msra.mxu0 %v4260
    %6882 = vmatprep.subr.mxu0 0.0
    %6883 = vmatpush2.xpose.msra.mxu0 %v4353
    %6884 = vmatprep.subr.mxu0 0.0
    %6885 = vmatpush2.xpose.msra.mxu0 %v4350
    %6886 = vmatprep.subr.mxu0 0.0
    %6887 = vmatpush2.xpose.msra.mxu0 %v4347
    %6888 = vmatprep.subr.mxu0 0.0
    %6889 = vmatpush2.xpose.msra.mxu0 %v4344
    %6890 = vmatprep.subr.mxu0 0.0
    %6891 = vmatpush2.xpose.msra.mxu0 %v4341
    %6892 = vmatprep.subr.mxu0 0.0
    %6893 = vmatpush2.xpose.msra.mxu0 %v4338
    %6894 = vmatprep.subr.mxu0 0.0
    %6895 = vmatpush2.xpose.msra.mxu0 %v4335
    %6896 = vmatprep.subr.mxu0 0.0
    %6897 = vmatpush2.xpose.msra.mxu0 %v4332
    %6898 = vmatprep.subr.mxu0 0.0
    %6899 = vmatpush2.xpose.msra.mxu0 %v4329
    %6900 = vmatprep.subr.mxu0 0.0
    %6901 = vmatpush2.xpose.msra.mxu0 %v4326
    %6902 = vmatprep.subr.mxu0 0.0
    %6903 = vmatpush2.xpose.msra.mxu0 %v4323
    %6904 = vmatprep.subr.mxu0 0.0
    %6905 = vmatpush2.xpose.msra.mxu0 %v4320
    %6906 = vmatprep.subr.mxu0 0.0
    %6907 = vmatpush2.xpose.msra.mxu0 %v4317
    %6908 = vmatprep.subr.mxu0 0.0
    %6909 = vmatpush2.xpose.msra.mxu0 %v4314
    %6910 = vmatprep.subr.mxu0 0.0
    %6911 = vmatpush2.xpose.msra.mxu0 %v4311
    %6912 = vmatprep.subr.mxu0 0.0
    %6913 = vmatpush2.xpose.msra.mxu0 %v4308
    %6914 = vmatprep.mubr.f32.mxu0 0.0
    %6915 = vmatmul.mubr.f32.gmra.mxu0 %v6848
    %v6916 = vpop.f32.mrf.mxu0
    %v6917 = vadd.f32 0.0, %v6916
    %v6918 = vpop.f32.mrf.mxu0
    %v6919 = vadd.f32 0.0, %v6918
    %6920 = vdwg.mxu0
    %v6921 = vmul.f32 %v4011, %v6917
    %v6922 = vmul.f32 %v4013, %v6919
    %v6923 = vmul.f32 %v6757, %v6921
    %v6924 = vmul.f32 %v6757, %v6922
    %v6925 = vsub.f32 %v6760, %v6923
    %v6926 = vsub.f32 %v6761, %v6924
    %v6927 = vmul.f32 %v4011, %v6925
    %v6928 = vmul.f32 %v4013, %v6926
    %6929 = vmatprep.subr.mxu0 0.0
    %6930 = vmatpush1.msra.mxu0 %v3919
    %6931 = vmatprep.subr.mxu0 0.0
    %6932 = vmatpush1.msra.mxu0 %v3918
    %6933 = vmatprep.subr.mxu0 0.0
    %6934 = vmatpush1.msra.mxu0 %v3917
    %6935 = vmatprep.subr.mxu0 0.0
    %6936 = vmatpush1.msra.mxu0 %v3916
    %6937 = vmatprep.subr.mxu0 0.0
    %6938 = vmatpush1.msra.mxu0 %v3915
    %6939 = vmatprep.subr.mxu0 0.0
    %6940 = vmatpush1.msra.mxu0 %v3914
    %6941 = vmatprep.subr.mxu0 0.0
    %6942 = vmatpush1.msra.mxu0 %v3913
    %6943 = vmatprep.subr.mxu0 0.0
    %6944 = vmatpush1.msra.mxu0 %v3912
    %6945 = vmatprep.subr.mxu0 0.0
    %6946 = vmatpush1.msra.mxu0 %v3911
    %6947 = vmatprep.subr.mxu0 0.0
    %6948 = vmatpush1.msra.mxu0 %v3910
    %6949 = vmatprep.subr.mxu0 0.0
    %6950 = vmatpush1.msra.mxu0 %v3909
    %6951 = vmatprep.subr.mxu0 0.0
    %6952 = vmatpush1.msra.mxu0 %v3908
    %6953 = vmatprep.subr.mxu0 0.0
    %6954 = vmatpush1.msra.mxu0 %v3907
    %6955 = vmatprep.subr.mxu0 0.0
    %6956 = vmatpush1.msra.mxu0 %v3906
    %6957 = vmatprep.subr.mxu0 0.0
    %6958 = vmatpush1.msra.mxu0 %v3905
    %6959 = vmatprep.subr.mxu0 0.0
    %6960 = vmatpush1.msra.mxu0 %v3904
    %6961 = vmatprep.subr.mxu0 0.0
    %6962 = vmatpush2.msra.mxu0 %v3935
    %6963 = vmatprep.subr.mxu0 0.0
    %6964 = vmatpush2.msra.mxu0 %v3934
    %6965 = vmatprep.subr.mxu0 0.0
    %6966 = vmatpush2.msra.mxu0 %v3933
    %6967 = vmatprep.subr.mxu0 0.0
    %6968 = vmatpush2.msra.mxu0 %v3932
    %6969 = vmatprep.subr.mxu0 0.0
    %6970 = vmatpush2.msra.mxu0 %v3931
    %6971 = vmatprep.subr.mxu0 0.0
    %6972 = vmatpush2.msra.mxu0 %v3930
    %6973 = vmatprep.subr.mxu0 0.0
    %6974 = vmatpush2.msra.mxu0 %v3929
    %6975 = vmatprep.subr.mxu0 0.0
    %6976 = vmatpush2.msra.mxu0 %v3928
    %6977 = vmatprep.subr.mxu0 0.0
    %6978 = vmatpush2.msra.mxu0 %v3927
    %6979 = vmatprep.subr.mxu0 0.0
    %6980 = vmatpush2.msra.mxu0 %v3926
    %6981 = vmatprep.subr.mxu0 0.0
    %6982 = vmatpush2.msra.mxu0 %v3925
    %6983 = vmatprep.subr.mxu0 0.0
    %6984 = vmatpush2.msra.mxu0 %v3924
    %6985 = vmatprep.subr.mxu0 0.0
    %6986 = vmatpush2.msra.mxu0 %v3923
    %6987 = vmatprep.subr.mxu0 0.0
    %6988 = vmatpush2.msra.mxu0 %v3922
    %6989 = vmatprep.subr.mxu0 0.0
    %6990 = vmatpush2.msra.mxu0 %v3921
    %6991 = vmatprep.subr.mxu0 0.0
    %6992 = vmatpush2.msra.mxu0 %v3920
    %6993 = vmatprep.mubr.f32.mxu0 %v6928
    %6994 = vmatmul.mubr.f32.gmra.mxu0 %v6927
    %v6995 = vpop.f32.mrf.mxu0
    %v6996 = vadd.f32 %v3942, %v6995
    %v6997 = vpop.f32.mrf.mxu0
    %6998 = vdwg.mxu0
    %v6999 = vsel %vm4242, %v6996, -inf
    %7000 = vmax.xlane.f32.xlu0 %v6999
    %v7001 = vpop.xlane.xlu0 %7000
    %v7002 = vsub.f32 %v6996, %v7001
    %v7003 = vmul.f32 %v7002, 1.442695
    %v7004 = vpow.pop %v7003
    %v7005 = vsel %vm4242, %v7004, 0.0
    %7006 = vadd.xlane.f32.xlu0 %v7005
    %v7007 = vpop.xlane.xlu0 %7006
    %v7008 = vrcp.pop %v7007
    %v7009 = vmul.f32 %v7004, %v7008
    %v7010 = vsub.f32 %v7009, %v3936
    %v7011 = vmul.f32 %v7010, 0.125
    %v7013 = vsel %vm4242, %v7011, 0
    %7015 = vmatprep.subr.mxu0 0.0
    %7016 = vmatpush1.xpose.msra.mxu0 %v4305
    %7017 = vmatprep.subr.mxu0 0.0
    %7018 = vmatpush1.xpose.msra.mxu0 %v4302
    %7019 = vmatprep.subr.mxu0 0.0
    %7020 = vmatpush1.xpose.msra.mxu0 %v4299
    %7021 = vmatprep.subr.mxu0 0.0
    %7022 = vmatpush1.xpose.msra.mxu0 %v4296
    %7023 = vmatprep.subr.mxu0 0.0
    %7024 = vmatpush1.xpose.msra.mxu0 %v4293
    %7025 = vmatprep.subr.mxu0 0.0
    %7026 = vmatpush1.xpose.msra.mxu0 %v4290
    %7027 = vmatprep.subr.mxu0 0.0
    %7028 = vmatpush1.xpose.msra.mxu0 %v4287
    %7029 = vmatprep.subr.mxu0 0.0
    %7030 = vmatpush1.xpose.msra.mxu0 %v4284
    %7031 = vmatprep.subr.mxu0 0.0
    %7032 = vmatpush1.xpose.msra.mxu0 %v4281
    %7033 = vmatprep.subr.mxu0 0.0
    %7034 = vmatpush1.xpose.msra.mxu0 %v4278
    %7035 = vmatprep.subr.mxu0 0.0
    %7036 = vmatpush1.xpose.msra.mxu0 %v4275
    %7037 = vmatprep.subr.mxu0 0.0
    %7038 = vmatpush1.xpose.msra.mxu0 %v4272
    %7039 = vmatprep.subr.mxu0 0.0
    %7040 = vmatpush1.xpose.msra.mxu0 %v4269
    %7041 = vmatprep.subr.mxu0 0.0
    %7042 = vmatpush1.xpose.msra.mxu0 %v4266
    %7043 = vmatprep.subr.mxu0 0.0
    %7044 = vmatpush1.xpose.msra.mxu0 %v4263
    %7045 = vmatprep.subr.mxu0 0.0
    %7046 = vmatpush1.xpose.msra.mxu0 %v4260
    %7047 = vmatprep.subr.mxu0 0.0
    %7048 = vmatpush2.xpose.msra.mxu0 %v4353
    %7049 = vmatprep.subr.mxu0 0.0
    %7050 = vmatpush2.xpose.msra.mxu0 %v4350
    %7051 = vmatprep.subr.mxu0 0.0
    %7052 = vmatpush2.xpose.msra.mxu0 %v4347
    %7053 = vmatprep.subr.mxu0 0.0
    %7054 = vmatpush2.xpose.msra.mxu0 %v4344
    %7055 = vmatprep.subr.mxu0 0.0
    %7056 = vmatpush2.xpose.msra.mxu0 %v4341
    %7057 = vmatprep.subr.mxu0 0.0
    %7058 = vmatpush2.xpose.msra.mxu0 %v4338
    %7059 = vmatprep.subr.mxu0 0.0
    %7060 = vmatpush2.xpose.msra.mxu0 %v4335
    %7061 = vmatprep.subr.mxu0 0.0
    %7062 = vmatpush2.xpose.msra.mxu0 %v4332
    %7063 = vmatprep.subr.mxu0 0.0
    %7064 = vmatpush2.xpose.msra.mxu0 %v4329
    %7065 = vmatprep.subr.mxu0 0.0
    %7066 = vmatpush2.xpose.msra.mxu0 %v4326
    %7067 = vmatprep.subr.mxu0 0.0
    %7068 = vmatpush2.xpose.msra.mxu0 %v4323
    %7069 = vmatprep.subr.mxu0 0.0
    %7070 = vmatpush2.xpose.msra.mxu0 %v4320
    %7071 = vmatprep.subr.mxu0 0.0
    %7072 = vmatpush2.xpose.msra.mxu0 %v4317
    %7073 = vmatprep.subr.mxu0 0.0
    %7074 = vmatpush2.xpose.msra.mxu0 %v4314
    %7075 = vmatprep.subr.mxu0 0.0
    %7076 = vmatpush2.xpose.msra.mxu0 %v4311
    %7077 = vmatprep.subr.mxu0 0.0
    %7078 = vmatpush2.xpose.msra.mxu0 %v4308
    %7079 = vmatprep.mubr.f32.mxu0 0.0
    %7080 = vmatmul.mubr.f32.gmra.mxu0 %v7013
    %v7081 = vpop.f32.mrf.mxu0
    %v7082 = vadd.f32 0.0, %v7081
    %v7083 = vpop.f32.mrf.mxu0
    %v7084 = vadd.f32 0.0, %v7083
    %7085 = vdwg.mxu0
    %v7086 = vmul.f32 %v4011, %v7082
    %v7087 = vmul.f32 %v4013, %v7084
    %v7088 = vmul.f32 %v6757, %v7086
    %v7089 = vmul.f32 %v6757, %v7087
    %v7090 = vsub.f32 %v6925, %v7088
    %v7091 = vsub.f32 %v6926, %v7089
    %v7092 = vmul.f32 %v4011, %v7090
    %v7093 = vmul.f32 %v4013, %v7091
    %7094 = vmatprep.subr.mxu0 0.0
    %7095 = vmatpush1.msra.mxu0 %v3919
    %7096 = vmatprep.subr.mxu0 0.0
    %7097 = vmatpush1.msra.mxu0 %v3918
    %7098 = vmatprep.subr.mxu0 0.0
    %7099 = vmatpush1.msra.mxu0 %v3917
    %7100 = vmatprep.subr.mxu0 0.0
    %7101 = vmatpush1.msra.mxu0 %v3916
    %7102 = vmatprep.subr.mxu0 0.0
    %7103 = vmatpush1.msra.mxu0 %v3915
    %7104 = vmatprep.subr.mxu0 0.0
    %7105 = vmatpush1.msra.mxu0 %v3914
    %7106 = vmatprep.subr.mxu0 0.0
    %7107 = vmatpush1.msra.mxu0 %v3913
    %7108 = vmatprep.subr.mxu0 0.0
    %7109 = vmatpush1.msra.mxu0 %v3912
    %7110 = vmatprep.subr.mxu0 0.0
    %7111 = vmatpush1.msra.mxu0 %v3911
    %7112 = vmatprep.subr.mxu0 0.0
    %7113 = vmatpush1.msra.mxu0 %v3910
    %7114 = vmatprep.subr.mxu0 0.0
    %7115 = vmatpush1.msra.mxu0 %v3909
    %7116 = vmatprep.subr.mxu0 0.0
    %7117 = vmatpush1.msra.mxu0 %v3908
    %7118 = vmatprep.subr.mxu0 0.0
    %7119 = vmatpush1.msra.mxu0 %v3907
    %7120 = vmatprep.subr.mxu0 0.0
    %7121 = vmatpush1.msra.mxu0 %v3906
    %7122 = vmatprep.subr.mxu0 0.0
    %7123 = vmatpush1.msra.mxu0 %v3905
    %7124 = vmatprep.subr.mxu0 0.0
    %7125 = vmatpush1.msra.mxu0 %v3904
    %7126 = vmatprep.subr.mxu0 0.0
    %7127 = vmatpush2.msra.mxu0 %v3935
    %7128 = vmatprep.subr.mxu0 0.0
    %7129 = vmatpush2.msra.mxu0 %v3934
    %7130 = vmatprep.subr.mxu0 0.0
    %7131 = vmatpush2.msra.mxu0 %v3933
    %7132 = vmatprep.subr.mxu0 0.0
    %7133 = vmatpush2.msra.mxu0 %v3932
    %7134 = vmatprep.subr.mxu0 0.0
    %7135 = vmatpush2.msra.mxu0 %v3931
    %7136 = vmatprep.subr.mxu0 0.0
    %7137 = vmatpush2.msra.mxu0 %v3930
    %7138 = vmatprep.subr.mxu0 0.0
    %7139 = vmatpush2.msra.mxu0 %v3929
    %7140 = vmatprep.subr.mxu0 0.0
    %7141 = vmatpush2.msra.mxu0 %v3928
    %7142 = vmatprep.subr.mxu0 0.0
    %7143 = vmatpush2.msra.mxu0 %v3927
    %7144 = vmatprep.subr.mxu0 0.0
    %7145 = vmatpush2.msra.mxu0 %v3926
    %7146 = vmatprep.subr.mxu0 0.0
    %7147 = vmatpush2.msra.mxu0 %v3925
    %7148 = vmatprep.subr.mxu0 0.0
    %7149 = vmatpush2.msra.mxu0 %v3924
    %7150 = vmatprep.subr.mxu0 0.0
    %7151 = vmatpush2.msra.mxu0 %v3923
    %7152 = vmatprep.subr.mxu0 0.0
    %7153 = vmatpush2.msra.mxu0 %v3922
    %7154 = vmatprep.subr.mxu0 0.0
    %7155 = vmatpush2.msra.mxu0 %v3921
    %7156 = vmatprep.subr.mxu0 0.0
    %7157 = vmatpush2.msra.mxu0 %v3920
    %7158 = vmatprep.mubr.f32.mxu0 %v7093
    %7159 = vmatmul.mubr.f32.gmra.mxu0 %v7092
    %v7160 = vpop.f32.mrf.mxu0
    %v7161 = vadd.f32 %v3942, %v7160
    %v7162 = vpop.f32.mrf.mxu0
    %7163 = vdwg.mxu0
    %v7164 = vsel %vm4242, %v7161, -inf
    %7165 = vmax.xlane.f32.xlu0 %v7164
    %v7166 = vpop.xlane.xlu0 %7165
    %v7167 = vsub.f32 %v7161, %v7166
    %v7168 = vmul.f32 %v7167, 1.442695
    %v7169 = vpow.pop %v7168
    %v7170 = vsel %vm4242, %v7169, 0.0
    %7171 = vadd.xlane.f32.xlu0 %v7170
    %v7172 = vpop.xlane.xlu0 %7171
    %v7173 = vrcp.pop %v7172
    %v7174 = vmul.f32 %v7169, %v7173
    %v7175 = vsub.f32 %v7174, %v3936
    %v7176 = vmul.f32 %v7175, 0.125
    %v7178 = vsel %vm4242, %v7176, 0
    %7180 = vmatprep.subr.mxu0 0.0
    %7181 = vmatpush1.xpose.msra.mxu0 %v4305
    %7182 = vmatprep.subr.mxu0 0.0
    %7183 = vmatpush1.xpose.msra.mxu0 %v4302
    %7184 = vmatprep.subr.mxu0 0.0
    %7185 = vmatpush1.xpose.msra.mxu0 %v4299
    %7186 = vmatprep.subr.mxu0 0.0
    %7187 = vmatpush1.xpose.msra.mxu0 %v4296
    %7188 = vmatprep.subr.mxu0 0.0
    %7189 = vmatpush1.xpose.msra.mxu0 %v4293
    %7190 = vmatprep.subr.mxu0 0.0
    %7191 = vmatpush1.xpose.msra.mxu0 %v4290
    %7192 = vmatprep.subr.mxu0 0.0
    %7193 = vmatpush1.xpose.msra.mxu0 %v4287
    %7194 = vmatprep.subr.mxu0 0.0
    %7195 = vmatpush1.xpose.msra.mxu0 %v4284
    %7196 = vmatprep.subr.mxu0 0.0
    %7197 = vmatpush1.xpose.msra.mxu0 %v4281
    %7198 = vmatprep.subr.mxu0 0.0
    %7199 = vmatpush1.xpose.msra.mxu0 %v4278
    %7200 = vmatprep.subr.mxu0 0.0
    %7201 = vmatpush1.xpose.msra.mxu0 %v4275
    %7202 = vmatprep.subr.mxu0 0.0
    %7203 = vmatpush1.xpose.msra.mxu0 %v4272
    %7204 = vmatprep.subr.mxu0 0.0
    %7205 = vmatpush1.xpose.msra.mxu0 %v4269
    %7206 = vmatprep.subr.mxu0 0.0
    %7207 = vmatpush1.xpose.msra.mxu0 %v4266
    %7208 = vmatprep.subr.mxu0 0.0
    %7209 = vmatpush1.xpose.msra.mxu0 %v4263
    %7210 = vmatprep.subr.mxu0 0.0
    %7211 = vmatpush1.xpose.msra.mxu0 %v4260
    %7212 = vmatprep.subr.mxu0 0.0
    %7213 = vmatpush2.xpose.msra.mxu0 %v4353
    %7214 = vmatprep.subr.mxu0 0.0
    %7215 = vmatpush2.xpose.msra.mxu0 %v4350
    %7216 = vmatprep.subr.mxu0 0.0
    %7217 = vmatpush2.xpose.msra.mxu0 %v4347
    %7218 = vmatprep.subr.mxu0 0.0
    %7219 = vmatpush2.xpose.msra.mxu0 %v4344
    %7220 = vmatprep.subr.mxu0 0.0
    %7221 = vmatpush2.xpose.msra.mxu0 %v4341
    %7222 = vmatprep.subr.mxu0 0.0
    %7223 = vmatpush2.xpose.msra.mxu0 %v4338
    %7224 = vmatprep.subr.mxu0 0.0
    %7225 = vmatpush2.xpose.msra.mxu0 %v4335
    %7226 = vmatprep.subr.mxu0 0.0
    %7227 = vmatpush2.xpose.msra.mxu0 %v4332
    %7228 = vmatprep.subr.mxu0 0.0
    %7229 = vmatpush2.xpose.msra.mxu0 %v4329
    %7230 = vmatprep.subr.mxu0 0.0
    %7231 = vmatpush2.xpose.msra.mxu0 %v4326
    %7232 = vmatprep.subr.mxu0 0.0
    %7233 = vmatpush2.xpose.msra.mxu0 %v4323
    %7234 = vmatprep.subr.mxu0 0.0
    %7235 = vmatpush2.xpose.msra.mxu0 %v4320
    %7236 = vmatprep.subr.mxu0 0.0
    %7237 = vmatpush2.xpose.msra.mxu0 %v4317
    %7238 = vmatprep.subr.mxu0 0.0
    %7239 = vmatpush2.xpose.msra.mxu0 %v4314
    %7240 = vmatprep.subr.mxu0 0.0
    %7241 = vmatpush2.xpose.msra.mxu0 %v4311
    %7242 = vmatprep.subr.mxu0 0.0
    %7243 = vmatpush2.xpose.msra.mxu0 %v4308
    %7244 = vmatprep.mubr.f32.mxu0 0.0
    %7245 = vmatmul.mubr.f32.gmra.mxu0 %v7178
    %v7246 = vpop.f32.mrf.mxu0
    %v7247 = vadd.f32 0.0, %v7246
    %v7248 = vpop.f32.mrf.mxu0
    %v7249 = vadd.f32 0.0, %v7248
    %7250 = vdwg.mxu0
    %v7251 = vmul.f32 %v4011, %v7247
    %v7252 = vmul.f32 %v4013, %v7249
    %v7253 = vmul.f32 %v6757, %v7251
    %v7254 = vmul.f32 %v6757, %v7252
    %v7255 = vsub.f32 %v7090, %v7253
    %v7256 = vsub.f32 %v7091, %v7254
    %v7257 = vmul.f32 %v4011, %v7255
    %v7258 = vmul.f32 %v4013, %v7256
    %7259 = vmatprep.subr.mxu0 0.0
    %7260 = vmatpush1.msra.mxu0 %v3919
    %7261 = vmatprep.subr.mxu0 0.0
    %7262 = vmatpush1.msra.mxu0 %v3918
    %7263 = vmatprep.subr.mxu0 0.0
    %7264 = vmatpush1.msra.mxu0 %v3917
    %7265 = vmatprep.subr.mxu0 0.0
    %7266 = vmatpush1.msra.mxu0 %v3916
    %7267 = vmatprep.subr.mxu0 0.0
    %7268 = vmatpush1.msra.mxu0 %v3915
    %7269 = vmatprep.subr.mxu0 0.0
    %7270 = vmatpush1.msra.mxu0 %v3914
    %7271 = vmatprep.subr.mxu0 0.0
    %7272 = vmatpush1.msra.mxu0 %v3913
    %7273 = vmatprep.subr.mxu0 0.0
    %7274 = vmatpush1.msra.mxu0 %v3912
    %7275 = vmatprep.subr.mxu0 0.0
    %7276 = vmatpush1.msra.mxu0 %v3911
    %7277 = vmatprep.subr.mxu0 0.0
    %7278 = vmatpush1.msra.mxu0 %v3910
    %7279 = vmatprep.subr.mxu0 0.0
    %7280 = vmatpush1.msra.mxu0 %v3909
    %7281 = vmatprep.subr.mxu0 0.0
    %7282 = vmatpush1.msra.mxu0 %v3908
    %7283 = vmatprep.subr.mxu0 0.0
    %7284 = vmatpush1.msra.mxu0 %v3907
    %7285 = vmatprep.subr.mxu0 0.0
    %7286 = vmatpush1.msra.mxu0 %v3906
    %7287 = vmatprep.subr.mxu0 0.0
    %7288 = vmatpush1.msra.mxu0 %v3905
    %7289 = vmatprep.subr.mxu0 0.0
    %7290 = vmatpush1.msra.mxu0 %v3904
    %7291 = vmatprep.subr.mxu0 0.0
    %7292 = vmatpush2.msra.mxu0 %v3935
    %7293 = vmatprep.subr.mxu0 0.0
    %7294 = vmatpush2.msra.mxu0 %v3934
    %7295 = vmatprep.subr.mxu0 0.0
    %7296 = vmatpush2.msra.mxu0 %v3933
    %7297 = vmatprep.subr.mxu0 0.0
    %7298 = vmatpush2.msra.mxu0 %v3932
    %7299 = vmatprep.subr.mxu0 0.0
    %7300 = vmatpush2.msra.mxu0 %v3931
    %7301 = vmatprep.subr.mxu0 0.0
    %7302 = vmatpush2.msra.mxu0 %v3930
    %7303 = vmatprep.subr.mxu0 0.0
    %7304 = vmatpush2.msra.mxu0 %v3929
    %7305 = vmatprep.subr.mxu0 0.0
    %7306 = vmatpush2.msra.mxu0 %v3928
    %7307 = vmatprep.subr.mxu0 0.0
    %7308 = vmatpush2.msra.mxu0 %v3927
    %7309 = vmatprep.subr.mxu0 0.0
    %7310 = vmatpush2.msra.mxu0 %v3926
    %7311 = vmatprep.subr.mxu0 0.0
    %7312 = vmatpush2.msra.mxu0 %v3925
    %7313 = vmatprep.subr.mxu0 0.0
    %7314 = vmatpush2.msra.mxu0 %v3924
    %7315 = vmatprep.subr.mxu0 0.0
    %7316 = vmatpush2.msra.mxu0 %v3923
    %7317 = vmatprep.subr.mxu0 0.0
    %7318 = vmatpush2.msra.mxu0 %v3922
    %7319 = vmatprep.subr.mxu0 0.0
    %7320 = vmatpush2.msra.mxu0 %v3921
    %7321 = vmatprep.subr.mxu0 0.0
    %7322 = vmatpush2.msra.mxu0 %v3920
    %7323 = vmatprep.mubr.f32.mxu0 %v7258
    %7324 = vmatmul.mubr.f32.gmra.mxu0 %v7257
    %v7325 = vpop.f32.mrf.mxu0
    %v7326 = vadd.f32 %v3942, %v7325
    %v7327 = vpop.f32.mrf.mxu0
    %7328 = vdwg.mxu0
    %v7329 = vsel %vm4242, %v7326, -inf
    %7330 = vmax.xlane.f32.xlu0 %v7329
    %v7331 = vpop.xlane.xlu0 %7330
    %v7332 = vsub.f32 %v7326, %v7331
    %v7333 = vmul.f32 %v7332, 1.442695
    %v7334 = vpow.pop %v7333
    %v7335 = vsel %vm4242, %v7334, 0.0
    %7336 = vadd.xlane.f32.xlu0 %v7335
    %v7337 = vpop.xlane.xlu0 %7336
    %v7338 = vrcp.pop %v7337
    %v7339 = vmul.f32 %v7334, %v7338
    %v7340 = vsub.f32 %v7339, %v3936
    %v7341 = vmul.f32 %v7340, 0.125
    %v7343 = vsel %vm4242, %v7341, 0
    %7345 = vmatprep.subr.mxu0 0.0
    %7346 = vmatpush1.xpose.msra.mxu0 %v4305
    %7347 = vmatprep.subr.mxu0 0.0
    %7348 = vmatpush1.xpose.msra.mxu0 %v4302
    %7349 = vmatprep.subr.mxu0 0.0
    %7350 = vmatpush1.xpose.msra.mxu0 %v4299
    %7351 = vmatprep.subr.mxu0 0.0
    %7352 = vmatpush1.xpose.msra.mxu0 %v4296
    %7353 = vmatprep.subr.mxu0 0.0
    %7354 = vmatpush1.xpose.msra.mxu0 %v4293
    %7355 = vmatprep.subr.mxu0 0.0
    %7356 = vmatpush1.xpose.msra.mxu0 %v4290
    %7357 = vmatprep.subr.mxu0 0.0
    %7358 = vmatpush1.xpose.msra.mxu0 %v4287
    %7359 = vmatprep.subr.mxu0 0.0
    %7360 = vmatpush1.xpose.msra.mxu0 %v4284
    %7361 = vmatprep.subr.mxu0 0.0
    %7362 = vmatpush1.xpose.msra.mxu0 %v4281
    %7363 = vmatprep.subr.mxu0 0.0
    %7364 = vmatpush1.xpose.msra.mxu0 %v4278
    %7365 = vmatprep.subr.mxu0 0.0
    %7366 = vmatpush1.xpose.msra.mxu0 %v4275
    %7367 = vmatprep.subr.mxu0 0.0
    %7368 = vmatpush1.xpose.msra.mxu0 %v4272
    %7369 = vmatprep.subr.mxu0 0.0
    %7370 = vmatpush1.xpose.msra.mxu0 %v4269
    %7371 = vmatprep.subr.mxu0 0.0
    %7372 = vmatpush1.xpose.msra.mxu0 %v4266
    %7373 = vmatprep.subr.mxu0 0.0
    %7374 = vmatpush1.xpose.msra.mxu0 %v4263
    %7375 = vmatprep.subr.mxu0 0.0
    %7376 = vmatpush1.xpose.msra.mxu0 %v4260
    %7377 = vmatprep.subr.mxu0 0.0
    %7378 = vmatpush2.xpose.msra.mxu0 %v4353
    %7379 = vmatprep.subr.mxu0 0.0
    %7380 = vmatpush2.xpose.msra.mxu0 %v4350
    %7381 = vmatprep.subr.mxu0 0.0
    %7382 = vmatpush2.xpose.msra.mxu0 %v4347
    %7383 = vmatprep.subr.mxu0 0.0
    %7384 = vmatpush2.xpose.msra.mxu0 %v4344
    %7385 = vmatprep.subr.mxu0 0.0
    %7386 = vmatpush2.xpose.msra.mxu0 %v4341
    %7387 = vmatprep.subr.mxu0 0.0
    %7388 = vmatpush2.xpose.msra.mxu0 %v4338
    %7389 = vmatprep.subr.mxu0 0.0
    %7390 = vmatpush2.xpose.msra.mxu0 %v4335
    %7391 = vmatprep.subr.mxu0 0.0
    %7392 = vmatpush2.xpose.msra.mxu0 %v4332
    %7393 = vmatprep.subr.mxu0 0.0
    %7394 = vmatpush2.xpose.msra.mxu0 %v4329
    %7395 = vmatprep.subr.mxu0 0.0
    %7396 = vmatpush2.xpose.msra.mxu0 %v4326
    %7397 = vmatprep.subr.mxu0 0.0
    %7398 = vmatpush2.xpose.msra.mxu0 %v4323
    %7399 = vmatprep.subr.mxu0 0.0
    %7400 = vmatpush2.xpose.msra.mxu0 %v4320
    %7401 = vmatprep.subr.mxu0 0.0
    %7402 = vmatpush2.xpose.msra.mxu0 %v4317
    %7403 = vmatprep.subr.mxu0 0.0
    %7404 = vmatpush2.xpose.msra.mxu0 %v4314
    %7405 = vmatprep.subr.mxu0 0.0
    %7406 = vmatpush2.xpose.msra.mxu0 %v4311
    %7407 = vmatprep.subr.mxu0 0.0
    %7408 = vmatpush2.xpose.msra.mxu0 %v4308
    %7409 = vmatprep.mubr.f32.mxu0 0.0
    %7410 = vmatmul.mubr.f32.gmra.mxu0 %v7343
    %v7411 = vpop.f32.mrf.mxu0
    %v7412 = vadd.f32 0.0, %v7411
    %v7413 = vpop.f32.mrf.mxu0
    %v7414 = vadd.f32 0.0, %v7413
    %7415 = vdwg.mxu0
    %v7416 = vmul.f32 %v4011, %v7412
    %v7417 = vmul.f32 %v4013, %v7414
    %v7418 = vmul.f32 %v6757, %v7416
    %v7419 = vmul.f32 %v6757, %v7417
    %v7420 = vsub.f32 %v7255, %v7418
    %v7421 = vsub.f32 %v7256, %v7419
    %7423 = vrot.lane.b32.xlu0 %v3668, 32
    %v7424 = vpop.permute.xlu0 %7423
    %v7425 = vsel %vm384, %v7424, 0
    %7427 = vmatprep.subr.mxu0 0.0
    %7428 = vmatpush1.msra.mxu0 0.0
    %7429 = vmatprep.subr.mxu0 0.0
    %7430 = vmatpush1.msra.mxu0 0.0
    %7431 = vmatprep.subr.mxu0 0.0
    %7432 = vmatpush1.msra.mxu0 0.0
    %7433 = vmatprep.subr.mxu0 0.0
    %7434 = vmatpush1.msra.mxu0 0.0
    %7435 = vmatprep.subr.mxu0 0.0
    %7436 = vmatpush1.msra.mxu0 0.0
    %7437 = vmatprep.subr.mxu0 0.0
    %7438 = vmatpush1.msra.mxu0 0.0
    %7439 = vmatprep.subr.mxu0 0.0
    %7440 = vmatpush1.msra.mxu0 0.0
    %7441 = vmatprep.subr.mxu0 0.0
    %7442 = vmatpush1.msra.mxu0 0.0
    %7443 = vmatprep.subr.mxu0 0.0
    %7444 = vmatpush1.msra.mxu0 0.0
    %7445 = vmatprep.subr.mxu0 0.0
    %7446 = vmatpush1.msra.mxu0 0.0
    %7447 = vmatprep.subr.mxu0 0.0
    %7448 = vmatpush1.msra.mxu0 0.0
    %7449 = vmatprep.subr.mxu0 0.0
    %7450 = vmatpush1.msra.mxu0 0.0
    %7451 = vmatprep.subr.mxu0 %v3903
    %7452 = vmatpush1.msra.mxu0 %v3902
    %7453 = vmatprep.subr.mxu0 %v3901
    %7454 = vmatpush1.msra.mxu0 %v3900
    %7455 = vmatprep.subr.mxu0 %v3899
    %7456 = vmatpush1.msra.mxu0 %v3898
    %7457 = vmatprep.subr.mxu0 %v3897
    %7458 = vmatpush1.msra.mxu0 %v3896
    %7459 = vmatprep.subr.mxu0 0.0
    %7460 = vmatpush2.msra.mxu0 0.0
    %7461 = vmatprep.subr.mxu0 0.0
    %7462 = vmatpush2.msra.mxu0 0.0
    %7463 = vmatprep.subr.mxu0 0.0
    %7464 = vmatpush2.msra.mxu0 0.0
    %7465 = vmatprep.subr.mxu0 0.0
    %7466 = vmatpush2.msra.mxu0 0.0
    %7467 = vmatprep.subr.mxu0 0.0
    %7468 = vmatpush2.msra.mxu0 0.0
    %7469 = vmatprep.subr.mxu0 0.0
    %7470 = vmatpush2.msra.mxu0 0.0
    %7471 = vmatprep.subr.mxu0 0.0
    %7472 = vmatpush2.msra.mxu0 0.0
    %7473 = vmatprep.subr.mxu0 0.0
    %7474 = vmatpush2.msra.mxu0 0.0
    %7475 = vmatprep.subr.mxu0 0.0
    %7476 = vmatpush2.msra.mxu0 0.0
    %7477 = vmatprep.subr.mxu0 0.0
    %7478 = vmatpush2.msra.mxu0 0.0
    %7479 = vmatprep.subr.mxu0 0.0
    %7480 = vmatpush2.msra.mxu0 0.0
    %7481 = vmatprep.subr.mxu0 0.0
    %7482 = vmatpush2.msra.mxu0 0.0
    %7483 = vmatprep.subr.mxu0 0.0
    %7484 = vmatpush2.msra.mxu0 0.0
    %7485 = vmatprep.subr.mxu0 0.0
    %7486 = vmatpush2.msra.mxu0 0.0
    %7487 = vmatprep.subr.mxu0 0.0
    %7488 = vmatpush2.msra.mxu0 0.0
    %7489 = vmatprep.subr.mxu0 0.0
    %7490 = vmatpush2.msra.mxu0 0.0
    %7491 = vmatprep.mubr.f32.mxu0 0.0
    %7492 = vmatmul.mubr.f32.gmra.mxu0 %v7425
    %v7493 = vpop.f32.mrf.mxu0
    %v7494 = vadd.f32 0.0, %v7493
    %v7495 = vpop.f32.mrf.mxu0
    %v7496 = vadd.f32 0.0, %v7495
    %7497 = vdwg.mxu0
    %v7498 = vmul.f32 %v7494, %v7420
    %v7499 = vmul.f32 %v7496, %v7421
    %7500 = vmatprep.subr.mxu0 0.0
    %7501 = vmatpush1.msra.mxu0 %v3919
    %7502 = vmatprep.subr.mxu0 0.0
    %7503 = vmatpush1.msra.mxu0 %v3918
    %7504 = vmatprep.subr.mxu0 0.0
    %7505 = vmatpush1.msra.mxu0 %v3917
    %7506 = vmatprep.subr.mxu0 0.0
    %7507 = vmatpush1.msra.mxu0 %v3916
    %7508 = vmatprep.subr.mxu0 0.0
    %7509 = vmatpush1.msra.mxu0 %v3915
    %7510 = vmatprep.subr.mxu0 0.0
    %7511 = vmatpush1.msra.mxu0 %v3914
    %7512 = vmatprep.subr.mxu0 0.0
    %7513 = vmatpush1.msra.mxu0 %v3913
    %7514 = vmatprep.subr.mxu0 0.0
    %7515 = vmatpush1.msra.mxu0 %v3912
    %7516 = vmatprep.subr.mxu0 0.0
    %7517 = vmatpush1.msra.mxu0 %v3911
    %7518 = vmatprep.subr.mxu0 0.0
    %7519 = vmatpush1.msra.mxu0 %v3910
    %7520 = vmatprep.subr.mxu0 0.0
    %7521 = vmatpush1.msra.mxu0 %v3909
    %7522 = vmatprep.subr.mxu0 0.0
    %7523 = vmatpush1.msra.mxu0 %v3908
    %7524 = vmatprep.subr.mxu0 0.0
    %7525 = vmatpush1.msra.mxu0 %v3907
    %7526 = vmatprep.subr.mxu0 0.0
    %7527 = vmatpush1.msra.mxu0 %v3906
    %7528 = vmatprep.subr.mxu0 0.0
    %7529 = vmatpush1.msra.mxu0 %v3905
    %7530 = vmatprep.subr.mxu0 0.0
    %7531 = vmatpush1.msra.mxu0 %v3904
    %7532 = vmatprep.subr.mxu0 0.0
    %7533 = vmatpush2.msra.mxu0 %v3935
    %7534 = vmatprep.subr.mxu0 0.0
    %7535 = vmatpush2.msra.mxu0 %v3934
    %7536 = vmatprep.subr.mxu0 0.0
    %7537 = vmatpush2.msra.mxu0 %v3933
    %7538 = vmatprep.subr.mxu0 0.0
    %7539 = vmatpush2.msra.mxu0 %v3932
    %7540 = vmatprep.subr.mxu0 0.0
    %7541 = vmatpush2.msra.mxu0 %v3931
    %7542 = vmatprep.subr.mxu0 0.0
    %7543 = vmatpush2.msra.mxu0 %v3930
    %7544 = vmatprep.subr.mxu0 0.0
    %7545 = vmatpush2.msra.mxu0 %v3929
    %7546 = vmatprep.subr.mxu0 0.0
    %7547 = vmatpush2.msra.mxu0 %v3928
    %7548 = vmatprep.subr.mxu0 0.0
    %7549 = vmatpush2.msra.mxu0 %v3927
    %7550 = vmatprep.subr.mxu0 0.0
    %7551 = vmatpush2.msra.mxu0 %v3926
    %7552 = vmatprep.subr.mxu0 0.0
    %7553 = vmatpush2.msra.mxu0 %v3925
    %7554 = vmatprep.subr.mxu0 0.0
    %7555 = vmatpush2.msra.mxu0 %v3924
    %7556 = vmatprep.subr.mxu0 0.0
    %7557 = vmatpush2.msra.mxu0 %v3923
    %7558 = vmatprep.subr.mxu0 0.0
    %7559 = vmatpush2.msra.mxu0 %v3922
    %7560 = vmatprep.subr.mxu0 0.0
    %7561 = vmatpush2.msra.mxu0 %v3921
    %7562 = vmatprep.subr.mxu0 0.0
    %7563 = vmatpush2.msra.mxu0 %v3920
    %7564 = vmatprep.mubr.f32.mxu0 %v7499
    %7565 = vmatmul.mubr.f32.gmra.mxu0 %v7498
    %v7566 = vpop.f32.mrf.mxu0
    %v7567 = vadd.f32 %v3942, %v7566
    %v7568 = vpop.f32.mrf.mxu0
    %7569 = vdwg.mxu0
    %v7570 = vld [vmem:[%s41] sm:$0xff]
    %v7571 = vsel %vm4242, %v7567, -inf
    %7572 = vmax.xlane.f32.xlu0 %v7571
    %v7573 = vpop.xlane.xlu0 %7572
    %v7574 = vsub.f32 %v7567, %v7573
    %v7575 = vmul.f32 %v7574, 1.442695
    %v7576 = vpow.pop %v7575
    %v7577 = vsel %vm4242, %v7576, 0.0
    %7578 = vadd.xlane.f32.xlu0 %v7577
    %v7579 = vpop.xlane.xlu0 %7578
    %v7580 = vlog2.pop %v7579
    %v7581 = vmul.f32 %v7580, 0.6931472
    %v7582 = vadd.f32 %v7573, %v7581
    %v7583 = vmul.f32 %v7567, %v7570
    %v7584 = vsel %vm4242, %v7583, 0.0
    %7585 = vadd.xlane.f32.xlu0 %v7584
    %v7586 = vpop.xlane.xlu0 %7585
    %v7587 = vsub.f32 %v7582, %v7586
    %v7588 = vadd.f32 %v7587, 0.0
    %v7589 = vrot.slane %v7588, 4
    %v7590 = vadd.f32 %v7588, %v7589
    %v7591 = vrot.slane %v7590, 2
    %v7592 = vadd.f32 %v7590, %v7591
    %v7593 = vrot.slane %v7592, 1
    %v7594 = vadd.f32 %v7592, %v7593
    %v7595 = vmul.f32 %v7594, 0.125
    %7596 = vst.msk [vmem:[#allocation4] sm:$0x1] %vm3878, %v7595
    %vm7597 = vcmp.ge.f32.partialorder %v7567, %v7573
    %v7598 = vsel %vm7597, %v3943, 8.0
    %v7599 = vsel %vm4242, %v7598, inf
    %7600 = vmin.xlane.f32.xlu0 %v7599
    %v7601 = vpop.xlane.xlu0 %7600
    %v7602 = vld [vmem:[%s43] sm:$0xff]
    %vm7603 = vcmp.eq.f32.partialorder %v7601, %v7602
    %v7604 = vsel %vm7603, 1, 0
    %v7605 = vcvt.s32.f32 %v7604
    %v7606 = vadd.f32 %v7605, 0.0
    %vm7607 = vcmask 7168
    %v7608 = vsel %vm7607, %v7606, 0.0
    %v7609 = vrot.slane %v7608, 4
    %v7610 = vadd.f32 %v7608, %v7609
    %v7611 = vrot.slane %v7610, 2
    %v7612 = vadd.f32 %v7610, %v7611
    %v7613 = vrot.slane %v7612, 1
    %v7614 = vadd.f32 %v7612, %v7613
    %v7615 = vmul.f32 %v7614, 0.125
    %7616 = vst.msk [vmem:[#allocation6] sm:$0x1] %vm3878, %v7615
    // Predicated region
    $region106: #{meta_forward.3} parent=1 // pred_check
      _
    $region107: #{meta_forward.3} parent=1 // pred_check_branch
      %7618 = sbr.rel (0) target = $region109
    $region108: #{meta_forward.3} parent=1 // pred_region
      %s7620 = ssub.s32 16, 16
      %7621 = vsyncadd [#allocation5], %s7620
      %s7623 = sshll.u32 [#allocation4], 4
      %s7624 = int_to_ptr.vmem [resolvable:$true] %s7623
      %7626 = dma.vmem_to_hbm [thread:$0]  %s7624, 16, %s53, [#allocation5]
    $region109: #{meta_forward.3} parent=1 // pred_fallthru
      _
    // Predicated region
    $region110: #{meta_forward.3} parent=1 // pred_check
      _
    $region111: #{meta_forward.3} parent=1 // pred_check_branch
      %7628 = sbr.rel (0) target = $region113
    $region112: #{meta_forward.3} parent=1 // pred_region
      %s7630 = ssub.s32 16, 16
      %7631 = vsyncadd [#allocation7], %s7630
      %s7633 = sshll.u32 [#allocation6], 4
      %s7634 = int_to_ptr.vmem [resolvable:$true] %s7633
      %7636 = dma.vmem_to_hbm [thread:$0]  %s7634, 16, %s55, [#allocation7]
    $region113: #{meta_forward.3} parent=1 // pred_fallthru
      _
    // Predicated region
    $region114: #{meta_forward.3} parent=1 // pred_check
      _
    $region115: #{meta_forward.3} parent=1 // pred_check_branch
      %7638 = sbr.rel (0) target = $region117
    $region116: #{meta_forward.3} parent=1 // pred_region
      %s7640 = ssub.s32 16, 16
      %7641 = vsyncadd [#allocation7], %s7640
      %s7643 = sshll.u32 [#allocation8], 4
      %s7644 = int_to_ptr.vmem [resolvable:$true] %s7643
      %7646 = dma.vmem_to_hbm [thread:$0]  %s7644, 16, %s57, [#allocation7]
    $region117: #{meta_forward.3} parent=1 // pred_fallthru
      _
    // Predicated region
    $region118: #{meta_forward.3} parent=1 // pred_check
      _
    $region119: #{meta_forward.3} parent=1 // pred_check_branch
      %7648 = sbr.rel (0) target = $region121
    $region120: #{meta_forward.3} parent=1 // pred_region
      %s7650 = ssub.s32 16, 16
      %7651 = vsyncadd [#allocation10], %s7650
      %s7653 = sshll.u32 [#allocation9], 4
      %s7654 = int_to_ptr.vmem [resolvable:$true] %s7653
      %7656 = dma.vmem_to_hbm [thread:$0]  %s7654, 16, %s59, [#allocation10]
    $region121: #{meta_forward.3} parent=1 // pred_fallthru
      _
    // Predicated region
    $region122: #{meta_forward.3} parent=1 // pred_check
      _
    $region123: #{meta_forward.3} parent=1 // pred_check_branch
      %7658 = sbr.rel (0) target = $region125
    $region124: #{meta_forward.3} parent=1 // pred_region
      %7659 = dma.done [#allocation5], 16
    $region125: #{meta_forward.3} parent=1 // pred_fallthru
      _
    // Predicated region
    $region126: #{meta_forward.3} parent=1 // pred_check
      _
    $region127: #{meta_forward.3} parent=1 // pred_check_branch
      %7661 = sbr.rel (0) target = $region129
    $region128: #{meta_forward.3} parent=1 // pred_region
      %7662 = dma.done [#allocation7], 16
    $region129: #{meta_forward.3} parent=1 // pred_fallthru
      _
    // Predicated region
    $region130: #{meta_forward.3} parent=1 // pred_check
      _
    $region131: #{meta_forward.3} parent=1 // pred_check_branch
      %7664 = sbr.rel (0) target = $region133
    $region132: #{meta_forward.3} parent=1 // pred_region
      %7665 = dma.done [#allocation7], 16
    $region133: #{meta_forward.3} parent=1 // pred_fallthru
      _
    // Predicated region
    $region134: #{meta_forward.3} parent=1 // pred_check
      _
    $region135: #{meta_forward.3} parent=1 // pred_check_branch
      %7667 = sbr.rel (0) target = $region137
    $region136: #{meta_forward.3} parent=1 // pred_region
      %7668 = dma.done [#allocation10], 16
    $region137: #{meta_forward.3} parent=1 // pred_fallthru
      _
    %7669 = vsyncpa [#allocation5], 1
    %7670 = vsyncpa [#allocation7], 1
    %7671 = vsyncpa [#allocation10], 1

</llo_original>
